<compile_context>
chip_gen: v6e
topology: v6e:2x2x1
jax: 0.10.0
libtpu: 0.0.40
codegen_flags: <defaults>
</compile_context>

<pallas_src>
import functools

import jax
import jax.numpy as jnp
from jax.experimental import pallas as pl
from jax.experimental.pallas import tpu as pltpu


def _round_up(x, m):
    return (x + m - 1) // m * m


def _subpixel_conv(body_ref, halo0_ref, halo1_ref, w_ref):
    """Fused Upsample(x2)+Conv3x3 on a source-row tile -> (ths*W, Cp) f32 acc.

    The x2-nearest upsample is folded into the weights (4*Cout sub-pixel output
    channels), so only the original-resolution image is ever read.  The 3x3 window is
    applied as 9 accumulating (rows, Cin) @ (Cin, Cp) MXU matmuls: no 9*Cin im2col
    concat (lane-sparse for small Cin, a large extra VMEM copy for big Cin).
    """
    ths = body_ref.shape[1]
    wp2 = body_ref.shape[2]
    cin = body_ref.shape[3]
    wid = wp2 - 2

    # (ths+2, W+2, Cin) halo'd tile assembled in VMEM from the three auto-pipelined
    # blocks; the 1-row halos are never duplicated in HBM.
    src = jnp.concatenate([body_ref[0], halo0_ref[0], halo1_ref[0]], axis=0)

    acc = None
    for sy in range(3):
        for sx in range(3):
            tap = src[sy:sy + ths, sx:sx + wid, :].reshape(ths * wid, cin)
            d = jnp.dot(tap, w_ref[sy * 3 + sx],
                        preferred_element_type=jnp.float32)
            acc = d if acc is None else acc + d
    return acc


def _stats_kernel(body_ref, halo0_ref, halo1_ref, w_ref, stats_ref):
    # Pass 1: per-tile BatchNorm partials.  Centering by the tile mean before squaring
    # (Chan-style partials) avoids the catastrophic cancellation of a global
    # E[x^2] - E[x]^2 reduction.
    acc = _subpixel_conv(body_ref, halo0_ref, halo1_ref, w_ref)
    inv_n = 1.0 / acc.shape[0]
    s = jnp.sum(acc, axis=0, keepdims=True)                 # (1, Cp)
    mu = s * inv_n
    m2 = jnp.sum((acc - mu) ** 2, axis=0, keepdims=True)    # (1, Cp)
    stats_ref[0] = jnp.concatenate([s, m2], axis=0)         # one lane-dense (2,Cp) store


def _conv_bn_lrelu_kernel(body_ref, halo0_ref, halo1_ref, w_ref,
                          scale_ref, shift_ref, out_ref):
    # Pass 2: recompute the conv tile (removes the (rows, Cp) HBM intermediate
    # entirely) and fuse BatchNorm affine + LeakyReLU.  Stores are lane-dense.
    acc = _subpixel_conv(body_ref, halo0_ref, halo1_ref, w_ref)
    y = acc * scale_ref[...] + shift_ref[...]
    out_ref[...] = jnp.where(y > 0, y, 0.01 * y)


@functools.partial(jax.jit, static_argnames=("eps", "compute_dtype", "target_rows"))
def up_conv_forward(x_nchw, w_oihw, bias, gamma, beta, *,
                    eps=1e-5, compute_dtype=jnp.bfloat16, target_rows=None):
    """Matches up_conv(ch_in, ch_out).forward(x) (training-mode BN) for NCHW input."""
    del bias  # exactly cancelled by the training-mode BatchNorm mean subtraction
    N, Cin, H, W = x_nchw.shape
    Cout = w_oihw.shape[0]
    H2, W2 = 2 * H, 2 * W
    Cp = _round_up(4 * Cout, 128)          # lane-dense sub-pixel channel slab
    rows = N * H * W

    # ---- source-row tile: target >= ~512-1K matmul rows per grid step, picked as the
    #      divisor of H closest to the target so every tile is full (exact BN stats
    #      without masking).  Halve the target on v7x (64 MiB VMEM, 2 TensorCores).
    if target_rows is None:
        target_rows = 1024
        try:
            if "7" in jax.devices()[0].device_kind.lower():
                target_rows = 512
        except Exception:
            pass
    ths_target = max(1, min(H, target_rows // max(W, 1)))
    ths = min((d for d in range(1, H + 1) if H % d == 0),
              key=lambda d: (abs(d - ths_target), -d))
    nT = H // ths

    # ---- fold Upsample(x2)+Conv3x3 into a source-resolution 3x3 conv producing
    #      4*Cout sub-pixel channels (tiny, done once in f32 on the weights).
    w_hwio = jnp.transpose(w_oihw, (2, 3, 1, 0)).astype(jnp.float32)   # (3,3,Ci,Co)
    smap = {(0, 0): 0, (0, 1): 1, (0, 2): 1, (1, 0): 1, (1, 1): 1, (1, 2): 2}
    w4 = jnp.zeros((3, 3, Cin, 2, 2, Cout), jnp.float32)
    for a in range(2):
        for b in range(2):
            for ky in range(3):
                for kx in range(3):
                    w4 = w4.at[smap[(a, ky)], smap[(b, kx)], :, a, b, :].add(
                        w_hwio[ky, kx])
    w4 = w4.reshape(9, Cin, 4 * Cout)
    w4 = jnp.pad(w4, ((0, 0), (0, 0), (0, Cp - 4 * Cout))).astype(compute_dtype)

    # ---- zero-padded NHWC source (bf16 for the MXU).  Neither the x2-upsampled image
    #      nor halo-duplicated tiles are ever materialized in HBM.
    x_nhwc = jnp.transpose(x_nchw, (0, 2, 3, 1)).astype(compute_dtype)
    x_pad = jnp.pad(x_nhwc, ((0, 0), (1, 1), (1, 1), (0, 0)))          # (N,H+2,W+2,Ci)

    # Overlapping 1-row halos expressed as two extra BlockSpecs on the SAME array.
    body_spec = pl.BlockSpec((1, ths, W + 2, Cin), lambda n, t: (n, t, 0, 0))
    halo0_spec = pl.BlockSpec((1, 1, W + 2, Cin),
                              lambda n, t: (n, t * ths + ths, 0, 0))
    halo1_spec = pl.BlockSpec((1, 1, W + 2, Cin),
                              lambda n, t: (n, t * ths + ths + 1, 0, 0))
    w_spec = pl.BlockSpec((9, Cin, Cp), lambda n, t: (0, 0, 0))

    itm = jnp.dtype(compute_dtype).itemsize
    tile_bytes = ((ths + 2) * (W + 2) * Cin * itm          # body + halo blocks
                  + 9 * Cin * Cp * itm                     # folded weights
                  + ths * W * Cp * 4                       # output tile
                  + 4 * Cp * 4)                            # stats / scale / shift
    vlim = int(min(max(2 * tile_bytes + ths * W * Cp * 4 + (4 << 20), 16 << 20),
                   64 << 20))
    cparams = pltpu.CompilerParams(
        dimension_semantics=("parallel", "parallel"),
        vmem_limit_bytes=vlim)

    # ---- pass 1: streaming BatchNorm partials (sum, centered sum of squares)
    stats = pl.pallas_call(
        _stats_kernel,
        out_shape=jax.ShapeDtypeStruct((N * nT, 2, Cp), jnp.float32),
        grid=(N, nT),
        in_specs=[body_spec, halo0_spec, halo1_spec, w_spec],
        out_specs=pl.BlockSpec((1, 2, Cp), lambda n, t: (n * nT + t, 0, 0)),
        compiler_params=cparams,
    )(x_pad, x_pad, x_pad, w4)

    # ---- tiny Chan-style merge of per-(tile, sub-pixel) partials + BN coefficients
    n_per = ths * W                                         # samples per partial
    s_g = stats[:, 0, :4 * Cout].reshape(-1, Cout)          # (N*nT*4, Cout)
    m2_g = stats[:, 1, :4 * Cout].reshape(-1, Cout)
    cnt = s_g.shape[0] * n_per                              # == N * H2 * W2
    mean = jnp.sum(s_g, axis=0) / cnt
    m2 = jnp.sum(m2_g, axis=0) + n_per * jnp.sum((s_g / n_per - mean) ** 2, axis=0)
    var = m2 / cnt                                          # biased batch variance
    scale_c = gamma.astype(jnp.float32) * jax.lax.rsqrt(var + eps)
    shift_c = beta.astype(jnp.float32) - mean * scale_c
    pad = Cp - 4 * Cout
    scale_sub = jnp.pad(jnp.tile(scale_c, 4), (0, pad)).reshape(1, Cp)
    shift_sub = jnp.pad(jnp.tile(shift_c, 4), (0, pad)).reshape(1, Cp)

    # ---- pass 2: conv recompute + fused BN affine + LeakyReLU, lane-dense stores
    out_flat = pl.pallas_call(
        _conv_bn_lrelu_kernel,
        out_shape=jax.ShapeDtypeStruct((rows, Cp), jnp.float32),
        grid=(N, nT),
        in_specs=[body_spec, halo0_spec, halo1_spec, w_spec,
                  pl.BlockSpec((1, Cp), lambda n, t: (0, 0)),
                  pl.BlockSpec((1, Cp), lambda n, t: (0, 0))],
        out_specs=pl.BlockSpec((ths * W, Cp), lambda n, t: (n * nT + t, 0)),
        compiler_params=cparams,
    )(x_pad, x_pad, x_pad, w4, scale_sub, shift_sub)

    # ---- depth-to-space + NCHW, folded into the single layout transform the module
    #      needs on the way out anyway.  (For Cout >= 128 this would instead be folded
    #      into the pass-2 store; lane-sparse and slower for this small Cout.)
    out_sub = out_flat[:, :4 * Cout].reshape(N, H, W, 2, 2, Cout)
    return jnp.transpose(out_sub, (0, 5, 1, 3, 2, 4)).reshape(N, Cout, H2, W2)


def _reference(x_nchw, w_oihw, bias, gamma, beta, eps=1e-5):
    """Pure-JAX f32 reference mirroring the PyTorch forward."""
    xu = jnp.repeat(jnp.repeat(x_nchw, 2, axis=2), 2, axis=3)
    y = jax.lax.conv_general_dilated(
        xu, w_oihw, window_strides=(1, 1), padding=((1, 1), (1, 1)),
        dimension_numbers=("NCHW", "OIHW", "NCHW"))
    y = y + bias[None, :, None, None]
    mu = jnp.mean(y, axis=(0, 2, 3), keepdims=True)
    var = jnp.mean((y - mu) ** 2, axis=(0, 2, 3), keepdims=True)
    yn = (y - mu) * jax.lax.rsqrt(var + eps)
    yn = yn * gamma[None, :, None, None] + beta[None, :, None, None]
    return jnp.where(yn > 0, yn, 0.01 * yn)


if __name__ == "__main__":
    # small shapes consistent with up_conv(ch_in=4, ch_out=8)
    N, Cin, Cout, H, W = 2, 4, 8, 16, 16

    key = jax.random.PRNGKey(0)
    kx, kw, kb, kg, kbe = jax.random.split(key, 5)
    x = jax.random.normal(kx, (N, Cin, H, W), jnp.float32)
    w = 0.1 * jax.random.normal(kw, (Cout, Cin, 3, 3), jnp.float32)   # OIHW
    b = 0.1 * jax.random.normal(kb, (Cout,), jnp.float32)
    gamma = 1.0 + 0.1 * jax.random.normal(kg, (Cout,), jnp.float32)
    beta = 0.1 * jax.random.normal(kbe, (Cout,), jnp.float32)

    ref = _reference(x, w, b, gamma, beta)

    # f32 compute path: tight check of the algorithm (weight folding, halo tiling,
    # two-pass BN, depth-to-space).
    out_f32 = jax.block_until_ready(
        up_conv_forward(x, w, b, gamma, beta, compute_dtype=jnp.float32))
    assert out_f32.shape == (N, Cout, 2 * H, 2 * W)
    err_f32 = float(jnp.max(jnp.abs(out_f32 - ref)))
    assert jnp.allclose(out_f32, ref, rtol=2e-3, atol=2e-3), err_f32

    # bf16 MXU path (default, per perf guidance): bf16-operand-level tolerance.
    out_bf16 = jax.block_until_ready(up_conv_forward(x, w, b, gamma, beta))
    assert out_bf16.shape == (N, Cout, 2 * H, 2 * W)
    err_bf16 = float(jnp.max(jnp.abs(out_bf16 - ref)))
    assert jnp.allclose(out_bf16, ref, rtol=5e-2, atol=5e-2), err_bf16

    print("KERNEL_OK")
</pallas_src>

<mosaic_0001>
module attributes {stable_mosaic.version = 11 : i64} {
  func.func @_stats_kernel(%arg0: i32, %arg1: i32, %arg2: memref<1x16x18x4xf32, #tpu.memory_space<vmem>>, %arg3: memref<1x1x18x4xf32, #tpu.memory_space<vmem>>, %arg4: memref<1x1x18x4xf32, #tpu.memory_space<vmem>>, %arg5: memref<9x4x128xf32, #tpu.memory_space<vmem>>, %arg6: memref<1x2x128xf32, #tpu.memory_space<vmem>>) attributes {dimension_semantics = [#tpu.dimension_semantics<parallel>, #tpu.dimension_semantics<parallel>], iteration_bounds = array<i64: 2, 1>, scalar_prefetch = 0 : i64, scratch_operands = 0 : i64, tpu.core_type = #tpu.core_type<tc>, window_params = [{transform_indices = @transform_0, window_bounds = array<i64: 1, 16, 18, 4>}, {transform_indices = @transform_1, window_bounds = array<i64: 1, 1, 18, 4>}, {transform_indices = @transform_2, window_bounds = array<i64: 1, 1, 18, 4>}, {pipeline_mode = #tpu.pipeline_mode<synchronous>, transform_indices = @transform_3, window_bounds = array<i64: 9, 4, 128>}, {transform_indices = @transform_4, window_bounds = array<i64: 1, 2, 128>}]} {
    %c0 = arith.constant 0 : index
    %c0_0 = arith.constant 0 : index
    %c0_1 = arith.constant 0 : index
    %c0_2 = arith.constant 0 : index
    %0 = vector.load %arg2[%c0, %c0_0, %c0_1, %c0_2] : memref<1x16x18x4xf32, #tpu.memory_space<vmem>>, vector<1x16x18x4xf32>
    %1 = vector.shape_cast %0 : vector<1x16x18x4xf32> to vector<16x18x4xf32>
    %c0_3 = arith.constant 0 : index
    %c0_4 = arith.constant 0 : index
    %c0_5 = arith.constant 0 : index
    %c0_6 = arith.constant 0 : index
    %2 = vector.load %arg3[%c0_3, %c0_4, %c0_5, %c0_6] : memref<1x1x18x4xf32, #tpu.memory_space<vmem>>, vector<1x1x18x4xf32>
    %3 = vector.shape_cast %2 : vector<1x1x18x4xf32> to vector<1x18x4xf32>
    %c0_7 = arith.constant 0 : index
    %c0_8 = arith.constant 0 : index
    %c0_9 = arith.constant 0 : index
    %c0_10 = arith.constant 0 : index
    %4 = vector.load %arg4[%c0_7, %c0_8, %c0_9, %c0_10] : memref<1x1x18x4xf32, #tpu.memory_space<vmem>>, vector<1x1x18x4xf32>
    %5 = vector.shape_cast %4 : vector<1x1x18x4xf32> to vector<1x18x4xf32>
    %6 = tpu.concatenate %1, %3, %5 in 0 : vector<16x18x4xf32>, vector<1x18x4xf32>, vector<1x18x4xf32> -> vector<18x18x4xf32>
    %7 = vector.extract_strided_slice %6 {offsets = [0, 0, 0], sizes = [16, 16, 4], strides = [1, 1, 1]} : vector<18x18x4xf32> to vector<16x16x4xf32>
    %8 = vector.shape_cast %7 : vector<16x16x4xf32> to vector<256x4xf32>
    %c0_11 = arith.constant 0 : index
    %c0_12 = arith.constant 0 : index
    %c0_13 = arith.constant 0 : index
    %9 = vector.load %arg5[%c0_11, %c0_12, %c0_13] : memref<9x4x128xf32, #tpu.memory_space<vmem>>, vector<1x4x128xf32>
    %10 = vector.shape_cast %9 : vector<1x4x128xf32> to vector<4x128xf32>
    %cst = arith.constant dense<0.000000e+00> : vector<256x128xf32>
    %11 = tpu.matmul %8, %10, %cst {dimension_numbers = #tpu.dot_dimension_numbers<[1], [0], [0], [1], [0, 0, 1, 1], [], []>} : vector<256x4xf32>, vector<4x128xf32>, vector<256x128xf32> -> vector<256x128xf32>
    %12 = vector.extract_strided_slice %6 {offsets = [0, 1, 0], sizes = [16, 16, 4], strides = [1, 1, 1]} : vector<18x18x4xf32> to vector<16x16x4xf32>
    %13 = vector.shape_cast %12 : vector<16x16x4xf32> to vector<256x4xf32>
    %c1 = arith.constant 1 : index
    %c0_14 = arith.constant 0 : index
    %c0_15 = arith.constant 0 : index
    %14 = vector.load %arg5[%c1, %c0_14, %c0_15] : memref<9x4x128xf32, #tpu.memory_space<vmem>>, vector<1x4x128xf32>
    %15 = vector.shape_cast %14 : vector<1x4x128xf32> to vector<4x128xf32>
    %cst_16 = arith.constant dense<0.000000e+00> : vector<256x128xf32>
    %16 = tpu.matmul %13, %15, %cst_16 {dimension_numbers = #tpu.dot_dimension_numbers<[1], [0], [0], [1], [0, 0, 1, 1], [], []>} : vector<256x4xf32>, vector<4x128xf32>, vector<256x128xf32> -> vector<256x128xf32>
    %17 = arith.addf %11, %16 : vector<256x128xf32>
    %18 = vector.extract_strided_slice %6 {offsets = [0, 2, 0], sizes = [16, 16, 4], strides = [1, 1, 1]} : vector<18x18x4xf32> to vector<16x16x4xf32>
    %19 = vector.shape_cast %18 : vector<16x16x4xf32> to vector<256x4xf32>
    %c2 = arith.constant 2 : index
    %c0_17 = arith.constant 0 : index
    %c0_18 = arith.constant 0 : index
    %20 = vector.load %arg5[%c2, %c0_17, %c0_18] : memref<9x4x128xf32, #tpu.memory_space<vmem>>, vector<1x4x128xf32>
    %21 = vector.shape_cast %20 : vector<1x4x128xf32> to vector<4x128xf32>
    %cst_19 = arith.constant dense<0.000000e+00> : vector<256x128xf32>
    %22 = tpu.matmul %19, %21, %cst_19 {dimension_numbers = #tpu.dot_dimension_numbers<[1], [0], [0], [1], [0, 0, 1, 1], [], []>} : vector<256x4xf32>, vector<4x128xf32>, vector<256x128xf32> -> vector<256x128xf32>
    %23 = arith.addf %17, %22 : vector<256x128xf32>
    %24 = vector.extract_strided_slice %6 {offsets = [1, 0, 0], sizes = [16, 16, 4], strides = [1, 1, 1]} : vector<18x18x4xf32> to vector<16x16x4xf32>
    %25 = vector.shape_cast %24 : vector<16x16x4xf32> to vector<256x4xf32>
    %c3 = arith.constant 3 : index
    %c0_20 = arith.constant 0 : index
    %c0_21 = arith.constant 0 : index
    %26 = vector.load %arg5[%c3, %c0_20, %c0_21] : memref<9x4x128xf32, #tpu.memory_space<vmem>>, vector<1x4x128xf32>
    %27 = vector.shape_cast %26 : vector<1x4x128xf32> to vector<4x128xf32>
    %cst_22 = arith.constant dense<0.000000e+00> : vector<256x128xf32>
    %28 = tpu.matmul %25, %27, %cst_22 {dimension_numbers = #tpu.dot_dimension_numbers<[1], [0], [0], [1], [0, 0, 1, 1], [], []>} : vector<256x4xf32>, vector<4x128xf32>, vector<256x128xf32> -> vector<256x128xf32>
    %29 = arith.addf %23, %28 : vector<256x128xf32>
    %30 = vector.extract_strided_slice %6 {offsets = [1, 1, 0], sizes = [16, 16, 4], strides = [1, 1, 1]} : vector<18x18x4xf32> to vector<16x16x4xf32>
    %31 = vector.shape_cast %30 : vector<16x16x4xf32> to vector<256x4xf32>
    %c4 = arith.constant 4 : index
    %c0_23 = arith.constant 0 : index
    %c0_24 = arith.constant 0 : index
    %32 = vector.load %arg5[%c4, %c0_23, %c0_24] : memref<9x4x128xf32, #tpu.memory_space<vmem>>, vector<1x4x128xf32>
    %33 = vector.shape_cast %32 : vector<1x4x128xf32> to vector<4x128xf32>
    %cst_25 = arith.constant dense<0.000000e+00> : vector<256x128xf32>
    %34 = tpu.matmul %31, %33, %cst_25 {dimension_numbers = #tpu.dot_dimension_numbers<[1], [0], [0], [1], [0, 0, 1, 1], [], []>} : vector<256x4xf32>, vector<4x128xf32>, vector<256x128xf32> -> vector<256x128xf32>
    %35 = arith.addf %29, %34 : vector<256x128xf32>
    %36 = vector.extract_strided_slice %6 {offsets = [1, 2, 0], sizes = [16, 16, 4], strides = [1, 1, 1]} : vector<18x18x4xf32> to vector<16x16x4xf32>
    %37 = vector.shape_cast %36 : vector<16x16x4xf32> to vector<256x4xf32>
    %c5 = arith.constant 5 : index
    %c0_26 = arith.constant 0 : index
    %c0_27 = arith.constant 0 : index
    %38 = vector.load %arg5[%c5, %c0_26, %c0_27] : memref<9x4x128xf32, #tpu.memory_space<vmem>>, vector<1x4x128xf32>
    %39 = vector.shape_cast %38 : vector<1x4x128xf32> to vector<4x128xf32>
    %cst_28 = arith.constant dense<0.000000e+00> : vector<256x128xf32>
    %40 = tpu.matmul %37, %39, %cst_28 {dimension_numbers = #tpu.dot_dimension_numbers<[1], [0], [0], [1], [0, 0, 1, 1], [], []>} : vector<256x4xf32>, vector<4x128xf32>, vector<256x128xf32> -> vector<256x128xf32>
    %41 = arith.addf %35, %40 : vector<256x128xf32>
    %42 = vector.extract_strided_slice %6 {offsets = [2, 0, 0], sizes = [16, 16, 4], strides = [1, 1, 1]} : vector<18x18x4xf32> to vector<16x16x4xf32>
    %43 = vector.shape_cast %42 : vector<16x16x4xf32> to vector<256x4xf32>
    %c6 = arith.constant 6 : index
    %c0_29 = arith.constant 0 : index
    %c0_30 = arith.constant 0 : index
    %44 = vector.load %arg5[%c6, %c0_29, %c0_30] : memref<9x4x128xf32, #tpu.memory_space<vmem>>, vector<1x4x128xf32>
    %45 = vector.shape_cast %44 : vector<1x4x128xf32> to vector<4x128xf32>
    %cst_31 = arith.constant dense<0.000000e+00> : vector<256x128xf32>
    %46 = tpu.matmul %43, %45, %cst_31 {dimension_numbers = #tpu.dot_dimension_numbers<[1], [0], [0], [1], [0, 0, 1, 1], [], []>} : vector<256x4xf32>, vector<4x128xf32>, vector<256x128xf32> -> vector<256x128xf32>
    %47 = arith.addf %41, %46 : vector<256x128xf32>
    %48 = vector.extract_strided_slice %6 {offsets = [2, 1, 0], sizes = [16, 16, 4], strides = [1, 1, 1]} : vector<18x18x4xf32> to vector<16x16x4xf32>
    %49 = vector.shape_cast %48 : vector<16x16x4xf32> to vector<256x4xf32>
    %c7 = arith.constant 7 : index
    %c0_32 = arith.constant 0 : index
    %c0_33 = arith.constant 0 : index
    %50 = vector.load %arg5[%c7, %c0_32, %c0_33] : memref<9x4x128xf32, #tpu.memory_space<vmem>>, vector<1x4x128xf32>
    %51 = vector.shape_cast %50 : vector<1x4x128xf32> to vector<4x128xf32>
    %cst_34 = arith.constant dense<0.000000e+00> : vector<256x128xf32>
    %52 = tpu.matmul %49, %51, %cst_34 {dimension_numbers = #tpu.dot_dimension_numbers<[1], [0], [0], [1], [0, 0, 1, 1], [], []>} : vector<256x4xf32>, vector<4x128xf32>, vector<256x128xf32> -> vector<256x128xf32>
    %53 = arith.addf %47, %52 : vector<256x128xf32>
    %54 = vector.extract_strided_slice %6 {offsets = [2, 2, 0], sizes = [16, 16, 4], strides = [1, 1, 1]} : vector<18x18x4xf32> to vector<16x16x4xf32>
    %55 = vector.shape_cast %54 : vector<16x16x4xf32> to vector<256x4xf32>
    %c8 = arith.constant 8 : index
    %c0_35 = arith.constant 0 : index
    %c0_36 = arith.constant 0 : index
    %56 = vector.load %arg5[%c8, %c0_35, %c0_36] : memref<9x4x128xf32, #tpu.memory_space<vmem>>, vector<1x4x128xf32>
    %57 = vector.shape_cast %56 : vector<1x4x128xf32> to vector<4x128xf32>
    %cst_37 = arith.constant dense<0.000000e+00> : vector<256x128xf32>
    %58 = tpu.matmul %55, %57, %cst_37 {dimension_numbers = #tpu.dot_dimension_numbers<[1], [0], [0], [1], [0, 0, 1, 1], [], []>} : vector<256x4xf32>, vector<4x128xf32>, vector<256x128xf32> -> vector<256x128xf32>
    %59 = arith.addf %53, %58 : vector<256x128xf32>
    %cst_38 = arith.constant dense<0.000000e+00> : vector<128xf32>
    %60 = vector.multi_reduction <add>, %59, %cst_38 [0] : vector<256x128xf32> to vector<128xf32>
    %61 = vector.shape_cast %60 : vector<128xf32> to vector<1x128xf32>
    %cst_39 = arith.constant 3.906250e-03 : f32
    %62 = vector.broadcast %cst_39 : f32 to vector<1x128xf32>
    %63 = arith.mulf %61, %62 : vector<1x128xf32>
    %64 = vector.broadcast %63 : vector<1x128xf32> to vector<256x128xf32>
    %65 = arith.subf %59, %64 : vector<256x128xf32>
    %66 = arith.mulf %65, %65 : vector<256x128xf32>
    %cst_40 = arith.constant dense<0.000000e+00> : vector<128xf32>
    %67 = vector.multi_reduction <add>, %66, %cst_40 [0] : vector<256x128xf32> to vector<128xf32>
    %68 = vector.shape_cast %67 : vector<128xf32> to vector<1x128xf32>
    %69 = tpu.concatenate %61, %68 in 0 : vector<1x128xf32>, vector<1x128xf32> -> vector<2x128xf32>
    %c0_41 = arith.constant 0 : index
    %c0_42 = arith.constant 0 : index
    %c0_43 = arith.constant 0 : index
    %70 = vector.load %arg6[%c0_41, %c0_42, %c0_43] : memref<1x2x128xf32, #tpu.memory_space<vmem>>, vector<1x2x128xf32>
    %71 = vector.shape_cast %70 : vector<1x2x128xf32> to vector<2x128xf32>
    %72 = vector.shape_cast %69 : vector<2x128xf32> to vector<1x2x128xf32>
    tpu.vector_store %arg6[%c0_41, %c0_42, %c0_43], %72 {strides = array<i32>} : memref<1x2x128xf32, #tpu.memory_space<vmem>>, vector<1x2x128xf32>,
    return
  }
  func.func @transform_0(%arg0: i32, %arg1: i32) -> (i32, i32, i32, i32) {
    %c0_i32 = arith.constant 0 : i32
    %c0_i32_0 = arith.constant 0 : i32
    %c0_i32_1 = arith.constant 0 : i32
    return %arg0, %arg1, %c0_i32, %c0_i32_0 : i32, i32, i32, i32
  }
  func.func @transform_1(%arg0: i32, %arg1: i32) -> (i32, i32, i32, i32) {
    %c16_i32 = arith.constant 16 : i32
    %0 = arith.muli %arg1, %c16_i32 : i32
    %c16_i32_0 = arith.constant 16 : i32
    %1 = arith.addi %0, %c16_i32_0 : i32
    %c0_i32 = arith.constant 0 : i32
    %c0_i32_1 = arith.constant 0 : i32
    %c0_i32_2 = arith.constant 0 : i32
    return %arg0, %1, %c0_i32, %c0_i32_1 : i32, i32, i32, i32
  }
  func.func @transform_2(%arg0: i32, %arg1: i32) -> (i32, i32, i32, i32) {
    %c16_i32 = arith.constant 16 : i32
    %0 = arith.muli %arg1, %c16_i32 : i32
    %c16_i32_0 = arith.constant 16 : i32
    %1 = arith.addi %0, %c16_i32_0 : i32
    %c1_i32 = arith.constant 1 : i32
    %2 = arith.addi %1, %c1_i32 : i32
    %c0_i32 = arith.constant 0 : i32
    %c0_i32_1 = arith.constant 0 : i32
    %c0_i32_2 = arith.constant 0 : i32
    return %arg0, %2, %c0_i32, %c0_i32_1 : i32, i32, i32, i32
  }
  func.func @transform_3(%arg0: i32, %arg1: i32) -> (i32, i32, i32) {
    %c0_i32 = arith.constant 0 : i32
    %c0_i32_0 = arith.constant 0 : i32
    %c0_i32_1 = arith.constant 0 : i32
    %c0_i32_2 = arith.constant 0 : i32
    return %c0_i32, %c0_i32_0, %c0_i32_1 : i32, i32, i32
  }
  func.func @transform_4(%arg0: i32, %arg1: i32) -> (i32, i32, i32) {
    %c1_i32 = arith.constant 1 : i32
    %0 = arith.muli %arg0, %c1_i32 : i32
    %1 = arith.addi %0, %arg1 : i32
    %c0_i32 = arith.constant 0 : i32
    %c0_i32_0 = arith.constant 0 : i32
    %c0_i32_1 = arith.constant 0 : i32
    return %1, %c0_i32, %c0_i32_0 : i32, i32, i32
  }
}

module attributes {stable_mosaic.version = 11 : i64} {
  func.func @_conv_bn_lrelu_kernel(%arg0: i32, %arg1: i32, %arg2: memref<1x16x18x4xf32, #tpu.memory_space<vmem>>, %arg3: memref<1x1x18x4xf32, #tpu.memory_space<vmem>>, %arg4: memref<1x1x18x4xf32, #tpu.memory_space<vmem>>, %arg5: memref<9x4x128xf32, #tpu.memory_space<vmem>>, %arg6: memref<1x128xf32, #tpu.memory_space<vmem>>, %arg7: memref<1x128xf32, #tpu.memory_space<vmem>>, %arg8: memref<256x128xf32, #tpu.memory_space<vmem>>) attributes {dimension_semantics = [#tpu.dimension_semantics<parallel>, #tpu.dimension_semantics<parallel>], iteration_bounds = array<i64: 2, 1>, scalar_prefetch = 0 : i64, scratch_operands = 0 : i64, tpu.core_type = #tpu.core_type<tc>, window_params = [{transform_indices = @transform_0, window_bounds = array<i64: 1, 16, 18, 4>}, {transform_indices = @transform_1, window_bounds = array<i64: 1, 1, 18, 4>}, {transform_indices = @transform_2, window_bounds = array<i64: 1, 1, 18, 4>}, {pipeline_mode = #tpu.pipeline_mode<synchronous>, transform_indices = @transform_3, window_bounds = array<i64: 9, 4, 128>}, {pipeline_mode = #tpu.pipeline_mode<synchronous>, transform_indices = @transform_4, window_bounds = array<i64: 1, 128>}, {pipeline_mode = #tpu.pipeline_mode<synchronous>, transform_indices = @transform_5, window_bounds = array<i64: 1, 128>}, {transform_indices = @transform_6, window_bounds = array<i64: 256, 128>}]} {
    %c0 = arith.constant 0 : index
    %c0_0 = arith.constant 0 : index
    %c0_1 = arith.constant 0 : index
    %c0_2 = arith.constant 0 : index
    %0 = vector.load %arg2[%c0, %c0_0, %c0_1, %c0_2] : memref<1x16x18x4xf32, #tpu.memory_space<vmem>>, vector<1x16x18x4xf32>
    %1 = vector.shape_cast %0 : vector<1x16x18x4xf32> to vector<16x18x4xf32>
    %c0_3 = arith.constant 0 : index
    %c0_4 = arith.constant 0 : index
    %c0_5 = arith.constant 0 : index
    %c0_6 = arith.constant 0 : index
    %2 = vector.load %arg3[%c0_3, %c0_4, %c0_5, %c0_6] : memref<1x1x18x4xf32, #tpu.memory_space<vmem>>, vector<1x1x18x4xf32>
    %3 = vector.shape_cast %2 : vector<1x1x18x4xf32> to vector<1x18x4xf32>
    %c0_7 = arith.constant 0 : index
    %c0_8 = arith.constant 0 : index
    %c0_9 = arith.constant 0 : index
    %c0_10 = arith.constant 0 : index
    %4 = vector.load %arg4[%c0_7, %c0_8, %c0_9, %c0_10] : memref<1x1x18x4xf32, #tpu.memory_space<vmem>>, vector<1x1x18x4xf32>
    %5 = vector.shape_cast %4 : vector<1x1x18x4xf32> to vector<1x18x4xf32>
    %6 = tpu.concatenate %1, %3, %5 in 0 : vector<16x18x4xf32>, vector<1x18x4xf32>, vector<1x18x4xf32> -> vector<18x18x4xf32>
    %7 = vector.extract_strided_slice %6 {offsets = [0, 0, 0], sizes = [16, 16, 4], strides = [1, 1, 1]} : vector<18x18x4xf32> to vector<16x16x4xf32>
    %8 = vector.shape_cast %7 : vector<16x16x4xf32> to vector<256x4xf32>
    %c0_11 = arith.constant 0 : index
    %c0_12 = arith.constant 0 : index
    %c0_13 = arith.constant 0 : index
    %9 = vector.load %arg5[%c0_11, %c0_12, %c0_13] : memref<9x4x128xf32, #tpu.memory_space<vmem>>, vector<1x4x128xf32>
    %10 = vector.shape_cast %9 : vector<1x4x128xf32> to vector<4x128xf32>
    %cst = arith.constant dense<0.000000e+00> : vector<256x128xf32>
    %11 = tpu.matmul %8, %10, %cst {dimension_numbers = #tpu.dot_dimension_numbers<[1], [0], [0], [1], [0, 0, 1, 1], [], []>} : vector<256x4xf32>, vector<4x128xf32>, vector<256x128xf32> -> vector<256x128xf32>
    %12 = vector.extract_strided_slice %6 {offsets = [0, 1, 0], sizes = [16, 16, 4], strides = [1, 1, 1]} : vector<18x18x4xf32> to vector<16x16x4xf32>
    %13 = vector.shape_cast %12 : vector<16x16x4xf32> to vector<256x4xf32>
    %c1 = arith.constant 1 : index
    %c0_14 = arith.constant 0 : index
    %c0_15 = arith.constant 0 : index
    %14 = vector.load %arg5[%c1, %c0_14, %c0_15] : memref<9x4x128xf32, #tpu.memory_space<vmem>>, vector<1x4x128xf32>
    %15 = vector.shape_cast %14 : vector<1x4x128xf32> to vector<4x128xf32>
    %cst_16 = arith.constant dense<0.000000e+00> : vector<256x128xf32>
    %16 = tpu.matmul %13, %15, %cst_16 {dimension_numbers = #tpu.dot_dimension_numbers<[1], [0], [0], [1], [0, 0, 1, 1], [], []>} : vector<256x4xf32>, vector<4x128xf32>, vector<256x128xf32> -> vector<256x128xf32>
    %17 = arith.addf %11, %16 : vector<256x128xf32>
    %18 = vector.extract_strided_slice %6 {offsets = [0, 2, 0], sizes = [16, 16, 4], strides = [1, 1, 1]} : vector<18x18x4xf32> to vector<16x16x4xf32>
    %19 = vector.shape_cast %18 : vector<16x16x4xf32> to vector<256x4xf32>
    %c2 = arith.constant 2 : index
    %c0_17 = arith.constant 0 : index
    %c0_18 = arith.constant 0 : index
    %20 = vector.load %arg5[%c2, %c0_17, %c0_18] : memref<9x4x128xf32, #tpu.memory_space<vmem>>, vector<1x4x128xf32>
    %21 = vector.shape_cast %20 : vector<1x4x128xf32> to vector<4x128xf32>
    %cst_19 = arith.constant dense<0.000000e+00> : vector<256x128xf32>
    %22 = tpu.matmul %19, %21, %cst_19 {dimension_numbers = #tpu.dot_dimension_numbers<[1], [0], [0], [1], [0, 0, 1, 1], [], []>} : vector<256x4xf32>, vector<4x128xf32>, vector<256x128xf32> -> vector<256x128xf32>
    %23 = arith.addf %17, %22 : vector<256x128xf32>
    %24 = vector.extract_strided_slice %6 {offsets = [1, 0, 0], sizes = [16, 16, 4], strides = [1, 1, 1]} : vector<18x18x4xf32> to vector<16x16x4xf32>
    %25 = vector.shape_cast %24 : vector<16x16x4xf32> to vector<256x4xf32>
    %c3 = arith.constant 3 : index
    %c0_20 = arith.constant 0 : index
    %c0_21 = arith.constant 0 : index
    %26 = vector.load %arg5[%c3, %c0_20, %c0_21] : memref<9x4x128xf32, #tpu.memory_space<vmem>>, vector<1x4x128xf32>
    %27 = vector.shape_cast %26 : vector<1x4x128xf32> to vector<4x128xf32>
    %cst_22 = arith.constant dense<0.000000e+00> : vector<256x128xf32>
    %28 = tpu.matmul %25, %27, %cst_22 {dimension_numbers = #tpu.dot_dimension_numbers<[1], [0], [0], [1], [0, 0, 1, 1], [], []>} : vector<256x4xf32>, vector<4x128xf32>, vector<256x128xf32> -> vector<256x128xf32>
    %29 = arith.addf %23, %28 : vector<256x128xf32>
    %30 = vector.extract_strided_slice %6 {offsets = [1, 1, 0], sizes = [16, 16, 4], strides = [1, 1, 1]} : vector<18x18x4xf32> to vector<16x16x4xf32>
    %31 = vector.shape_cast %30 : vector<16x16x4xf32> to vector<256x4xf32>
    %c4 = arith.constant 4 : index
    %c0_23 = arith.constant 0 : index
    %c0_24 = arith.constant 0 : index
    %32 = vector.load %arg5[%c4, %c0_23, %c0_24] : memref<9x4x128xf32, #tpu.memory_space<vmem>>, vector<1x4x128xf32>
    %33 = vector.shape_cast %32 : vector<1x4x128xf32> to vector<4x128xf32>
    %cst_25 = arith.constant dense<0.000000e+00> : vector<256x128xf32>
    %34 = tpu.matmul %31, %33, %cst_25 {dimension_numbers = #tpu.dot_dimension_numbers<[1], [0], [0], [1], [0, 0, 1, 1], [], []>} : vector<256x4xf32>, vector<4x128xf32>, vector<256x128xf32> -> vector<256x128xf32>
    %35 = arith.addf %29, %34 : vector<256x128xf32>
    %36 = vector.extract_strided_slice %6 {offsets = [1, 2, 0], sizes = [16, 16, 4], strides = [1, 1, 1]} : vector<18x18x4xf32> to vector<16x16x4xf32>
    %37 = vector.shape_cast %36 : vector<16x16x4xf32> to vector<256x4xf32>
    %c5 = arith.constant 5 : index
    %c0_26 = arith.constant 0 : index
    %c0_27 = arith.constant 0 : index
    %38 = vector.load %arg5[%c5, %c0_26, %c0_27] : memref<9x4x128xf32, #tpu.memory_space<vmem>>, vector<1x4x128xf32>
    %39 = vector.shape_cast %38 : vector<1x4x128xf32> to vector<4x128xf32>
    %cst_28 = arith.constant dense<0.000000e+00> : vector<256x128xf32>
    %40 = tpu.matmul %37, %39, %cst_28 {dimension_numbers = #tpu.dot_dimension_numbers<[1], [0], [0], [1], [0, 0, 1, 1], [], []>} : vector<256x4xf32>, vector<4x128xf32>, vector<256x128xf32> -> vector<256x128xf32>
    %41 = arith.addf %35, %40 : vector<256x128xf32>
    %42 = vector.extract_strided_slice %6 {offsets = [2, 0, 0], sizes = [16, 16, 4], strides = [1, 1, 1]} : vector<18x18x4xf32> to vector<16x16x4xf32>
    %43 = vector.shape_cast %42 : vector<16x16x4xf32> to vector<256x4xf32>
    %c6 = arith.constant 6 : index
    %c0_29 = arith.constant 0 : index
    %c0_30 = arith.constant 0 : index
    %44 = vector.load %arg5[%c6, %c0_29, %c0_30] : memref<9x4x128xf32, #tpu.memory_space<vmem>>, vector<1x4x128xf32>
    %45 = vector.shape_cast %44 : vector<1x4x128xf32> to vector<4x128xf32>
    %cst_31 = arith.constant dense<0.000000e+00> : vector<256x128xf32>
    %46 = tpu.matmul %43, %45, %cst_31 {dimension_numbers = #tpu.dot_dimension_numbers<[1], [0], [0], [1], [0, 0, 1, 1], [], []>} : vector<256x4xf32>, vector<4x128xf32>, vector<256x128xf32> -> vector<256x128xf32>
    %47 = arith.addf %41, %46 : vector<256x128xf32>
    %48 = vector.extract_strided_slice %6 {offsets = [2, 1, 0], sizes = [16, 16, 4], strides = [1, 1, 1]} : vector<18x18x4xf32> to vector<16x16x4xf32>
    %49 = vector.shape_cast %48 : vector<16x16x4xf32> to vector<256x4xf32>
    %c7 = arith.constant 7 : index
    %c0_32 = arith.constant 0 : index
    %c0_33 = arith.constant 0 : index
    %50 = vector.load %arg5[%c7, %c0_32, %c0_33] : memref<9x4x128xf32, #tpu.memory_space<vmem>>, vector<1x4x128xf32>
    %51 = vector.shape_cast %50 : vector<1x4x128xf32> to vector<4x128xf32>
    %cst_34 = arith.constant dense<0.000000e+00> : vector<256x128xf32>
    %52 = tpu.matmul %49, %51, %cst_34 {dimension_numbers = #tpu.dot_dimension_numbers<[1], [0], [0], [1], [0, 0, 1, 1], [], []>} : vector<256x4xf32>, vector<4x128xf32>, vector<256x128xf32> -> vector<256x128xf32>
    %53 = arith.addf %47, %52 : vector<256x128xf32>
    %54 = vector.extract_strided_slice %6 {offsets = [2, 2, 0], sizes = [16, 16, 4], strides = [1, 1, 1]} : vector<18x18x4xf32> to vector<16x16x4xf32>
    %55 = vector.shape_cast %54 : vector<16x16x4xf32> to vector<256x4xf32>
    %c8 = arith.constant 8 : index
    %c0_35 = arith.constant 0 : index
    %c0_36 = arith.constant 0 : index
    %56 = vector.load %arg5[%c8, %c0_35, %c0_36] : memref<9x4x128xf32, #tpu.memory_space<vmem>>, vector<1x4x128xf32>
    %57 = vector.shape_cast %56 : vector<1x4x128xf32> to vector<4x128xf32>
    %cst_37 = arith.constant dense<0.000000e+00> : vector<256x128xf32>
    %58 = tpu.matmul %55, %57, %cst_37 {dimension_numbers = #tpu.dot_dimension_numbers<[1], [0], [0], [1], [0, 0, 1, 1], [], []>} : vector<256x4xf32>, vector<4x128xf32>, vector<256x128xf32> -> vector<256x128xf32>
    %59 = arith.addf %53, %58 : vector<256x128xf32>
    %c0_38 = arith.constant 0 : index
    %c0_39 = arith.constant 0 : index
    %60 = vector.load %arg6[%c0_38, %c0_39] : memref<1x128xf32, #tpu.memory_space<vmem>>, vector<1x128xf32>
    %61 = vector.broadcast %60 : vector<1x128xf32> to vector<256x128xf32>
    %62 = arith.mulf %59, %61 : vector<256x128xf32>
    %c0_40 = arith.constant 0 : index
    %c0_41 = arith.constant 0 : index
    %63 = vector.load %arg7[%c0_40, %c0_41] : memref<1x128xf32, #tpu.memory_space<vmem>>, vector<1x128xf32>
    %64 = vector.broadcast %63 : vector<1x128xf32> to vector<256x128xf32>
    %65 = arith.addf %62, %64 : vector<256x128xf32>
    %cst_42 = arith.constant 0.000000e+00 : f32
    %66 = vector.broadcast %cst_42 : f32 to vector<256x128xf32>
    %67 = arith.cmpf ogt, %65, %66 : vector<256x128xf32>
    %cst_43 = arith.constant 0.00999999977 : f32
    %68 = vector.broadcast %cst_43 : f32 to vector<256x128xf32>
    %69 = arith.mulf %68, %65 : vector<256x128xf32>
    %70 = arith.select %67, %65, %69 : vector<256x128xi1>, vector<256x128xf32>
    %c0_44 = arith.constant 0 : index
    %c0_45 = arith.constant 0 : index
    %71 = vector.load %arg8[%c0_44, %c0_45] : memref<256x128xf32, #tpu.memory_space<vmem>>, vector<256x128xf32>
    tpu.vector_store %arg8[%c0_44, %c0_45], %70 {strides = array<i32>} : memref<256x128xf32, #tpu.memory_space<vmem>>, vector<256x128xf32>,
    return
  }
  func.func @transform_0(%arg0: i32, %arg1: i32) -> (i32, i32, i32, i32) {
    %c0_i32 = arith.constant 0 : i32
    %c0_i32_0 = arith.constant 0 : i32
    %c0_i32_1 = arith.constant 0 : i32
    return %arg0, %arg1, %c0_i32, %c0_i32_0 : i32, i32, i32, i32
  }
  func.func @transform_1(%arg0: i32, %arg1: i32) -> (i32, i32, i32, i32) {
    %c16_i32 = arith.constant 16 : i32
    %0 = arith.muli %arg1, %c16_i32 : i32
    %c16_i32_0 = arith.constant 16 : i32
    %1 = arith.addi %0, %c16_i32_0 : i32
    %c0_i32 = arith.constant 0 : i32
    %c0_i32_1 = arith.constant 0 : i32
    %c0_i32_2 = arith.constant 0 : i32
    return %arg0, %1, %c0_i32, %c0_i32_1 : i32, i32, i32, i32
  }
  func.func @transform_2(%arg0: i32, %arg1: i32) -> (i32, i32, i32, i32) {
    %c16_i32 = arith.constant 16 : i32
    %0 = arith.muli %arg1, %c16_i32 : i32
    %c16_i32_0 = arith.constant 16 : i32
    %1 = arith.addi %0, %c16_i32_0 : i32
    %c1_i32 = arith.constant 1 : i32
    %2 = arith.addi %1, %c1_i32 : i32
    %c0_i32 = arith.constant 0 : i32
    %c0_i32_1 = arith.constant 0 : i32
    %c0_i32_2 = arith.constant 0 : i32
    return %arg0, %2, %c0_i32, %c0_i32_1 : i32, i32, i32, i32
  }
  func.func @transform_3(%arg0: i32, %arg1: i32) -> (i32, i32, i32) {
    %c0_i32 = arith.constant 0 : i32
    %c0_i32_0 = arith.constant 0 : i32
    %c0_i32_1 = arith.constant 0 : i32
    %c0_i32_2 = arith.constant 0 : i32
    return %c0_i32, %c0_i32_0, %c0_i32_1 : i32, i32, i32
  }
  func.func @transform_4(%arg0: i32, %arg1: i32) -> (i32, i32) {
    %c0_i32 = arith.constant 0 : i32
    %c0_i32_0 = arith.constant 0 : i32
    %c0_i32_1 = arith.constant 0 : i32
    return %c0_i32, %c0_i32_0 : i32, i32
  }
  func.func @transform_5(%arg0: i32, %arg1: i32) -> (i32, i32) {
    %c0_i32 = arith.constant 0 : i32
    %c0_i32_0 = arith.constant 0 : i32
    %c0_i32_1 = arith.constant 0 : i32
    return %c0_i32, %c0_i32_0 : i32, i32
  }
  func.func @transform_6(%arg0: i32, %arg1: i32) -> (i32, i32) {
    %c1_i32 = arith.constant 1 : i32
    %0 = arith.muli %arg0, %c1_i32 : i32
    %1 = arith.addi %0, %arg1 : i32
    %c0_i32 = arith.constant 0 : i32
    %c0_i32_0 = arith.constant 0 : i32
    return %1, %c0_i32 : i32, i32
  }
}

</mosaic_0001>

<llo_original>
// kernel: squeeze.74
$region0: #{squeeze.74}
  %s0 = inlined_call_operand.vmem [shape: f32[2,32], index: 0, kind: input, shape index: {}]
  %s1 = inlined_call_operand.vmem [shape: f32[8,8], index: 1, kind: output, shape index: {}]
  $region1: #{squeeze.74} parent=0
    #allocation0 [shape = 'u8[4096]{0}', space=vmem, size = 0x1000, scoped, tag = 'scoped mem for input reshape']
    %s3 = sshll.u32 1, 2
    %s4 = ssub.s32 %s3, 1
    %v5 = vld [vmem:[%s0] sm:%s4]
    %6 = vst [vmem:[#allocation0] sm:%s4] %v5
    %v7 = vld [vmem:[#allocation0] sm:$0x3]
    %vm8 = vcmask 64512
    %9 = vst.msk [vmem:[%s1] ss:$4 sm:$0x3] %vm8, %v7
    %v10 = vld [vmem:[#allocation0] sm:$0x3]
    %11 = vrot.lane.b32.xlu0 %v10, 120
    %v12 = vpop.permute.xlu0 %11
    %vm13 = vcmask 64512
    %s14 = scalar_lea.vmem %s1, 1
    %15 = vst.msk [vmem:[%s14] ss:$4 sm:$0x3] %vm13, %v12
    %v16 = vld [vmem:[#allocation0] sm:$0x3]
    %17 = vrot.lane.b32.xlu0 %v16, 112
    %v18 = vpop.permute.xlu0 %17
    %vm19 = vcmask 64512
    %s20 = scalar_lea.vmem %s1, 2
    %21 = vst.msk [vmem:[%s20] ss:$4 sm:$0x3] %vm19, %v18
    %v22 = vld [vmem:[#allocation0] sm:$0x3]
    %23 = vrot.lane.b32.xlu0 %v22, 104
    %v24 = vpop.permute.xlu0 %23
    %vm25 = vcmask 64512
    %s26 = scalar_lea.vmem %s1, 3
    %27 = vst.msk [vmem:[%s26] ss:$4 sm:$0x3] %vm25, %v24

// kernel: tile.18
$region0: #{tile.18}
  #allocation0 [shape = 's32[1]{0}', space=sflag, size = 0x4, scoped, tag = 'scoped memory for tile.18']
  %s0 = inlined_call_operand.vmem [shape: f32[8], index: 0, kind: input, shape index: {}]
  %s1 = inlined_call_operand.vmem [shape: f32[4,8], index: 1, kind: output, shape index: {}]
  // Predicated region
  $region2: #{tile.18} parent=0 // pred_check
    _
  $region3: #{tile.18} parent=0 // pred_check_branch
    %3 = sbr.rel (0) target = $region5
  $region4: #{tile.18} parent=0 // pred_region
    _
  $region5: #{tile.18} parent=0 // pred_fallthru
    _
  %v4 = vld [vmem:[%s0] ss:$0 sm:$0xff]
  %5 = vst [vmem:[%s1] sm:$0xf] %v4

// kernel: tile.19
$region0: #{tile.19}
  %s0 = inlined_call_operand.vmem [shape: f32[4,8], index: 0, kind: input, shape index: {}]
  %s1 = inlined_call_operand.vmem [shape: f32[32], index: 1, kind: output, shape index: {}]
  $region1: #{tile.19} parent=0
    #allocation0 [shape = 'u8[4096]{0}', space=vmem, size = 0x1000, scoped, tag = 'scoped mem for output reshape']
    #allocation1 [shape = 'u8[4096]{0}', space=vmem, size = 0x1000, scoped, tag = 'scoped mem for input reshape']
    %s3 = sshll.u32 1, 4
    %s4 = ssub.s32 %s3, 1
    %v5 = vld [vmem:[%s0] sm:%s4]
    %6 = vst [vmem:[#allocation1] sm:%s4] %v5
    %v7 = vld [vmem:[#allocation1] sm:$0x1]
    %vm8 = vcmask 64512
    %9 = vst.msk [vmem:[#allocation0] sm:$0x1] %vm8, %v7
    %s10 = scalar_lea.vmem [#allocation1], 3
    %v11 = vld [vmem:[%s10] sm:$0x1]
    %12 = vrot.lane.b32.xlu0 %v11, 24
    %v13 = vpop.permute.xlu0 %12
    %vm14 = vcmask 261312
    %15 = vst.msk [vmem:[#allocation0] sm:$0x1] %vm14, %v13
    %s16 = scalar_lea.vmem [#allocation1], 2
    %v17 = vld [vmem:[%s16] sm:$0x1]
    %18 = vrot.lane.b32.xlu0 %v17, 16
    %v19 = vpop.permute.xlu0 %18
    %vm20 = vcmask 195712
    %21 = vst.msk [vmem:[#allocation0] sm:$0x1] %vm20, %v19
    %s22 = scalar_lea.vmem [#allocation1], 1
    %v23 = vld [vmem:[%s22] sm:$0x1]
    %24 = vrot.lane.b32.xlu0 %v23, 8
    %v25 = vpop.permute.xlu0 %24
    %vm26 = vcmask 130112
    %27 = vst.msk [vmem:[#allocation0] sm:$0x1] %vm26, %v25
    %s29 = sshll.u32 1, 1
    %s30 = ssub.s32 %s29, 1
    %v32 = vld [vmem:[#allocation0] sm:%s30]
    %s33 = sshll.u32 1, 1
    %s34 = ssub.s32 %s33, 1
    %35 = vst [vmem:[%s1] sm:%s34] %v32

// kernel: up_conv_forward.2
$region0: #{up_conv_forward.2}
  #allocation0 [shape = 'u32[]', space=smem, size = 0x4, offset = 0x4, fixed_abs, tag = 'smem constant byte address 0x4 - core index']
  #allocation1 [shape = 'u32[144,128]{1,0:T(1,128)}', space=vmem, size = 0x12000, scoped, tag = 'internal scratch']
  %s0 = inlined_call_operand.vmem [shape: f32[2,18,18,4], index: 0, kind: input, shape index: {}, may-alias: {0,1,2}]
  %s1 = inlined_call_operand.vmem [shape: f32[2,18,18,4], index: 1, kind: input, shape index: {}, may-alias: {0,1,2}]
  %s2 = inlined_call_operand.vmem [shape: f32[2,18,18,4], index: 2, kind: input, shape index: {}, may-alias: {0,1,2}]
  %s3 = inlined_call_operand.vmem [shape: f32[9,4,128], index: 3, kind: input, shape index: {}]
  %s4 = inlined_call_operand.vmem [shape: f32[2,2,128], index: 4, kind: output, shape index: {}]
  %s5 = sld [smem:[#allocation0]]
  $region49: #{up_conv_forward.2} parent=0
    _
  %s7 = ssub.s32 1, %s5
  %s8 = scalar_select 0, %s7, %s5
  loop: start=0, step=1, limit=4
  $region2: #{up_conv_forward.2} parent=0 // loop_pre_header
    _
  $region3: #{up_conv_forward.2} parent=0 // loop_header
    %s10 = sphi 0, %s14
    %p11 = scmp.ge.s32.totalorder %s10, 4
    %s17 = sphi 0, %s29
    %s18 = sphi 0, %s25
    %s19 = sphi 0, %s17
    %s20 = sphi 0, %s18
    %s21 = sphi 0, %s19
    %s22 = sphi 0, %s20
    %s34 = sphi 0, %s36
    %s37 = sphi 0, %s34
    %s38 = sphi 0, %s37
    %s54 = sphi 0, %s38
    %s66 = sphi 0, %s68
    %s69 = sphi 0, %s66
    %s70 = sphi 0, %s69
    %s86 = sphi 0, %s70
    %s98 = sphi 0, %s100
    %s101 = sphi 0, %s98
    %s102 = sphi 0, %s101
    %s118 = sphi 0, %s102
    %s122 = sphi 0, %s122
    %s124 = sphi 0, %s122
    %s125 = sphi 0, %s124
    %s139 = sphi 0, %s125
    %s147 = sphi 0, %s149
    %s150 = sphi 0, %s147
    %s151 = sphi 0, %s150
    %s167 = sphi 0, %s151
  $region4: #{up_conv_forward.2} parent=0 // loop_header_branch
    %13 = sbr.rel (%p11) target = $region8
  $region5: #{up_conv_forward.2} parent=0 // loop_body
    %s15 = ssub.s32 %s10, 1
    %s16 = ssub.s32 %s10, 2
    %s23 = sadd.s32 1, %s18
    %p24 = scmp.ge.s32.totalorder %s23, 1
    %s25 = scalar_select %p24, 0, %s23
    %s26 = sadd.s32 1, %s17
    %s27 = scalar_select %p24, %s26, %s17
    %p28 = scmp.ge.s32.totalorder %s27, 2
    %s29 = scalar_select %p28, 0, %s27
    %s30 = ssub.s32 %s17, %s29
    %s31 = ssub.s32 %s18, %s25
    %s32 = sor.u32 %s30, %s31
    %p33 = scmp.eq.s32.totalorder %s32, 0
    %s35 = sadd.s32 %s34, 1
    %s36 = scalar_select %p33, %s34, %s35
    %p39 = pneg %p33
    %p40 = scmp.eq.s32.totalorder %s10, 1
    %p41 = por %p39, %p40
    %p42 = scmp.ne.s32.totalorder %s34, %s37
    %p43 = scmp.eq.s32.totalorder %s10, 0
    %p44 = por %p42, %p43
    %p45 = scmp.ne.s32.totalorder %s34, %s37
    %p46 = scmp.eq.s32.totalorder %s15, 1
    %p47 = por %p45, %p46
    %p48 = scmp.ne.s32.totalorder %s37, %s38
    %p49 = scmp.eq.s32.totalorder %s15, 0
    %p50 = por %p48, %p49
    %p51 = scmp.ne.s32.totalorder %s37, %s38
    %p52 = scmp.eq.s32.totalorder %s16, 1
    %p53 = por %p51, %p52
    %p55 = scmp.ne.s32.totalorder %s38, %s54
    %p56 = scmp.eq.s32.totalorder %s16, 0
    %p57 = por %p55, %p56
    %s58 = smul.u32 %s18, 16
    %s59 = sadd.s32 %s58, 16
    %s60 = smul.u32 %s25, 16
    %s61 = sadd.s32 %s60, 16
    %s62 = ssub.s32 %s17, %s29
    %s63 = ssub.s32 %s59, %s61
    %s64 = sor.u32 %s62, %s63
    %p65 = scmp.eq.s32.totalorder %s64, 0
    %s67 = sadd.s32 %s66, 1
    %s68 = scalar_select %p65, %s66, %s67
    %p71 = pneg %p65
    %p72 = scmp.eq.s32.totalorder %s10, 1
    %p73 = por %p71, %p72
    %p74 = scmp.ne.s32.totalorder %s66, %s69
    %p75 = scmp.eq.s32.totalorder %s10, 0
    %p76 = por %p74, %p75
    %p77 = scmp.ne.s32.totalorder %s66, %s69
    %p78 = scmp.eq.s32.totalorder %s15, 1
    %p79 = por %p77, %p78
    %p80 = scmp.ne.s32.totalorder %s69, %s70
    %p81 = scmp.eq.s32.totalorder %s15, 0
    %p82 = por %p80, %p81
    %p83 = scmp.ne.s32.totalorder %s69, %s70
    %p84 = scmp.eq.s32.totalorder %s16, 1
    %p85 = por %p83, %p84
    %p87 = scmp.ne.s32.totalorder %s70, %s86
    %p88 = scmp.eq.s32.totalorder %s16, 0
    %p89 = por %p87, %p88
    %s90 = smul.u32 %s18, 16
    %s91 = sadd.s32 %s90, 17
    %s92 = smul.u32 %s25, 16
    %s93 = sadd.s32 %s92, 17
    %s94 = ssub.s32 %s17, %s29
    %s95 = ssub.s32 %s91, %s93
    %s96 = sor.u32 %s94, %s95
    %p97 = scmp.eq.s32.totalorder %s96, 0
    %s99 = sadd.s32 %s98, 1
    %s100 = scalar_select %p97, %s98, %s99
    %p103 = pneg %p97
    %p104 = scmp.eq.s32.totalorder %s10, 1
    %p105 = por %p103, %p104
    %p106 = scmp.ne.s32.totalorder %s98, %s101
    %p107 = scmp.eq.s32.totalorder %s10, 0
    %p108 = por %p106, %p107
    %p109 = scmp.ne.s32.totalorder %s98, %s101
    %p110 = scmp.eq.s32.totalorder %s15, 1
    %p111 = por %p109, %p110
    %p112 = scmp.ne.s32.totalorder %s101, %s102
    %p113 = scmp.eq.s32.totalorder %s15, 0
    %p114 = por %p112, %p113
    %p115 = scmp.ne.s32.totalorder %s101, %s102
    %p116 = scmp.eq.s32.totalorder %s16, 1
    %p117 = por %p115, %p116
    %p119 = scmp.ne.s32.totalorder %s102, %s118
    %p120 = scmp.eq.s32.totalorder %s16, 0
    %p121 = por %p119, %p120
    %s123 = sadd.s32 %s122, 1
    %p126 = scmp.eq.s32.totalorder %s10, 1
    %p127 = scmp.ne.s32.totalorder %s122, %s124
    %p128 = scmp.eq.s32.totalorder %s10, 0
    %p129 = por %p127, %p128
    %p130 = scmp.ne.s32.totalorder %s122, %s124
    %p131 = scmp.eq.s32.totalorder %s15, 1
    %p132 = por %p130, %p131
    %p133 = scmp.ne.s32.totalorder %s124, %s125
    %p134 = scmp.eq.s32.totalorder %s15, 0
    %p135 = por %p133, %p134
    %p136 = scmp.ne.s32.totalorder %s124, %s125
    %p137 = scmp.eq.s32.totalorder %s16, 1
    %p138 = por %p136, %p137
    %p140 = scmp.ne.s32.totalorder %s125, %s139
    %p141 = scmp.eq.s32.totalorder %s16, 0
    %p142 = por %p140, %p141
    %s143 = sadd.s32 %s17, %s18
    %s144 = sadd.s32 %s29, %s25
    %s145 = ssub.s32 %s143, %s144
    %p146 = scmp.eq.s32.totalorder %s145, 0
    %s148 = sadd.s32 %s147, 1
    %s149 = scalar_select %p146, %s147, %s148
    %p152 = pneg %p146
    %p153 = scmp.eq.s32.totalorder %s10, 1
    %p154 = por %p152, %p153
    %p155 = scmp.ne.s32.totalorder %s147, %s150
    %p156 = scmp.eq.s32.totalorder %s10, 0
    %p157 = por %p155, %p156
    %p158 = scmp.ne.s32.totalorder %s147, %s150
    %p159 = scmp.eq.s32.totalorder %s15, 1
    %p160 = por %p158, %p159
    %p161 = scmp.ne.s32.totalorder %s150, %s151
    %p162 = scmp.eq.s32.totalorder %s15, 0
    %p163 = por %p161, %p162
    %p164 = scmp.ne.s32.totalorder %s150, %s151
    %p165 = scmp.eq.s32.totalorder %s16, 1
    %p166 = por %p164, %p165
    %p168 = scmp.ne.s32.totalorder %s151, %s167
    %p169 = scmp.eq.s32.totalorder %s16, 0
    %p170 = por %p168, %p169
    %p171 = scmp.le.s32.totalorder 1, %s10
    %p172 = scmp.lt.s32.totalorder %s10, 3
    %p173 = pnand %p171, %p172
    %p174 = pneg %p173
    // Predicated region
    $region9: #{up_conv_forward.2} parent=5 // pred_check
      _
    $region10: #{up_conv_forward.2} parent=5 // pred_check_branch
      %176 = sbr.rel (%p173) target = $region12
    $region11: #{up_conv_forward.2} parent=5 // pred_region
      %s177 = ssub.s32 %s10, 1
      // Predicated region
      $region13: #{up_conv_forward.2} parent=11 // pred_check
        %p178 = pneg %p135
      $region14: #{up_conv_forward.2} parent=11 // pred_check_branch
        %180 = sbr.rel (%p178) target = $region16
      $region15: #{up_conv_forward.2} parent=11 // pred_region
        _
      $region16: #{up_conv_forward.2} parent=11 // pred_fallthru
        _
    $region12: #{up_conv_forward.2} parent=5 // pred_fallthru
      _
    %p181 = scmp.lt.s32.totalorder %s10, 2
    // Predicated region
    $region17: #{up_conv_forward.2} parent=5 // pred_check
      %p182 = pneg %p181
    $region18: #{up_conv_forward.2} parent=5 // pred_check_branch
      %184 = sbr.rel (%p182) target = $region20
    $region19: #{up_conv_forward.2} parent=5 // pred_region
      // Predicated region
      $region21: #{up_conv_forward.2} parent=19 // pred_check
        %p185 = pneg %p44
      $region22: #{up_conv_forward.2} parent=19 // pred_check_branch
        %187 = sbr.rel (%p185) target = $region24
      $region23: #{up_conv_forward.2} parent=19 // pred_region
        %s188 = smul.u32 16, %s18
        %s189 = ssub.s32 18, %s188
        %p190 = scmp.lt.s32.totalorder %s189, 16
        %s191 = scalar_select %p190, %s189, 16
        %s192 = smul.u32 128, %s191
        %s193 = smul.u32 %s192, 3
        %p194 = scmp.lt.s32.totalorder %s17, 1
        %s195 = scalar_select %p194, %s17, 1
        %p196 = scmp.lt.s32.totalorder %s188, 17
        %s197 = scalar_select %p196, %s188, 17
        %s198 = smul.addr %s197, 3
        %s199 = smul.addr %s195, 54
        %s200 = sadd.s32 %s198, %s199
        %s201 = smul.addr %s200, 8
        %s202 = scalar_lea.vmem %s0, %s201
        %s203 = smul.u32 16, %s18
        %s204 = ssub.s32 18, %s203
        %p205 = scmp.lt.s32.totalorder %s204, 16
        %s206 = scalar_select %p205, %s204, 16
        %s207 = smul.u32 128, %s206
        %s208 = smul.u32 %s207, 3
      $region24: #{up_conv_forward.2} parent=19 // pred_fallthru
        _
      // Predicated region
      $region25: #{up_conv_forward.2} parent=19 // pred_check
        %p209 = pneg %p76
      $region26: #{up_conv_forward.2} parent=19 // pred_check_branch
        %211 = sbr.rel (%p209) target = $region28
      $region27: #{up_conv_forward.2} parent=19 // pred_region
        %s212 = smul.u32 %s18, 16
        %s213 = sadd.s32 %s212, 16
        %p214 = scmp.lt.s32.totalorder %s17, 1
        %s215 = scalar_select %p214, %s17, 1
        %p216 = scmp.lt.s32.totalorder %s213, 17
        %s217 = scalar_select %p216, %s213, 17
        %s218 = smul.addr %s217, 3
        %s219 = smul.addr %s215, 54
        %s220 = sadd.s32 %s218, %s219
        %s221 = smul.addr %s220, 8
        %s222 = scalar_lea.vmem %s1, %s221
        %s223 = smul.u32 %s18, 16
        %s224 = sadd.s32 %s223, 16
      $region28: #{up_conv_forward.2} parent=19 // pred_fallthru
        _
      // Predicated region
      $region29: #{up_conv_forward.2} parent=19 // pred_check
        %p225 = pneg %p108
      $region30: #{up_conv_forward.2} parent=19 // pred_check_branch
        %227 = sbr.rel (%p225) target = $region32
      $region31: #{up_conv_forward.2} parent=19 // pred_region
        %s228 = smul.u32 %s18, 16
        %s229 = sadd.s32 %s228, 17
        %p230 = scmp.lt.s32.totalorder %s17, 1
        %s231 = scalar_select %p230, %s17, 1
        %p232 = scmp.lt.s32.totalorder %s229, 17
        %s233 = scalar_select %p232, %s229, 17
        %s234 = smul.addr %s233, 3
        %s235 = smul.addr %s231, 54
        %s236 = sadd.s32 %s234, %s235
        %s237 = smul.addr %s236, 8
        %s238 = scalar_lea.vmem %s2, %s237
        %s239 = smul.u32 %s18, 16
        %s240 = sadd.s32 %s239, 17
      $region32: #{up_conv_forward.2} parent=19 // pred_fallthru
        _
    $region20: #{up_conv_forward.2} parent=5 // pred_fallthru
      _
    %p241 = scmp.le.s32.totalorder 1, %s10
    %p242 = scmp.lt.s32.totalorder %s10, 3
    %p243 = pnand %p241, %p242
    %p244 = pneg %p243
    // Predicated region
    $region33: #{up_conv_forward.2} parent=5 // pred_check
      _
    $region34: #{up_conv_forward.2} parent=5 // pred_check_branch
      %246 = sbr.rel (%p243) target = $region36
    $region35: #{up_conv_forward.2} parent=5 // pred_region
      %s247 = ssub.s32 %s10, 1
      %s248 = smul.u32 16, %s20
      %s249 = ssub.s32 18, %s248
      %p250 = scmp.lt.s32.totalorder %s249, 16
      %s251 = scalar_select %p250, %s249, 16
      %s252 = smul.u32 128, %s251
      %s253 = smul.u32 %s252, 3
      %p254 = scmp.lt.s32.totalorder %s19, 1
      %s255 = scalar_select %p254, %s19, 1
      %p256 = scmp.lt.s32.totalorder %s248, 17
      %s257 = scalar_select %p256, %s248, 17
      %s258 = smul.addr %s257, 3
      %s259 = smul.addr %s255, 54
      %s260 = sadd.s32 %s258, %s259
      %s261 = smul.addr %s260, 8
      %s262 = scalar_lea.vmem %s0, %s261
      %p263 = pneg %p50
      %p264 = pneg %p47
      %s265 = smul.u32 %s20, 16
      %s266 = sadd.s32 %s265, 16
      %p267 = scmp.lt.s32.totalorder %s19, 1
      %s268 = scalar_select %p267, %s19, 1
      %p269 = scmp.lt.s32.totalorder %s266, 17
      %s270 = scalar_select %p269, %s266, 17
      %s271 = smul.addr %s270, 3
      %s272 = smul.addr %s268, 54
      %s273 = sadd.s32 %s271, %s272
      %s274 = smul.addr %s273, 8
      %s275 = scalar_lea.vmem %s1, %s274
      %p276 = pneg %p82
      %p277 = pneg %p79
      %s278 = smul.u32 %s20, 16
      %s279 = sadd.s32 %s278, 17
      %p280 = scmp.lt.s32.totalorder %s19, 1
      %s281 = scalar_select %p280, %s19, 1
      %p282 = scmp.lt.s32.totalorder %s279, 17
      %s283 = scalar_select %p282, %s279, 17
      %s284 = smul.addr %s283, 3
      %s285 = smul.addr %s281, 54
      %s286 = sadd.s32 %s284, %s285
      %s287 = smul.addr %s286, 8
      %s288 = scalar_lea.vmem %s2, %s287
      %p289 = pneg %p114
      %p290 = pneg %p111
      %p291 = pneg %p135
      %p292 = pneg %p132
      %p293 = pneg %p163
      %p294 = pneg %p160
      %s295 = sadd.s32 %s19, %s20
      %p296 = scmp.lt.s32.totalorder %s295, 1
      %s297 = scalar_select %p296, %s295, 1
      %s298 = smul.addr %s297, 2
      %s299 = scalar_lea.vmem %s4, %s298
      %s300 = smul.u32 16, %s20
      %s301 = ssub.s32 18, %s300
      %p302 = scmp.lt.s32.totalorder %s301, 16
      %s303 = scalar_select %p302, %s301, 16
      %s304 = smul.u32 128, %s303
      %s305 = smul.u32 %s304, 3
      %p306 = scmp.lt.s32.totalorder %s19, 1
      %s307 = scalar_select %p306, %s19, 1
      %p308 = scmp.lt.s32.totalorder %s300, 17
      %s309 = scalar_select %p308, %s300, 17
      %s310 = smul.addr %s309, 3
      %s311 = smul.addr %s307, 54
      %s312 = sadd.s32 %s310, %s311
      %s313 = smul.addr %s312, 8
      %s314 = scalar_lea.vmem %s0, %s313
      %s315 = smul.u32 16, %s20
      %s316 = ssub.s32 18, %s315
      %p317 = scmp.lt.s32.totalorder %s316, 16
      %s318 = scalar_select %p317, %s316, 16
      %s319 = smul.u32 128, %s318
      %s320 = smul.u32 %s319, 3
      %s321 = smul.u32 %s20, 16
      %s322 = sadd.s32 %s321, 16
      %p323 = scmp.lt.s32.totalorder %s19, 1
      %s324 = scalar_select %p323, %s19, 1
      %p325 = scmp.lt.s32.totalorder %s322, 17
      %s326 = scalar_select %p325, %s322, 17
      %s327 = smul.addr %s326, 3
      %s328 = smul.addr %s324, 54
      %s329 = sadd.s32 %s327, %s328
      %s330 = smul.addr %s329, 8
      %s331 = scalar_lea.vmem %s1, %s330
      %s332 = smul.u32 %s20, 16
      %s333 = sadd.s32 %s332, 16
      %s334 = smul.u32 %s20, 16
      %s335 = sadd.s32 %s334, 17
      %p336 = scmp.lt.s32.totalorder %s19, 1
      %s337 = scalar_select %p336, %s19, 1
      %p338 = scmp.lt.s32.totalorder %s335, 17
      %s339 = scalar_select %p338, %s335, 17
      %s340 = smul.addr %s339, 3
      %s341 = smul.addr %s337, 54
      %s342 = sadd.s32 %s340, %s341
      %s343 = smul.addr %s342, 8
      %s344 = scalar_lea.vmem %s2, %s343
      %s345 = smul.u32 %s20, 16
      %s346 = sadd.s32 %s345, 17
      %s347 = sadd.s32 %s19, %s20
      %p348 = scmp.lt.s32.totalorder %s347, 1
      %s349 = scalar_select %p348, %s347, 1
      %s350 = smul.addr %s349, 2
      %s351 = scalar_lea.vmem %s4, %s350
      %s352 = sadd.s32 %s19, %s20
      %v353 = vld [vmem:[%s314] sm:$0xff]
      %v354 = vld [vmem:[%s314 + $0x8] sm:$0xff]
      %v355 = vld [vmem:[%s314 + $0x10] sm:$0x3]
      %v356 = vld [vmem:[%s314 + $0x18] sm:$0xff]
      %v357 = vld [vmem:[%s314 + $0x20] sm:$0xff]
      %v358 = vld [vmem:[%s314 + $0x28] sm:$0x3]
      %v359 = vld [vmem:[%s314 + $0x30] sm:$0xff]
      %v360 = vld [vmem:[%s314 + $0x38] sm:$0xff]
      %v361 = vld [vmem:[%s314 + $0x40] sm:$0x3]
      %v362 = vld [vmem:[%s314 + $0x48] sm:$0xff]
      %v363 = vld [vmem:[%s314 + $0x50] sm:$0xff]
      %v364 = vld [vmem:[%s314 + $0x58] sm:$0x3]
      %v365 = vld [vmem:[%s314 + $0x60] sm:$0xff]
      %v366 = vld [vmem:[%s314 + $0x68] sm:$0xff]
      %v367 = vld [vmem:[%s314 + $0x70] sm:$0x3]
      %v368 = vld [vmem:[%s314 + $0x78] sm:$0xff]
      %v369 = vld [vmem:[%s314 + $0x80] sm:$0xff]
      %v370 = vld [vmem:[%s314 + $0x88] sm:$0x3]
      %v371 = vld [vmem:[%s314 + $0x90] sm:$0xff]
      %v372 = vld [vmem:[%s314 + $0x98] sm:$0xff]
      %v373 = vld [vmem:[%s314 + $0xa0] sm:$0x3]
      %v374 = vld [vmem:[%s314 + $0xa8] sm:$0xff]
      %v375 = vld [vmem:[%s314 + $0xb0] sm:$0xff]
      %v376 = vld [vmem:[%s314 + $0xb8] sm:$0x3]
      %v377 = vld [vmem:[%s314 + $0xc0] sm:$0xff]
      %v378 = vld [vmem:[%s314 + $0xc8] sm:$0xff]
      %v379 = vld [vmem:[%s314 + $0xd0] sm:$0x3]
      %v380 = vld [vmem:[%s314 + $0xd8] sm:$0xff]
      %v381 = vld [vmem:[%s314 + $0xe0] sm:$0xff]
      %v382 = vld [vmem:[%s314 + $0xe8] sm:$0x3]
      %v383 = vld [vmem:[%s314 + $0xf0] sm:$0xff]
      %v384 = vld [vmem:[%s314 + $0xf8] sm:$0xff]
      %v385 = vld [vmem:[%s314 + $0x100] sm:$0x3]
      %v386 = vld [vmem:[%s314 + $0x108] sm:$0xff]
      %v387 = vld [vmem:[%s314 + $0x110] sm:$0xff]
      %v388 = vld [vmem:[%s314 + $0x118] sm:$0x3]
      %v389 = vld [vmem:[%s314 + $0x120] sm:$0xff]
      %v390 = vld [vmem:[%s314 + $0x128] sm:$0xff]
      %v391 = vld [vmem:[%s314 + $0x130] sm:$0x3]
      %v392 = vld [vmem:[%s314 + $0x138] sm:$0xff]
      %v393 = vld [vmem:[%s314 + $0x140] sm:$0xff]
      %v394 = vld [vmem:[%s314 + $0x148] sm:$0x3]
      %v395 = vld [vmem:[%s314 + $0x150] sm:$0xff]
      %v396 = vld [vmem:[%s314 + $0x158] sm:$0xff]
      %v397 = vld [vmem:[%s314 + $0x160] sm:$0x3]
      %v398 = vld [vmem:[%s314 + $0x168] sm:$0xff]
      %v399 = vld [vmem:[%s314 + $0x170] sm:$0xff]
      %v400 = vld [vmem:[%s314 + $0x178] sm:$0x3]
      %v401 = vld [vmem:[%s331] sm:$0xff]
      %v402 = vld [vmem:[%s331 + $0x8] sm:$0xff]
      %v403 = vld [vmem:[%s331 + $0x10] sm:$0x3]
      %v404 = vld [vmem:[%s344] sm:$0xff]
      %v405 = vld [vmem:[%s344 + $0x8] sm:$0xff]
      %v406 = vld [vmem:[%s344 + $0x10] sm:$0x3]
      %v407 = vld [vmem:[%s3] sm:$0xf]
      %vm456 = vcmask 1046528
      %v457 = vrot.slane %v353, 1
      %v458 = vrot.slane %v354, 1
      %v459 = vsel %vm456, %v457, %v458
      %v460 = vrot.slane %v355, 1
      %v461 = vsel %vm456, %v458, %v460
      %v462 = vrot.slane %v356, 1
      %v463 = vrot.slane %v357, 1
      %v464 = vsel %vm456, %v462, %v463
      %v465 = vrot.slane %v358, 1
      %v466 = vsel %vm456, %v463, %v465
      %v467 = vrot.slane %v359, 1
      %v468 = vrot.slane %v360, 1
      %v469 = vsel %vm456, %v467, %v468
      %v470 = vrot.slane %v361, 1
      %v471 = vsel %vm456, %v468, %v470
      %v472 = vrot.slane %v362, 1
      %v473 = vrot.slane %v363, 1
      %v474 = vsel %vm456, %v472, %v473
      %v475 = vrot.slane %v364, 1
      %v476 = vsel %vm456, %v473, %v475
      %v477 = vrot.slane %v365, 1
      %v478 = vrot.slane %v366, 1
      %v479 = vsel %vm456, %v477, %v478
      %v480 = vrot.slane %v367, 1
      %v481 = vsel %vm456, %v478, %v480
      %v482 = vrot.slane %v368, 1
      %v483 = vrot.slane %v369, 1
      %v484 = vsel %vm456, %v482, %v483
      %v485 = vrot.slane %v370, 1
      %v486 = vsel %vm456, %v483, %v485
      %v487 = vrot.slane %v371, 1
      %v488 = vrot.slane %v372, 1
      %v489 = vsel %vm456, %v487, %v488
      %v490 = vrot.slane %v373, 1
      %v491 = vsel %vm456, %v488, %v490
      %v492 = vrot.slane %v374, 1
      %v493 = vrot.slane %v375, 1
      %v494 = vsel %vm456, %v492, %v493
      %v495 = vrot.slane %v376, 1
      %v496 = vsel %vm456, %v493, %v495
      %v497 = vrot.slane %v377, 1
      %v498 = vrot.slane %v378, 1
      %v499 = vsel %vm456, %v497, %v498
      %v500 = vrot.slane %v379, 1
      %v501 = vsel %vm456, %v498, %v500
      %v502 = vrot.slane %v380, 1
      %v503 = vrot.slane %v381, 1
      %v504 = vsel %vm456, %v502, %v503
      %v505 = vrot.slane %v382, 1
      %v506 = vsel %vm456, %v503, %v505
      %v507 = vrot.slane %v383, 1
      %v508 = vrot.slane %v384, 1
      %v509 = vsel %vm456, %v507, %v508
      %v510 = vrot.slane %v385, 1
      %v511 = vsel %vm456, %v508, %v510
      %v512 = vrot.slane %v386, 1
      %v513 = vrot.slane %v387, 1
      %v514 = vsel %vm456, %v512, %v513
      %v515 = vrot.slane %v388, 1
      %v516 = vsel %vm456, %v513, %v515
      %v517 = vrot.slane %v389, 1
      %v518 = vrot.slane %v390, 1
      %v519 = vsel %vm456, %v517, %v518
      %v520 = vrot.slane %v391, 1
      %v521 = vsel %vm456, %v518, %v520
      %v522 = vrot.slane %v392, 1
      %v523 = vrot.slane %v393, 1
      %v524 = vsel %vm456, %v522, %v523
      %v525 = vrot.slane %v394, 1
      %v526 = vsel %vm456, %v523, %v525
      %v527 = vrot.slane %v395, 1
      %v528 = vrot.slane %v396, 1
      %v529 = vsel %vm456, %v527, %v528
      %v530 = vrot.slane %v397, 1
      %v531 = vsel %vm456, %v528, %v530
      %v532 = vrot.slane %v398, 1
      %v533 = vrot.slane %v399, 1
      %v534 = vsel %vm456, %v532, %v533
      %v535 = vrot.slane %v400, 1
      %v536 = vsel %vm456, %v533, %v535
      %s537 = scalar_lea.vmem %s3, 4
      %v538 = vld [vmem:[%s537] sm:$0xf]
      %vm539 = vcmask 31744
      %v540 = vsel %vm539, %v459, 0
      %v542 = vsel %vm539, %v461, 0
      %v544 = vsel %vm539, %v464, 0
      %v546 = vsel %vm539, %v466, 0
      %v548 = vsel %vm539, %v469, 0
      %v550 = vsel %vm539, %v471, 0
      %v552 = vsel %vm539, %v474, 0
      %v554 = vsel %vm539, %v476, 0
      %v556 = vsel %vm539, %v479, 0
      %v558 = vsel %vm539, %v481, 0
      %v560 = vsel %vm539, %v484, 0
      %v562 = vsel %vm539, %v486, 0
      %v564 = vsel %vm539, %v489, 0
      %v566 = vsel %vm539, %v491, 0
      %v568 = vsel %vm539, %v494, 0
      %v570 = vsel %vm539, %v496, 0
      %v572 = vsel %vm539, %v499, 0
      %v574 = vsel %vm539, %v501, 0
      %v576 = vsel %vm539, %v504, 0
      %v578 = vsel %vm539, %v506, 0
      %v580 = vsel %vm539, %v509, 0
      %v582 = vsel %vm539, %v511, 0
      %v584 = vsel %vm539, %v514, 0
      %v586 = vsel %vm539, %v516, 0
      %v588 = vsel %vm539, %v519, 0
      %v590 = vsel %vm539, %v521, 0
      %v592 = vsel %vm539, %v524, 0
      %v594 = vsel %vm539, %v526, 0
      %v596 = vsel %vm539, %v529, 0
      %v598 = vsel %vm539, %v531, 0
      %v600 = vsel %vm539, %v534, 0
      %v602 = vsel %vm539, %v536, 0
      %vm604 = vcmask 1043456
      %v606 = vsel %vm604, %v538, 0
      %608 = vmatprep.subr.mxu0 0.0
      %609 = vmatpush1.msra.mxu0 0.0
      %610 = vmatprep.subr.mxu0 0.0
      %611 = vmatpush1.msra.mxu0 0.0
      %612 = vmatprep.subr.mxu0 0.0
      %613 = vmatpush1.msra.mxu0 0.0
      %614 = vmatprep.subr.mxu0 0.0
      %615 = vmatpush1.msra.mxu0 0.0
      %616 = vmatprep.subr.mxu0 0.0
      %617 = vmatpush1.msra.mxu0 0.0
      %618 = vmatprep.subr.mxu0 0.0
      %619 = vmatpush1.msra.mxu0 0.0
      %620 = vmatprep.subr.mxu0 0.0
      %621 = vmatpush1.msra.mxu0 0.0
      %622 = vmatprep.subr.mxu0 0.0
      %623 = vmatpush1.msra.mxu0 0.0
      %624 = vmatprep.subr.mxu0 0.0
      %625 = vmatpush1.msra.mxu0 0.0
      %626 = vmatprep.subr.mxu0 0.0
      %627 = vmatpush1.msra.mxu0 0.0
      %628 = vmatprep.subr.mxu0 0.0
      %629 = vmatpush1.msra.mxu0 0.0
      %630 = vmatprep.subr.mxu0 0.0
      %631 = vmatpush1.msra.mxu0 0.0
      %632 = vmatprep.subr.mxu0 0.0
      %633 = vmatpush1.msra.mxu0 0.0
      %634 = vmatprep.subr.mxu0 0.0
      %635 = vmatpush1.msra.mxu0 0.0
      %636 = vmatprep.subr.mxu0 0.0
      %637 = vmatpush1.msra.mxu0 0.0
      %638 = vmatprep.subr.mxu0 0.0
      %639 = vmatpush1.msra.mxu0 %v606
      %640 = vmatprep.subr.mxu0 0.0
      %641 = vmatpush2.msra.mxu0 0.0
      %642 = vmatprep.subr.mxu0 0.0
      %643 = vmatpush2.msra.mxu0 0.0
      %644 = vmatprep.subr.mxu0 0.0
      %645 = vmatpush2.msra.mxu0 0.0
      %646 = vmatprep.subr.mxu0 0.0
      %647 = vmatpush2.msra.mxu0 0.0
      %648 = vmatprep.subr.mxu0 0.0
      %649 = vmatpush2.msra.mxu0 0.0
      %650 = vmatprep.subr.mxu0 0.0
      %651 = vmatpush2.msra.mxu0 0.0
      %652 = vmatprep.subr.mxu0 0.0
      %653 = vmatpush2.msra.mxu0 0.0
      %654 = vmatprep.subr.mxu0 0.0
      %655 = vmatpush2.msra.mxu0 0.0
      %656 = vmatprep.subr.mxu0 0.0
      %657 = vmatpush2.msra.mxu0 0.0
      %658 = vmatprep.subr.mxu0 0.0
      %659 = vmatpush2.msra.mxu0 0.0
      %660 = vmatprep.subr.mxu0 0.0
      %661 = vmatpush2.msra.mxu0 0.0
      %662 = vmatprep.subr.mxu0 0.0
      %663 = vmatpush2.msra.mxu0 0.0
      %664 = vmatprep.subr.mxu0 0.0
      %665 = vmatpush2.msra.mxu0 0.0
      %666 = vmatprep.subr.mxu0 0.0
      %667 = vmatpush2.msra.mxu0 0.0
      %668 = vmatprep.subr.mxu0 0.0
      %669 = vmatpush2.msra.mxu0 0.0
      %670 = vmatprep.subr.mxu0 0.0
      %671 = vmatpush2.msra.mxu0 0.0
      %672 = vmatprep.mubr.f32.mxu0 0.0
      %673 = vmatmul.mubr.f32.gmra.mxu0 %v540
      %v674 = vpop.f32.mrf.mxu0
      %v675 = vadd.f32 0.0, %v674
      %v676 = vpop.f32.mrf.mxu0
      %677 = vmatprep.mubr.f32.mxu0 0.0
      %678 = vmatmul.mubr.f32.gmra.mxu0 %v542
      %v679 = vpop.f32.mrf.mxu0
      %v680 = vadd.f32 0.0, %v679
      %v681 = vpop.f32.mrf.mxu0
      %682 = vmatprep.mubr.f32.mxu0 0.0
      %683 = vmatmul.mubr.f32.gmra.mxu0 %v544
      %v684 = vpop.f32.mrf.mxu0
      %v685 = vadd.f32 0.0, %v684
      %v686 = vpop.f32.mrf.mxu0
      %687 = vmatprep.mubr.f32.mxu0 0.0
      %688 = vmatmul.mubr.f32.gmra.mxu0 %v546
      %v689 = vpop.f32.mrf.mxu0
      %v690 = vadd.f32 0.0, %v689
      %v691 = vpop.f32.mrf.mxu0
      %692 = vmatprep.mubr.f32.mxu0 0.0
      %693 = vmatmul.mubr.f32.gmra.mxu0 %v548
      %v694 = vpop.f32.mrf.mxu0
      %v695 = vadd.f32 0.0, %v694
      %v696 = vpop.f32.mrf.mxu0
      %697 = vmatprep.mubr.f32.mxu0 0.0
      %698 = vmatmul.mubr.f32.gmra.mxu0 %v550
      %v699 = vpop.f32.mrf.mxu0
      %v700 = vadd.f32 0.0, %v699
      %v701 = vpop.f32.mrf.mxu0
      %702 = vmatprep.mubr.f32.mxu0 0.0
      %703 = vmatmul.mubr.f32.gmra.mxu0 %v552
      %v704 = vpop.f32.mrf.mxu0
      %v705 = vadd.f32 0.0, %v704
      %v706 = vpop.f32.mrf.mxu0
      %707 = vmatprep.mubr.f32.mxu0 0.0
      %708 = vmatmul.mubr.f32.gmra.mxu0 %v554
      %v709 = vpop.f32.mrf.mxu0
      %v710 = vadd.f32 0.0, %v709
      %v711 = vpop.f32.mrf.mxu0
      %712 = vmatprep.mubr.f32.mxu0 0.0
      %713 = vmatmul.mubr.f32.gmra.mxu0 %v556
      %v714 = vpop.f32.mrf.mxu0
      %v715 = vadd.f32 0.0, %v714
      %v716 = vpop.f32.mrf.mxu0
      %717 = vmatprep.mubr.f32.mxu0 0.0
      %718 = vmatmul.mubr.f32.gmra.mxu0 %v558
      %v719 = vpop.f32.mrf.mxu0
      %v720 = vadd.f32 0.0, %v719
      %v721 = vpop.f32.mrf.mxu0
      %722 = vmatprep.mubr.f32.mxu0 0.0
      %723 = vmatmul.mubr.f32.gmra.mxu0 %v560
      %v724 = vpop.f32.mrf.mxu0
      %v725 = vadd.f32 0.0, %v724
      %v726 = vpop.f32.mrf.mxu0
      %727 = vmatprep.mubr.f32.mxu0 0.0
      %728 = vmatmul.mubr.f32.gmra.mxu0 %v562
      %v729 = vpop.f32.mrf.mxu0
      %v730 = vadd.f32 0.0, %v729
      %v731 = vpop.f32.mrf.mxu0
      %732 = vmatprep.mubr.f32.mxu0 0.0
      %733 = vmatmul.mubr.f32.gmra.mxu0 %v564
      %v734 = vpop.f32.mrf.mxu0
      %v735 = vadd.f32 0.0, %v734
      %v736 = vpop.f32.mrf.mxu0
      %737 = vmatprep.mubr.f32.mxu0 0.0
      %738 = vmatmul.mubr.f32.gmra.mxu0 %v566
      %v739 = vpop.f32.mrf.mxu0
      %v740 = vadd.f32 0.0, %v739
      %v741 = vpop.f32.mrf.mxu0
      %742 = vmatprep.mubr.f32.mxu0 0.0
      %743 = vmatmul.mubr.f32.gmra.mxu0 %v568
      %v744 = vpop.f32.mrf.mxu0
      %v745 = vadd.f32 0.0, %v744
      %v746 = vpop.f32.mrf.mxu0
      %747 = vmatprep.mubr.f32.mxu0 0.0
      %748 = vmatmul.mubr.f32.gmra.mxu0 %v570
      %v749 = vpop.f32.mrf.mxu0
      %v750 = vadd.f32 0.0, %v749
      %v751 = vpop.f32.mrf.mxu0
      %752 = vmatprep.mubr.f32.mxu0 0.0
      %753 = vmatmul.mubr.f32.gmra.mxu0 %v572
      %v754 = vpop.f32.mrf.mxu0
      %v755 = vadd.f32 0.0, %v754
      %v756 = vpop.f32.mrf.mxu0
      %757 = vmatprep.mubr.f32.mxu0 0.0
      %758 = vmatmul.mubr.f32.gmra.mxu0 %v574
      %v759 = vpop.f32.mrf.mxu0
      %v760 = vadd.f32 0.0, %v759
      %v761 = vpop.f32.mrf.mxu0
      %762 = vmatprep.mubr.f32.mxu0 0.0
      %763 = vmatmul.mubr.f32.gmra.mxu0 %v576
      %v764 = vpop.f32.mrf.mxu0
      %v765 = vadd.f32 0.0, %v764
      %v766 = vpop.f32.mrf.mxu0
      %767 = vmatprep.mubr.f32.mxu0 0.0
      %768 = vmatmul.mubr.f32.gmra.mxu0 %v578
      %v769 = vpop.f32.mrf.mxu0
      %v770 = vadd.f32 0.0, %v769
      %v771 = vpop.f32.mrf.mxu0
      %772 = vmatprep.mubr.f32.mxu0 0.0
      %773 = vmatmul.mubr.f32.gmra.mxu0 %v580
      %v774 = vpop.f32.mrf.mxu0
      %v775 = vadd.f32 0.0, %v774
      %v776 = vpop.f32.mrf.mxu0
      %777 = vmatprep.mubr.f32.mxu0 0.0
      %778 = vmatmul.mubr.f32.gmra.mxu0 %v582
      %v779 = vpop.f32.mrf.mxu0
      %v780 = vadd.f32 0.0, %v779
      %v781 = vpop.f32.mrf.mxu0
      %782 = vmatprep.mubr.f32.mxu0 0.0
      %783 = vmatmul.mubr.f32.gmra.mxu0 %v584
      %v784 = vpop.f32.mrf.mxu0
      %v785 = vadd.f32 0.0, %v784
      %v786 = vpop.f32.mrf.mxu0
      %787 = vmatprep.mubr.f32.mxu0 0.0
      %788 = vmatmul.mubr.f32.gmra.mxu0 %v586
      %v789 = vpop.f32.mrf.mxu0
      %v790 = vadd.f32 0.0, %v789
      %v791 = vpop.f32.mrf.mxu0
      %792 = vmatprep.mubr.f32.mxu0 0.0
      %793 = vmatmul.mubr.f32.gmra.mxu0 %v588
      %v794 = vpop.f32.mrf.mxu0
      %v795 = vadd.f32 0.0, %v794
      %v796 = vpop.f32.mrf.mxu0
      %797 = vmatprep.mubr.f32.mxu0 0.0
      %798 = vmatmul.mubr.f32.gmra.mxu0 %v590
      %v799 = vpop.f32.mrf.mxu0
      %v800 = vadd.f32 0.0, %v799
      %v801 = vpop.f32.mrf.mxu0
      %802 = vmatprep.mubr.f32.mxu0 0.0
      %803 = vmatmul.mubr.f32.gmra.mxu0 %v592
      %v804 = vpop.f32.mrf.mxu0
      %v805 = vadd.f32 0.0, %v804
      %v806 = vpop.f32.mrf.mxu0
      %807 = vmatprep.mubr.f32.mxu0 0.0
      %808 = vmatmul.mubr.f32.gmra.mxu0 %v594
      %v809 = vpop.f32.mrf.mxu0
      %v810 = vadd.f32 0.0, %v809
      %v811 = vpop.f32.mrf.mxu0
      %812 = vmatprep.mubr.f32.mxu0 0.0
      %813 = vmatmul.mubr.f32.gmra.mxu0 %v596
      %v814 = vpop.f32.mrf.mxu0
      %v815 = vadd.f32 0.0, %v814
      %v816 = vpop.f32.mrf.mxu0
      %817 = vmatprep.mubr.f32.mxu0 0.0
      %818 = vmatmul.mubr.f32.gmra.mxu0 %v598
      %v819 = vpop.f32.mrf.mxu0
      %v820 = vadd.f32 0.0, %v819
      %v821 = vpop.f32.mrf.mxu0
      %822 = vmatprep.mubr.f32.mxu0 0.0
      %823 = vmatmul.mubr.f32.gmra.mxu0 %v600
      %v824 = vpop.f32.mrf.mxu0
      %v825 = vadd.f32 0.0, %v824
      %v826 = vpop.f32.mrf.mxu0
      %827 = vmatprep.mubr.f32.mxu0 0.0
      %828 = vmatmul.mubr.f32.gmra.mxu0 %v602
      %v829 = vpop.f32.mrf.mxu0
      %v830 = vadd.f32 0.0, %v829
      %v831 = vpop.f32.mrf.mxu0
      %832 = vdwg.mxu0
      %v833 = vsel %vm539, %v353, 0
      %v835 = vsel %vm539, %v354, 0
      %v837 = vsel %vm539, %v356, 0
      %v839 = vsel %vm539, %v357, 0
      %v841 = vsel %vm539, %v359, 0
      %v843 = vsel %vm539, %v360, 0
      %v845 = vsel %vm539, %v362, 0
      %v847 = vsel %vm539, %v363, 0
      %v849 = vsel %vm539, %v365, 0
      %v851 = vsel %vm539, %v366, 0
      %v853 = vsel %vm539, %v368, 0
      %v855 = vsel %vm539, %v369, 0
      %v857 = vsel %vm539, %v371, 0
      %v859 = vsel %vm539, %v372, 0
      %v861 = vsel %vm539, %v374, 0
      %v863 = vsel %vm539, %v375, 0
      %v865 = vsel %vm539, %v377, 0
      %v867 = vsel %vm539, %v378, 0
      %v869 = vsel %vm539, %v380, 0
      %v871 = vsel %vm539, %v381, 0
      %v873 = vsel %vm539, %v383, 0
      %v875 = vsel %vm539, %v384, 0
      %v877 = vsel %vm539, %v386, 0
      %v879 = vsel %vm539, %v387, 0
      %v881 = vsel %vm539, %v389, 0
      %v883 = vsel %vm539, %v390, 0
      %v885 = vsel %vm539, %v392, 0
      %v887 = vsel %vm539, %v393, 0
      %v889 = vsel %vm539, %v395, 0
      %v891 = vsel %vm539, %v396, 0
      %v893 = vsel %vm539, %v398, 0
      %v895 = vsel %vm539, %v399, 0
      %v898 = vsel %vm604, %v407, 0
      %900 = vmatprep.subr.mxu0 0.0
      %901 = vmatpush1.msra.mxu0 0.0
      %902 = vmatprep.subr.mxu0 0.0
      %903 = vmatpush1.msra.mxu0 0.0
      %904 = vmatprep.subr.mxu0 0.0
      %905 = vmatpush1.msra.mxu0 0.0
      %906 = vmatprep.subr.mxu0 0.0
      %907 = vmatpush1.msra.mxu0 0.0
      %908 = vmatprep.subr.mxu0 0.0
      %909 = vmatpush1.msra.mxu0 0.0
      %910 = vmatprep.subr.mxu0 0.0
      %911 = vmatpush1.msra.mxu0 0.0
      %912 = vmatprep.subr.mxu0 0.0
      %913 = vmatpush1.msra.mxu0 0.0
      %914 = vmatprep.subr.mxu0 0.0
      %915 = vmatpush1.msra.mxu0 0.0
      %916 = vmatprep.subr.mxu0 0.0
      %917 = vmatpush1.msra.mxu0 0.0
      %918 = vmatprep.subr.mxu0 0.0
      %919 = vmatpush1.msra.mxu0 0.0
      %920 = vmatprep.subr.mxu0 0.0
      %921 = vmatpush1.msra.mxu0 0.0
      %922 = vmatprep.subr.mxu0 0.0
      %923 = vmatpush1.msra.mxu0 0.0
      %924 = vmatprep.subr.mxu0 0.0
      %925 = vmatpush1.msra.mxu0 0.0
      %926 = vmatprep.subr.mxu0 0.0
      %927 = vmatpush1.msra.mxu0 0.0
      %928 = vmatprep.subr.mxu0 0.0
      %929 = vmatpush1.msra.mxu0 0.0
      %930 = vmatprep.subr.mxu0 0.0
      %931 = vmatpush1.msra.mxu0 %v898
      %932 = vmatprep.subr.mxu0 0.0
      %933 = vmatpush2.msra.mxu0 0.0
      %934 = vmatprep.subr.mxu0 0.0
      %935 = vmatpush2.msra.mxu0 0.0
      %936 = vmatprep.subr.mxu0 0.0
      %937 = vmatpush2.msra.mxu0 0.0
      %938 = vmatprep.subr.mxu0 0.0
      %939 = vmatpush2.msra.mxu0 0.0
      %940 = vmatprep.subr.mxu0 0.0
      %941 = vmatpush2.msra.mxu0 0.0
      %942 = vmatprep.subr.mxu0 0.0
      %943 = vmatpush2.msra.mxu0 0.0
      %944 = vmatprep.subr.mxu0 0.0
      %945 = vmatpush2.msra.mxu0 0.0
      %946 = vmatprep.subr.mxu0 0.0
      %947 = vmatpush2.msra.mxu0 0.0
      %948 = vmatprep.subr.mxu0 0.0
      %949 = vmatpush2.msra.mxu0 0.0
      %950 = vmatprep.subr.mxu0 0.0
      %951 = vmatpush2.msra.mxu0 0.0
      %952 = vmatprep.subr.mxu0 0.0
      %953 = vmatpush2.msra.mxu0 0.0
      %954 = vmatprep.subr.mxu0 0.0
      %955 = vmatpush2.msra.mxu0 0.0
      %956 = vmatprep.subr.mxu0 0.0
      %957 = vmatpush2.msra.mxu0 0.0
      %958 = vmatprep.subr.mxu0 0.0
      %959 = vmatpush2.msra.mxu0 0.0
      %960 = vmatprep.subr.mxu0 0.0
      %961 = vmatpush2.msra.mxu0 0.0
      %962 = vmatprep.subr.mxu0 0.0
      %963 = vmatpush2.msra.mxu0 0.0
      %964 = vmatprep.mubr.f32.mxu0 0.0
      %965 = vmatmul.mubr.f32.gmra.mxu0 %v833
      %v966 = vpop.f32.mrf.mxu0
      %v967 = vadd.f32 %v675, %v966
      %v968 = vpop.f32.mrf.mxu0
      %969 = vmatprep.mubr.f32.mxu0 0.0
      %970 = vmatmul.mubr.f32.gmra.mxu0 %v835
      %v971 = vpop.f32.mrf.mxu0
      %v972 = vadd.f32 %v680, %v971
      %v973 = vpop.f32.mrf.mxu0
      %974 = vmatprep.mubr.f32.mxu0 0.0
      %975 = vmatmul.mubr.f32.gmra.mxu0 %v837
      %v976 = vpop.f32.mrf.mxu0
      %v977 = vadd.f32 %v685, %v976
      %v978 = vpop.f32.mrf.mxu0
      %979 = vmatprep.mubr.f32.mxu0 0.0
      %980 = vmatmul.mubr.f32.gmra.mxu0 %v839
      %v981 = vpop.f32.mrf.mxu0
      %v982 = vadd.f32 %v690, %v981
      %v983 = vpop.f32.mrf.mxu0
      %984 = vmatprep.mubr.f32.mxu0 0.0
      %985 = vmatmul.mubr.f32.gmra.mxu0 %v841
      %v986 = vpop.f32.mrf.mxu0
      %v987 = vadd.f32 %v695, %v986
      %v988 = vpop.f32.mrf.mxu0
      %989 = vmatprep.mubr.f32.mxu0 0.0
      %990 = vmatmul.mubr.f32.gmra.mxu0 %v843
      %v991 = vpop.f32.mrf.mxu0
      %v992 = vadd.f32 %v700, %v991
      %v993 = vpop.f32.mrf.mxu0
      %994 = vmatprep.mubr.f32.mxu0 0.0
      %995 = vmatmul.mubr.f32.gmra.mxu0 %v845
      %v996 = vpop.f32.mrf.mxu0
      %v997 = vadd.f32 %v705, %v996
      %v998 = vpop.f32.mrf.mxu0
      %999 = vmatprep.mubr.f32.mxu0 0.0
      %1000 = vmatmul.mubr.f32.gmra.mxu0 %v847
      %v1001 = vpop.f32.mrf.mxu0
      %v1002 = vadd.f32 %v710, %v1001
      %v1003 = vpop.f32.mrf.mxu0
      %1004 = vmatprep.mubr.f32.mxu0 0.0
      %1005 = vmatmul.mubr.f32.gmra.mxu0 %v849
      %v1006 = vpop.f32.mrf.mxu0
      %v1007 = vadd.f32 %v715, %v1006
      %v1008 = vpop.f32.mrf.mxu0
      %1009 = vmatprep.mubr.f32.mxu0 0.0
      %1010 = vmatmul.mubr.f32.gmra.mxu0 %v851
      %v1011 = vpop.f32.mrf.mxu0
      %v1012 = vadd.f32 %v720, %v1011
      %v1013 = vpop.f32.mrf.mxu0
      %1014 = vmatprep.mubr.f32.mxu0 0.0
      %1015 = vmatmul.mubr.f32.gmra.mxu0 %v853
      %v1016 = vpop.f32.mrf.mxu0
      %v1017 = vadd.f32 %v725, %v1016
      %v1018 = vpop.f32.mrf.mxu0
      %1019 = vmatprep.mubr.f32.mxu0 0.0
      %1020 = vmatmul.mubr.f32.gmra.mxu0 %v855
      %v1021 = vpop.f32.mrf.mxu0
      %v1022 = vadd.f32 %v730, %v1021
      %v1023 = vpop.f32.mrf.mxu0
      %1024 = vmatprep.mubr.f32.mxu0 0.0
      %1025 = vmatmul.mubr.f32.gmra.mxu0 %v857
      %v1026 = vpop.f32.mrf.mxu0
      %v1027 = vadd.f32 %v735, %v1026
      %v1028 = vpop.f32.mrf.mxu0
      %1029 = vmatprep.mubr.f32.mxu0 0.0
      %1030 = vmatmul.mubr.f32.gmra.mxu0 %v859
      %v1031 = vpop.f32.mrf.mxu0
      %v1032 = vadd.f32 %v740, %v1031
      %v1033 = vpop.f32.mrf.mxu0
      %1034 = vmatprep.mubr.f32.mxu0 0.0
      %1035 = vmatmul.mubr.f32.gmra.mxu0 %v861
      %v1036 = vpop.f32.mrf.mxu0
      %v1037 = vadd.f32 %v745, %v1036
      %v1038 = vpop.f32.mrf.mxu0
      %1039 = vmatprep.mubr.f32.mxu0 0.0
      %1040 = vmatmul.mubr.f32.gmra.mxu0 %v863
      %v1041 = vpop.f32.mrf.mxu0
      %v1042 = vadd.f32 %v750, %v1041
      %v1043 = vpop.f32.mrf.mxu0
      %1044 = vmatprep.mubr.f32.mxu0 0.0
      %1045 = vmatmul.mubr.f32.gmra.mxu0 %v865
      %v1046 = vpop.f32.mrf.mxu0
      %v1047 = vadd.f32 %v755, %v1046
      %v1048 = vpop.f32.mrf.mxu0
      %1049 = vmatprep.mubr.f32.mxu0 0.0
      %1050 = vmatmul.mubr.f32.gmra.mxu0 %v867
      %v1051 = vpop.f32.mrf.mxu0
      %v1052 = vadd.f32 %v760, %v1051
      %v1053 = vpop.f32.mrf.mxu0
      %1054 = vmatprep.mubr.f32.mxu0 0.0
      %1055 = vmatmul.mubr.f32.gmra.mxu0 %v869
      %v1056 = vpop.f32.mrf.mxu0
      %v1057 = vadd.f32 %v765, %v1056
      %v1058 = vpop.f32.mrf.mxu0
      %1059 = vmatprep.mubr.f32.mxu0 0.0
      %1060 = vmatmul.mubr.f32.gmra.mxu0 %v871
      %v1061 = vpop.f32.mrf.mxu0
      %v1062 = vadd.f32 %v770, %v1061
      %v1063 = vpop.f32.mrf.mxu0
      %1064 = vmatprep.mubr.f32.mxu0 0.0
      %1065 = vmatmul.mubr.f32.gmra.mxu0 %v873
      %v1066 = vpop.f32.mrf.mxu0
      %v1067 = vadd.f32 %v775, %v1066
      %v1068 = vpop.f32.mrf.mxu0
      %1069 = vmatprep.mubr.f32.mxu0 0.0
      %1070 = vmatmul.mubr.f32.gmra.mxu0 %v875
      %v1071 = vpop.f32.mrf.mxu0
      %v1072 = vadd.f32 %v780, %v1071
      %v1073 = vpop.f32.mrf.mxu0
      %1074 = vmatprep.mubr.f32.mxu0 0.0
      %1075 = vmatmul.mubr.f32.gmra.mxu0 %v877
      %v1076 = vpop.f32.mrf.mxu0
      %v1077 = vadd.f32 %v785, %v1076
      %v1078 = vpop.f32.mrf.mxu0
      %1079 = vmatprep.mubr.f32.mxu0 0.0
      %1080 = vmatmul.mubr.f32.gmra.mxu0 %v879
      %v1081 = vpop.f32.mrf.mxu0
      %v1082 = vadd.f32 %v790, %v1081
      %v1083 = vpop.f32.mrf.mxu0
      %1084 = vmatprep.mubr.f32.mxu0 0.0
      %1085 = vmatmul.mubr.f32.gmra.mxu0 %v881
      %v1086 = vpop.f32.mrf.mxu0
      %v1087 = vadd.f32 %v795, %v1086
      %v1088 = vpop.f32.mrf.mxu0
      %1089 = vmatprep.mubr.f32.mxu0 0.0
      %1090 = vmatmul.mubr.f32.gmra.mxu0 %v883
      %v1091 = vpop.f32.mrf.mxu0
      %v1092 = vadd.f32 %v800, %v1091
      %v1093 = vpop.f32.mrf.mxu0
      %1094 = vmatprep.mubr.f32.mxu0 0.0
      %1095 = vmatmul.mubr.f32.gmra.mxu0 %v885
      %v1096 = vpop.f32.mrf.mxu0
      %v1097 = vadd.f32 %v805, %v1096
      %v1098 = vpop.f32.mrf.mxu0
      %1099 = vmatprep.mubr.f32.mxu0 0.0
      %1100 = vmatmul.mubr.f32.gmra.mxu0 %v887
      %v1101 = vpop.f32.mrf.mxu0
      %v1102 = vadd.f32 %v810, %v1101
      %v1103 = vpop.f32.mrf.mxu0
      %1104 = vmatprep.mubr.f32.mxu0 0.0
      %1105 = vmatmul.mubr.f32.gmra.mxu0 %v889
      %v1106 = vpop.f32.mrf.mxu0
      %v1107 = vadd.f32 %v815, %v1106
      %v1108 = vpop.f32.mrf.mxu0
      %1109 = vmatprep.mubr.f32.mxu0 0.0
      %1110 = vmatmul.mubr.f32.gmra.mxu0 %v891
      %v1111 = vpop.f32.mrf.mxu0
      %v1112 = vadd.f32 %v820, %v1111
      %v1113 = vpop.f32.mrf.mxu0
      %1114 = vmatprep.mubr.f32.mxu0 0.0
      %1115 = vmatmul.mubr.f32.gmra.mxu0 %v893
      %v1116 = vpop.f32.mrf.mxu0
      %v1117 = vadd.f32 %v825, %v1116
      %v1118 = vpop.f32.mrf.mxu0
      %1119 = vmatprep.mubr.f32.mxu0 0.0
      %1120 = vmatmul.mubr.f32.gmra.mxu0 %v895
      %v1121 = vpop.f32.mrf.mxu0
      %v1122 = vadd.f32 %v830, %v1121
      %v1123 = vpop.f32.mrf.mxu0
      %1124 = vdwg.mxu0
      %vm1125 = vcmask 1045504
      %v1126 = vrot.slane %v353, 2
      %v1127 = vrot.slane %v354, 2
      %v1128 = vsel %vm1125, %v1126, %v1127
      %v1129 = vrot.slane %v355, 2
      %v1130 = vsel %vm1125, %v1127, %v1129
      %v1131 = vrot.slane %v356, 2
      %v1132 = vrot.slane %v357, 2
      %v1133 = vsel %vm1125, %v1131, %v1132
      %v1134 = vrot.slane %v358, 2
      %v1135 = vsel %vm1125, %v1132, %v1134
      %v1136 = vrot.slane %v359, 2
      %v1137 = vrot.slane %v360, 2
      %v1138 = vsel %vm1125, %v1136, %v1137
      %v1139 = vrot.slane %v361, 2
      %v1140 = vsel %vm1125, %v1137, %v1139
      %v1141 = vrot.slane %v362, 2
      %v1142 = vrot.slane %v363, 2
      %v1143 = vsel %vm1125, %v1141, %v1142
      %v1144 = vrot.slane %v364, 2
      %v1145 = vsel %vm1125, %v1142, %v1144
      %v1146 = vrot.slane %v365, 2
      %v1147 = vrot.slane %v366, 2
      %v1148 = vsel %vm1125, %v1146, %v1147
      %v1149 = vrot.slane %v367, 2
      %v1150 = vsel %vm1125, %v1147, %v1149
      %v1151 = vrot.slane %v368, 2
      %v1152 = vrot.slane %v369, 2
      %v1153 = vsel %vm1125, %v1151, %v1152
      %v1154 = vrot.slane %v370, 2
      %v1155 = vsel %vm1125, %v1152, %v1154
      %v1156 = vrot.slane %v371, 2
      %v1157 = vrot.slane %v372, 2
      %v1158 = vsel %vm1125, %v1156, %v1157
      %v1159 = vrot.slane %v373, 2
      %v1160 = vsel %vm1125, %v1157, %v1159
      %v1161 = vrot.slane %v374, 2
      %v1162 = vrot.slane %v375, 2
      %v1163 = vsel %vm1125, %v1161, %v1162
      %v1164 = vrot.slane %v376, 2
      %v1165 = vsel %vm1125, %v1162, %v1164
      %v1166 = vrot.slane %v377, 2
      %v1167 = vrot.slane %v378, 2
      %v1168 = vsel %vm1125, %v1166, %v1167
      %v1169 = vrot.slane %v379, 2
      %v1170 = vsel %vm1125, %v1167, %v1169
      %v1171 = vrot.slane %v380, 2
      %v1172 = vrot.slane %v381, 2
      %v1173 = vsel %vm1125, %v1171, %v1172
      %v1174 = vrot.slane %v382, 2
      %v1175 = vsel %vm1125, %v1172, %v1174
      %v1176 = vrot.slane %v383, 2
      %v1177 = vrot.slane %v384, 2
      %v1178 = vsel %vm1125, %v1176, %v1177
      %v1179 = vrot.slane %v385, 2
      %v1180 = vsel %vm1125, %v1177, %v1179
      %v1181 = vrot.slane %v386, 2
      %v1182 = vrot.slane %v387, 2
      %v1183 = vsel %vm1125, %v1181, %v1182
      %v1184 = vrot.slane %v388, 2
      %v1185 = vsel %vm1125, %v1182, %v1184
      %v1186 = vrot.slane %v389, 2
      %v1187 = vrot.slane %v390, 2
      %v1188 = vsel %vm1125, %v1186, %v1187
      %v1189 = vrot.slane %v391, 2
      %v1190 = vsel %vm1125, %v1187, %v1189
      %v1191 = vrot.slane %v392, 2
      %v1192 = vrot.slane %v393, 2
      %v1193 = vsel %vm1125, %v1191, %v1192
      %v1194 = vrot.slane %v394, 2
      %v1195 = vsel %vm1125, %v1192, %v1194
      %v1196 = vrot.slane %v395, 2
      %v1197 = vrot.slane %v396, 2
      %v1198 = vsel %vm1125, %v1196, %v1197
      %v1199 = vrot.slane %v397, 2
      %v1200 = vsel %vm1125, %v1197, %v1199
      %v1201 = vrot.slane %v398, 2
      %v1202 = vrot.slane %v399, 2
      %v1203 = vsel %vm1125, %v1201, %v1202
      %v1204 = vrot.slane %v400, 2
      %v1205 = vsel %vm1125, %v1202, %v1204
      %s1206 = scalar_lea.vmem %s3, 8
      %v1207 = vld [vmem:[%s1206] sm:$0xf]
      %v1208 = vsel %vm539, %v1128, 0
      %v1210 = vsel %vm539, %v1130, 0
      %v1212 = vsel %vm539, %v1133, 0
      %v1214 = vsel %vm539, %v1135, 0
      %v1216 = vsel %vm539, %v1138, 0
      %v1218 = vsel %vm539, %v1140, 0
      %v1220 = vsel %vm539, %v1143, 0
      %v1222 = vsel %vm539, %v1145, 0
      %v1224 = vsel %vm539, %v1148, 0
      %v1226 = vsel %vm539, %v1150, 0
      %v1228 = vsel %vm539, %v1153, 0
      %v1230 = vsel %vm539, %v1155, 0
      %v1232 = vsel %vm539, %v1158, 0
      %v1234 = vsel %vm539, %v1160, 0
      %v1236 = vsel %vm539, %v1163, 0
      %v1238 = vsel %vm539, %v1165, 0
      %v1240 = vsel %vm539, %v1168, 0
      %v1242 = vsel %vm539, %v1170, 0
      %v1244 = vsel %vm539, %v1173, 0
      %v1246 = vsel %vm539, %v1175, 0
      %v1248 = vsel %vm539, %v1178, 0
      %v1250 = vsel %vm539, %v1180, 0
      %v1252 = vsel %vm539, %v1183, 0
      %v1254 = vsel %vm539, %v1185, 0
      %v1256 = vsel %vm539, %v1188, 0
      %v1258 = vsel %vm539, %v1190, 0
      %v1260 = vsel %vm539, %v1193, 0
      %v1262 = vsel %vm539, %v1195, 0
      %v1264 = vsel %vm539, %v1198, 0
      %v1266 = vsel %vm539, %v1200, 0
      %v1268 = vsel %vm539, %v1203, 0
      %v1270 = vsel %vm539, %v1205, 0
      %v1273 = vsel %vm604, %v1207, 0
      %1275 = vmatprep.subr.mxu0 0.0
      %1276 = vmatpush1.msra.mxu0 0.0
      %1277 = vmatprep.subr.mxu0 0.0
      %1278 = vmatpush1.msra.mxu0 0.0
      %1279 = vmatprep.subr.mxu0 0.0
      %1280 = vmatpush1.msra.mxu0 0.0
      %1281 = vmatprep.subr.mxu0 0.0
      %1282 = vmatpush1.msra.mxu0 0.0
      %1283 = vmatprep.subr.mxu0 0.0
      %1284 = vmatpush1.msra.mxu0 0.0
      %1285 = vmatprep.subr.mxu0 0.0
      %1286 = vmatpush1.msra.mxu0 0.0
      %1287 = vmatprep.subr.mxu0 0.0
      %1288 = vmatpush1.msra.mxu0 0.0
      %1289 = vmatprep.subr.mxu0 0.0
      %1290 = vmatpush1.msra.mxu0 0.0
      %1291 = vmatprep.subr.mxu0 0.0
      %1292 = vmatpush1.msra.mxu0 0.0
      %1293 = vmatprep.subr.mxu0 0.0
      %1294 = vmatpush1.msra.mxu0 0.0
      %1295 = vmatprep.subr.mxu0 0.0
      %1296 = vmatpush1.msra.mxu0 0.0
      %1297 = vmatprep.subr.mxu0 0.0
      %1298 = vmatpush1.msra.mxu0 0.0
      %1299 = vmatprep.subr.mxu0 0.0
      %1300 = vmatpush1.msra.mxu0 0.0
      %1301 = vmatprep.subr.mxu0 0.0
      %1302 = vmatpush1.msra.mxu0 0.0
      %1303 = vmatprep.subr.mxu0 0.0
      %1304 = vmatpush1.msra.mxu0 0.0
      %1305 = vmatprep.subr.mxu0 0.0
      %1306 = vmatpush1.msra.mxu0 %v1273
      %1307 = vmatprep.subr.mxu0 0.0
      %1308 = vmatpush2.msra.mxu0 0.0
      %1309 = vmatprep.subr.mxu0 0.0
      %1310 = vmatpush2.msra.mxu0 0.0
      %1311 = vmatprep.subr.mxu0 0.0
      %1312 = vmatpush2.msra.mxu0 0.0
      %1313 = vmatprep.subr.mxu0 0.0
      %1314 = vmatpush2.msra.mxu0 0.0
      %1315 = vmatprep.subr.mxu0 0.0
      %1316 = vmatpush2.msra.mxu0 0.0
      %1317 = vmatprep.subr.mxu0 0.0
      %1318 = vmatpush2.msra.mxu0 0.0
      %1319 = vmatprep.subr.mxu0 0.0
      %1320 = vmatpush2.msra.mxu0 0.0
      %1321 = vmatprep.subr.mxu0 0.0
      %1322 = vmatpush2.msra.mxu0 0.0
      %1323 = vmatprep.subr.mxu0 0.0
      %1324 = vmatpush2.msra.mxu0 0.0
      %1325 = vmatprep.subr.mxu0 0.0
      %1326 = vmatpush2.msra.mxu0 0.0
      %1327 = vmatprep.subr.mxu0 0.0
      %1328 = vmatpush2.msra.mxu0 0.0
      %1329 = vmatprep.subr.mxu0 0.0
      %1330 = vmatpush2.msra.mxu0 0.0
      %1331 = vmatprep.subr.mxu0 0.0
      %1332 = vmatpush2.msra.mxu0 0.0
      %1333 = vmatprep.subr.mxu0 0.0
      %1334 = vmatpush2.msra.mxu0 0.0
      %1335 = vmatprep.subr.mxu0 0.0
      %1336 = vmatpush2.msra.mxu0 0.0
      %1337 = vmatprep.subr.mxu0 0.0
      %1338 = vmatpush2.msra.mxu0 0.0
      %1339 = vmatprep.mubr.f32.mxu0 0.0
      %1340 = vmatmul.mubr.f32.gmra.mxu0 %v1208
      %v1341 = vpop.f32.mrf.mxu0
      %v1342 = vadd.f32 0.0, %v1341
      %v1343 = vpop.f32.mrf.mxu0
      %1344 = vmatprep.mubr.f32.mxu0 0.0
      %1345 = vmatmul.mubr.f32.gmra.mxu0 %v1210
      %v1346 = vpop.f32.mrf.mxu0
      %v1347 = vadd.f32 0.0, %v1346
      %v1348 = vpop.f32.mrf.mxu0
      %1349 = vmatprep.mubr.f32.mxu0 0.0
      %1350 = vmatmul.mubr.f32.gmra.mxu0 %v1212
      %v1351 = vpop.f32.mrf.mxu0
      %v1352 = vadd.f32 0.0, %v1351
      %v1353 = vpop.f32.mrf.mxu0
      %1354 = vmatprep.mubr.f32.mxu0 0.0
      %1355 = vmatmul.mubr.f32.gmra.mxu0 %v1214
      %v1356 = vpop.f32.mrf.mxu0
      %v1357 = vadd.f32 0.0, %v1356
      %v1358 = vpop.f32.mrf.mxu0
      %1359 = vmatprep.mubr.f32.mxu0 0.0
      %1360 = vmatmul.mubr.f32.gmra.mxu0 %v1216
      %v1361 = vpop.f32.mrf.mxu0
      %v1362 = vadd.f32 0.0, %v1361
      %v1363 = vpop.f32.mrf.mxu0
      %1364 = vmatprep.mubr.f32.mxu0 0.0
      %1365 = vmatmul.mubr.f32.gmra.mxu0 %v1218
      %v1366 = vpop.f32.mrf.mxu0
      %v1367 = vadd.f32 0.0, %v1366
      %v1368 = vpop.f32.mrf.mxu0
      %1369 = vmatprep.mubr.f32.mxu0 0.0
      %1370 = vmatmul.mubr.f32.gmra.mxu0 %v1220
      %v1371 = vpop.f32.mrf.mxu0
      %v1372 = vadd.f32 0.0, %v1371
      %v1373 = vpop.f32.mrf.mxu0
      %1374 = vmatprep.mubr.f32.mxu0 0.0
      %1375 = vmatmul.mubr.f32.gmra.mxu0 %v1222
      %v1376 = vpop.f32.mrf.mxu0
      %v1377 = vadd.f32 0.0, %v1376
      %v1378 = vpop.f32.mrf.mxu0
      %1379 = vmatprep.mubr.f32.mxu0 0.0
      %1380 = vmatmul.mubr.f32.gmra.mxu0 %v1224
      %v1381 = vpop.f32.mrf.mxu0
      %v1382 = vadd.f32 0.0, %v1381
      %v1383 = vpop.f32.mrf.mxu0
      %1384 = vmatprep.mubr.f32.mxu0 0.0
      %1385 = vmatmul.mubr.f32.gmra.mxu0 %v1226
      %v1386 = vpop.f32.mrf.mxu0
      %v1387 = vadd.f32 0.0, %v1386
      %v1388 = vpop.f32.mrf.mxu0
      %1389 = vmatprep.mubr.f32.mxu0 0.0
      %1390 = vmatmul.mubr.f32.gmra.mxu0 %v1228
      %v1391 = vpop.f32.mrf.mxu0
      %v1392 = vadd.f32 0.0, %v1391
      %v1393 = vpop.f32.mrf.mxu0
      %1394 = vmatprep.mubr.f32.mxu0 0.0
      %1395 = vmatmul.mubr.f32.gmra.mxu0 %v1230
      %v1396 = vpop.f32.mrf.mxu0
      %v1397 = vadd.f32 0.0, %v1396
      %v1398 = vpop.f32.mrf.mxu0
      %1399 = vmatprep.mubr.f32.mxu0 0.0
      %1400 = vmatmul.mubr.f32.gmra.mxu0 %v1232
      %v1401 = vpop.f32.mrf.mxu0
      %v1402 = vadd.f32 0.0, %v1401
      %v1403 = vpop.f32.mrf.mxu0
      %1404 = vmatprep.mubr.f32.mxu0 0.0
      %1405 = vmatmul.mubr.f32.gmra.mxu0 %v1234
      %v1406 = vpop.f32.mrf.mxu0
      %v1407 = vadd.f32 0.0, %v1406
      %v1408 = vpop.f32.mrf.mxu0
      %1409 = vmatprep.mubr.f32.mxu0 0.0
      %1410 = vmatmul.mubr.f32.gmra.mxu0 %v1236
      %v1411 = vpop.f32.mrf.mxu0
      %v1412 = vadd.f32 0.0, %v1411
      %v1413 = vpop.f32.mrf.mxu0
      %1414 = vmatprep.mubr.f32.mxu0 0.0
      %1415 = vmatmul.mubr.f32.gmra.mxu0 %v1238
      %v1416 = vpop.f32.mrf.mxu0
      %v1417 = vadd.f32 0.0, %v1416
      %v1418 = vpop.f32.mrf.mxu0
      %1419 = vmatprep.mubr.f32.mxu0 0.0
      %1420 = vmatmul.mubr.f32.gmra.mxu0 %v1240
      %v1421 = vpop.f32.mrf.mxu0
      %v1422 = vadd.f32 0.0, %v1421
      %v1423 = vpop.f32.mrf.mxu0
      %1424 = vmatprep.mubr.f32.mxu0 0.0
      %1425 = vmatmul.mubr.f32.gmra.mxu0 %v1242
      %v1426 = vpop.f32.mrf.mxu0
      %v1427 = vadd.f32 0.0, %v1426
      %v1428 = vpop.f32.mrf.mxu0
      %1429 = vmatprep.mubr.f32.mxu0 0.0
      %1430 = vmatmul.mubr.f32.gmra.mxu0 %v1244
      %v1431 = vpop.f32.mrf.mxu0
      %v1432 = vadd.f32 0.0, %v1431
      %v1433 = vpop.f32.mrf.mxu0
      %1434 = vmatprep.mubr.f32.mxu0 0.0
      %1435 = vmatmul.mubr.f32.gmra.mxu0 %v1246
      %v1436 = vpop.f32.mrf.mxu0
      %v1437 = vadd.f32 0.0, %v1436
      %v1438 = vpop.f32.mrf.mxu0
      %1439 = vmatprep.mubr.f32.mxu0 0.0
      %1440 = vmatmul.mubr.f32.gmra.mxu0 %v1248
      %v1441 = vpop.f32.mrf.mxu0
      %v1442 = vadd.f32 0.0, %v1441
      %v1443 = vpop.f32.mrf.mxu0
      %1444 = vmatprep.mubr.f32.mxu0 0.0
      %1445 = vmatmul.mubr.f32.gmra.mxu0 %v1250
      %v1446 = vpop.f32.mrf.mxu0
      %v1447 = vadd.f32 0.0, %v1446
      %v1448 = vpop.f32.mrf.mxu0
      %1449 = vmatprep.mubr.f32.mxu0 0.0
      %1450 = vmatmul.mubr.f32.gmra.mxu0 %v1252
      %v1451 = vpop.f32.mrf.mxu0
      %v1452 = vadd.f32 0.0, %v1451
      %v1453 = vpop.f32.mrf.mxu0
      %1454 = vmatprep.mubr.f32.mxu0 0.0
      %1455 = vmatmul.mubr.f32.gmra.mxu0 %v1254
      %v1456 = vpop.f32.mrf.mxu0
      %v1457 = vadd.f32 0.0, %v1456
      %v1458 = vpop.f32.mrf.mxu0
      %1459 = vmatprep.mubr.f32.mxu0 0.0
      %1460 = vmatmul.mubr.f32.gmra.mxu0 %v1256
      %v1461 = vpop.f32.mrf.mxu0
      %v1462 = vadd.f32 0.0, %v1461
      %v1463 = vpop.f32.mrf.mxu0
      %1464 = vmatprep.mubr.f32.mxu0 0.0
      %1465 = vmatmul.mubr.f32.gmra.mxu0 %v1258
      %v1466 = vpop.f32.mrf.mxu0
      %v1467 = vadd.f32 0.0, %v1466
      %v1468 = vpop.f32.mrf.mxu0
      %1469 = vmatprep.mubr.f32.mxu0 0.0
      %1470 = vmatmul.mubr.f32.gmra.mxu0 %v1260
      %v1471 = vpop.f32.mrf.mxu0
      %v1472 = vadd.f32 0.0, %v1471
      %v1473 = vpop.f32.mrf.mxu0
      %1474 = vmatprep.mubr.f32.mxu0 0.0
      %1475 = vmatmul.mubr.f32.gmra.mxu0 %v1262
      %v1476 = vpop.f32.mrf.mxu0
      %v1477 = vadd.f32 0.0, %v1476
      %v1478 = vpop.f32.mrf.mxu0
      %1479 = vmatprep.mubr.f32.mxu0 0.0
      %1480 = vmatmul.mubr.f32.gmra.mxu0 %v1264
      %v1481 = vpop.f32.mrf.mxu0
      %v1482 = vadd.f32 0.0, %v1481
      %v1483 = vpop.f32.mrf.mxu0
      %1484 = vmatprep.mubr.f32.mxu0 0.0
      %1485 = vmatmul.mubr.f32.gmra.mxu0 %v1266
      %v1486 = vpop.f32.mrf.mxu0
      %v1487 = vadd.f32 0.0, %v1486
      %v1488 = vpop.f32.mrf.mxu0
      %1489 = vmatprep.mubr.f32.mxu0 0.0
      %1490 = vmatmul.mubr.f32.gmra.mxu0 %v1268
      %v1491 = vpop.f32.mrf.mxu0
      %v1492 = vadd.f32 0.0, %v1491
      %v1493 = vpop.f32.mrf.mxu0
      %1494 = vmatprep.mubr.f32.mxu0 0.0
      %1495 = vmatmul.mubr.f32.gmra.mxu0 %v1270
      %v1496 = vpop.f32.mrf.mxu0
      %v1497 = vadd.f32 0.0, %v1496
      %v1498 = vpop.f32.mrf.mxu0
      %1499 = vdwg.mxu0
      %v1500 = vadd.f32 %v967, %v1342
      %v1501 = vadd.f32 %v972, %v1347
      %v1502 = vadd.f32 %v977, %v1352
      %v1503 = vadd.f32 %v982, %v1357
      %v1504 = vadd.f32 %v987, %v1362
      %v1505 = vadd.f32 %v992, %v1367
      %v1506 = vadd.f32 %v997, %v1372
      %v1507 = vadd.f32 %v1002, %v1377
      %v1508 = vadd.f32 %v1007, %v1382
      %v1509 = vadd.f32 %v1012, %v1387
      %v1510 = vadd.f32 %v1017, %v1392
      %v1511 = vadd.f32 %v1022, %v1397
      %v1512 = vadd.f32 %v1027, %v1402
      %v1513 = vadd.f32 %v1032, %v1407
      %v1514 = vadd.f32 %v1037, %v1412
      %v1515 = vadd.f32 %v1042, %v1417
      %v1516 = vadd.f32 %v1047, %v1422
      %v1517 = vadd.f32 %v1052, %v1427
      %v1518 = vadd.f32 %v1057, %v1432
      %v1519 = vadd.f32 %v1062, %v1437
      %v1520 = vadd.f32 %v1067, %v1442
      %v1521 = vadd.f32 %v1072, %v1447
      %v1522 = vadd.f32 %v1077, %v1452
      %v1523 = vadd.f32 %v1082, %v1457
      %v1524 = vadd.f32 %v1087, %v1462
      %v1525 = vadd.f32 %v1092, %v1467
      %v1526 = vadd.f32 %v1097, %v1472
      %v1527 = vadd.f32 %v1102, %v1477
      %v1528 = vadd.f32 %v1107, %v1482
      %v1529 = vadd.f32 %v1112, %v1487
      %v1530 = vadd.f32 %v1117, %v1492
      %v1531 = vadd.f32 %v1122, %v1497
      %s1532 = scalar_lea.vmem %s3, 12
      %v1533 = vld [vmem:[%s1532] sm:$0xf]
      %v1535 = vsel %vm539, %v401, 0
      %v1538 = vsel %vm539, %v402, 0
      %v1541 = vsel %vm604, %v1533, 0
      %1543 = vmatprep.subr.mxu0 0.0
      %1544 = vmatpush1.msra.mxu0 0.0
      %1545 = vmatprep.subr.mxu0 0.0
      %1546 = vmatpush1.msra.mxu0 0.0
      %1547 = vmatprep.subr.mxu0 0.0
      %1548 = vmatpush1.msra.mxu0 0.0
      %1549 = vmatprep.subr.mxu0 0.0
      %1550 = vmatpush1.msra.mxu0 0.0
      %1551 = vmatprep.subr.mxu0 0.0
      %1552 = vmatpush1.msra.mxu0 0.0
      %1553 = vmatprep.subr.mxu0 0.0
      %1554 = vmatpush1.msra.mxu0 0.0
      %1555 = vmatprep.subr.mxu0 0.0
      %1556 = vmatpush1.msra.mxu0 0.0
      %1557 = vmatprep.subr.mxu0 0.0
      %1558 = vmatpush1.msra.mxu0 0.0
      %1559 = vmatprep.subr.mxu0 0.0
      %1560 = vmatpush1.msra.mxu0 0.0
      %1561 = vmatprep.subr.mxu0 0.0
      %1562 = vmatpush1.msra.mxu0 0.0
      %1563 = vmatprep.subr.mxu0 0.0
      %1564 = vmatpush1.msra.mxu0 0.0
      %1565 = vmatprep.subr.mxu0 0.0
      %1566 = vmatpush1.msra.mxu0 0.0
      %1567 = vmatprep.subr.mxu0 0.0
      %1568 = vmatpush1.msra.mxu0 0.0
      %1569 = vmatprep.subr.mxu0 0.0
      %1570 = vmatpush1.msra.mxu0 0.0
      %1571 = vmatprep.subr.mxu0 0.0
      %1572 = vmatpush1.msra.mxu0 0.0
      %1573 = vmatprep.subr.mxu0 0.0
      %1574 = vmatpush1.msra.mxu0 %v1541
      %1575 = vmatprep.subr.mxu0 0.0
      %1576 = vmatpush2.msra.mxu0 0.0
      %1577 = vmatprep.subr.mxu0 0.0
      %1578 = vmatpush2.msra.mxu0 0.0
      %1579 = vmatprep.subr.mxu0 0.0
      %1580 = vmatpush2.msra.mxu0 0.0
      %1581 = vmatprep.subr.mxu0 0.0
      %1582 = vmatpush2.msra.mxu0 0.0
      %1583 = vmatprep.subr.mxu0 0.0
      %1584 = vmatpush2.msra.mxu0 0.0
      %1585 = vmatprep.subr.mxu0 0.0
      %1586 = vmatpush2.msra.mxu0 0.0
      %1587 = vmatprep.subr.mxu0 0.0
      %1588 = vmatpush2.msra.mxu0 0.0
      %1589 = vmatprep.subr.mxu0 0.0
      %1590 = vmatpush2.msra.mxu0 0.0
      %1591 = vmatprep.subr.mxu0 0.0
      %1592 = vmatpush2.msra.mxu0 0.0
      %1593 = vmatprep.subr.mxu0 0.0
      %1594 = vmatpush2.msra.mxu0 0.0
      %1595 = vmatprep.subr.mxu0 0.0
      %1596 = vmatpush2.msra.mxu0 0.0
      %1597 = vmatprep.subr.mxu0 0.0
      %1598 = vmatpush2.msra.mxu0 0.0
      %1599 = vmatprep.subr.mxu0 0.0
      %1600 = vmatpush2.msra.mxu0 0.0
      %1601 = vmatprep.subr.mxu0 0.0
      %1602 = vmatpush2.msra.mxu0 0.0
      %1603 = vmatprep.subr.mxu0 0.0
      %1604 = vmatpush2.msra.mxu0 0.0
      %1605 = vmatprep.subr.mxu0 0.0
      %1606 = vmatpush2.msra.mxu0 0.0
      %1607 = vmatprep.mubr.f32.mxu0 0.0
      %1608 = vmatmul.mubr.f32.gmra.mxu0 %v837
      %v1609 = vpop.f32.mrf.mxu0
      %v1610 = vadd.f32 0.0, %v1609
      %v1611 = vpop.f32.mrf.mxu0
      %1612 = vmatprep.mubr.f32.mxu0 0.0
      %1613 = vmatmul.mubr.f32.gmra.mxu0 %v839
      %v1614 = vpop.f32.mrf.mxu0
      %v1615 = vadd.f32 0.0, %v1614
      %v1616 = vpop.f32.mrf.mxu0
      %1617 = vmatprep.mubr.f32.mxu0 0.0
      %1618 = vmatmul.mubr.f32.gmra.mxu0 %v841
      %v1619 = vpop.f32.mrf.mxu0
      %v1620 = vadd.f32 0.0, %v1619
      %v1621 = vpop.f32.mrf.mxu0
      %1622 = vmatprep.mubr.f32.mxu0 0.0
      %1623 = vmatmul.mubr.f32.gmra.mxu0 %v843
      %v1624 = vpop.f32.mrf.mxu0
      %v1625 = vadd.f32 0.0, %v1624
      %v1626 = vpop.f32.mrf.mxu0
      %1627 = vmatprep.mubr.f32.mxu0 0.0
      %1628 = vmatmul.mubr.f32.gmra.mxu0 %v845
      %v1629 = vpop.f32.mrf.mxu0
      %v1630 = vadd.f32 0.0, %v1629
      %v1631 = vpop.f32.mrf.mxu0
      %1632 = vmatprep.mubr.f32.mxu0 0.0
      %1633 = vmatmul.mubr.f32.gmra.mxu0 %v847
      %v1634 = vpop.f32.mrf.mxu0
      %v1635 = vadd.f32 0.0, %v1634
      %v1636 = vpop.f32.mrf.mxu0
      %1637 = vmatprep.mubr.f32.mxu0 0.0
      %1638 = vmatmul.mubr.f32.gmra.mxu0 %v849
      %v1639 = vpop.f32.mrf.mxu0
      %v1640 = vadd.f32 0.0, %v1639
      %v1641 = vpop.f32.mrf.mxu0
      %1642 = vmatprep.mubr.f32.mxu0 0.0
      %1643 = vmatmul.mubr.f32.gmra.mxu0 %v851
      %v1644 = vpop.f32.mrf.mxu0
      %v1645 = vadd.f32 0.0, %v1644
      %v1646 = vpop.f32.mrf.mxu0
      %1647 = vmatprep.mubr.f32.mxu0 0.0
      %1648 = vmatmul.mubr.f32.gmra.mxu0 %v853
      %v1649 = vpop.f32.mrf.mxu0
      %v1650 = vadd.f32 0.0, %v1649
      %v1651 = vpop.f32.mrf.mxu0
      %1652 = vmatprep.mubr.f32.mxu0 0.0
      %1653 = vmatmul.mubr.f32.gmra.mxu0 %v855
      %v1654 = vpop.f32.mrf.mxu0
      %v1655 = vadd.f32 0.0, %v1654
      %v1656 = vpop.f32.mrf.mxu0
      %1657 = vmatprep.mubr.f32.mxu0 0.0
      %1658 = vmatmul.mubr.f32.gmra.mxu0 %v857
      %v1659 = vpop.f32.mrf.mxu0
      %v1660 = vadd.f32 0.0, %v1659
      %v1661 = vpop.f32.mrf.mxu0
      %1662 = vmatprep.mubr.f32.mxu0 0.0
      %1663 = vmatmul.mubr.f32.gmra.mxu0 %v859
      %v1664 = vpop.f32.mrf.mxu0
      %v1665 = vadd.f32 0.0, %v1664
      %v1666 = vpop.f32.mrf.mxu0
      %1667 = vmatprep.mubr.f32.mxu0 0.0
      %1668 = vmatmul.mubr.f32.gmra.mxu0 %v861
      %v1669 = vpop.f32.mrf.mxu0
      %v1670 = vadd.f32 0.0, %v1669
      %v1671 = vpop.f32.mrf.mxu0
      %1672 = vmatprep.mubr.f32.mxu0 0.0
      %1673 = vmatmul.mubr.f32.gmra.mxu0 %v863
      %v1674 = vpop.f32.mrf.mxu0
      %v1675 = vadd.f32 0.0, %v1674
      %v1676 = vpop.f32.mrf.mxu0
      %1677 = vmatprep.mubr.f32.mxu0 0.0
      %1678 = vmatmul.mubr.f32.gmra.mxu0 %v865
      %v1679 = vpop.f32.mrf.mxu0
      %v1680 = vadd.f32 0.0, %v1679
      %v1681 = vpop.f32.mrf.mxu0
      %1682 = vmatprep.mubr.f32.mxu0 0.0
      %1683 = vmatmul.mubr.f32.gmra.mxu0 %v867
      %v1684 = vpop.f32.mrf.mxu0
      %v1685 = vadd.f32 0.0, %v1684
      %v1686 = vpop.f32.mrf.mxu0
      %1687 = vmatprep.mubr.f32.mxu0 0.0
      %1688 = vmatmul.mubr.f32.gmra.mxu0 %v869
      %v1689 = vpop.f32.mrf.mxu0
      %v1690 = vadd.f32 0.0, %v1689
      %v1691 = vpop.f32.mrf.mxu0
      %1692 = vmatprep.mubr.f32.mxu0 0.0
      %1693 = vmatmul.mubr.f32.gmra.mxu0 %v871
      %v1694 = vpop.f32.mrf.mxu0
      %v1695 = vadd.f32 0.0, %v1694
      %v1696 = vpop.f32.mrf.mxu0
      %1697 = vmatprep.mubr.f32.mxu0 0.0
      %1698 = vmatmul.mubr.f32.gmra.mxu0 %v873
      %v1699 = vpop.f32.mrf.mxu0
      %v1700 = vadd.f32 0.0, %v1699
      %v1701 = vpop.f32.mrf.mxu0
      %1702 = vmatprep.mubr.f32.mxu0 0.0
      %1703 = vmatmul.mubr.f32.gmra.mxu0 %v875
      %v1704 = vpop.f32.mrf.mxu0
      %v1705 = vadd.f32 0.0, %v1704
      %v1706 = vpop.f32.mrf.mxu0
      %1707 = vmatprep.mubr.f32.mxu0 0.0
      %1708 = vmatmul.mubr.f32.gmra.mxu0 %v877
      %v1709 = vpop.f32.mrf.mxu0
      %v1710 = vadd.f32 0.0, %v1709
      %v1711 = vpop.f32.mrf.mxu0
      %1712 = vmatprep.mubr.f32.mxu0 0.0
      %1713 = vmatmul.mubr.f32.gmra.mxu0 %v879
      %v1714 = vpop.f32.mrf.mxu0
      %v1715 = vadd.f32 0.0, %v1714
      %v1716 = vpop.f32.mrf.mxu0
      %1717 = vmatprep.mubr.f32.mxu0 0.0
      %1718 = vmatmul.mubr.f32.gmra.mxu0 %v881
      %v1719 = vpop.f32.mrf.mxu0
      %v1720 = vadd.f32 0.0, %v1719
      %v1721 = vpop.f32.mrf.mxu0
      %1722 = vmatprep.mubr.f32.mxu0 0.0
      %1723 = vmatmul.mubr.f32.gmra.mxu0 %v883
      %v1724 = vpop.f32.mrf.mxu0
      %v1725 = vadd.f32 0.0, %v1724
      %v1726 = vpop.f32.mrf.mxu0
      %1727 = vmatprep.mubr.f32.mxu0 0.0
      %1728 = vmatmul.mubr.f32.gmra.mxu0 %v885
      %v1729 = vpop.f32.mrf.mxu0
      %v1730 = vadd.f32 0.0, %v1729
      %v1731 = vpop.f32.mrf.mxu0
      %1732 = vmatprep.mubr.f32.mxu0 0.0
      %1733 = vmatmul.mubr.f32.gmra.mxu0 %v887
      %v1734 = vpop.f32.mrf.mxu0
      %v1735 = vadd.f32 0.0, %v1734
      %v1736 = vpop.f32.mrf.mxu0
      %1737 = vmatprep.mubr.f32.mxu0 0.0
      %1738 = vmatmul.mubr.f32.gmra.mxu0 %v889
      %v1739 = vpop.f32.mrf.mxu0
      %v1740 = vadd.f32 0.0, %v1739
      %v1741 = vpop.f32.mrf.mxu0
      %1742 = vmatprep.mubr.f32.mxu0 0.0
      %1743 = vmatmul.mubr.f32.gmra.mxu0 %v891
      %v1744 = vpop.f32.mrf.mxu0
      %v1745 = vadd.f32 0.0, %v1744
      %v1746 = vpop.f32.mrf.mxu0
      %1747 = vmatprep.mubr.f32.mxu0 0.0
      %1748 = vmatmul.mubr.f32.gmra.mxu0 %v893
      %v1749 = vpop.f32.mrf.mxu0
      %v1750 = vadd.f32 0.0, %v1749
      %v1751 = vpop.f32.mrf.mxu0
      %1752 = vmatprep.mubr.f32.mxu0 0.0
      %1753 = vmatmul.mubr.f32.gmra.mxu0 %v895
      %v1754 = vpop.f32.mrf.mxu0
      %v1755 = vadd.f32 0.0, %v1754
      %v1756 = vpop.f32.mrf.mxu0
      %1757 = vmatprep.mubr.f32.mxu0 0.0
      %1758 = vmatmul.mubr.f32.gmra.mxu0 %v1535
      %v1759 = vpop.f32.mrf.mxu0
      %v1760 = vadd.f32 0.0, %v1759
      %v1761 = vpop.f32.mrf.mxu0
      %1762 = vmatprep.mubr.f32.mxu0 0.0
      %1763 = vmatmul.mubr.f32.gmra.mxu0 %v1538
      %v1764 = vpop.f32.mrf.mxu0
      %v1765 = vadd.f32 0.0, %v1764
      %v1766 = vpop.f32.mrf.mxu0
      %1767 = vdwg.mxu0
      %v1768 = vadd.f32 %v1500, %v1610
      %v1769 = vadd.f32 %v1501, %v1615
      %v1770 = vadd.f32 %v1502, %v1620
      %v1771 = vadd.f32 %v1503, %v1625
      %v1772 = vadd.f32 %v1504, %v1630
      %v1773 = vadd.f32 %v1505, %v1635
      %v1774 = vadd.f32 %v1506, %v1640
      %v1775 = vadd.f32 %v1507, %v1645
      %v1776 = vadd.f32 %v1508, %v1650
      %v1777 = vadd.f32 %v1509, %v1655
      %v1778 = vadd.f32 %v1510, %v1660
      %v1779 = vadd.f32 %v1511, %v1665
      %v1780 = vadd.f32 %v1512, %v1670
      %v1781 = vadd.f32 %v1513, %v1675
      %v1782 = vadd.f32 %v1514, %v1680
      %v1783 = vadd.f32 %v1515, %v1685
      %v1784 = vadd.f32 %v1516, %v1690
      %v1785 = vadd.f32 %v1517, %v1695
      %v1786 = vadd.f32 %v1518, %v1700
      %v1787 = vadd.f32 %v1519, %v1705
      %v1788 = vadd.f32 %v1520, %v1710
      %v1789 = vadd.f32 %v1521, %v1715
      %v1790 = vadd.f32 %v1522, %v1720
      %v1791 = vadd.f32 %v1523, %v1725
      %v1792 = vadd.f32 %v1524, %v1730
      %v1793 = vadd.f32 %v1525, %v1735
      %v1794 = vadd.f32 %v1526, %v1740
      %v1795 = vadd.f32 %v1527, %v1745
      %v1796 = vadd.f32 %v1528, %v1750
      %v1797 = vadd.f32 %v1529, %v1755
      %v1798 = vadd.f32 %v1530, %v1760
      %v1799 = vadd.f32 %v1531, %v1765
      %v1801 = vrot.slane %v401, 1
      %v1802 = vrot.slane %v402, 1
      %v1803 = vsel %vm456, %v1801, %v1802
      %v1804 = vrot.slane %v403, 1
      %v1805 = vsel %vm456, %v1802, %v1804
      %s1806 = scalar_lea.vmem %s3, 16
      %v1807 = vld [vmem:[%s1806] sm:$0xf]
      %v1808 = vsel %vm539, %v1803, 0
      %v1810 = vsel %vm539, %v1805, 0
      %v1813 = vsel %vm604, %v1807, 0
      %1815 = vmatprep.subr.mxu0 0.0
      %1816 = vmatpush1.msra.mxu0 0.0
      %1817 = vmatprep.subr.mxu0 0.0
      %1818 = vmatpush1.msra.mxu0 0.0
      %1819 = vmatprep.subr.mxu0 0.0
      %1820 = vmatpush1.msra.mxu0 0.0
      %1821 = vmatprep.subr.mxu0 0.0
      %1822 = vmatpush1.msra.mxu0 0.0
      %1823 = vmatprep.subr.mxu0 0.0
      %1824 = vmatpush1.msra.mxu0 0.0
      %1825 = vmatprep.subr.mxu0 0.0
      %1826 = vmatpush1.msra.mxu0 0.0
      %1827 = vmatprep.subr.mxu0 0.0
      %1828 = vmatpush1.msra.mxu0 0.0
      %1829 = vmatprep.subr.mxu0 0.0
      %1830 = vmatpush1.msra.mxu0 0.0
      %1831 = vmatprep.subr.mxu0 0.0
      %1832 = vmatpush1.msra.mxu0 0.0
      %1833 = vmatprep.subr.mxu0 0.0
      %1834 = vmatpush1.msra.mxu0 0.0
      %1835 = vmatprep.subr.mxu0 0.0
      %1836 = vmatpush1.msra.mxu0 0.0
      %1837 = vmatprep.subr.mxu0 0.0
      %1838 = vmatpush1.msra.mxu0 0.0
      %1839 = vmatprep.subr.mxu0 0.0
      %1840 = vmatpush1.msra.mxu0 0.0
      %1841 = vmatprep.subr.mxu0 0.0
      %1842 = vmatpush1.msra.mxu0 0.0
      %1843 = vmatprep.subr.mxu0 0.0
      %1844 = vmatpush1.msra.mxu0 0.0
      %1845 = vmatprep.subr.mxu0 0.0
      %1846 = vmatpush1.msra.mxu0 %v1813
      %1847 = vmatprep.subr.mxu0 0.0
      %1848 = vmatpush2.msra.mxu0 0.0
      %1849 = vmatprep.subr.mxu0 0.0
      %1850 = vmatpush2.msra.mxu0 0.0
      %1851 = vmatprep.subr.mxu0 0.0
      %1852 = vmatpush2.msra.mxu0 0.0
      %1853 = vmatprep.subr.mxu0 0.0
      %1854 = vmatpush2.msra.mxu0 0.0
      %1855 = vmatprep.subr.mxu0 0.0
      %1856 = vmatpush2.msra.mxu0 0.0
      %1857 = vmatprep.subr.mxu0 0.0
      %1858 = vmatpush2.msra.mxu0 0.0
      %1859 = vmatprep.subr.mxu0 0.0
      %1860 = vmatpush2.msra.mxu0 0.0
      %1861 = vmatprep.subr.mxu0 0.0
      %1862 = vmatpush2.msra.mxu0 0.0
      %1863 = vmatprep.subr.mxu0 0.0
      %1864 = vmatpush2.msra.mxu0 0.0
      %1865 = vmatprep.subr.mxu0 0.0
      %1866 = vmatpush2.msra.mxu0 0.0
      %1867 = vmatprep.subr.mxu0 0.0
      %1868 = vmatpush2.msra.mxu0 0.0
      %1869 = vmatprep.subr.mxu0 0.0
      %1870 = vmatpush2.msra.mxu0 0.0
      %1871 = vmatprep.subr.mxu0 0.0
      %1872 = vmatpush2.msra.mxu0 0.0
      %1873 = vmatprep.subr.mxu0 0.0
      %1874 = vmatpush2.msra.mxu0 0.0
      %1875 = vmatprep.subr.mxu0 0.0
      %1876 = vmatpush2.msra.mxu0 0.0
      %1877 = vmatprep.subr.mxu0 0.0
      %1878 = vmatpush2.msra.mxu0 0.0
      %1879 = vmatprep.mubr.f32.mxu0 0.0
      %1880 = vmatmul.mubr.f32.gmra.mxu0 %v544
      %v1881 = vpop.f32.mrf.mxu0
      %v1882 = vadd.f32 0.0, %v1881
      %v1883 = vpop.f32.mrf.mxu0
      %1884 = vmatprep.mubr.f32.mxu0 0.0
      %1885 = vmatmul.mubr.f32.gmra.mxu0 %v546
      %v1886 = vpop.f32.mrf.mxu0
      %v1887 = vadd.f32 0.0, %v1886
      %v1888 = vpop.f32.mrf.mxu0
      %1889 = vmatprep.mubr.f32.mxu0 0.0
      %1890 = vmatmul.mubr.f32.gmra.mxu0 %v548
      %v1891 = vpop.f32.mrf.mxu0
      %v1892 = vadd.f32 0.0, %v1891
      %v1893 = vpop.f32.mrf.mxu0
      %1894 = vmatprep.mubr.f32.mxu0 0.0
      %1895 = vmatmul.mubr.f32.gmra.mxu0 %v550
      %v1896 = vpop.f32.mrf.mxu0
      %v1897 = vadd.f32 0.0, %v1896
      %v1898 = vpop.f32.mrf.mxu0
      %1899 = vmatprep.mubr.f32.mxu0 0.0
      %1900 = vmatmul.mubr.f32.gmra.mxu0 %v552
      %v1901 = vpop.f32.mrf.mxu0
      %v1902 = vadd.f32 0.0, %v1901
      %v1903 = vpop.f32.mrf.mxu0
      %1904 = vmatprep.mubr.f32.mxu0 0.0
      %1905 = vmatmul.mubr.f32.gmra.mxu0 %v554
      %v1906 = vpop.f32.mrf.mxu0
      %v1907 = vadd.f32 0.0, %v1906
      %v1908 = vpop.f32.mrf.mxu0
      %1909 = vmatprep.mubr.f32.mxu0 0.0
      %1910 = vmatmul.mubr.f32.gmra.mxu0 %v556
      %v1911 = vpop.f32.mrf.mxu0
      %v1912 = vadd.f32 0.0, %v1911
      %v1913 = vpop.f32.mrf.mxu0
      %1914 = vmatprep.mubr.f32.mxu0 0.0
      %1915 = vmatmul.mubr.f32.gmra.mxu0 %v558
      %v1916 = vpop.f32.mrf.mxu0
      %v1917 = vadd.f32 0.0, %v1916
      %v1918 = vpop.f32.mrf.mxu0
      %1919 = vmatprep.mubr.f32.mxu0 0.0
      %1920 = vmatmul.mubr.f32.gmra.mxu0 %v560
      %v1921 = vpop.f32.mrf.mxu0
      %v1922 = vadd.f32 0.0, %v1921
      %v1923 = vpop.f32.mrf.mxu0
      %1924 = vmatprep.mubr.f32.mxu0 0.0
      %1925 = vmatmul.mubr.f32.gmra.mxu0 %v562
      %v1926 = vpop.f32.mrf.mxu0
      %v1927 = vadd.f32 0.0, %v1926
      %v1928 = vpop.f32.mrf.mxu0
      %1929 = vmatprep.mubr.f32.mxu0 0.0
      %1930 = vmatmul.mubr.f32.gmra.mxu0 %v564
      %v1931 = vpop.f32.mrf.mxu0
      %v1932 = vadd.f32 0.0, %v1931
      %v1933 = vpop.f32.mrf.mxu0
      %1934 = vmatprep.mubr.f32.mxu0 0.0
      %1935 = vmatmul.mubr.f32.gmra.mxu0 %v566
      %v1936 = vpop.f32.mrf.mxu0
      %v1937 = vadd.f32 0.0, %v1936
      %v1938 = vpop.f32.mrf.mxu0
      %1939 = vmatprep.mubr.f32.mxu0 0.0
      %1940 = vmatmul.mubr.f32.gmra.mxu0 %v568
      %v1941 = vpop.f32.mrf.mxu0
      %v1942 = vadd.f32 0.0, %v1941
      %v1943 = vpop.f32.mrf.mxu0
      %1944 = vmatprep.mubr.f32.mxu0 0.0
      %1945 = vmatmul.mubr.f32.gmra.mxu0 %v570
      %v1946 = vpop.f32.mrf.mxu0
      %v1947 = vadd.f32 0.0, %v1946
      %v1948 = vpop.f32.mrf.mxu0
      %1949 = vmatprep.mubr.f32.mxu0 0.0
      %1950 = vmatmul.mubr.f32.gmra.mxu0 %v572
      %v1951 = vpop.f32.mrf.mxu0
      %v1952 = vadd.f32 0.0, %v1951
      %v1953 = vpop.f32.mrf.mxu0
      %1954 = vmatprep.mubr.f32.mxu0 0.0
      %1955 = vmatmul.mubr.f32.gmra.mxu0 %v574
      %v1956 = vpop.f32.mrf.mxu0
      %v1957 = vadd.f32 0.0, %v1956
      %v1958 = vpop.f32.mrf.mxu0
      %1959 = vmatprep.mubr.f32.mxu0 0.0
      %1960 = vmatmul.mubr.f32.gmra.mxu0 %v576
      %v1961 = vpop.f32.mrf.mxu0
      %v1962 = vadd.f32 0.0, %v1961
      %v1963 = vpop.f32.mrf.mxu0
      %1964 = vmatprep.mubr.f32.mxu0 0.0
      %1965 = vmatmul.mubr.f32.gmra.mxu0 %v578
      %v1966 = vpop.f32.mrf.mxu0
      %v1967 = vadd.f32 0.0, %v1966
      %v1968 = vpop.f32.mrf.mxu0
      %1969 = vmatprep.mubr.f32.mxu0 0.0
      %1970 = vmatmul.mubr.f32.gmra.mxu0 %v580
      %v1971 = vpop.f32.mrf.mxu0
      %v1972 = vadd.f32 0.0, %v1971
      %v1973 = vpop.f32.mrf.mxu0
      %1974 = vmatprep.mubr.f32.mxu0 0.0
      %1975 = vmatmul.mubr.f32.gmra.mxu0 %v582
      %v1976 = vpop.f32.mrf.mxu0
      %v1977 = vadd.f32 0.0, %v1976
      %v1978 = vpop.f32.mrf.mxu0
      %1979 = vmatprep.mubr.f32.mxu0 0.0
      %1980 = vmatmul.mubr.f32.gmra.mxu0 %v584
      %v1981 = vpop.f32.mrf.mxu0
      %v1982 = vadd.f32 0.0, %v1981
      %v1983 = vpop.f32.mrf.mxu0
      %1984 = vmatprep.mubr.f32.mxu0 0.0
      %1985 = vmatmul.mubr.f32.gmra.mxu0 %v586
      %v1986 = vpop.f32.mrf.mxu0
      %v1987 = vadd.f32 0.0, %v1986
      %v1988 = vpop.f32.mrf.mxu0
      %1989 = vmatprep.mubr.f32.mxu0 0.0
      %1990 = vmatmul.mubr.f32.gmra.mxu0 %v588
      %v1991 = vpop.f32.mrf.mxu0
      %v1992 = vadd.f32 0.0, %v1991
      %v1993 = vpop.f32.mrf.mxu0
      %1994 = vmatprep.mubr.f32.mxu0 0.0
      %1995 = vmatmul.mubr.f32.gmra.mxu0 %v590
      %v1996 = vpop.f32.mrf.mxu0
      %v1997 = vadd.f32 0.0, %v1996
      %v1998 = vpop.f32.mrf.mxu0
      %1999 = vmatprep.mubr.f32.mxu0 0.0
      %2000 = vmatmul.mubr.f32.gmra.mxu0 %v592
      %v2001 = vpop.f32.mrf.mxu0
      %v2002 = vadd.f32 0.0, %v2001
      %v2003 = vpop.f32.mrf.mxu0
      %2004 = vmatprep.mubr.f32.mxu0 0.0
      %2005 = vmatmul.mubr.f32.gmra.mxu0 %v594
      %v2006 = vpop.f32.mrf.mxu0
      %v2007 = vadd.f32 0.0, %v2006
      %v2008 = vpop.f32.mrf.mxu0
      %2009 = vmatprep.mubr.f32.mxu0 0.0
      %2010 = vmatmul.mubr.f32.gmra.mxu0 %v596
      %v2011 = vpop.f32.mrf.mxu0
      %v2012 = vadd.f32 0.0, %v2011
      %v2013 = vpop.f32.mrf.mxu0
      %2014 = vmatprep.mubr.f32.mxu0 0.0
      %2015 = vmatmul.mubr.f32.gmra.mxu0 %v598
      %v2016 = vpop.f32.mrf.mxu0
      %v2017 = vadd.f32 0.0, %v2016
      %v2018 = vpop.f32.mrf.mxu0
      %2019 = vmatprep.mubr.f32.mxu0 0.0
      %2020 = vmatmul.mubr.f32.gmra.mxu0 %v600
      %v2021 = vpop.f32.mrf.mxu0
      %v2022 = vadd.f32 0.0, %v2021
      %v2023 = vpop.f32.mrf.mxu0
      %2024 = vmatprep.mubr.f32.mxu0 0.0
      %2025 = vmatmul.mubr.f32.gmra.mxu0 %v602
      %v2026 = vpop.f32.mrf.mxu0
      %v2027 = vadd.f32 0.0, %v2026
      %v2028 = vpop.f32.mrf.mxu0
      %2029 = vmatprep.mubr.f32.mxu0 0.0
      %2030 = vmatmul.mubr.f32.gmra.mxu0 %v1808
      %v2031 = vpop.f32.mrf.mxu0
      %v2032 = vadd.f32 0.0, %v2031
      %v2033 = vpop.f32.mrf.mxu0
      %2034 = vmatprep.mubr.f32.mxu0 0.0
      %2035 = vmatmul.mubr.f32.gmra.mxu0 %v1810
      %v2036 = vpop.f32.mrf.mxu0
      %v2037 = vadd.f32 0.0, %v2036
      %v2038 = vpop.f32.mrf.mxu0
      %2039 = vdwg.mxu0
      %v2040 = vadd.f32 %v1768, %v1882
      %v2041 = vadd.f32 %v1769, %v1887
      %v2042 = vadd.f32 %v1770, %v1892
      %v2043 = vadd.f32 %v1771, %v1897
      %v2044 = vadd.f32 %v1772, %v1902
      %v2045 = vadd.f32 %v1773, %v1907
      %v2046 = vadd.f32 %v1774, %v1912
      %v2047 = vadd.f32 %v1775, %v1917
      %v2048 = vadd.f32 %v1776, %v1922
      %v2049 = vadd.f32 %v1777, %v1927
      %v2050 = vadd.f32 %v1778, %v1932
      %v2051 = vadd.f32 %v1779, %v1937
      %v2052 = vadd.f32 %v1780, %v1942
      %v2053 = vadd.f32 %v1781, %v1947
      %v2054 = vadd.f32 %v1782, %v1952
      %v2055 = vadd.f32 %v1783, %v1957
      %v2056 = vadd.f32 %v1784, %v1962
      %v2057 = vadd.f32 %v1785, %v1967
      %v2058 = vadd.f32 %v1786, %v1972
      %v2059 = vadd.f32 %v1787, %v1977
      %v2060 = vadd.f32 %v1788, %v1982
      %v2061 = vadd.f32 %v1789, %v1987
      %v2062 = vadd.f32 %v1790, %v1992
      %v2063 = vadd.f32 %v1791, %v1997
      %v2064 = vadd.f32 %v1792, %v2002
      %v2065 = vadd.f32 %v1793, %v2007
      %v2066 = vadd.f32 %v1794, %v2012
      %v2067 = vadd.f32 %v1795, %v2017
      %v2068 = vadd.f32 %v1796, %v2022
      %v2069 = vadd.f32 %v1797, %v2027
      %v2070 = vadd.f32 %v1798, %v2032
      %v2071 = vadd.f32 %v1799, %v2037
      %v2072 = vrot.slane %v401, 2
      %v2073 = vrot.slane %v402, 2
      %v2074 = vsel %vm1125, %v2072, %v2073
      %v2075 = vrot.slane %v403, 2
      %v2076 = vsel %vm1125, %v2073, %v2075
      %s2077 = scalar_lea.vmem %s3, 20
      %v2078 = vld [vmem:[%s2077] sm:$0xf]
      %v2079 = vsel %vm539, %v2074, 0
      %v2081 = vsel %vm539, %v2076, 0
      %v2084 = vsel %vm604, %v2078, 0
      %2086 = vmatprep.subr.mxu0 0.0
      %2087 = vmatpush1.msra.mxu0 0.0
      %2088 = vmatprep.subr.mxu0 0.0
      %2089 = vmatpush1.msra.mxu0 0.0
      %2090 = vmatprep.subr.mxu0 0.0
      %2091 = vmatpush1.msra.mxu0 0.0
      %2092 = vmatprep.subr.mxu0 0.0
      %2093 = vmatpush1.msra.mxu0 0.0
      %2094 = vmatprep.subr.mxu0 0.0
      %2095 = vmatpush1.msra.mxu0 0.0
      %2096 = vmatprep.subr.mxu0 0.0
      %2097 = vmatpush1.msra.mxu0 0.0
      %2098 = vmatprep.subr.mxu0 0.0
      %2099 = vmatpush1.msra.mxu0 0.0
      %2100 = vmatprep.subr.mxu0 0.0
      %2101 = vmatpush1.msra.mxu0 0.0
      %2102 = vmatprep.subr.mxu0 0.0
      %2103 = vmatpush1.msra.mxu0 0.0
      %2104 = vmatprep.subr.mxu0 0.0
      %2105 = vmatpush1.msra.mxu0 0.0
      %2106 = vmatprep.subr.mxu0 0.0
      %2107 = vmatpush1.msra.mxu0 0.0
      %2108 = vmatprep.subr.mxu0 0.0
      %2109 = vmatpush1.msra.mxu0 0.0
      %2110 = vmatprep.subr.mxu0 0.0
      %2111 = vmatpush1.msra.mxu0 0.0
      %2112 = vmatprep.subr.mxu0 0.0
      %2113 = vmatpush1.msra.mxu0 0.0
      %2114 = vmatprep.subr.mxu0 0.0
      %2115 = vmatpush1.msra.mxu0 0.0
      %2116 = vmatprep.subr.mxu0 0.0
      %2117 = vmatpush1.msra.mxu0 %v2084
      %2118 = vmatprep.subr.mxu0 0.0
      %2119 = vmatpush2.msra.mxu0 0.0
      %2120 = vmatprep.subr.mxu0 0.0
      %2121 = vmatpush2.msra.mxu0 0.0
      %2122 = vmatprep.subr.mxu0 0.0
      %2123 = vmatpush2.msra.mxu0 0.0
      %2124 = vmatprep.subr.mxu0 0.0
      %2125 = vmatpush2.msra.mxu0 0.0
      %2126 = vmatprep.subr.mxu0 0.0
      %2127 = vmatpush2.msra.mxu0 0.0
      %2128 = vmatprep.subr.mxu0 0.0
      %2129 = vmatpush2.msra.mxu0 0.0
      %2130 = vmatprep.subr.mxu0 0.0
      %2131 = vmatpush2.msra.mxu0 0.0
      %2132 = vmatprep.subr.mxu0 0.0
      %2133 = vmatpush2.msra.mxu0 0.0
      %2134 = vmatprep.subr.mxu0 0.0
      %2135 = vmatpush2.msra.mxu0 0.0
      %2136 = vmatprep.subr.mxu0 0.0
      %2137 = vmatpush2.msra.mxu0 0.0
      %2138 = vmatprep.subr.mxu0 0.0
      %2139 = vmatpush2.msra.mxu0 0.0
      %2140 = vmatprep.subr.mxu0 0.0
      %2141 = vmatpush2.msra.mxu0 0.0
      %2142 = vmatprep.subr.mxu0 0.0
      %2143 = vmatpush2.msra.mxu0 0.0
      %2144 = vmatprep.subr.mxu0 0.0
      %2145 = vmatpush2.msra.mxu0 0.0
      %2146 = vmatprep.subr.mxu0 0.0
      %2147 = vmatpush2.msra.mxu0 0.0
      %2148 = vmatprep.subr.mxu0 0.0
      %2149 = vmatpush2.msra.mxu0 0.0
      %2150 = vmatprep.mubr.f32.mxu0 0.0
      %2151 = vmatmul.mubr.f32.gmra.mxu0 %v1212
      %v2152 = vpop.f32.mrf.mxu0
      %v2153 = vadd.f32 0.0, %v2152
      %v2154 = vpop.f32.mrf.mxu0
      %2155 = vmatprep.mubr.f32.mxu0 0.0
      %2156 = vmatmul.mubr.f32.gmra.mxu0 %v1214
      %v2157 = vpop.f32.mrf.mxu0
      %v2158 = vadd.f32 0.0, %v2157
      %v2159 = vpop.f32.mrf.mxu0
      %2160 = vmatprep.mubr.f32.mxu0 0.0
      %2161 = vmatmul.mubr.f32.gmra.mxu0 %v1216
      %v2162 = vpop.f32.mrf.mxu0
      %v2163 = vadd.f32 0.0, %v2162
      %v2164 = vpop.f32.mrf.mxu0
      %2165 = vmatprep.mubr.f32.mxu0 0.0
      %2166 = vmatmul.mubr.f32.gmra.mxu0 %v1218
      %v2167 = vpop.f32.mrf.mxu0
      %v2168 = vadd.f32 0.0, %v2167
      %v2169 = vpop.f32.mrf.mxu0
      %2170 = vmatprep.mubr.f32.mxu0 0.0
      %2171 = vmatmul.mubr.f32.gmra.mxu0 %v1220
      %v2172 = vpop.f32.mrf.mxu0
      %v2173 = vadd.f32 0.0, %v2172
      %v2174 = vpop.f32.mrf.mxu0
      %2175 = vmatprep.mubr.f32.mxu0 0.0
      %2176 = vmatmul.mubr.f32.gmra.mxu0 %v1222
      %v2177 = vpop.f32.mrf.mxu0
      %v2178 = vadd.f32 0.0, %v2177
      %v2179 = vpop.f32.mrf.mxu0
      %2180 = vmatprep.mubr.f32.mxu0 0.0
      %2181 = vmatmul.mubr.f32.gmra.mxu0 %v1224
      %v2182 = vpop.f32.mrf.mxu0
      %v2183 = vadd.f32 0.0, %v2182
      %v2184 = vpop.f32.mrf.mxu0
      %2185 = vmatprep.mubr.f32.mxu0 0.0
      %2186 = vmatmul.mubr.f32.gmra.mxu0 %v1226
      %v2187 = vpop.f32.mrf.mxu0
      %v2188 = vadd.f32 0.0, %v2187
      %v2189 = vpop.f32.mrf.mxu0
      %2190 = vmatprep.mubr.f32.mxu0 0.0
      %2191 = vmatmul.mubr.f32.gmra.mxu0 %v1228
      %v2192 = vpop.f32.mrf.mxu0
      %v2193 = vadd.f32 0.0, %v2192
      %v2194 = vpop.f32.mrf.mxu0
      %2195 = vmatprep.mubr.f32.mxu0 0.0
      %2196 = vmatmul.mubr.f32.gmra.mxu0 %v1230
      %v2197 = vpop.f32.mrf.mxu0
      %v2198 = vadd.f32 0.0, %v2197
      %v2199 = vpop.f32.mrf.mxu0
      %2200 = vmatprep.mubr.f32.mxu0 0.0
      %2201 = vmatmul.mubr.f32.gmra.mxu0 %v1232
      %v2202 = vpop.f32.mrf.mxu0
      %v2203 = vadd.f32 0.0, %v2202
      %v2204 = vpop.f32.mrf.mxu0
      %2205 = vmatprep.mubr.f32.mxu0 0.0
      %2206 = vmatmul.mubr.f32.gmra.mxu0 %v1234
      %v2207 = vpop.f32.mrf.mxu0
      %v2208 = vadd.f32 0.0, %v2207
      %v2209 = vpop.f32.mrf.mxu0
      %2210 = vmatprep.mubr.f32.mxu0 0.0
      %2211 = vmatmul.mubr.f32.gmra.mxu0 %v1236
      %v2212 = vpop.f32.mrf.mxu0
      %v2213 = vadd.f32 0.0, %v2212
      %v2214 = vpop.f32.mrf.mxu0
      %2215 = vmatprep.mubr.f32.mxu0 0.0
      %2216 = vmatmul.mubr.f32.gmra.mxu0 %v1238
      %v2217 = vpop.f32.mrf.mxu0
      %v2218 = vadd.f32 0.0, %v2217
      %v2219 = vpop.f32.mrf.mxu0
      %2220 = vmatprep.mubr.f32.mxu0 0.0
      %2221 = vmatmul.mubr.f32.gmra.mxu0 %v1240
      %v2222 = vpop.f32.mrf.mxu0
      %v2223 = vadd.f32 0.0, %v2222
      %v2224 = vpop.f32.mrf.mxu0
      %2225 = vmatprep.mubr.f32.mxu0 0.0
      %2226 = vmatmul.mubr.f32.gmra.mxu0 %v1242
      %v2227 = vpop.f32.mrf.mxu0
      %v2228 = vadd.f32 0.0, %v2227
      %v2229 = vpop.f32.mrf.mxu0
      %2230 = vmatprep.mubr.f32.mxu0 0.0
      %2231 = vmatmul.mubr.f32.gmra.mxu0 %v1244
      %v2232 = vpop.f32.mrf.mxu0
      %v2233 = vadd.f32 0.0, %v2232
      %v2234 = vpop.f32.mrf.mxu0
      %2235 = vmatprep.mubr.f32.mxu0 0.0
      %2236 = vmatmul.mubr.f32.gmra.mxu0 %v1246
      %v2237 = vpop.f32.mrf.mxu0
      %v2238 = vadd.f32 0.0, %v2237
      %v2239 = vpop.f32.mrf.mxu0
      %2240 = vmatprep.mubr.f32.mxu0 0.0
      %2241 = vmatmul.mubr.f32.gmra.mxu0 %v1248
      %v2242 = vpop.f32.mrf.mxu0
      %v2243 = vadd.f32 0.0, %v2242
      %v2244 = vpop.f32.mrf.mxu0
      %2245 = vmatprep.mubr.f32.mxu0 0.0
      %2246 = vmatmul.mubr.f32.gmra.mxu0 %v1250
      %v2247 = vpop.f32.mrf.mxu0
      %v2248 = vadd.f32 0.0, %v2247
      %v2249 = vpop.f32.mrf.mxu0
      %2250 = vmatprep.mubr.f32.mxu0 0.0
      %2251 = vmatmul.mubr.f32.gmra.mxu0 %v1252
      %v2252 = vpop.f32.mrf.mxu0
      %v2253 = vadd.f32 0.0, %v2252
      %v2254 = vpop.f32.mrf.mxu0
      %2255 = vmatprep.mubr.f32.mxu0 0.0
      %2256 = vmatmul.mubr.f32.gmra.mxu0 %v1254
      %v2257 = vpop.f32.mrf.mxu0
      %v2258 = vadd.f32 0.0, %v2257
      %v2259 = vpop.f32.mrf.mxu0
      %2260 = vmatprep.mubr.f32.mxu0 0.0
      %2261 = vmatmul.mubr.f32.gmra.mxu0 %v1256
      %v2262 = vpop.f32.mrf.mxu0
      %v2263 = vadd.f32 0.0, %v2262
      %v2264 = vpop.f32.mrf.mxu0
      %2265 = vmatprep.mubr.f32.mxu0 0.0
      %2266 = vmatmul.mubr.f32.gmra.mxu0 %v1258
      %v2267 = vpop.f32.mrf.mxu0
      %v2268 = vadd.f32 0.0, %v2267
      %v2269 = vpop.f32.mrf.mxu0
      %2270 = vmatprep.mubr.f32.mxu0 0.0
      %2271 = vmatmul.mubr.f32.gmra.mxu0 %v1260
      %v2272 = vpop.f32.mrf.mxu0
      %v2273 = vadd.f32 0.0, %v2272
      %v2274 = vpop.f32.mrf.mxu0
      %2275 = vmatprep.mubr.f32.mxu0 0.0
      %2276 = vmatmul.mubr.f32.gmra.mxu0 %v1262
      %v2277 = vpop.f32.mrf.mxu0
      %v2278 = vadd.f32 0.0, %v2277
      %v2279 = vpop.f32.mrf.mxu0
      %2280 = vmatprep.mubr.f32.mxu0 0.0
      %2281 = vmatmul.mubr.f32.gmra.mxu0 %v1264
      %v2282 = vpop.f32.mrf.mxu0
      %v2283 = vadd.f32 0.0, %v2282
      %v2284 = vpop.f32.mrf.mxu0
      %2285 = vmatprep.mubr.f32.mxu0 0.0
      %2286 = vmatmul.mubr.f32.gmra.mxu0 %v1266
      %v2287 = vpop.f32.mrf.mxu0
      %v2288 = vadd.f32 0.0, %v2287
      %v2289 = vpop.f32.mrf.mxu0
      %2290 = vmatprep.mubr.f32.mxu0 0.0
      %2291 = vmatmul.mubr.f32.gmra.mxu0 %v1268
      %v2292 = vpop.f32.mrf.mxu0
      %v2293 = vadd.f32 0.0, %v2292
      %v2294 = vpop.f32.mrf.mxu0
      %2295 = vmatprep.mubr.f32.mxu0 0.0
      %2296 = vmatmul.mubr.f32.gmra.mxu0 %v1270
      %v2297 = vpop.f32.mrf.mxu0
      %v2298 = vadd.f32 0.0, %v2297
      %v2299 = vpop.f32.mrf.mxu0
      %2300 = vmatprep.mubr.f32.mxu0 0.0
      %2301 = vmatmul.mubr.f32.gmra.mxu0 %v2079
      %v2302 = vpop.f32.mrf.mxu0
      %v2303 = vadd.f32 0.0, %v2302
      %v2304 = vpop.f32.mrf.mxu0
      %2305 = vmatprep.mubr.f32.mxu0 0.0
      %2306 = vmatmul.mubr.f32.gmra.mxu0 %v2081
      %v2307 = vpop.f32.mrf.mxu0
      %v2308 = vadd.f32 0.0, %v2307
      %v2309 = vpop.f32.mrf.mxu0
      %2310 = vdwg.mxu0
      %v2311 = vadd.f32 %v2040, %v2153
      %v2312 = vadd.f32 %v2041, %v2158
      %v2313 = vadd.f32 %v2042, %v2163
      %v2314 = vadd.f32 %v2043, %v2168
      %v2315 = vadd.f32 %v2044, %v2173
      %v2316 = vadd.f32 %v2045, %v2178
      %v2317 = vadd.f32 %v2046, %v2183
      %v2318 = vadd.f32 %v2047, %v2188
      %v2319 = vadd.f32 %v2048, %v2193
      %v2320 = vadd.f32 %v2049, %v2198
      %v2321 = vadd.f32 %v2050, %v2203
      %v2322 = vadd.f32 %v2051, %v2208
      %v2323 = vadd.f32 %v2052, %v2213
      %v2324 = vadd.f32 %v2053, %v2218
      %v2325 = vadd.f32 %v2054, %v2223
      %v2326 = vadd.f32 %v2055, %v2228
      %v2327 = vadd.f32 %v2056, %v2233
      %v2328 = vadd.f32 %v2057, %v2238
      %v2329 = vadd.f32 %v2058, %v2243
      %v2330 = vadd.f32 %v2059, %v2248
      %v2331 = vadd.f32 %v2060, %v2253
      %v2332 = vadd.f32 %v2061, %v2258
      %v2333 = vadd.f32 %v2062, %v2263
      %v2334 = vadd.f32 %v2063, %v2268
      %v2335 = vadd.f32 %v2064, %v2273
      %v2336 = vadd.f32 %v2065, %v2278
      %v2337 = vadd.f32 %v2066, %v2283
      %v2338 = vadd.f32 %v2067, %v2288
      %v2339 = vadd.f32 %v2068, %v2293
      %v2340 = vadd.f32 %v2069, %v2298
      %v2341 = vadd.f32 %v2070, %v2303
      %v2342 = vadd.f32 %v2071, %v2308
      %s2343 = scalar_lea.vmem %s3, 24
      %v2344 = vld [vmem:[%s2343] sm:$0xf]
      %v2346 = vsel %vm539, %v404, 0
      %v2349 = vsel %vm539, %v405, 0
      %v2352 = vsel %vm604, %v2344, 0
      %2354 = vmatprep.subr.mxu0 0.0
      %2355 = vmatpush1.msra.mxu0 0.0
      %2356 = vmatprep.subr.mxu0 0.0
      %2357 = vmatpush1.msra.mxu0 0.0
      %2358 = vmatprep.subr.mxu0 0.0
      %2359 = vmatpush1.msra.mxu0 0.0
      %2360 = vmatprep.subr.mxu0 0.0
      %2361 = vmatpush1.msra.mxu0 0.0
      %2362 = vmatprep.subr.mxu0 0.0
      %2363 = vmatpush1.msra.mxu0 0.0
      %2364 = vmatprep.subr.mxu0 0.0
      %2365 = vmatpush1.msra.mxu0 0.0
      %2366 = vmatprep.subr.mxu0 0.0
      %2367 = vmatpush1.msra.mxu0 0.0
      %2368 = vmatprep.subr.mxu0 0.0
      %2369 = vmatpush1.msra.mxu0 0.0
      %2370 = vmatprep.subr.mxu0 0.0
      %2371 = vmatpush1.msra.mxu0 0.0
      %2372 = vmatprep.subr.mxu0 0.0
      %2373 = vmatpush1.msra.mxu0 0.0
      %2374 = vmatprep.subr.mxu0 0.0
      %2375 = vmatpush1.msra.mxu0 0.0
      %2376 = vmatprep.subr.mxu0 0.0
      %2377 = vmatpush1.msra.mxu0 0.0
      %2378 = vmatprep.subr.mxu0 0.0
      %2379 = vmatpush1.msra.mxu0 0.0
      %2380 = vmatprep.subr.mxu0 0.0
      %2381 = vmatpush1.msra.mxu0 0.0
      %2382 = vmatprep.subr.mxu0 0.0
      %2383 = vmatpush1.msra.mxu0 0.0
      %2384 = vmatprep.subr.mxu0 0.0
      %2385 = vmatpush1.msra.mxu0 %v2352
      %2386 = vmatprep.subr.mxu0 0.0
      %2387 = vmatpush2.msra.mxu0 0.0
      %2388 = vmatprep.subr.mxu0 0.0
      %2389 = vmatpush2.msra.mxu0 0.0
      %2390 = vmatprep.subr.mxu0 0.0
      %2391 = vmatpush2.msra.mxu0 0.0
      %2392 = vmatprep.subr.mxu0 0.0
      %2393 = vmatpush2.msra.mxu0 0.0
      %2394 = vmatprep.subr.mxu0 0.0
      %2395 = vmatpush2.msra.mxu0 0.0
      %2396 = vmatprep.subr.mxu0 0.0
      %2397 = vmatpush2.msra.mxu0 0.0
      %2398 = vmatprep.subr.mxu0 0.0
      %2399 = vmatpush2.msra.mxu0 0.0
      %2400 = vmatprep.subr.mxu0 0.0
      %2401 = vmatpush2.msra.mxu0 0.0
      %2402 = vmatprep.subr.mxu0 0.0
      %2403 = vmatpush2.msra.mxu0 0.0
      %2404 = vmatprep.subr.mxu0 0.0
      %2405 = vmatpush2.msra.mxu0 0.0
      %2406 = vmatprep.subr.mxu0 0.0
      %2407 = vmatpush2.msra.mxu0 0.0
      %2408 = vmatprep.subr.mxu0 0.0
      %2409 = vmatpush2.msra.mxu0 0.0
      %2410 = vmatprep.subr.mxu0 0.0
      %2411 = vmatpush2.msra.mxu0 0.0
      %2412 = vmatprep.subr.mxu0 0.0
      %2413 = vmatpush2.msra.mxu0 0.0
      %2414 = vmatprep.subr.mxu0 0.0
      %2415 = vmatpush2.msra.mxu0 0.0
      %2416 = vmatprep.subr.mxu0 0.0
      %2417 = vmatpush2.msra.mxu0 0.0
      %2418 = vmatprep.mubr.f32.mxu0 0.0
      %2419 = vmatmul.mubr.f32.gmra.mxu0 %v841
      %v2420 = vpop.f32.mrf.mxu0
      %v2421 = vadd.f32 0.0, %v2420
      %v2422 = vpop.f32.mrf.mxu0
      %2423 = vmatprep.mubr.f32.mxu0 0.0
      %2424 = vmatmul.mubr.f32.gmra.mxu0 %v843
      %v2425 = vpop.f32.mrf.mxu0
      %v2426 = vadd.f32 0.0, %v2425
      %v2427 = vpop.f32.mrf.mxu0
      %2428 = vmatprep.mubr.f32.mxu0 0.0
      %2429 = vmatmul.mubr.f32.gmra.mxu0 %v845
      %v2430 = vpop.f32.mrf.mxu0
      %v2431 = vadd.f32 0.0, %v2430
      %v2432 = vpop.f32.mrf.mxu0
      %2433 = vmatprep.mubr.f32.mxu0 0.0
      %2434 = vmatmul.mubr.f32.gmra.mxu0 %v847
      %v2435 = vpop.f32.mrf.mxu0
      %v2436 = vadd.f32 0.0, %v2435
      %v2437 = vpop.f32.mrf.mxu0
      %2438 = vmatprep.mubr.f32.mxu0 0.0
      %2439 = vmatmul.mubr.f32.gmra.mxu0 %v849
      %v2440 = vpop.f32.mrf.mxu0
      %v2441 = vadd.f32 0.0, %v2440
      %v2442 = vpop.f32.mrf.mxu0
      %2443 = vmatprep.mubr.f32.mxu0 0.0
      %2444 = vmatmul.mubr.f32.gmra.mxu0 %v851
      %v2445 = vpop.f32.mrf.mxu0
      %v2446 = vadd.f32 0.0, %v2445
      %v2447 = vpop.f32.mrf.mxu0
      %2448 = vmatprep.mubr.f32.mxu0 0.0
      %2449 = vmatmul.mubr.f32.gmra.mxu0 %v853
      %v2450 = vpop.f32.mrf.mxu0
      %v2451 = vadd.f32 0.0, %v2450
      %v2452 = vpop.f32.mrf.mxu0
      %2453 = vmatprep.mubr.f32.mxu0 0.0
      %2454 = vmatmul.mubr.f32.gmra.mxu0 %v855
      %v2455 = vpop.f32.mrf.mxu0
      %v2456 = vadd.f32 0.0, %v2455
      %v2457 = vpop.f32.mrf.mxu0
      %2458 = vmatprep.mubr.f32.mxu0 0.0
      %2459 = vmatmul.mubr.f32.gmra.mxu0 %v857
      %v2460 = vpop.f32.mrf.mxu0
      %v2461 = vadd.f32 0.0, %v2460
      %v2462 = vpop.f32.mrf.mxu0
      %2463 = vmatprep.mubr.f32.mxu0 0.0
      %2464 = vmatmul.mubr.f32.gmra.mxu0 %v859
      %v2465 = vpop.f32.mrf.mxu0
      %v2466 = vadd.f32 0.0, %v2465
      %v2467 = vpop.f32.mrf.mxu0
      %2468 = vmatprep.mubr.f32.mxu0 0.0
      %2469 = vmatmul.mubr.f32.gmra.mxu0 %v861
      %v2470 = vpop.f32.mrf.mxu0
      %v2471 = vadd.f32 0.0, %v2470
      %v2472 = vpop.f32.mrf.mxu0
      %2473 = vmatprep.mubr.f32.mxu0 0.0
      %2474 = vmatmul.mubr.f32.gmra.mxu0 %v863
      %v2475 = vpop.f32.mrf.mxu0
      %v2476 = vadd.f32 0.0, %v2475
      %v2477 = vpop.f32.mrf.mxu0
      %2478 = vmatprep.mubr.f32.mxu0 0.0
      %2479 = vmatmul.mubr.f32.gmra.mxu0 %v865
      %v2480 = vpop.f32.mrf.mxu0
      %v2481 = vadd.f32 0.0, %v2480
      %v2482 = vpop.f32.mrf.mxu0
      %2483 = vmatprep.mubr.f32.mxu0 0.0
      %2484 = vmatmul.mubr.f32.gmra.mxu0 %v867
      %v2485 = vpop.f32.mrf.mxu0
      %v2486 = vadd.f32 0.0, %v2485
      %v2487 = vpop.f32.mrf.mxu0
      %2488 = vmatprep.mubr.f32.mxu0 0.0
      %2489 = vmatmul.mubr.f32.gmra.mxu0 %v869
      %v2490 = vpop.f32.mrf.mxu0
      %v2491 = vadd.f32 0.0, %v2490
      %v2492 = vpop.f32.mrf.mxu0
      %2493 = vmatprep.mubr.f32.mxu0 0.0
      %2494 = vmatmul.mubr.f32.gmra.mxu0 %v871
      %v2495 = vpop.f32.mrf.mxu0
      %v2496 = vadd.f32 0.0, %v2495
      %v2497 = vpop.f32.mrf.mxu0
      %2498 = vmatprep.mubr.f32.mxu0 0.0
      %2499 = vmatmul.mubr.f32.gmra.mxu0 %v873
      %v2500 = vpop.f32.mrf.mxu0
      %v2501 = vadd.f32 0.0, %v2500
      %v2502 = vpop.f32.mrf.mxu0
      %2503 = vmatprep.mubr.f32.mxu0 0.0
      %2504 = vmatmul.mubr.f32.gmra.mxu0 %v875
      %v2505 = vpop.f32.mrf.mxu0
      %v2506 = vadd.f32 0.0, %v2505
      %v2507 = vpop.f32.mrf.mxu0
      %2508 = vmatprep.mubr.f32.mxu0 0.0
      %2509 = vmatmul.mubr.f32.gmra.mxu0 %v877
      %v2510 = vpop.f32.mrf.mxu0
      %v2511 = vadd.f32 0.0, %v2510
      %v2512 = vpop.f32.mrf.mxu0
      %2513 = vmatprep.mubr.f32.mxu0 0.0
      %2514 = vmatmul.mubr.f32.gmra.mxu0 %v879
      %v2515 = vpop.f32.mrf.mxu0
      %v2516 = vadd.f32 0.0, %v2515
      %v2517 = vpop.f32.mrf.mxu0
      %2518 = vmatprep.mubr.f32.mxu0 0.0
      %2519 = vmatmul.mubr.f32.gmra.mxu0 %v881
      %v2520 = vpop.f32.mrf.mxu0
      %v2521 = vadd.f32 0.0, %v2520
      %v2522 = vpop.f32.mrf.mxu0
      %2523 = vmatprep.mubr.f32.mxu0 0.0
      %2524 = vmatmul.mubr.f32.gmra.mxu0 %v883
      %v2525 = vpop.f32.mrf.mxu0
      %v2526 = vadd.f32 0.0, %v2525
      %v2527 = vpop.f32.mrf.mxu0
      %2528 = vmatprep.mubr.f32.mxu0 0.0
      %2529 = vmatmul.mubr.f32.gmra.mxu0 %v885
      %v2530 = vpop.f32.mrf.mxu0
      %v2531 = vadd.f32 0.0, %v2530
      %v2532 = vpop.f32.mrf.mxu0
      %2533 = vmatprep.mubr.f32.mxu0 0.0
      %2534 = vmatmul.mubr.f32.gmra.mxu0 %v887
      %v2535 = vpop.f32.mrf.mxu0
      %v2536 = vadd.f32 0.0, %v2535
      %v2537 = vpop.f32.mrf.mxu0
      %2538 = vmatprep.mubr.f32.mxu0 0.0
      %2539 = vmatmul.mubr.f32.gmra.mxu0 %v889
      %v2540 = vpop.f32.mrf.mxu0
      %v2541 = vadd.f32 0.0, %v2540
      %v2542 = vpop.f32.mrf.mxu0
      %2543 = vmatprep.mubr.f32.mxu0 0.0
      %2544 = vmatmul.mubr.f32.gmra.mxu0 %v891
      %v2545 = vpop.f32.mrf.mxu0
      %v2546 = vadd.f32 0.0, %v2545
      %v2547 = vpop.f32.mrf.mxu0
      %2548 = vmatprep.mubr.f32.mxu0 0.0
      %2549 = vmatmul.mubr.f32.gmra.mxu0 %v893
      %v2550 = vpop.f32.mrf.mxu0
      %v2551 = vadd.f32 0.0, %v2550
      %v2552 = vpop.f32.mrf.mxu0
      %2553 = vmatprep.mubr.f32.mxu0 0.0
      %2554 = vmatmul.mubr.f32.gmra.mxu0 %v895
      %v2555 = vpop.f32.mrf.mxu0
      %v2556 = vadd.f32 0.0, %v2555
      %v2557 = vpop.f32.mrf.mxu0
      %2558 = vmatprep.mubr.f32.mxu0 0.0
      %2559 = vmatmul.mubr.f32.gmra.mxu0 %v1535
      %v2560 = vpop.f32.mrf.mxu0
      %v2561 = vadd.f32 0.0, %v2560
      %v2562 = vpop.f32.mrf.mxu0
      %2563 = vmatprep.mubr.f32.mxu0 0.0
      %2564 = vmatmul.mubr.f32.gmra.mxu0 %v1538
      %v2565 = vpop.f32.mrf.mxu0
      %v2566 = vadd.f32 0.0, %v2565
      %v2567 = vpop.f32.mrf.mxu0
      %2568 = vmatprep.mubr.f32.mxu0 0.0
      %2569 = vmatmul.mubr.f32.gmra.mxu0 %v2346
      %v2570 = vpop.f32.mrf.mxu0
      %v2571 = vadd.f32 0.0, %v2570
      %v2572 = vpop.f32.mrf.mxu0
      %2573 = vmatprep.mubr.f32.mxu0 0.0
      %2574 = vmatmul.mubr.f32.gmra.mxu0 %v2349
      %v2575 = vpop.f32.mrf.mxu0
      %v2576 = vadd.f32 0.0, %v2575
      %v2577 = vpop.f32.mrf.mxu0
      %2578 = vdwg.mxu0
      %v2579 = vadd.f32 %v2311, %v2421
      %v2580 = vadd.f32 %v2312, %v2426
      %v2581 = vadd.f32 %v2313, %v2431
      %v2582 = vadd.f32 %v2314, %v2436
      %v2583 = vadd.f32 %v2315, %v2441
      %v2584 = vadd.f32 %v2316, %v2446
      %v2585 = vadd.f32 %v2317, %v2451
      %v2586 = vadd.f32 %v2318, %v2456
      %v2587 = vadd.f32 %v2319, %v2461
      %v2588 = vadd.f32 %v2320, %v2466
      %v2589 = vadd.f32 %v2321, %v2471
      %v2590 = vadd.f32 %v2322, %v2476
      %v2591 = vadd.f32 %v2323, %v2481
      %v2592 = vadd.f32 %v2324, %v2486
      %v2593 = vadd.f32 %v2325, %v2491
      %v2594 = vadd.f32 %v2326, %v2496
      %v2595 = vadd.f32 %v2327, %v2501
      %v2596 = vadd.f32 %v2328, %v2506
      %v2597 = vadd.f32 %v2329, %v2511
      %v2598 = vadd.f32 %v2330, %v2516
      %v2599 = vadd.f32 %v2331, %v2521
      %v2600 = vadd.f32 %v2332, %v2526
      %v2601 = vadd.f32 %v2333, %v2531
      %v2602 = vadd.f32 %v2334, %v2536
      %v2603 = vadd.f32 %v2335, %v2541
      %v2604 = vadd.f32 %v2336, %v2546
      %v2605 = vadd.f32 %v2337, %v2551
      %v2606 = vadd.f32 %v2338, %v2556
      %v2607 = vadd.f32 %v2339, %v2561
      %v2608 = vadd.f32 %v2340, %v2566
      %v2609 = vadd.f32 %v2341, %v2571
      %v2610 = vadd.f32 %v2342, %v2576
      %v2612 = vrot.slane %v404, 1
      %v2613 = vrot.slane %v405, 1
      %v2614 = vsel %vm456, %v2612, %v2613
      %v2615 = vrot.slane %v406, 1
      %v2616 = vsel %vm456, %v2613, %v2615
      %s2617 = scalar_lea.vmem %s3, 28
      %v2618 = vld [vmem:[%s2617] sm:$0xf]
      %v2619 = vsel %vm539, %v2614, 0
      %v2621 = vsel %vm539, %v2616, 0
      %v2624 = vsel %vm604, %v2618, 0
      %2626 = vmatprep.subr.mxu0 0.0
      %2627 = vmatpush1.msra.mxu0 0.0
      %2628 = vmatprep.subr.mxu0 0.0
      %2629 = vmatpush1.msra.mxu0 0.0
      %2630 = vmatprep.subr.mxu0 0.0
      %2631 = vmatpush1.msra.mxu0 0.0
      %2632 = vmatprep.subr.mxu0 0.0
      %2633 = vmatpush1.msra.mxu0 0.0
      %2634 = vmatprep.subr.mxu0 0.0
      %2635 = vmatpush1.msra.mxu0 0.0
      %2636 = vmatprep.subr.mxu0 0.0
      %2637 = vmatpush1.msra.mxu0 0.0
      %2638 = vmatprep.subr.mxu0 0.0
      %2639 = vmatpush1.msra.mxu0 0.0
      %2640 = vmatprep.subr.mxu0 0.0
      %2641 = vmatpush1.msra.mxu0 0.0
      %2642 = vmatprep.subr.mxu0 0.0
      %2643 = vmatpush1.msra.mxu0 0.0
      %2644 = vmatprep.subr.mxu0 0.0
      %2645 = vmatpush1.msra.mxu0 0.0
      %2646 = vmatprep.subr.mxu0 0.0
      %2647 = vmatpush1.msra.mxu0 0.0
      %2648 = vmatprep.subr.mxu0 0.0
      %2649 = vmatpush1.msra.mxu0 0.0
      %2650 = vmatprep.subr.mxu0 0.0
      %2651 = vmatpush1.msra.mxu0 0.0
      %2652 = vmatprep.subr.mxu0 0.0
      %2653 = vmatpush1.msra.mxu0 0.0
      %2654 = vmatprep.subr.mxu0 0.0
      %2655 = vmatpush1.msra.mxu0 0.0
      %2656 = vmatprep.subr.mxu0 0.0
      %2657 = vmatpush1.msra.mxu0 %v2624
      %2658 = vmatprep.subr.mxu0 0.0
      %2659 = vmatpush2.msra.mxu0 0.0
      %2660 = vmatprep.subr.mxu0 0.0
      %2661 = vmatpush2.msra.mxu0 0.0
      %2662 = vmatprep.subr.mxu0 0.0
      %2663 = vmatpush2.msra.mxu0 0.0
      %2664 = vmatprep.subr.mxu0 0.0
      %2665 = vmatpush2.msra.mxu0 0.0
      %2666 = vmatprep.subr.mxu0 0.0
      %2667 = vmatpush2.msra.mxu0 0.0
      %2668 = vmatprep.subr.mxu0 0.0
      %2669 = vmatpush2.msra.mxu0 0.0
      %2670 = vmatprep.subr.mxu0 0.0
      %2671 = vmatpush2.msra.mxu0 0.0
      %2672 = vmatprep.subr.mxu0 0.0
      %2673 = vmatpush2.msra.mxu0 0.0
      %2674 = vmatprep.subr.mxu0 0.0
      %2675 = vmatpush2.msra.mxu0 0.0
      %2676 = vmatprep.subr.mxu0 0.0
      %2677 = vmatpush2.msra.mxu0 0.0
      %2678 = vmatprep.subr.mxu0 0.0
      %2679 = vmatpush2.msra.mxu0 0.0
      %2680 = vmatprep.subr.mxu0 0.0
      %2681 = vmatpush2.msra.mxu0 0.0
      %2682 = vmatprep.subr.mxu0 0.0
      %2683 = vmatpush2.msra.mxu0 0.0
      %2684 = vmatprep.subr.mxu0 0.0
      %2685 = vmatpush2.msra.mxu0 0.0
      %2686 = vmatprep.subr.mxu0 0.0
      %2687 = vmatpush2.msra.mxu0 0.0
      %2688 = vmatprep.subr.mxu0 0.0
      %2689 = vmatpush2.msra.mxu0 0.0
      %2690 = vmatprep.mubr.f32.mxu0 0.0
      %2691 = vmatmul.mubr.f32.gmra.mxu0 %v548
      %v2692 = vpop.f32.mrf.mxu0
      %v2693 = vadd.f32 0.0, %v2692
      %v2694 = vpop.f32.mrf.mxu0
      %2695 = vmatprep.mubr.f32.mxu0 0.0
      %2696 = vmatmul.mubr.f32.gmra.mxu0 %v550
      %v2697 = vpop.f32.mrf.mxu0
      %v2698 = vadd.f32 0.0, %v2697
      %v2699 = vpop.f32.mrf.mxu0
      %2700 = vmatprep.mubr.f32.mxu0 0.0
      %2701 = vmatmul.mubr.f32.gmra.mxu0 %v552
      %v2702 = vpop.f32.mrf.mxu0
      %v2703 = vadd.f32 0.0, %v2702
      %v2704 = vpop.f32.mrf.mxu0
      %2705 = vmatprep.mubr.f32.mxu0 0.0
      %2706 = vmatmul.mubr.f32.gmra.mxu0 %v554
      %v2707 = vpop.f32.mrf.mxu0
      %v2708 = vadd.f32 0.0, %v2707
      %v2709 = vpop.f32.mrf.mxu0
      %2710 = vmatprep.mubr.f32.mxu0 0.0
      %2711 = vmatmul.mubr.f32.gmra.mxu0 %v556
      %v2712 = vpop.f32.mrf.mxu0
      %v2713 = vadd.f32 0.0, %v2712
      %v2714 = vpop.f32.mrf.mxu0
      %2715 = vmatprep.mubr.f32.mxu0 0.0
      %2716 = vmatmul.mubr.f32.gmra.mxu0 %v558
      %v2717 = vpop.f32.mrf.mxu0
      %v2718 = vadd.f32 0.0, %v2717
      %v2719 = vpop.f32.mrf.mxu0
      %2720 = vmatprep.mubr.f32.mxu0 0.0
      %2721 = vmatmul.mubr.f32.gmra.mxu0 %v560
      %v2722 = vpop.f32.mrf.mxu0
      %v2723 = vadd.f32 0.0, %v2722
      %v2724 = vpop.f32.mrf.mxu0
      %2725 = vmatprep.mubr.f32.mxu0 0.0
      %2726 = vmatmul.mubr.f32.gmra.mxu0 %v562
      %v2727 = vpop.f32.mrf.mxu0
      %v2728 = vadd.f32 0.0, %v2727
      %v2729 = vpop.f32.mrf.mxu0
      %2730 = vmatprep.mubr.f32.mxu0 0.0
      %2731 = vmatmul.mubr.f32.gmra.mxu0 %v564
      %v2732 = vpop.f32.mrf.mxu0
      %v2733 = vadd.f32 0.0, %v2732
      %v2734 = vpop.f32.mrf.mxu0
      %2735 = vmatprep.mubr.f32.mxu0 0.0
      %2736 = vmatmul.mubr.f32.gmra.mxu0 %v566
      %v2737 = vpop.f32.mrf.mxu0
      %v2738 = vadd.f32 0.0, %v2737
      %v2739 = vpop.f32.mrf.mxu0
      %2740 = vmatprep.mubr.f32.mxu0 0.0
      %2741 = vmatmul.mubr.f32.gmra.mxu0 %v568
      %v2742 = vpop.f32.mrf.mxu0
      %v2743 = vadd.f32 0.0, %v2742
      %v2744 = vpop.f32.mrf.mxu0
      %2745 = vmatprep.mubr.f32.mxu0 0.0
      %2746 = vmatmul.mubr.f32.gmra.mxu0 %v570
      %v2747 = vpop.f32.mrf.mxu0
      %v2748 = vadd.f32 0.0, %v2747
      %v2749 = vpop.f32.mrf.mxu0
      %2750 = vmatprep.mubr.f32.mxu0 0.0
      %2751 = vmatmul.mubr.f32.gmra.mxu0 %v572
      %v2752 = vpop.f32.mrf.mxu0
      %v2753 = vadd.f32 0.0, %v2752
      %v2754 = vpop.f32.mrf.mxu0
      %2755 = vmatprep.mubr.f32.mxu0 0.0
      %2756 = vmatmul.mubr.f32.gmra.mxu0 %v574
      %v2757 = vpop.f32.mrf.mxu0
      %v2758 = vadd.f32 0.0, %v2757
      %v2759 = vpop.f32.mrf.mxu0
      %2760 = vmatprep.mubr.f32.mxu0 0.0
      %2761 = vmatmul.mubr.f32.gmra.mxu0 %v576
      %v2762 = vpop.f32.mrf.mxu0
      %v2763 = vadd.f32 0.0, %v2762
      %v2764 = vpop.f32.mrf.mxu0
      %2765 = vmatprep.mubr.f32.mxu0 0.0
      %2766 = vmatmul.mubr.f32.gmra.mxu0 %v578
      %v2767 = vpop.f32.mrf.mxu0
      %v2768 = vadd.f32 0.0, %v2767
      %v2769 = vpop.f32.mrf.mxu0
      %2770 = vmatprep.mubr.f32.mxu0 0.0
      %2771 = vmatmul.mubr.f32.gmra.mxu0 %v580
      %v2772 = vpop.f32.mrf.mxu0
      %v2773 = vadd.f32 0.0, %v2772
      %v2774 = vpop.f32.mrf.mxu0
      %2775 = vmatprep.mubr.f32.mxu0 0.0
      %2776 = vmatmul.mubr.f32.gmra.mxu0 %v582
      %v2777 = vpop.f32.mrf.mxu0
      %v2778 = vadd.f32 0.0, %v2777
      %v2779 = vpop.f32.mrf.mxu0
      %2780 = vmatprep.mubr.f32.mxu0 0.0
      %2781 = vmatmul.mubr.f32.gmra.mxu0 %v584
      %v2782 = vpop.f32.mrf.mxu0
      %v2783 = vadd.f32 0.0, %v2782
      %v2784 = vpop.f32.mrf.mxu0
      %2785 = vmatprep.mubr.f32.mxu0 0.0
      %2786 = vmatmul.mubr.f32.gmra.mxu0 %v586
      %v2787 = vpop.f32.mrf.mxu0
      %v2788 = vadd.f32 0.0, %v2787
      %v2789 = vpop.f32.mrf.mxu0
      %2790 = vmatprep.mubr.f32.mxu0 0.0
      %2791 = vmatmul.mubr.f32.gmra.mxu0 %v588
      %v2792 = vpop.f32.mrf.mxu0
      %v2793 = vadd.f32 0.0, %v2792
      %v2794 = vpop.f32.mrf.mxu0
      %2795 = vmatprep.mubr.f32.mxu0 0.0
      %2796 = vmatmul.mubr.f32.gmra.mxu0 %v590
      %v2797 = vpop.f32.mrf.mxu0
      %v2798 = vadd.f32 0.0, %v2797
      %v2799 = vpop.f32.mrf.mxu0
      %2800 = vmatprep.mubr.f32.mxu0 0.0
      %2801 = vmatmul.mubr.f32.gmra.mxu0 %v592
      %v2802 = vpop.f32.mrf.mxu0
      %v2803 = vadd.f32 0.0, %v2802
      %v2804 = vpop.f32.mrf.mxu0
      %2805 = vmatprep.mubr.f32.mxu0 0.0
      %2806 = vmatmul.mubr.f32.gmra.mxu0 %v594
      %v2807 = vpop.f32.mrf.mxu0
      %v2808 = vadd.f32 0.0, %v2807
      %v2809 = vpop.f32.mrf.mxu0
      %2810 = vmatprep.mubr.f32.mxu0 0.0
      %2811 = vmatmul.mubr.f32.gmra.mxu0 %v596
      %v2812 = vpop.f32.mrf.mxu0
      %v2813 = vadd.f32 0.0, %v2812
      %v2814 = vpop.f32.mrf.mxu0
      %2815 = vmatprep.mubr.f32.mxu0 0.0
      %2816 = vmatmul.mubr.f32.gmra.mxu0 %v598
      %v2817 = vpop.f32.mrf.mxu0
      %v2818 = vadd.f32 0.0, %v2817
      %v2819 = vpop.f32.mrf.mxu0
      %2820 = vmatprep.mubr.f32.mxu0 0.0
      %2821 = vmatmul.mubr.f32.gmra.mxu0 %v600
      %v2822 = vpop.f32.mrf.mxu0
      %v2823 = vadd.f32 0.0, %v2822
      %v2824 = vpop.f32.mrf.mxu0
      %2825 = vmatprep.mubr.f32.mxu0 0.0
      %2826 = vmatmul.mubr.f32.gmra.mxu0 %v602
      %v2827 = vpop.f32.mrf.mxu0
      %v2828 = vadd.f32 0.0, %v2827
      %v2829 = vpop.f32.mrf.mxu0
      %2830 = vmatprep.mubr.f32.mxu0 0.0
      %2831 = vmatmul.mubr.f32.gmra.mxu0 %v1808
      %v2832 = vpop.f32.mrf.mxu0
      %v2833 = vadd.f32 0.0, %v2832
      %v2834 = vpop.f32.mrf.mxu0
      %2835 = vmatprep.mubr.f32.mxu0 0.0
      %2836 = vmatmul.mubr.f32.gmra.mxu0 %v1810
      %v2837 = vpop.f32.mrf.mxu0
      %v2838 = vadd.f32 0.0, %v2837
      %v2839 = vpop.f32.mrf.mxu0
      %2840 = vmatprep.mubr.f32.mxu0 0.0
      %2841 = vmatmul.mubr.f32.gmra.mxu0 %v2619
      %v2842 = vpop.f32.mrf.mxu0
      %v2843 = vadd.f32 0.0, %v2842
      %v2844 = vpop.f32.mrf.mxu0
      %2845 = vmatprep.mubr.f32.mxu0 0.0
      %2846 = vmatmul.mubr.f32.gmra.mxu0 %v2621
      %v2847 = vpop.f32.mrf.mxu0
      %v2848 = vadd.f32 0.0, %v2847
      %v2849 = vpop.f32.mrf.mxu0
      %2850 = vdwg.mxu0
      %v2851 = vadd.f32 %v2579, %v2693
      %v2852 = vadd.f32 %v2580, %v2698
      %v2853 = vadd.f32 %v2581, %v2703
      %v2854 = vadd.f32 %v2582, %v2708
      %v2855 = vadd.f32 %v2583, %v2713
      %v2856 = vadd.f32 %v2584, %v2718
      %v2857 = vadd.f32 %v2585, %v2723
      %v2858 = vadd.f32 %v2586, %v2728
      %v2859 = vadd.f32 %v2587, %v2733
      %v2860 = vadd.f32 %v2588, %v2738
      %v2861 = vadd.f32 %v2589, %v2743
      %v2862 = vadd.f32 %v2590, %v2748
      %v2863 = vadd.f32 %v2591, %v2753
      %v2864 = vadd.f32 %v2592, %v2758
      %v2865 = vadd.f32 %v2593, %v2763
      %v2866 = vadd.f32 %v2594, %v2768
      %v2867 = vadd.f32 %v2595, %v2773
      %v2868 = vadd.f32 %v2596, %v2778
      %v2869 = vadd.f32 %v2597, %v2783
      %v2870 = vadd.f32 %v2598, %v2788
      %v2871 = vadd.f32 %v2599, %v2793
      %v2872 = vadd.f32 %v2600, %v2798
      %v2873 = vadd.f32 %v2601, %v2803
      %v2874 = vadd.f32 %v2602, %v2808
      %v2875 = vadd.f32 %v2603, %v2813
      %v2876 = vadd.f32 %v2604, %v2818
      %v2877 = vadd.f32 %v2605, %v2823
      %v2878 = vadd.f32 %v2606, %v2828
      %v2879 = vadd.f32 %v2607, %v2833
      %v2880 = vadd.f32 %v2608, %v2838
      %v2881 = vadd.f32 %v2609, %v2843
      %v2882 = vadd.f32 %v2610, %v2848
      %v2883 = vrot.slane %v404, 2
      %v2884 = vrot.slane %v405, 2
      %v2885 = vsel %vm1125, %v2883, %v2884
      %v2886 = vrot.slane %v406, 2
      %v2887 = vsel %vm1125, %v2884, %v2886
      %s2888 = scalar_lea.vmem %s3, 32
      %v2889 = vld [vmem:[%s2888] sm:$0xf]
      %v2890 = vsel %vm539, %v2885, 0
      %v2892 = vsel %vm539, %v2887, 0
      %v2895 = vsel %vm604, %v2889, 0
      %2897 = vmatprep.subr.mxu0 0.0
      %2898 = vmatpush1.msra.mxu0 0.0
      %2899 = vmatprep.subr.mxu0 0.0
      %2900 = vmatpush1.msra.mxu0 0.0
      %2901 = vmatprep.subr.mxu0 0.0
      %2902 = vmatpush1.msra.mxu0 0.0
      %2903 = vmatprep.subr.mxu0 0.0
      %2904 = vmatpush1.msra.mxu0 0.0
      %2905 = vmatprep.subr.mxu0 0.0
      %2906 = vmatpush1.msra.mxu0 0.0
      %2907 = vmatprep.subr.mxu0 0.0
      %2908 = vmatpush1.msra.mxu0 0.0
      %2909 = vmatprep.subr.mxu0 0.0
      %2910 = vmatpush1.msra.mxu0 0.0
      %2911 = vmatprep.subr.mxu0 0.0
      %2912 = vmatpush1.msra.mxu0 0.0
      %2913 = vmatprep.subr.mxu0 0.0
      %2914 = vmatpush1.msra.mxu0 0.0
      %2915 = vmatprep.subr.mxu0 0.0
      %2916 = vmatpush1.msra.mxu0 0.0
      %2917 = vmatprep.subr.mxu0 0.0
      %2918 = vmatpush1.msra.mxu0 0.0
      %2919 = vmatprep.subr.mxu0 0.0
      %2920 = vmatpush1.msra.mxu0 0.0
      %2921 = vmatprep.subr.mxu0 0.0
      %2922 = vmatpush1.msra.mxu0 0.0
      %2923 = vmatprep.subr.mxu0 0.0
      %2924 = vmatpush1.msra.mxu0 0.0
      %2925 = vmatprep.subr.mxu0 0.0
      %2926 = vmatpush1.msra.mxu0 0.0
      %2927 = vmatprep.subr.mxu0 0.0
      %2928 = vmatpush1.msra.mxu0 %v2895
      %2929 = vmatprep.subr.mxu0 0.0
      %2930 = vmatpush2.msra.mxu0 0.0
      %2931 = vmatprep.subr.mxu0 0.0
      %2932 = vmatpush2.msra.mxu0 0.0
      %2933 = vmatprep.subr.mxu0 0.0
      %2934 = vmatpush2.msra.mxu0 0.0
      %2935 = vmatprep.subr.mxu0 0.0
      %2936 = vmatpush2.msra.mxu0 0.0
      %2937 = vmatprep.subr.mxu0 0.0
      %2938 = vmatpush2.msra.mxu0 0.0
      %2939 = vmatprep.subr.mxu0 0.0
      %2940 = vmatpush2.msra.mxu0 0.0
      %2941 = vmatprep.subr.mxu0 0.0
      %2942 = vmatpush2.msra.mxu0 0.0
      %2943 = vmatprep.subr.mxu0 0.0
      %2944 = vmatpush2.msra.mxu0 0.0
      %2945 = vmatprep.subr.mxu0 0.0
      %2946 = vmatpush2.msra.mxu0 0.0
      %2947 = vmatprep.subr.mxu0 0.0
      %2948 = vmatpush2.msra.mxu0 0.0
      %2949 = vmatprep.subr.mxu0 0.0
      %2950 = vmatpush2.msra.mxu0 0.0
      %2951 = vmatprep.subr.mxu0 0.0
      %2952 = vmatpush2.msra.mxu0 0.0
      %2953 = vmatprep.subr.mxu0 0.0
      %2954 = vmatpush2.msra.mxu0 0.0
      %2955 = vmatprep.subr.mxu0 0.0
      %2956 = vmatpush2.msra.mxu0 0.0
      %2957 = vmatprep.subr.mxu0 0.0
      %2958 = vmatpush2.msra.mxu0 0.0
      %2959 = vmatprep.subr.mxu0 0.0
      %2960 = vmatpush2.msra.mxu0 0.0
      %2961 = vmatprep.mubr.f32.mxu0 0.0
      %2962 = vmatmul.mubr.f32.gmra.mxu0 %v1216
      %v2963 = vpop.f32.mrf.mxu0
      %v2964 = vadd.f32 0.0, %v2963
      %v2965 = vpop.f32.mrf.mxu0
      %2966 = vmatprep.mubr.f32.mxu0 0.0
      %2967 = vmatmul.mubr.f32.gmra.mxu0 %v1218
      %v2968 = vpop.f32.mrf.mxu0
      %v2969 = vadd.f32 0.0, %v2968
      %v2970 = vpop.f32.mrf.mxu0
      %2971 = vmatprep.mubr.f32.mxu0 0.0
      %2972 = vmatmul.mubr.f32.gmra.mxu0 %v1220
      %v2973 = vpop.f32.mrf.mxu0
      %v2974 = vadd.f32 0.0, %v2973
      %v2975 = vpop.f32.mrf.mxu0
      %2976 = vmatprep.mubr.f32.mxu0 0.0
      %2977 = vmatmul.mubr.f32.gmra.mxu0 %v1222
      %v2978 = vpop.f32.mrf.mxu0
      %v2979 = vadd.f32 0.0, %v2978
      %v2980 = vpop.f32.mrf.mxu0
      %2981 = vmatprep.mubr.f32.mxu0 0.0
      %2982 = vmatmul.mubr.f32.gmra.mxu0 %v1224
      %v2983 = vpop.f32.mrf.mxu0
      %v2984 = vadd.f32 0.0, %v2983
      %v2985 = vpop.f32.mrf.mxu0
      %2986 = vmatprep.mubr.f32.mxu0 0.0
      %2987 = vmatmul.mubr.f32.gmra.mxu0 %v1226
      %v2988 = vpop.f32.mrf.mxu0
      %v2989 = vadd.f32 0.0, %v2988
      %v2990 = vpop.f32.mrf.mxu0
      %2991 = vmatprep.mubr.f32.mxu0 0.0
      %2992 = vmatmul.mubr.f32.gmra.mxu0 %v1228
      %v2993 = vpop.f32.mrf.mxu0
      %v2994 = vadd.f32 0.0, %v2993
      %v2995 = vpop.f32.mrf.mxu0
      %2996 = vmatprep.mubr.f32.mxu0 0.0
      %2997 = vmatmul.mubr.f32.gmra.mxu0 %v1230
      %v2998 = vpop.f32.mrf.mxu0
      %v2999 = vadd.f32 0.0, %v2998
      %v3000 = vpop.f32.mrf.mxu0
      %3001 = vmatprep.mubr.f32.mxu0 0.0
      %3002 = vmatmul.mubr.f32.gmra.mxu0 %v1232
      %v3003 = vpop.f32.mrf.mxu0
      %v3004 = vadd.f32 0.0, %v3003
      %v3005 = vpop.f32.mrf.mxu0
      %3006 = vmatprep.mubr.f32.mxu0 0.0
      %3007 = vmatmul.mubr.f32.gmra.mxu0 %v1234
      %v3008 = vpop.f32.mrf.mxu0
      %v3009 = vadd.f32 0.0, %v3008
      %v3010 = vpop.f32.mrf.mxu0
      %3011 = vmatprep.mubr.f32.mxu0 0.0
      %3012 = vmatmul.mubr.f32.gmra.mxu0 %v1236
      %v3013 = vpop.f32.mrf.mxu0
      %v3014 = vadd.f32 0.0, %v3013
      %v3015 = vpop.f32.mrf.mxu0
      %3016 = vmatprep.mubr.f32.mxu0 0.0
      %3017 = vmatmul.mubr.f32.gmra.mxu0 %v1238
      %v3018 = vpop.f32.mrf.mxu0
      %v3019 = vadd.f32 0.0, %v3018
      %v3020 = vpop.f32.mrf.mxu0
      %3021 = vmatprep.mubr.f32.mxu0 0.0
      %3022 = vmatmul.mubr.f32.gmra.mxu0 %v1240
      %v3023 = vpop.f32.mrf.mxu0
      %v3024 = vadd.f32 0.0, %v3023
      %v3025 = vpop.f32.mrf.mxu0
      %3026 = vmatprep.mubr.f32.mxu0 0.0
      %3027 = vmatmul.mubr.f32.gmra.mxu0 %v1242
      %v3028 = vpop.f32.mrf.mxu0
      %v3029 = vadd.f32 0.0, %v3028
      %v3030 = vpop.f32.mrf.mxu0
      %3031 = vmatprep.mubr.f32.mxu0 0.0
      %3032 = vmatmul.mubr.f32.gmra.mxu0 %v1244
      %v3033 = vpop.f32.mrf.mxu0
      %v3034 = vadd.f32 0.0, %v3033
      %v3035 = vpop.f32.mrf.mxu0
      %3036 = vmatprep.mubr.f32.mxu0 0.0
      %3037 = vmatmul.mubr.f32.gmra.mxu0 %v1246
      %v3038 = vpop.f32.mrf.mxu0
      %v3039 = vadd.f32 0.0, %v3038
      %v3040 = vpop.f32.mrf.mxu0
      %3041 = vmatprep.mubr.f32.mxu0 0.0
      %3042 = vmatmul.mubr.f32.gmra.mxu0 %v1248
      %v3043 = vpop.f32.mrf.mxu0
      %v3044 = vadd.f32 0.0, %v3043
      %v3045 = vpop.f32.mrf.mxu0
      %3046 = vmatprep.mubr.f32.mxu0 0.0
      %3047 = vmatmul.mubr.f32.gmra.mxu0 %v1250
      %v3048 = vpop.f32.mrf.mxu0
      %v3049 = vadd.f32 0.0, %v3048
      %v3050 = vpop.f32.mrf.mxu0
      %3051 = vmatprep.mubr.f32.mxu0 0.0
      %3052 = vmatmul.mubr.f32.gmra.mxu0 %v1252
      %v3053 = vpop.f32.mrf.mxu0
      %v3054 = vadd.f32 0.0, %v3053
      %v3055 = vpop.f32.mrf.mxu0
      %3056 = vmatprep.mubr.f32.mxu0 0.0
      %3057 = vmatmul.mubr.f32.gmra.mxu0 %v1254
      %v3058 = vpop.f32.mrf.mxu0
      %v3059 = vadd.f32 0.0, %v3058
      %v3060 = vpop.f32.mrf.mxu0
      %3061 = vmatprep.mubr.f32.mxu0 0.0
      %3062 = vmatmul.mubr.f32.gmra.mxu0 %v1256
      %v3063 = vpop.f32.mrf.mxu0
      %v3064 = vadd.f32 0.0, %v3063
      %v3065 = vpop.f32.mrf.mxu0
      %3066 = vmatprep.mubr.f32.mxu0 0.0
      %3067 = vmatmul.mubr.f32.gmra.mxu0 %v1258
      %v3068 = vpop.f32.mrf.mxu0
      %v3069 = vadd.f32 0.0, %v3068
      %v3070 = vpop.f32.mrf.mxu0
      %3071 = vmatprep.mubr.f32.mxu0 0.0
      %3072 = vmatmul.mubr.f32.gmra.mxu0 %v1260
      %v3073 = vpop.f32.mrf.mxu0
      %v3074 = vadd.f32 0.0, %v3073
      %v3075 = vpop.f32.mrf.mxu0
      %3076 = vmatprep.mubr.f32.mxu0 0.0
      %3077 = vmatmul.mubr.f32.gmra.mxu0 %v1262
      %v3078 = vpop.f32.mrf.mxu0
      %v3079 = vadd.f32 0.0, %v3078
      %v3080 = vpop.f32.mrf.mxu0
      %3081 = vmatprep.mubr.f32.mxu0 0.0
      %3082 = vmatmul.mubr.f32.gmra.mxu0 %v1264
      %v3083 = vpop.f32.mrf.mxu0
      %v3084 = vadd.f32 0.0, %v3083
      %v3085 = vpop.f32.mrf.mxu0
      %3086 = vmatprep.mubr.f32.mxu0 0.0
      %3087 = vmatmul.mubr.f32.gmra.mxu0 %v1266
      %v3088 = vpop.f32.mrf.mxu0
      %v3089 = vadd.f32 0.0, %v3088
      %v3090 = vpop.f32.mrf.mxu0
      %3091 = vmatprep.mubr.f32.mxu0 0.0
      %3092 = vmatmul.mubr.f32.gmra.mxu0 %v1268
      %v3093 = vpop.f32.mrf.mxu0
      %v3094 = vadd.f32 0.0, %v3093
      %v3095 = vpop.f32.mrf.mxu0
      %3096 = vmatprep.mubr.f32.mxu0 0.0
      %3097 = vmatmul.mubr.f32.gmra.mxu0 %v1270
      %v3098 = vpop.f32.mrf.mxu0
      %v3099 = vadd.f32 0.0, %v3098
      %v3100 = vpop.f32.mrf.mxu0
      %3101 = vmatprep.mubr.f32.mxu0 0.0
      %3102 = vmatmul.mubr.f32.gmra.mxu0 %v2079
      %v3103 = vpop.f32.mrf.mxu0
      %v3104 = vadd.f32 0.0, %v3103
      %v3105 = vpop.f32.mrf.mxu0
      %3106 = vmatprep.mubr.f32.mxu0 0.0
      %3107 = vmatmul.mubr.f32.gmra.mxu0 %v2081
      %v3108 = vpop.f32.mrf.mxu0
      %v3109 = vadd.f32 0.0, %v3108
      %v3110 = vpop.f32.mrf.mxu0
      %3111 = vmatprep.mubr.f32.mxu0 0.0
      %3112 = vmatmul.mubr.f32.gmra.mxu0 %v2890
      %v3113 = vpop.f32.mrf.mxu0
      %v3114 = vadd.f32 0.0, %v3113
      %v3115 = vpop.f32.mrf.mxu0
      %3116 = vmatprep.mubr.f32.mxu0 0.0
      %3117 = vmatmul.mubr.f32.gmra.mxu0 %v2892
      %v3118 = vpop.f32.mrf.mxu0
      %v3119 = vadd.f32 0.0, %v3118
      %v3120 = vpop.f32.mrf.mxu0
      %3121 = vdwg.mxu0
      %v3122 = vadd.f32 %v2851, %v2964
      %v3123 = vadd.f32 %v2852, %v2969
      %v3124 = vadd.f32 %v2853, %v2974
      %v3125 = vadd.f32 %v2854, %v2979
      %v3126 = vadd.f32 %v2855, %v2984
      %v3127 = vadd.f32 %v2856, %v2989
      %v3128 = vadd.f32 %v2857, %v2994
      %v3129 = vadd.f32 %v2858, %v2999
      %v3130 = vadd.f32 %v2859, %v3004
      %v3131 = vadd.f32 %v2860, %v3009
      %v3132 = vadd.f32 %v2861, %v3014
      %v3133 = vadd.f32 %v2862, %v3019
      %v3134 = vadd.f32 %v2863, %v3024
      %v3135 = vadd.f32 %v2864, %v3029
      %v3136 = vadd.f32 %v2865, %v3034
      %v3137 = vadd.f32 %v2866, %v3039
      %v3138 = vadd.f32 %v2867, %v3044
      %v3139 = vadd.f32 %v2868, %v3049
      %v3140 = vadd.f32 %v2869, %v3054
      %v3141 = vadd.f32 %v2870, %v3059
      %v3142 = vadd.f32 %v2871, %v3064
      %v3143 = vadd.f32 %v2872, %v3069
      %v3144 = vadd.f32 %v2873, %v3074
      %v3145 = vadd.f32 %v2874, %v3079
      %v3146 = vadd.f32 %v2875, %v3084
      %v3147 = vadd.f32 %v2876, %v3089
      %v3148 = vadd.f32 %v2877, %v3094
      %v3149 = vadd.f32 %v2878, %v3099
      %v3150 = vadd.f32 %v2879, %v3104
      %v3151 = vadd.f32 %v2880, %v3109
      %v3152 = vadd.f32 %v2881, %v3114
      %v3153 = vadd.f32 %v2882, %v3119
      %v3154 = vadd.f32 %v3122, %v3123
      %v3155 = vadd.f32 %v3154, %v3124
      %v3156 = vadd.f32 %v3155, %v3125
      %v3157 = vadd.f32 %v3156, %v3126
      %v3158 = vadd.f32 %v3157, %v3127
      %v3159 = vadd.f32 %v3158, %v3128
      %v3160 = vadd.f32 %v3159, %v3129
      %v3161 = vadd.f32 %v3160, %v3130
      %v3162 = vadd.f32 %v3161, %v3131
      %v3163 = vadd.f32 %v3162, %v3132
      %v3164 = vadd.f32 %v3163, %v3133
      %v3165 = vadd.f32 %v3164, %v3134
      %v3166 = vadd.f32 %v3165, %v3135
      %v3167 = vadd.f32 %v3166, %v3136
      %v3168 = vadd.f32 %v3167, %v3137
      %v3169 = vadd.f32 %v3168, %v3138
      %v3170 = vadd.f32 %v3169, %v3139
      %v3171 = vadd.f32 %v3170, %v3140
      %v3172 = vadd.f32 %v3171, %v3141
      %v3173 = vadd.f32 %v3172, %v3142
      %v3174 = vadd.f32 %v3173, %v3143
      %v3175 = vadd.f32 %v3174, %v3144
      %v3176 = vadd.f32 %v3175, %v3145
      %v3177 = vadd.f32 %v3176, %v3146
      %v3178 = vadd.f32 %v3177, %v3147
      %v3179 = vadd.f32 %v3178, %v3148
      %v3180 = vadd.f32 %v3179, %v3149
      %v3181 = vadd.f32 %v3180, %v3150
      %v3182 = vadd.f32 %v3181, %v3151
      %v3183 = vadd.f32 %v3182, %v3152
      %v3184 = vadd.f32 %v3183, %v3153
      %v3185 = vrot.slane %v3184, 4
      %v3186 = vadd.f32 %v3184, %v3185
      %v3187 = vrot.slane %v3186, 2
      %v3188 = vadd.f32 %v3186, %v3187
      %v3189 = vrot.slane %v3188, 1
      %v3190 = vadd.f32 %v3188, %v3189
      %v3191 = vmul.f32 %v3190, 0.00390625
      %v3192 = vsub.f32 %v3122, %v3191
      %v3193 = vsub.f32 %v3123, %v3191
      %v3194 = vsub.f32 %v3124, %v3191
      %v3195 = vsub.f32 %v3125, %v3191
      %v3196 = vsub.f32 %v3126, %v3191
      %v3197 = vsub.f32 %v3127, %v3191
      %v3198 = vsub.f32 %v3128, %v3191
      %v3199 = vsub.f32 %v3129, %v3191
      %v3200 = vsub.f32 %v3130, %v3191
      %v3201 = vsub.f32 %v3131, %v3191
      %v3202 = vsub.f32 %v3132, %v3191
      %v3203 = vsub.f32 %v3133, %v3191
      %v3204 = vsub.f32 %v3134, %v3191
      %v3205 = vsub.f32 %v3135, %v3191
      %v3206 = vsub.f32 %v3136, %v3191
      %v3207 = vsub.f32 %v3137, %v3191
      %v3208 = vsub.f32 %v3138, %v3191
      %v3209 = vsub.f32 %v3139, %v3191
      %v3210 = vsub.f32 %v3140, %v3191
      %v3211 = vsub.f32 %v3141, %v3191
      %v3212 = vsub.f32 %v3142, %v3191
      %v3213 = vsub.f32 %v3143, %v3191
      %v3214 = vsub.f32 %v3144, %v3191
      %v3215 = vsub.f32 %v3145, %v3191
      %v3216 = vsub.f32 %v3146, %v3191
      %v3217 = vsub.f32 %v3147, %v3191
      %v3218 = vsub.f32 %v3148, %v3191
      %v3219 = vsub.f32 %v3149, %v3191
      %v3220 = vsub.f32 %v3150, %v3191
      %v3221 = vsub.f32 %v3151, %v3191
      %v3222 = vsub.f32 %v3152, %v3191
      %v3223 = vsub.f32 %v3153, %v3191
      %v3224 = vmul.f32 %v3192, %v3192
      %v3225 = vmul.f32 %v3193, %v3193
      %v3226 = vmul.f32 %v3194, %v3194
      %v3227 = vmul.f32 %v3195, %v3195
      %v3228 = vmul.f32 %v3196, %v3196
      %v3229 = vmul.f32 %v3197, %v3197
      %v3230 = vmul.f32 %v3198, %v3198
      %v3231 = vmul.f32 %v3199, %v3199
      %v3232 = vmul.f32 %v3200, %v3200
      %v3233 = vmul.f32 %v3201, %v3201
      %v3234 = vmul.f32 %v3202, %v3202
      %v3235 = vmul.f32 %v3203, %v3203
      %v3236 = vmul.f32 %v3204, %v3204
      %v3237 = vmul.f32 %v3205, %v3205
      %v3238 = vmul.f32 %v3206, %v3206
      %v3239 = vmul.f32 %v3207, %v3207
      %v3240 = vmul.f32 %v3208, %v3208
      %v3241 = vmul.f32 %v3209, %v3209
      %v3242 = vmul.f32 %v3210, %v3210
      %v3243 = vmul.f32 %v3211, %v3211
      %v3244 = vmul.f32 %v3212, %v3212
      %v3245 = vmul.f32 %v3213, %v3213
      %v3246 = vmul.f32 %v3214, %v3214
      %v3247 = vmul.f32 %v3215, %v3215
      %v3248 = vmul.f32 %v3216, %v3216
      %v3249 = vmul.f32 %v3217, %v3217
      %v3250 = vmul.f32 %v3218, %v3218
      %v3251 = vmul.f32 %v3219, %v3219
      %v3252 = vmul.f32 %v3220, %v3220
      %v3253 = vmul.f32 %v3221, %v3221
      %v3254 = vmul.f32 %v3222, %v3222
      %v3255 = vmul.f32 %v3223, %v3223
      %v3256 = vadd.f32 %v3224, %v3225
      %v3257 = vadd.f32 %v3256, %v3226
      %v3258 = vadd.f32 %v3257, %v3227
      %v3259 = vadd.f32 %v3258, %v3228
      %v3260 = vadd.f32 %v3259, %v3229
      %v3261 = vadd.f32 %v3260, %v3230
      %v3262 = vadd.f32 %v3261, %v3231
      %v3263 = vadd.f32 %v3262, %v3232
      %v3264 = vadd.f32 %v3263, %v3233
      %v3265 = vadd.f32 %v3264, %v3234
      %v3266 = vadd.f32 %v3265, %v3235
      %v3267 = vadd.f32 %v3266, %v3236
      %v3268 = vadd.f32 %v3267, %v3237
      %v3269 = vadd.f32 %v3268, %v3238
      %v3270 = vadd.f32 %v3269, %v3239
      %v3271 = vadd.f32 %v3270, %v3240
      %v3272 = vadd.f32 %v3271, %v3241
      %v3273 = vadd.f32 %v3272, %v3242
      %v3274 = vadd.f32 %v3273, %v3243
      %v3275 = vadd.f32 %v3274, %v3244
      %v3276 = vadd.f32 %v3275, %v3245
      %v3277 = vadd.f32 %v3276, %v3246
      %v3278 = vadd.f32 %v3277, %v3247
      %v3279 = vadd.f32 %v3278, %v3248
      %v3280 = vadd.f32 %v3279, %v3249
      %v3281 = vadd.f32 %v3280, %v3250
      %v3282 = vadd.f32 %v3281, %v3251
      %v3283 = vadd.f32 %v3282, %v3252
      %v3284 = vadd.f32 %v3283, %v3253
      %v3285 = vadd.f32 %v3284, %v3254
      %v3286 = vadd.f32 %v3285, %v3255
      %v3287 = vrot.slane %v3286, 4
      %v3288 = vadd.f32 %v3286, %v3287
      %v3289 = vrot.slane %v3288, 2
      %v3290 = vadd.f32 %v3288, %v3289
      %v3291 = vrot.slane %v3290, 1
      %v3292 = vadd.f32 %v3290, %v3291
      %vm3293 = vcmask 1040384
      %v3294 = vsel %vm3293, %v3190, %v3292
      %3295 = vst [vmem:[%s351] sm:$0x3] %v3294
      %s3296 = sadd.s32 %s19, %s20
      %p3297 = scmp.lt.s32.totalorder %s3296, 1
      %s3298 = scalar_select %p3297, %s3296, 1
      %s3299 = smul.addr %s3298, 2
      %s3300 = scalar_lea.vmem %s4, %s3299
      // Predicated region
      $region37: #{up_conv_forward.2} parent=35 // pred_check
        %p3301 = pneg %p160
      $region38: #{up_conv_forward.2} parent=35 // pred_check_branch
        %3303 = sbr.rel (%p3301) target = $region40
      $region39: #{up_conv_forward.2} parent=35 // pred_region
        %s3304 = sadd.s32 %s19, %s20
      $region40: #{up_conv_forward.2} parent=35 // pred_fallthru
        _
    $region36: #{up_conv_forward.2} parent=5 // pred_fallthru
      _
    %p3305 = scmp.le.s32.totalorder 2, %s10
    // Predicated region
    $region41: #{up_conv_forward.2} parent=5 // pred_check
      %p3306 = pneg %p3305
    $region42: #{up_conv_forward.2} parent=5 // pred_check_branch
      %3308 = sbr.rel (%p3306) target = $region44
    $region43: #{up_conv_forward.2} parent=5 // pred_region
      %s3309 = ssub.s32 %s10, 2
      // Predicated region
      $region45: #{up_conv_forward.2} parent=43 // pred_check
        %p3310 = pneg %p166
      $region46: #{up_conv_forward.2} parent=43 // pred_check_branch
        %3312 = sbr.rel (%p3310) target = $region48
      $region47: #{up_conv_forward.2} parent=43 // pred_region
        %s3313 = sadd.s32 %s21, %s22
        %p3314 = scmp.lt.s32.totalorder %s3313, 1
        %s3315 = scalar_select %p3314, %s3313, 1
        %s3316 = smul.addr %s3315, 2
        %s3317 = scalar_lea.vmem %s4, %s3316
      $region48: #{up_conv_forward.2} parent=43 // pred_fallthru
        _
    $region44: #{up_conv_forward.2} parent=5 // pred_fallthru
      _
  $region6: #{up_conv_forward.2} parent=0 // loop_footer
    %s14 = sadd.s32 1, %s10
  $region7: #{up_conv_forward.2} parent=0 // loop_footer_branch
    %9 = sbr.rel target = $region3
  $region8: #{up_conv_forward.2} parent=0 // loop_exit
    _

// kernel: up_conv_forward.3
$region0: #{up_conv_forward.3}
  #allocation0 [shape = 'u32[]', space=smem, size = 0x4, offset = 0x4, fixed_abs, tag = 'smem constant byte address 0x4 - core index']
  #allocation1 [shape = 'u32[144,128]{1,0:T(1,128)}', space=vmem, size = 0x12000, scoped, tag = 'internal scratch']
  %s0 = inlined_call_operand.vmem [shape: f32[2,18,18,4], index: 0, kind: input, shape index: {}, may-alias: {0,1,2}]
  %s1 = inlined_call_operand.vmem [shape: f32[2,18,18,4], index: 1, kind: input, shape index: {}, may-alias: {0,1,2}]
  %s2 = inlined_call_operand.vmem [shape: f32[2,18,18,4], index: 2, kind: input, shape index: {}, may-alias: {0,1,2}]
  %s3 = inlined_call_operand.vmem [shape: f32[9,4,128], index: 3, kind: input, shape index: {}]
  %s4 = inlined_call_operand.vmem [shape: f32[1,128], index: 4, kind: input, shape index: {}]
  %s5 = inlined_call_operand.vmem [shape: f32[1,128], index: 5, kind: input, shape index: {}]
  %s6 = inlined_call_operand.vmem [shape: f32[512,128], index: 6, kind: output, shape index: {}]
  %s7 = sld [smem:[#allocation0]]
  $region57: #{up_conv_forward.3} parent=0
    _
  %s9 = ssub.s32 1, %s7
  %s10 = scalar_select 0, %s9, %s7
  loop: start=0, step=1, limit=4
  $region2: #{up_conv_forward.3} parent=0 // loop_pre_header
    _
  $region3: #{up_conv_forward.3} parent=0 // loop_header
    %s12 = sphi 0, %s16
    %p13 = scmp.ge.s32.totalorder %s12, 4
    %s19 = sphi 0, %s31
    %s20 = sphi 0, %s27
    %s21 = sphi 0, %s19
    %s22 = sphi 0, %s20
    %s23 = sphi 0, %s21
    %s24 = sphi 0, %s22
    %s36 = sphi 0, %s38
    %s39 = sphi 0, %s36
    %s40 = sphi 0, %s39
    %s56 = sphi 0, %s40
    %s68 = sphi 0, %s70
    %s71 = sphi 0, %s68
    %s72 = sphi 0, %s71
    %s88 = sphi 0, %s72
    %s100 = sphi 0, %s102
    %s103 = sphi 0, %s100
    %s104 = sphi 0, %s103
    %s120 = sphi 0, %s104
    %s124 = sphi 0, %s124
    %s126 = sphi 0, %s124
    %s127 = sphi 0, %s126
    %s141 = sphi 0, %s127
    %s145 = sphi 0, %s145
    %s147 = sphi 0, %s145
    %s148 = sphi 0, %s147
    %s162 = sphi 0, %s148
    %s166 = sphi 0, %s166
    %s168 = sphi 0, %s166
    %s169 = sphi 0, %s168
    %s183 = sphi 0, %s169
    %s191 = sphi 0, %s193
    %s194 = sphi 0, %s191
    %s195 = sphi 0, %s194
    %s211 = sphi 0, %s195
  $region4: #{up_conv_forward.3} parent=0 // loop_header_branch
    %15 = sbr.rel (%p13) target = $region8
  $region5: #{up_conv_forward.3} parent=0 // loop_body
    %s17 = ssub.s32 %s12, 1
    %s18 = ssub.s32 %s12, 2
    %s25 = sadd.s32 1, %s20
    %p26 = scmp.ge.s32.totalorder %s25, 1
    %s27 = scalar_select %p26, 0, %s25
    %s28 = sadd.s32 1, %s19
    %s29 = scalar_select %p26, %s28, %s19
    %p30 = scmp.ge.s32.totalorder %s29, 2
    %s31 = scalar_select %p30, 0, %s29
    %s32 = ssub.s32 %s19, %s31
    %s33 = ssub.s32 %s20, %s27
    %s34 = sor.u32 %s32, %s33
    %p35 = scmp.eq.s32.totalorder %s34, 0
    %s37 = sadd.s32 %s36, 1
    %s38 = scalar_select %p35, %s36, %s37
    %p41 = pneg %p35
    %p42 = scmp.eq.s32.totalorder %s12, 1
    %p43 = por %p41, %p42
    %p44 = scmp.ne.s32.totalorder %s36, %s39
    %p45 = scmp.eq.s32.totalorder %s12, 0
    %p46 = por %p44, %p45
    %p47 = scmp.ne.s32.totalorder %s36, %s39
    %p48 = scmp.eq.s32.totalorder %s17, 1
    %p49 = por %p47, %p48
    %p50 = scmp.ne.s32.totalorder %s39, %s40
    %p51 = scmp.eq.s32.totalorder %s17, 0
    %p52 = por %p50, %p51
    %p53 = scmp.ne.s32.totalorder %s39, %s40
    %p54 = scmp.eq.s32.totalorder %s18, 1
    %p55 = por %p53, %p54
    %p57 = scmp.ne.s32.totalorder %s40, %s56
    %p58 = scmp.eq.s32.totalorder %s18, 0
    %p59 = por %p57, %p58
    %s60 = smul.u32 %s20, 16
    %s61 = sadd.s32 %s60, 16
    %s62 = smul.u32 %s27, 16
    %s63 = sadd.s32 %s62, 16
    %s64 = ssub.s32 %s19, %s31
    %s65 = ssub.s32 %s61, %s63
    %s66 = sor.u32 %s64, %s65
    %p67 = scmp.eq.s32.totalorder %s66, 0
    %s69 = sadd.s32 %s68, 1
    %s70 = scalar_select %p67, %s68, %s69
    %p73 = pneg %p67
    %p74 = scmp.eq.s32.totalorder %s12, 1
    %p75 = por %p73, %p74
    %p76 = scmp.ne.s32.totalorder %s68, %s71
    %p77 = scmp.eq.s32.totalorder %s12, 0
    %p78 = por %p76, %p77
    %p79 = scmp.ne.s32.totalorder %s68, %s71
    %p80 = scmp.eq.s32.totalorder %s17, 1
    %p81 = por %p79, %p80
    %p82 = scmp.ne.s32.totalorder %s71, %s72
    %p83 = scmp.eq.s32.totalorder %s17, 0
    %p84 = por %p82, %p83
    %p85 = scmp.ne.s32.totalorder %s71, %s72
    %p86 = scmp.eq.s32.totalorder %s18, 1
    %p87 = por %p85, %p86
    %p89 = scmp.ne.s32.totalorder %s72, %s88
    %p90 = scmp.eq.s32.totalorder %s18, 0
    %p91 = por %p89, %p90
    %s92 = smul.u32 %s20, 16
    %s93 = sadd.s32 %s92, 17
    %s94 = smul.u32 %s27, 16
    %s95 = sadd.s32 %s94, 17
    %s96 = ssub.s32 %s19, %s31
    %s97 = ssub.s32 %s93, %s95
    %s98 = sor.u32 %s96, %s97
    %p99 = scmp.eq.s32.totalorder %s98, 0
    %s101 = sadd.s32 %s100, 1
    %s102 = scalar_select %p99, %s100, %s101
    %p105 = pneg %p99
    %p106 = scmp.eq.s32.totalorder %s12, 1
    %p107 = por %p105, %p106
    %p108 = scmp.ne.s32.totalorder %s100, %s103
    %p109 = scmp.eq.s32.totalorder %s12, 0
    %p110 = por %p108, %p109
    %p111 = scmp.ne.s32.totalorder %s100, %s103
    %p112 = scmp.eq.s32.totalorder %s17, 1
    %p113 = por %p111, %p112
    %p114 = scmp.ne.s32.totalorder %s103, %s104
    %p115 = scmp.eq.s32.totalorder %s17, 0
    %p116 = por %p114, %p115
    %p117 = scmp.ne.s32.totalorder %s103, %s104
    %p118 = scmp.eq.s32.totalorder %s18, 1
    %p119 = por %p117, %p118
    %p121 = scmp.ne.s32.totalorder %s104, %s120
    %p122 = scmp.eq.s32.totalorder %s18, 0
    %p123 = por %p121, %p122
    %s125 = sadd.s32 %s124, 1
    %p128 = scmp.eq.s32.totalorder %s12, 1
    %p129 = scmp.ne.s32.totalorder %s124, %s126
    %p130 = scmp.eq.s32.totalorder %s12, 0
    %p131 = por %p129, %p130
    %p132 = scmp.ne.s32.totalorder %s124, %s126
    %p133 = scmp.eq.s32.totalorder %s17, 1
    %p134 = por %p132, %p133
    %p135 = scmp.ne.s32.totalorder %s126, %s127
    %p136 = scmp.eq.s32.totalorder %s17, 0
    %p137 = por %p135, %p136
    %p138 = scmp.ne.s32.totalorder %s126, %s127
    %p139 = scmp.eq.s32.totalorder %s18, 1
    %p140 = por %p138, %p139
    %p142 = scmp.ne.s32.totalorder %s127, %s141
    %p143 = scmp.eq.s32.totalorder %s18, 0
    %p144 = por %p142, %p143
    %s146 = sadd.s32 %s145, 1
    %p149 = scmp.eq.s32.totalorder %s12, 1
    %p150 = scmp.ne.s32.totalorder %s145, %s147
    %p151 = scmp.eq.s32.totalorder %s12, 0
    %p152 = por %p150, %p151
    %p153 = scmp.ne.s32.totalorder %s145, %s147
    %p154 = scmp.eq.s32.totalorder %s17, 1
    %p155 = por %p153, %p154
    %p156 = scmp.ne.s32.totalorder %s147, %s148
    %p157 = scmp.eq.s32.totalorder %s17, 0
    %p158 = por %p156, %p157
    %p159 = scmp.ne.s32.totalorder %s147, %s148
    %p160 = scmp.eq.s32.totalorder %s18, 1
    %p161 = por %p159, %p160
    %p163 = scmp.ne.s32.totalorder %s148, %s162
    %p164 = scmp.eq.s32.totalorder %s18, 0
    %p165 = por %p163, %p164
    %s167 = sadd.s32 %s166, 1
    %p170 = scmp.eq.s32.totalorder %s12, 1
    %p171 = scmp.ne.s32.totalorder %s166, %s168
    %p172 = scmp.eq.s32.totalorder %s12, 0
    %p173 = por %p171, %p172
    %p174 = scmp.ne.s32.totalorder %s166, %s168
    %p175 = scmp.eq.s32.totalorder %s17, 1
    %p176 = por %p174, %p175
    %p177 = scmp.ne.s32.totalorder %s168, %s169
    %p178 = scmp.eq.s32.totalorder %s17, 0
    %p179 = por %p177, %p178
    %p180 = scmp.ne.s32.totalorder %s168, %s169
    %p181 = scmp.eq.s32.totalorder %s18, 1
    %p182 = por %p180, %p181
    %p184 = scmp.ne.s32.totalorder %s169, %s183
    %p185 = scmp.eq.s32.totalorder %s18, 0
    %p186 = por %p184, %p185
    %s187 = sadd.s32 %s19, %s20
    %s188 = sadd.s32 %s31, %s27
    %s189 = ssub.s32 %s187, %s188
    %p190 = scmp.eq.s32.totalorder %s189, 0
    %s192 = sadd.s32 %s191, 1
    %s193 = scalar_select %p190, %s191, %s192
    %p196 = pneg %p190
    %p197 = scmp.eq.s32.totalorder %s12, 1
    %p198 = por %p196, %p197
    %p199 = scmp.ne.s32.totalorder %s191, %s194
    %p200 = scmp.eq.s32.totalorder %s12, 0
    %p201 = por %p199, %p200
    %p202 = scmp.ne.s32.totalorder %s191, %s194
    %p203 = scmp.eq.s32.totalorder %s17, 1
    %p204 = por %p202, %p203
    %p205 = scmp.ne.s32.totalorder %s194, %s195
    %p206 = scmp.eq.s32.totalorder %s17, 0
    %p207 = por %p205, %p206
    %p208 = scmp.ne.s32.totalorder %s194, %s195
    %p209 = scmp.eq.s32.totalorder %s18, 1
    %p210 = por %p208, %p209
    %p212 = scmp.ne.s32.totalorder %s195, %s211
    %p213 = scmp.eq.s32.totalorder %s18, 0
    %p214 = por %p212, %p213
    %p215 = scmp.le.s32.totalorder 1, %s12
    %p216 = scmp.lt.s32.totalorder %s12, 3
    %p217 = pnand %p215, %p216
    %p218 = pneg %p217
    // Predicated region
    $region9: #{up_conv_forward.3} parent=5 // pred_check
      _
    $region10: #{up_conv_forward.3} parent=5 // pred_check_branch
      %220 = sbr.rel (%p217) target = $region12
    $region11: #{up_conv_forward.3} parent=5 // pred_region
      %s221 = ssub.s32 %s12, 1
      // Predicated region
      $region13: #{up_conv_forward.3} parent=11 // pred_check
        %p222 = pneg %p137
      $region14: #{up_conv_forward.3} parent=11 // pred_check_branch
        %224 = sbr.rel (%p222) target = $region16
      $region15: #{up_conv_forward.3} parent=11 // pred_region
        _
      $region16: #{up_conv_forward.3} parent=11 // pred_fallthru
        _
      // Predicated region
      $region17: #{up_conv_forward.3} parent=11 // pred_check
        %p225 = pneg %p158
      $region18: #{up_conv_forward.3} parent=11 // pred_check_branch
        %227 = sbr.rel (%p225) target = $region20
      $region19: #{up_conv_forward.3} parent=11 // pred_region
        _
      $region20: #{up_conv_forward.3} parent=11 // pred_fallthru
        _
      // Predicated region
      $region21: #{up_conv_forward.3} parent=11 // pred_check
        %p228 = pneg %p179
      $region22: #{up_conv_forward.3} parent=11 // pred_check_branch
        %230 = sbr.rel (%p228) target = $region24
      $region23: #{up_conv_forward.3} parent=11 // pred_region
        _
      $region24: #{up_conv_forward.3} parent=11 // pred_fallthru
        _
    $region12: #{up_conv_forward.3} parent=5 // pred_fallthru
      _
    %p231 = scmp.lt.s32.totalorder %s12, 2
    // Predicated region
    $region25: #{up_conv_forward.3} parent=5 // pred_check
      %p232 = pneg %p231
    $region26: #{up_conv_forward.3} parent=5 // pred_check_branch
      %234 = sbr.rel (%p232) target = $region28
    $region27: #{up_conv_forward.3} parent=5 // pred_region
      // Predicated region
      $region29: #{up_conv_forward.3} parent=27 // pred_check
        %p235 = pneg %p46
      $region30: #{up_conv_forward.3} parent=27 // pred_check_branch
        %237 = sbr.rel (%p235) target = $region32
      $region31: #{up_conv_forward.3} parent=27 // pred_region
        %s238 = smul.u32 16, %s20
        %s239 = ssub.s32 18, %s238
        %p240 = scmp.lt.s32.totalorder %s239, 16
        %s241 = scalar_select %p240, %s239, 16
        %s242 = smul.u32 128, %s241
        %s243 = smul.u32 %s242, 3
        %p244 = scmp.lt.s32.totalorder %s19, 1
        %s245 = scalar_select %p244, %s19, 1
        %p246 = scmp.lt.s32.totalorder %s238, 17
        %s247 = scalar_select %p246, %s238, 17
        %s248 = smul.addr %s247, 3
        %s249 = smul.addr %s245, 54
        %s250 = sadd.s32 %s248, %s249
        %s251 = smul.addr %s250, 8
        %s252 = scalar_lea.vmem %s0, %s251
        %s253 = smul.u32 16, %s20
        %s254 = ssub.s32 18, %s253
        %p255 = scmp.lt.s32.totalorder %s254, 16
        %s256 = scalar_select %p255, %s254, 16
        %s257 = smul.u32 128, %s256
        %s258 = smul.u32 %s257, 3
      $region32: #{up_conv_forward.3} parent=27 // pred_fallthru
        _
      // Predicated region
      $region33: #{up_conv_forward.3} parent=27 // pred_check
        %p259 = pneg %p78
      $region34: #{up_conv_forward.3} parent=27 // pred_check_branch
        %261 = sbr.rel (%p259) target = $region36
      $region35: #{up_conv_forward.3} parent=27 // pred_region
        %s262 = smul.u32 %s20, 16
        %s263 = sadd.s32 %s262, 16
        %p264 = scmp.lt.s32.totalorder %s19, 1
        %s265 = scalar_select %p264, %s19, 1
        %p266 = scmp.lt.s32.totalorder %s263, 17
        %s267 = scalar_select %p266, %s263, 17
        %s268 = smul.addr %s267, 3
        %s269 = smul.addr %s265, 54
        %s270 = sadd.s32 %s268, %s269
        %s271 = smul.addr %s270, 8
        %s272 = scalar_lea.vmem %s1, %s271
        %s273 = smul.u32 %s20, 16
        %s274 = sadd.s32 %s273, 16
      $region36: #{up_conv_forward.3} parent=27 // pred_fallthru
        _
      // Predicated region
      $region37: #{up_conv_forward.3} parent=27 // pred_check
        %p275 = pneg %p110
      $region38: #{up_conv_forward.3} parent=27 // pred_check_branch
        %277 = sbr.rel (%p275) target = $region40
      $region39: #{up_conv_forward.3} parent=27 // pred_region
        %s278 = smul.u32 %s20, 16
        %s279 = sadd.s32 %s278, 17
        %p280 = scmp.lt.s32.totalorder %s19, 1
        %s281 = scalar_select %p280, %s19, 1
        %p282 = scmp.lt.s32.totalorder %s279, 17
        %s283 = scalar_select %p282, %s279, 17
        %s284 = smul.addr %s283, 3
        %s285 = smul.addr %s281, 54
        %s286 = sadd.s32 %s284, %s285
        %s287 = smul.addr %s286, 8
        %s288 = scalar_lea.vmem %s2, %s287
        %s289 = smul.u32 %s20, 16
        %s290 = sadd.s32 %s289, 17
      $region40: #{up_conv_forward.3} parent=27 // pred_fallthru
        _
    $region28: #{up_conv_forward.3} parent=5 // pred_fallthru
      _
    %p291 = scmp.le.s32.totalorder 1, %s12
    %p292 = scmp.lt.s32.totalorder %s12, 3
    %p293 = pnand %p291, %p292
    %p294 = pneg %p293
    // Predicated region
    $region41: #{up_conv_forward.3} parent=5 // pred_check
      _
    $region42: #{up_conv_forward.3} parent=5 // pred_check_branch
      %296 = sbr.rel (%p293) target = $region44
    $region43: #{up_conv_forward.3} parent=5 // pred_region
      %s297 = ssub.s32 %s12, 1
      %s298 = smul.u32 16, %s22
      %s299 = ssub.s32 18, %s298
      %p300 = scmp.lt.s32.totalorder %s299, 16
      %s301 = scalar_select %p300, %s299, 16
      %s302 = smul.u32 128, %s301
      %s303 = smul.u32 %s302, 3
      %p304 = scmp.lt.s32.totalorder %s21, 1
      %s305 = scalar_select %p304, %s21, 1
      %p306 = scmp.lt.s32.totalorder %s298, 17
      %s307 = scalar_select %p306, %s298, 17
      %s308 = smul.addr %s307, 3
      %s309 = smul.addr %s305, 54
      %s310 = sadd.s32 %s308, %s309
      %s311 = smul.addr %s310, 8
      %s312 = scalar_lea.vmem %s0, %s311
      %p313 = pneg %p52
      %p314 = pneg %p49
      %s315 = smul.u32 %s22, 16
      %s316 = sadd.s32 %s315, 16
      %p317 = scmp.lt.s32.totalorder %s21, 1
      %s318 = scalar_select %p317, %s21, 1
      %p319 = scmp.lt.s32.totalorder %s316, 17
      %s320 = scalar_select %p319, %s316, 17
      %s321 = smul.addr %s320, 3
      %s322 = smul.addr %s318, 54
      %s323 = sadd.s32 %s321, %s322
      %s324 = smul.addr %s323, 8
      %s325 = scalar_lea.vmem %s1, %s324
      %p326 = pneg %p84
      %p327 = pneg %p81
      %s328 = smul.u32 %s22, 16
      %s329 = sadd.s32 %s328, 17
      %p330 = scmp.lt.s32.totalorder %s21, 1
      %s331 = scalar_select %p330, %s21, 1
      %p332 = scmp.lt.s32.totalorder %s329, 17
      %s333 = scalar_select %p332, %s329, 17
      %s334 = smul.addr %s333, 3
      %s335 = smul.addr %s331, 54
      %s336 = sadd.s32 %s334, %s335
      %s337 = smul.addr %s336, 8
      %s338 = scalar_lea.vmem %s2, %s337
      %p339 = pneg %p116
      %p340 = pneg %p113
      %p341 = pneg %p137
      %p342 = pneg %p134
      %p343 = pneg %p158
      %p344 = pneg %p155
      %p345 = pneg %p179
      %p346 = pneg %p176
      %p347 = pneg %p207
      %p348 = pneg %p204
      %s349 = sadd.s32 %s21, %s22
      %s350 = smul.u32 32, %s349
      %p351 = scmp.lt.s32.totalorder %s350, 63
      %s352 = scalar_select %p351, %s350, 63
      %s353 = smul.addr %s352, 8
      %s354 = scalar_lea.vmem %s6, %s353
      %s355 = smul.u32 16, %s22
      %s356 = ssub.s32 18, %s355
      %p357 = scmp.lt.s32.totalorder %s356, 16
      %s358 = scalar_select %p357, %s356, 16
      %s359 = smul.u32 128, %s358
      %s360 = smul.u32 %s359, 3
      %p361 = scmp.lt.s32.totalorder %s21, 1
      %s362 = scalar_select %p361, %s21, 1
      %p363 = scmp.lt.s32.totalorder %s355, 17
      %s364 = scalar_select %p363, %s355, 17
      %s365 = smul.addr %s364, 3
      %s366 = smul.addr %s362, 54
      %s367 = sadd.s32 %s365, %s366
      %s368 = smul.addr %s367, 8
      %s369 = scalar_lea.vmem %s0, %s368
      %s370 = smul.u32 16, %s22
      %s371 = ssub.s32 18, %s370
      %p372 = scmp.lt.s32.totalorder %s371, 16
      %s373 = scalar_select %p372, %s371, 16
      %s374 = smul.u32 128, %s373
      %s375 = smul.u32 %s374, 3
      %s376 = smul.u32 %s22, 16
      %s377 = sadd.s32 %s376, 16
      %p378 = scmp.lt.s32.totalorder %s21, 1
      %s379 = scalar_select %p378, %s21, 1
      %p380 = scmp.lt.s32.totalorder %s377, 17
      %s381 = scalar_select %p380, %s377, 17
      %s382 = smul.addr %s381, 3
      %s383 = smul.addr %s379, 54
      %s384 = sadd.s32 %s382, %s383
      %s385 = smul.addr %s384, 8
      %s386 = scalar_lea.vmem %s1, %s385
      %s387 = smul.u32 %s22, 16
      %s388 = sadd.s32 %s387, 16
      %s389 = smul.u32 %s22, 16
      %s390 = sadd.s32 %s389, 17
      %p391 = scmp.lt.s32.totalorder %s21, 1
      %s392 = scalar_select %p391, %s21, 1
      %p393 = scmp.lt.s32.totalorder %s390, 17
      %s394 = scalar_select %p393, %s390, 17
      %s395 = smul.addr %s394, 3
      %s396 = smul.addr %s392, 54
      %s397 = sadd.s32 %s395, %s396
      %s398 = smul.addr %s397, 8
      %s399 = scalar_lea.vmem %s2, %s398
      %s400 = smul.u32 %s22, 16
      %s401 = sadd.s32 %s400, 17
      %s402 = sadd.s32 %s21, %s22
      %s403 = smul.u32 32, %s402
      %p404 = scmp.lt.s32.totalorder %s403, 63
      %s405 = scalar_select %p404, %s403, 63
      %s406 = smul.addr %s405, 8
      %s407 = scalar_lea.vmem %s6, %s406
      %s408 = sadd.s32 %s21, %s22
      %s409 = smul.u32 32, %s408
      %v410 = vld [vmem:[%s369] sm:$0xff]
      %v411 = vld [vmem:[%s369 + $0x8] sm:$0xff]
      %v412 = vld [vmem:[%s369 + $0x10] sm:$0x3]
      %v413 = vld [vmem:[%s369 + $0x18] sm:$0xff]
      %v414 = vld [vmem:[%s369 + $0x20] sm:$0xff]
      %v415 = vld [vmem:[%s369 + $0x28] sm:$0x3]
      %v416 = vld [vmem:[%s369 + $0x30] sm:$0xff]
      %v417 = vld [vmem:[%s369 + $0x38] sm:$0xff]
      %v418 = vld [vmem:[%s369 + $0x40] sm:$0x3]
      %v419 = vld [vmem:[%s369 + $0x48] sm:$0xff]
      %v420 = vld [vmem:[%s369 + $0x50] sm:$0xff]
      %v421 = vld [vmem:[%s369 + $0x58] sm:$0x3]
      %v422 = vld [vmem:[%s369 + $0x60] sm:$0xff]
      %v423 = vld [vmem:[%s369 + $0x68] sm:$0xff]
      %v424 = vld [vmem:[%s369 + $0x70] sm:$0x3]
      %v425 = vld [vmem:[%s369 + $0x78] sm:$0xff]
      %v426 = vld [vmem:[%s369 + $0x80] sm:$0xff]
      %v427 = vld [vmem:[%s369 + $0x88] sm:$0x3]
      %v428 = vld [vmem:[%s369 + $0x90] sm:$0xff]
      %v429 = vld [vmem:[%s369 + $0x98] sm:$0xff]
      %v430 = vld [vmem:[%s369 + $0xa0] sm:$0x3]
      %v431 = vld [vmem:[%s369 + $0xa8] sm:$0xff]
      %v432 = vld [vmem:[%s369 + $0xb0] sm:$0xff]
      %v433 = vld [vmem:[%s369 + $0xb8] sm:$0x3]
      %v434 = vld [vmem:[%s369 + $0xc0] sm:$0xff]
      %v435 = vld [vmem:[%s369 + $0xc8] sm:$0xff]
      %v436 = vld [vmem:[%s369 + $0xd0] sm:$0x3]
      %v437 = vld [vmem:[%s369 + $0xd8] sm:$0xff]
      %v438 = vld [vmem:[%s369 + $0xe0] sm:$0xff]
      %v439 = vld [vmem:[%s369 + $0xe8] sm:$0x3]
      %v440 = vld [vmem:[%s369 + $0xf0] sm:$0xff]
      %v441 = vld [vmem:[%s369 + $0xf8] sm:$0xff]
      %v442 = vld [vmem:[%s369 + $0x100] sm:$0x3]
      %v443 = vld [vmem:[%s369 + $0x108] sm:$0xff]
      %v444 = vld [vmem:[%s369 + $0x110] sm:$0xff]
      %v445 = vld [vmem:[%s369 + $0x118] sm:$0x3]
      %v446 = vld [vmem:[%s369 + $0x120] sm:$0xff]
      %v447 = vld [vmem:[%s369 + $0x128] sm:$0xff]
      %v448 = vld [vmem:[%s369 + $0x130] sm:$0x3]
      %v449 = vld [vmem:[%s369 + $0x138] sm:$0xff]
      %v450 = vld [vmem:[%s369 + $0x140] sm:$0xff]
      %v451 = vld [vmem:[%s369 + $0x148] sm:$0x3]
      %v452 = vld [vmem:[%s369 + $0x150] sm:$0xff]
      %v453 = vld [vmem:[%s369 + $0x158] sm:$0xff]
      %v454 = vld [vmem:[%s369 + $0x160] sm:$0x3]
      %v455 = vld [vmem:[%s369 + $0x168] sm:$0xff]
      %v456 = vld [vmem:[%s369 + $0x170] sm:$0xff]
      %v457 = vld [vmem:[%s369 + $0x178] sm:$0x3]
      %v458 = vld [vmem:[%s386] sm:$0xff]
      %v459 = vld [vmem:[%s386 + $0x8] sm:$0xff]
      %v460 = vld [vmem:[%s386 + $0x10] sm:$0x3]
      %v461 = vld [vmem:[%s399] sm:$0xff]
      %v462 = vld [vmem:[%s399 + $0x8] sm:$0xff]
      %v463 = vld [vmem:[%s399 + $0x10] sm:$0x3]
      %v464 = vld [vmem:[%s3] sm:$0xf]
      %vm513 = vcmask 1046528
      %v514 = vrot.slane %v410, 1
      %v515 = vrot.slane %v411, 1
      %v516 = vsel %vm513, %v514, %v515
      %v517 = vrot.slane %v412, 1
      %v518 = vsel %vm513, %v515, %v517
      %v519 = vrot.slane %v413, 1
      %v520 = vrot.slane %v414, 1
      %v521 = vsel %vm513, %v519, %v520
      %v522 = vrot.slane %v415, 1
      %v523 = vsel %vm513, %v520, %v522
      %v524 = vrot.slane %v416, 1
      %v525 = vrot.slane %v417, 1
      %v526 = vsel %vm513, %v524, %v525
      %v527 = vrot.slane %v418, 1
      %v528 = vsel %vm513, %v525, %v527
      %v529 = vrot.slane %v419, 1
      %v530 = vrot.slane %v420, 1
      %v531 = vsel %vm513, %v529, %v530
      %v532 = vrot.slane %v421, 1
      %v533 = vsel %vm513, %v530, %v532
      %v534 = vrot.slane %v422, 1
      %v535 = vrot.slane %v423, 1
      %v536 = vsel %vm513, %v534, %v535
      %v537 = vrot.slane %v424, 1
      %v538 = vsel %vm513, %v535, %v537
      %v539 = vrot.slane %v425, 1
      %v540 = vrot.slane %v426, 1
      %v541 = vsel %vm513, %v539, %v540
      %v542 = vrot.slane %v427, 1
      %v543 = vsel %vm513, %v540, %v542
      %v544 = vrot.slane %v428, 1
      %v545 = vrot.slane %v429, 1
      %v546 = vsel %vm513, %v544, %v545
      %v547 = vrot.slane %v430, 1
      %v548 = vsel %vm513, %v545, %v547
      %v549 = vrot.slane %v431, 1
      %v550 = vrot.slane %v432, 1
      %v551 = vsel %vm513, %v549, %v550
      %v552 = vrot.slane %v433, 1
      %v553 = vsel %vm513, %v550, %v552
      %v554 = vrot.slane %v434, 1
      %v555 = vrot.slane %v435, 1
      %v556 = vsel %vm513, %v554, %v555
      %v557 = vrot.slane %v436, 1
      %v558 = vsel %vm513, %v555, %v557
      %v559 = vrot.slane %v437, 1
      %v560 = vrot.slane %v438, 1
      %v561 = vsel %vm513, %v559, %v560
      %v562 = vrot.slane %v439, 1
      %v563 = vsel %vm513, %v560, %v562
      %v564 = vrot.slane %v440, 1
      %v565 = vrot.slane %v441, 1
      %v566 = vsel %vm513, %v564, %v565
      %v567 = vrot.slane %v442, 1
      %v568 = vsel %vm513, %v565, %v567
      %v569 = vrot.slane %v443, 1
      %v570 = vrot.slane %v444, 1
      %v571 = vsel %vm513, %v569, %v570
      %v572 = vrot.slane %v445, 1
      %v573 = vsel %vm513, %v570, %v572
      %v574 = vrot.slane %v446, 1
      %v575 = vrot.slane %v447, 1
      %v576 = vsel %vm513, %v574, %v575
      %v577 = vrot.slane %v448, 1
      %v578 = vsel %vm513, %v575, %v577
      %v579 = vrot.slane %v449, 1
      %v580 = vrot.slane %v450, 1
      %v581 = vsel %vm513, %v579, %v580
      %v582 = vrot.slane %v451, 1
      %v583 = vsel %vm513, %v580, %v582
      %v584 = vrot.slane %v452, 1
      %v585 = vrot.slane %v453, 1
      %v586 = vsel %vm513, %v584, %v585
      %v587 = vrot.slane %v454, 1
      %v588 = vsel %vm513, %v585, %v587
      %v589 = vrot.slane %v455, 1
      %v590 = vrot.slane %v456, 1
      %v591 = vsel %vm513, %v589, %v590
      %v592 = vrot.slane %v457, 1
      %v593 = vsel %vm513, %v590, %v592
      %s594 = scalar_lea.vmem %s3, 4
      %v595 = vld [vmem:[%s594] sm:$0xf]
      %vm596 = vcmask 31744
      %v597 = vsel %vm596, %v516, 0
      %v599 = vsel %vm596, %v518, 0
      %v601 = vsel %vm596, %v521, 0
      %v603 = vsel %vm596, %v523, 0
      %v605 = vsel %vm596, %v526, 0
      %v607 = vsel %vm596, %v528, 0
      %v609 = vsel %vm596, %v531, 0
      %v611 = vsel %vm596, %v533, 0
      %v613 = vsel %vm596, %v536, 0
      %v615 = vsel %vm596, %v538, 0
      %v617 = vsel %vm596, %v541, 0
      %v619 = vsel %vm596, %v543, 0
      %v621 = vsel %vm596, %v546, 0
      %v623 = vsel %vm596, %v548, 0
      %v625 = vsel %vm596, %v551, 0
      %v627 = vsel %vm596, %v553, 0
      %v629 = vsel %vm596, %v556, 0
      %v631 = vsel %vm596, %v558, 0
      %v633 = vsel %vm596, %v561, 0
      %v635 = vsel %vm596, %v563, 0
      %v637 = vsel %vm596, %v566, 0
      %v639 = vsel %vm596, %v568, 0
      %v641 = vsel %vm596, %v571, 0
      %v643 = vsel %vm596, %v573, 0
      %v645 = vsel %vm596, %v576, 0
      %v647 = vsel %vm596, %v578, 0
      %v649 = vsel %vm596, %v581, 0
      %v651 = vsel %vm596, %v583, 0
      %v653 = vsel %vm596, %v586, 0
      %v655 = vsel %vm596, %v588, 0
      %v657 = vsel %vm596, %v591, 0
      %v659 = vsel %vm596, %v593, 0
      %vm661 = vcmask 1043456
      %v663 = vsel %vm661, %v595, 0
      %665 = vmatprep.subr.mxu0 0.0
      %666 = vmatpush1.msra.mxu0 0.0
      %667 = vmatprep.subr.mxu0 0.0
      %668 = vmatpush1.msra.mxu0 0.0
      %669 = vmatprep.subr.mxu0 0.0
      %670 = vmatpush1.msra.mxu0 0.0
      %671 = vmatprep.subr.mxu0 0.0
      %672 = vmatpush1.msra.mxu0 0.0
      %673 = vmatprep.subr.mxu0 0.0
      %674 = vmatpush1.msra.mxu0 0.0
      %675 = vmatprep.subr.mxu0 0.0
      %676 = vmatpush1.msra.mxu0 0.0
      %677 = vmatprep.subr.mxu0 0.0
      %678 = vmatpush1.msra.mxu0 0.0
      %679 = vmatprep.subr.mxu0 0.0
      %680 = vmatpush1.msra.mxu0 0.0
      %681 = vmatprep.subr.mxu0 0.0
      %682 = vmatpush1.msra.mxu0 0.0
      %683 = vmatprep.subr.mxu0 0.0
      %684 = vmatpush1.msra.mxu0 0.0
      %685 = vmatprep.subr.mxu0 0.0
      %686 = vmatpush1.msra.mxu0 0.0
      %687 = vmatprep.subr.mxu0 0.0
      %688 = vmatpush1.msra.mxu0 0.0
      %689 = vmatprep.subr.mxu0 0.0
      %690 = vmatpush1.msra.mxu0 0.0
      %691 = vmatprep.subr.mxu0 0.0
      %692 = vmatpush1.msra.mxu0 0.0
      %693 = vmatprep.subr.mxu0 0.0
      %694 = vmatpush1.msra.mxu0 0.0
      %695 = vmatprep.subr.mxu0 0.0
      %696 = vmatpush1.msra.mxu0 %v663
      %697 = vmatprep.subr.mxu0 0.0
      %698 = vmatpush2.msra.mxu0 0.0
      %699 = vmatprep.subr.mxu0 0.0
      %700 = vmatpush2.msra.mxu0 0.0
      %701 = vmatprep.subr.mxu0 0.0
      %702 = vmatpush2.msra.mxu0 0.0
      %703 = vmatprep.subr.mxu0 0.0
      %704 = vmatpush2.msra.mxu0 0.0
      %705 = vmatprep.subr.mxu0 0.0
      %706 = vmatpush2.msra.mxu0 0.0
      %707 = vmatprep.subr.mxu0 0.0
      %708 = vmatpush2.msra.mxu0 0.0
      %709 = vmatprep.subr.mxu0 0.0
      %710 = vmatpush2.msra.mxu0 0.0
      %711 = vmatprep.subr.mxu0 0.0
      %712 = vmatpush2.msra.mxu0 0.0
      %713 = vmatprep.subr.mxu0 0.0
      %714 = vmatpush2.msra.mxu0 0.0
      %715 = vmatprep.subr.mxu0 0.0
      %716 = vmatpush2.msra.mxu0 0.0
      %717 = vmatprep.subr.mxu0 0.0
      %718 = vmatpush2.msra.mxu0 0.0
      %719 = vmatprep.subr.mxu0 0.0
      %720 = vmatpush2.msra.mxu0 0.0
      %721 = vmatprep.subr.mxu0 0.0
      %722 = vmatpush2.msra.mxu0 0.0
      %723 = vmatprep.subr.mxu0 0.0
      %724 = vmatpush2.msra.mxu0 0.0
      %725 = vmatprep.subr.mxu0 0.0
      %726 = vmatpush2.msra.mxu0 0.0
      %727 = vmatprep.subr.mxu0 0.0
      %728 = vmatpush2.msra.mxu0 0.0
      %729 = vmatprep.mubr.f32.mxu0 0.0
      %730 = vmatmul.mubr.f32.gmra.mxu0 %v597
      %v731 = vpop.f32.mrf.mxu0
      %v732 = vadd.f32 0.0, %v731
      %v733 = vpop.f32.mrf.mxu0
      %734 = vmatprep.mubr.f32.mxu0 0.0
      %735 = vmatmul.mubr.f32.gmra.mxu0 %v599
      %v736 = vpop.f32.mrf.mxu0
      %v737 = vadd.f32 0.0, %v736
      %v738 = vpop.f32.mrf.mxu0
      %739 = vmatprep.mubr.f32.mxu0 0.0
      %740 = vmatmul.mubr.f32.gmra.mxu0 %v601
      %v741 = vpop.f32.mrf.mxu0
      %v742 = vadd.f32 0.0, %v741
      %v743 = vpop.f32.mrf.mxu0
      %744 = vmatprep.mubr.f32.mxu0 0.0
      %745 = vmatmul.mubr.f32.gmra.mxu0 %v603
      %v746 = vpop.f32.mrf.mxu0
      %v747 = vadd.f32 0.0, %v746
      %v748 = vpop.f32.mrf.mxu0
      %749 = vmatprep.mubr.f32.mxu0 0.0
      %750 = vmatmul.mubr.f32.gmra.mxu0 %v605
      %v751 = vpop.f32.mrf.mxu0
      %v752 = vadd.f32 0.0, %v751
      %v753 = vpop.f32.mrf.mxu0
      %754 = vmatprep.mubr.f32.mxu0 0.0
      %755 = vmatmul.mubr.f32.gmra.mxu0 %v607
      %v756 = vpop.f32.mrf.mxu0
      %v757 = vadd.f32 0.0, %v756
      %v758 = vpop.f32.mrf.mxu0
      %759 = vmatprep.mubr.f32.mxu0 0.0
      %760 = vmatmul.mubr.f32.gmra.mxu0 %v609
      %v761 = vpop.f32.mrf.mxu0
      %v762 = vadd.f32 0.0, %v761
      %v763 = vpop.f32.mrf.mxu0
      %764 = vmatprep.mubr.f32.mxu0 0.0
      %765 = vmatmul.mubr.f32.gmra.mxu0 %v611
      %v766 = vpop.f32.mrf.mxu0
      %v767 = vadd.f32 0.0, %v766
      %v768 = vpop.f32.mrf.mxu0
      %769 = vmatprep.mubr.f32.mxu0 0.0
      %770 = vmatmul.mubr.f32.gmra.mxu0 %v613
      %v771 = vpop.f32.mrf.mxu0
      %v772 = vadd.f32 0.0, %v771
      %v773 = vpop.f32.mrf.mxu0
      %774 = vmatprep.mubr.f32.mxu0 0.0
      %775 = vmatmul.mubr.f32.gmra.mxu0 %v615
      %v776 = vpop.f32.mrf.mxu0
      %v777 = vadd.f32 0.0, %v776
      %v778 = vpop.f32.mrf.mxu0
      %779 = vmatprep.mubr.f32.mxu0 0.0
      %780 = vmatmul.mubr.f32.gmra.mxu0 %v617
      %v781 = vpop.f32.mrf.mxu0
      %v782 = vadd.f32 0.0, %v781
      %v783 = vpop.f32.mrf.mxu0
      %784 = vmatprep.mubr.f32.mxu0 0.0
      %785 = vmatmul.mubr.f32.gmra.mxu0 %v619
      %v786 = vpop.f32.mrf.mxu0
      %v787 = vadd.f32 0.0, %v786
      %v788 = vpop.f32.mrf.mxu0
      %789 = vmatprep.mubr.f32.mxu0 0.0
      %790 = vmatmul.mubr.f32.gmra.mxu0 %v621
      %v791 = vpop.f32.mrf.mxu0
      %v792 = vadd.f32 0.0, %v791
      %v793 = vpop.f32.mrf.mxu0
      %794 = vmatprep.mubr.f32.mxu0 0.0
      %795 = vmatmul.mubr.f32.gmra.mxu0 %v623
      %v796 = vpop.f32.mrf.mxu0
      %v797 = vadd.f32 0.0, %v796
      %v798 = vpop.f32.mrf.mxu0
      %799 = vmatprep.mubr.f32.mxu0 0.0
      %800 = vmatmul.mubr.f32.gmra.mxu0 %v625
      %v801 = vpop.f32.mrf.mxu0
      %v802 = vadd.f32 0.0, %v801
      %v803 = vpop.f32.mrf.mxu0
      %804 = vmatprep.mubr.f32.mxu0 0.0
      %805 = vmatmul.mubr.f32.gmra.mxu0 %v627
      %v806 = vpop.f32.mrf.mxu0
      %v807 = vadd.f32 0.0, %v806
      %v808 = vpop.f32.mrf.mxu0
      %809 = vmatprep.mubr.f32.mxu0 0.0
      %810 = vmatmul.mubr.f32.gmra.mxu0 %v629
      %v811 = vpop.f32.mrf.mxu0
      %v812 = vadd.f32 0.0, %v811
      %v813 = vpop.f32.mrf.mxu0
      %814 = vmatprep.mubr.f32.mxu0 0.0
      %815 = vmatmul.mubr.f32.gmra.mxu0 %v631
      %v816 = vpop.f32.mrf.mxu0
      %v817 = vadd.f32 0.0, %v816
      %v818 = vpop.f32.mrf.mxu0
      %819 = vmatprep.mubr.f32.mxu0 0.0
      %820 = vmatmul.mubr.f32.gmra.mxu0 %v633
      %v821 = vpop.f32.mrf.mxu0
      %v822 = vadd.f32 0.0, %v821
      %v823 = vpop.f32.mrf.mxu0
      %824 = vmatprep.mubr.f32.mxu0 0.0
      %825 = vmatmul.mubr.f32.gmra.mxu0 %v635
      %v826 = vpop.f32.mrf.mxu0
      %v827 = vadd.f32 0.0, %v826
      %v828 = vpop.f32.mrf.mxu0
      %829 = vmatprep.mubr.f32.mxu0 0.0
      %830 = vmatmul.mubr.f32.gmra.mxu0 %v637
      %v831 = vpop.f32.mrf.mxu0
      %v832 = vadd.f32 0.0, %v831
      %v833 = vpop.f32.mrf.mxu0
      %834 = vmatprep.mubr.f32.mxu0 0.0
      %835 = vmatmul.mubr.f32.gmra.mxu0 %v639
      %v836 = vpop.f32.mrf.mxu0
      %v837 = vadd.f32 0.0, %v836
      %v838 = vpop.f32.mrf.mxu0
      %839 = vmatprep.mubr.f32.mxu0 0.0
      %840 = vmatmul.mubr.f32.gmra.mxu0 %v641
      %v841 = vpop.f32.mrf.mxu0
      %v842 = vadd.f32 0.0, %v841
      %v843 = vpop.f32.mrf.mxu0
      %844 = vmatprep.mubr.f32.mxu0 0.0
      %845 = vmatmul.mubr.f32.gmra.mxu0 %v643
      %v846 = vpop.f32.mrf.mxu0
      %v847 = vadd.f32 0.0, %v846
      %v848 = vpop.f32.mrf.mxu0
      %849 = vmatprep.mubr.f32.mxu0 0.0
      %850 = vmatmul.mubr.f32.gmra.mxu0 %v645
      %v851 = vpop.f32.mrf.mxu0
      %v852 = vadd.f32 0.0, %v851
      %v853 = vpop.f32.mrf.mxu0
      %854 = vmatprep.mubr.f32.mxu0 0.0
      %855 = vmatmul.mubr.f32.gmra.mxu0 %v647
      %v856 = vpop.f32.mrf.mxu0
      %v857 = vadd.f32 0.0, %v856
      %v858 = vpop.f32.mrf.mxu0
      %859 = vmatprep.mubr.f32.mxu0 0.0
      %860 = vmatmul.mubr.f32.gmra.mxu0 %v649
      %v861 = vpop.f32.mrf.mxu0
      %v862 = vadd.f32 0.0, %v861
      %v863 = vpop.f32.mrf.mxu0
      %864 = vmatprep.mubr.f32.mxu0 0.0
      %865 = vmatmul.mubr.f32.gmra.mxu0 %v651
      %v866 = vpop.f32.mrf.mxu0
      %v867 = vadd.f32 0.0, %v866
      %v868 = vpop.f32.mrf.mxu0
      %869 = vmatprep.mubr.f32.mxu0 0.0
      %870 = vmatmul.mubr.f32.gmra.mxu0 %v653
      %v871 = vpop.f32.mrf.mxu0
      %v872 = vadd.f32 0.0, %v871
      %v873 = vpop.f32.mrf.mxu0
      %874 = vmatprep.mubr.f32.mxu0 0.0
      %875 = vmatmul.mubr.f32.gmra.mxu0 %v655
      %v876 = vpop.f32.mrf.mxu0
      %v877 = vadd.f32 0.0, %v876
      %v878 = vpop.f32.mrf.mxu0
      %879 = vmatprep.mubr.f32.mxu0 0.0
      %880 = vmatmul.mubr.f32.gmra.mxu0 %v657
      %v881 = vpop.f32.mrf.mxu0
      %v882 = vadd.f32 0.0, %v881
      %v883 = vpop.f32.mrf.mxu0
      %884 = vmatprep.mubr.f32.mxu0 0.0
      %885 = vmatmul.mubr.f32.gmra.mxu0 %v659
      %v886 = vpop.f32.mrf.mxu0
      %v887 = vadd.f32 0.0, %v886
      %v888 = vpop.f32.mrf.mxu0
      %889 = vdwg.mxu0
      %v890 = vsel %vm596, %v410, 0
      %v892 = vsel %vm596, %v411, 0
      %v894 = vsel %vm596, %v413, 0
      %v896 = vsel %vm596, %v414, 0
      %v898 = vsel %vm596, %v416, 0
      %v900 = vsel %vm596, %v417, 0
      %v902 = vsel %vm596, %v419, 0
      %v904 = vsel %vm596, %v420, 0
      %v906 = vsel %vm596, %v422, 0
      %v908 = vsel %vm596, %v423, 0
      %v910 = vsel %vm596, %v425, 0
      %v912 = vsel %vm596, %v426, 0
      %v914 = vsel %vm596, %v428, 0
      %v916 = vsel %vm596, %v429, 0
      %v918 = vsel %vm596, %v431, 0
      %v920 = vsel %vm596, %v432, 0
      %v922 = vsel %vm596, %v434, 0
      %v924 = vsel %vm596, %v435, 0
      %v926 = vsel %vm596, %v437, 0
      %v928 = vsel %vm596, %v438, 0
      %v930 = vsel %vm596, %v440, 0
      %v932 = vsel %vm596, %v441, 0
      %v934 = vsel %vm596, %v443, 0
      %v936 = vsel %vm596, %v444, 0
      %v938 = vsel %vm596, %v446, 0
      %v940 = vsel %vm596, %v447, 0
      %v942 = vsel %vm596, %v449, 0
      %v944 = vsel %vm596, %v450, 0
      %v946 = vsel %vm596, %v452, 0
      %v948 = vsel %vm596, %v453, 0
      %v950 = vsel %vm596, %v455, 0
      %v952 = vsel %vm596, %v456, 0
      %v955 = vsel %vm661, %v464, 0
      %957 = vmatprep.subr.mxu0 0.0
      %958 = vmatpush1.msra.mxu0 0.0
      %959 = vmatprep.subr.mxu0 0.0
      %960 = vmatpush1.msra.mxu0 0.0
      %961 = vmatprep.subr.mxu0 0.0
      %962 = vmatpush1.msra.mxu0 0.0
      %963 = vmatprep.subr.mxu0 0.0
      %964 = vmatpush1.msra.mxu0 0.0
      %965 = vmatprep.subr.mxu0 0.0
      %966 = vmatpush1.msra.mxu0 0.0
      %967 = vmatprep.subr.mxu0 0.0
      %968 = vmatpush1.msra.mxu0 0.0
      %969 = vmatprep.subr.mxu0 0.0
      %970 = vmatpush1.msra.mxu0 0.0
      %971 = vmatprep.subr.mxu0 0.0
      %972 = vmatpush1.msra.mxu0 0.0
      %973 = vmatprep.subr.mxu0 0.0
      %974 = vmatpush1.msra.mxu0 0.0
      %975 = vmatprep.subr.mxu0 0.0
      %976 = vmatpush1.msra.mxu0 0.0
      %977 = vmatprep.subr.mxu0 0.0
      %978 = vmatpush1.msra.mxu0 0.0
      %979 = vmatprep.subr.mxu0 0.0
      %980 = vmatpush1.msra.mxu0 0.0
      %981 = vmatprep.subr.mxu0 0.0
      %982 = vmatpush1.msra.mxu0 0.0
      %983 = vmatprep.subr.mxu0 0.0
      %984 = vmatpush1.msra.mxu0 0.0
      %985 = vmatprep.subr.mxu0 0.0
      %986 = vmatpush1.msra.mxu0 0.0
      %987 = vmatprep.subr.mxu0 0.0
      %988 = vmatpush1.msra.mxu0 %v955
      %989 = vmatprep.subr.mxu0 0.0
      %990 = vmatpush2.msra.mxu0 0.0
      %991 = vmatprep.subr.mxu0 0.0
      %992 = vmatpush2.msra.mxu0 0.0
      %993 = vmatprep.subr.mxu0 0.0
      %994 = vmatpush2.msra.mxu0 0.0
      %995 = vmatprep.subr.mxu0 0.0
      %996 = vmatpush2.msra.mxu0 0.0
      %997 = vmatprep.subr.mxu0 0.0
      %998 = vmatpush2.msra.mxu0 0.0
      %999 = vmatprep.subr.mxu0 0.0
      %1000 = vmatpush2.msra.mxu0 0.0
      %1001 = vmatprep.subr.mxu0 0.0
      %1002 = vmatpush2.msra.mxu0 0.0
      %1003 = vmatprep.subr.mxu0 0.0
      %1004 = vmatpush2.msra.mxu0 0.0
      %1005 = vmatprep.subr.mxu0 0.0
      %1006 = vmatpush2.msra.mxu0 0.0
      %1007 = vmatprep.subr.mxu0 0.0
      %1008 = vmatpush2.msra.mxu0 0.0
      %1009 = vmatprep.subr.mxu0 0.0
      %1010 = vmatpush2.msra.mxu0 0.0
      %1011 = vmatprep.subr.mxu0 0.0
      %1012 = vmatpush2.msra.mxu0 0.0
      %1013 = vmatprep.subr.mxu0 0.0
      %1014 = vmatpush2.msra.mxu0 0.0
      %1015 = vmatprep.subr.mxu0 0.0
      %1016 = vmatpush2.msra.mxu0 0.0
      %1017 = vmatprep.subr.mxu0 0.0
      %1018 = vmatpush2.msra.mxu0 0.0
      %1019 = vmatprep.subr.mxu0 0.0
      %1020 = vmatpush2.msra.mxu0 0.0
      %1021 = vmatprep.mubr.f32.mxu0 0.0
      %1022 = vmatmul.mubr.f32.gmra.mxu0 %v890
      %v1023 = vpop.f32.mrf.mxu0
      %v1024 = vadd.f32 %v732, %v1023
      %v1025 = vpop.f32.mrf.mxu0
      %1026 = vmatprep.mubr.f32.mxu0 0.0
      %1027 = vmatmul.mubr.f32.gmra.mxu0 %v892
      %v1028 = vpop.f32.mrf.mxu0
      %v1029 = vadd.f32 %v737, %v1028
      %v1030 = vpop.f32.mrf.mxu0
      %1031 = vmatprep.mubr.f32.mxu0 0.0
      %1032 = vmatmul.mubr.f32.gmra.mxu0 %v894
      %v1033 = vpop.f32.mrf.mxu0
      %v1034 = vadd.f32 %v742, %v1033
      %v1035 = vpop.f32.mrf.mxu0
      %1036 = vmatprep.mubr.f32.mxu0 0.0
      %1037 = vmatmul.mubr.f32.gmra.mxu0 %v896
      %v1038 = vpop.f32.mrf.mxu0
      %v1039 = vadd.f32 %v747, %v1038
      %v1040 = vpop.f32.mrf.mxu0
      %1041 = vmatprep.mubr.f32.mxu0 0.0
      %1042 = vmatmul.mubr.f32.gmra.mxu0 %v898
      %v1043 = vpop.f32.mrf.mxu0
      %v1044 = vadd.f32 %v752, %v1043
      %v1045 = vpop.f32.mrf.mxu0
      %1046 = vmatprep.mubr.f32.mxu0 0.0
      %1047 = vmatmul.mubr.f32.gmra.mxu0 %v900
      %v1048 = vpop.f32.mrf.mxu0
      %v1049 = vadd.f32 %v757, %v1048
      %v1050 = vpop.f32.mrf.mxu0
      %1051 = vmatprep.mubr.f32.mxu0 0.0
      %1052 = vmatmul.mubr.f32.gmra.mxu0 %v902
      %v1053 = vpop.f32.mrf.mxu0
      %v1054 = vadd.f32 %v762, %v1053
      %v1055 = vpop.f32.mrf.mxu0
      %1056 = vmatprep.mubr.f32.mxu0 0.0
      %1057 = vmatmul.mubr.f32.gmra.mxu0 %v904
      %v1058 = vpop.f32.mrf.mxu0
      %v1059 = vadd.f32 %v767, %v1058
      %v1060 = vpop.f32.mrf.mxu0
      %1061 = vmatprep.mubr.f32.mxu0 0.0
      %1062 = vmatmul.mubr.f32.gmra.mxu0 %v906
      %v1063 = vpop.f32.mrf.mxu0
      %v1064 = vadd.f32 %v772, %v1063
      %v1065 = vpop.f32.mrf.mxu0
      %1066 = vmatprep.mubr.f32.mxu0 0.0
      %1067 = vmatmul.mubr.f32.gmra.mxu0 %v908
      %v1068 = vpop.f32.mrf.mxu0
      %v1069 = vadd.f32 %v777, %v1068
      %v1070 = vpop.f32.mrf.mxu0
      %1071 = vmatprep.mubr.f32.mxu0 0.0
      %1072 = vmatmul.mubr.f32.gmra.mxu0 %v910
      %v1073 = vpop.f32.mrf.mxu0
      %v1074 = vadd.f32 %v782, %v1073
      %v1075 = vpop.f32.mrf.mxu0
      %1076 = vmatprep.mubr.f32.mxu0 0.0
      %1077 = vmatmul.mubr.f32.gmra.mxu0 %v912
      %v1078 = vpop.f32.mrf.mxu0
      %v1079 = vadd.f32 %v787, %v1078
      %v1080 = vpop.f32.mrf.mxu0
      %1081 = vmatprep.mubr.f32.mxu0 0.0
      %1082 = vmatmul.mubr.f32.gmra.mxu0 %v914
      %v1083 = vpop.f32.mrf.mxu0
      %v1084 = vadd.f32 %v792, %v1083
      %v1085 = vpop.f32.mrf.mxu0
      %1086 = vmatprep.mubr.f32.mxu0 0.0
      %1087 = vmatmul.mubr.f32.gmra.mxu0 %v916
      %v1088 = vpop.f32.mrf.mxu0
      %v1089 = vadd.f32 %v797, %v1088
      %v1090 = vpop.f32.mrf.mxu0
      %1091 = vmatprep.mubr.f32.mxu0 0.0
      %1092 = vmatmul.mubr.f32.gmra.mxu0 %v918
      %v1093 = vpop.f32.mrf.mxu0
      %v1094 = vadd.f32 %v802, %v1093
      %v1095 = vpop.f32.mrf.mxu0
      %1096 = vmatprep.mubr.f32.mxu0 0.0
      %1097 = vmatmul.mubr.f32.gmra.mxu0 %v920
      %v1098 = vpop.f32.mrf.mxu0
      %v1099 = vadd.f32 %v807, %v1098
      %v1100 = vpop.f32.mrf.mxu0
      %1101 = vmatprep.mubr.f32.mxu0 0.0
      %1102 = vmatmul.mubr.f32.gmra.mxu0 %v922
      %v1103 = vpop.f32.mrf.mxu0
      %v1104 = vadd.f32 %v812, %v1103
      %v1105 = vpop.f32.mrf.mxu0
      %1106 = vmatprep.mubr.f32.mxu0 0.0
      %1107 = vmatmul.mubr.f32.gmra.mxu0 %v924
      %v1108 = vpop.f32.mrf.mxu0
      %v1109 = vadd.f32 %v817, %v1108
      %v1110 = vpop.f32.mrf.mxu0
      %1111 = vmatprep.mubr.f32.mxu0 0.0
      %1112 = vmatmul.mubr.f32.gmra.mxu0 %v926
      %v1113 = vpop.f32.mrf.mxu0
      %v1114 = vadd.f32 %v822, %v1113
      %v1115 = vpop.f32.mrf.mxu0
      %1116 = vmatprep.mubr.f32.mxu0 0.0
      %1117 = vmatmul.mubr.f32.gmra.mxu0 %v928
      %v1118 = vpop.f32.mrf.mxu0
      %v1119 = vadd.f32 %v827, %v1118
      %v1120 = vpop.f32.mrf.mxu0
      %1121 = vmatprep.mubr.f32.mxu0 0.0
      %1122 = vmatmul.mubr.f32.gmra.mxu0 %v930
      %v1123 = vpop.f32.mrf.mxu0
      %v1124 = vadd.f32 %v832, %v1123
      %v1125 = vpop.f32.mrf.mxu0
      %1126 = vmatprep.mubr.f32.mxu0 0.0
      %1127 = vmatmul.mubr.f32.gmra.mxu0 %v932
      %v1128 = vpop.f32.mrf.mxu0
      %v1129 = vadd.f32 %v837, %v1128
      %v1130 = vpop.f32.mrf.mxu0
      %1131 = vmatprep.mubr.f32.mxu0 0.0
      %1132 = vmatmul.mubr.f32.gmra.mxu0 %v934
      %v1133 = vpop.f32.mrf.mxu0
      %v1134 = vadd.f32 %v842, %v1133
      %v1135 = vpop.f32.mrf.mxu0
      %1136 = vmatprep.mubr.f32.mxu0 0.0
      %1137 = vmatmul.mubr.f32.gmra.mxu0 %v936
      %v1138 = vpop.f32.mrf.mxu0
      %v1139 = vadd.f32 %v847, %v1138
      %v1140 = vpop.f32.mrf.mxu0
      %1141 = vmatprep.mubr.f32.mxu0 0.0
      %1142 = vmatmul.mubr.f32.gmra.mxu0 %v938
      %v1143 = vpop.f32.mrf.mxu0
      %v1144 = vadd.f32 %v852, %v1143
      %v1145 = vpop.f32.mrf.mxu0
      %1146 = vmatprep.mubr.f32.mxu0 0.0
      %1147 = vmatmul.mubr.f32.gmra.mxu0 %v940
      %v1148 = vpop.f32.mrf.mxu0
      %v1149 = vadd.f32 %v857, %v1148
      %v1150 = vpop.f32.mrf.mxu0
      %1151 = vmatprep.mubr.f32.mxu0 0.0
      %1152 = vmatmul.mubr.f32.gmra.mxu0 %v942
      %v1153 = vpop.f32.mrf.mxu0
      %v1154 = vadd.f32 %v862, %v1153
      %v1155 = vpop.f32.mrf.mxu0
      %1156 = vmatprep.mubr.f32.mxu0 0.0
      %1157 = vmatmul.mubr.f32.gmra.mxu0 %v944
      %v1158 = vpop.f32.mrf.mxu0
      %v1159 = vadd.f32 %v867, %v1158
      %v1160 = vpop.f32.mrf.mxu0
      %1161 = vmatprep.mubr.f32.mxu0 0.0
      %1162 = vmatmul.mubr.f32.gmra.mxu0 %v946
      %v1163 = vpop.f32.mrf.mxu0
      %v1164 = vadd.f32 %v872, %v1163
      %v1165 = vpop.f32.mrf.mxu0
      %1166 = vmatprep.mubr.f32.mxu0 0.0
      %1167 = vmatmul.mubr.f32.gmra.mxu0 %v948
      %v1168 = vpop.f32.mrf.mxu0
      %v1169 = vadd.f32 %v877, %v1168
      %v1170 = vpop.f32.mrf.mxu0
      %1171 = vmatprep.mubr.f32.mxu0 0.0
      %1172 = vmatmul.mubr.f32.gmra.mxu0 %v950
      %v1173 = vpop.f32.mrf.mxu0
      %v1174 = vadd.f32 %v882, %v1173
      %v1175 = vpop.f32.mrf.mxu0
      %1176 = vmatprep.mubr.f32.mxu0 0.0
      %1177 = vmatmul.mubr.f32.gmra.mxu0 %v952
      %v1178 = vpop.f32.mrf.mxu0
      %v1179 = vadd.f32 %v887, %v1178
      %v1180 = vpop.f32.mrf.mxu0
      %1181 = vdwg.mxu0
      %vm1182 = vcmask 1045504
      %v1183 = vrot.slane %v410, 2
      %v1184 = vrot.slane %v411, 2
      %v1185 = vsel %vm1182, %v1183, %v1184
      %v1186 = vrot.slane %v412, 2
      %v1187 = vsel %vm1182, %v1184, %v1186
      %v1188 = vrot.slane %v413, 2
      %v1189 = vrot.slane %v414, 2
      %v1190 = vsel %vm1182, %v1188, %v1189
      %v1191 = vrot.slane %v415, 2
      %v1192 = vsel %vm1182, %v1189, %v1191
      %v1193 = vrot.slane %v416, 2
      %v1194 = vrot.slane %v417, 2
      %v1195 = vsel %vm1182, %v1193, %v1194
      %v1196 = vrot.slane %v418, 2
      %v1197 = vsel %vm1182, %v1194, %v1196
      %v1198 = vrot.slane %v419, 2
      %v1199 = vrot.slane %v420, 2
      %v1200 = vsel %vm1182, %v1198, %v1199
      %v1201 = vrot.slane %v421, 2
      %v1202 = vsel %vm1182, %v1199, %v1201
      %v1203 = vrot.slane %v422, 2
      %v1204 = vrot.slane %v423, 2
      %v1205 = vsel %vm1182, %v1203, %v1204
      %v1206 = vrot.slane %v424, 2
      %v1207 = vsel %vm1182, %v1204, %v1206
      %v1208 = vrot.slane %v425, 2
      %v1209 = vrot.slane %v426, 2
      %v1210 = vsel %vm1182, %v1208, %v1209
      %v1211 = vrot.slane %v427, 2
      %v1212 = vsel %vm1182, %v1209, %v1211
      %v1213 = vrot.slane %v428, 2
      %v1214 = vrot.slane %v429, 2
      %v1215 = vsel %vm1182, %v1213, %v1214
      %v1216 = vrot.slane %v430, 2
      %v1217 = vsel %vm1182, %v1214, %v1216
      %v1218 = vrot.slane %v431, 2
      %v1219 = vrot.slane %v432, 2
      %v1220 = vsel %vm1182, %v1218, %v1219
      %v1221 = vrot.slane %v433, 2
      %v1222 = vsel %vm1182, %v1219, %v1221
      %v1223 = vrot.slane %v434, 2
      %v1224 = vrot.slane %v435, 2
      %v1225 = vsel %vm1182, %v1223, %v1224
      %v1226 = vrot.slane %v436, 2
      %v1227 = vsel %vm1182, %v1224, %v1226
      %v1228 = vrot.slane %v437, 2
      %v1229 = vrot.slane %v438, 2
      %v1230 = vsel %vm1182, %v1228, %v1229
      %v1231 = vrot.slane %v439, 2
      %v1232 = vsel %vm1182, %v1229, %v1231
      %v1233 = vrot.slane %v440, 2
      %v1234 = vrot.slane %v441, 2
      %v1235 = vsel %vm1182, %v1233, %v1234
      %v1236 = vrot.slane %v442, 2
      %v1237 = vsel %vm1182, %v1234, %v1236
      %v1238 = vrot.slane %v443, 2
      %v1239 = vrot.slane %v444, 2
      %v1240 = vsel %vm1182, %v1238, %v1239
      %v1241 = vrot.slane %v445, 2
      %v1242 = vsel %vm1182, %v1239, %v1241
      %v1243 = vrot.slane %v446, 2
      %v1244 = vrot.slane %v447, 2
      %v1245 = vsel %vm1182, %v1243, %v1244
      %v1246 = vrot.slane %v448, 2
      %v1247 = vsel %vm1182, %v1244, %v1246
      %v1248 = vrot.slane %v449, 2
      %v1249 = vrot.slane %v450, 2
      %v1250 = vsel %vm1182, %v1248, %v1249
      %v1251 = vrot.slane %v451, 2
      %v1252 = vsel %vm1182, %v1249, %v1251
      %v1253 = vrot.slane %v452, 2
      %v1254 = vrot.slane %v453, 2
      %v1255 = vsel %vm1182, %v1253, %v1254
      %v1256 = vrot.slane %v454, 2
      %v1257 = vsel %vm1182, %v1254, %v1256
      %v1258 = vrot.slane %v455, 2
      %v1259 = vrot.slane %v456, 2
      %v1260 = vsel %vm1182, %v1258, %v1259
      %v1261 = vrot.slane %v457, 2
      %v1262 = vsel %vm1182, %v1259, %v1261
      %s1263 = scalar_lea.vmem %s3, 8
      %v1264 = vld [vmem:[%s1263] sm:$0xf]
      %v1265 = vsel %vm596, %v1185, 0
      %v1267 = vsel %vm596, %v1187, 0
      %v1269 = vsel %vm596, %v1190, 0
      %v1271 = vsel %vm596, %v1192, 0
      %v1273 = vsel %vm596, %v1195, 0
      %v1275 = vsel %vm596, %v1197, 0
      %v1277 = vsel %vm596, %v1200, 0
      %v1279 = vsel %vm596, %v1202, 0
      %v1281 = vsel %vm596, %v1205, 0
      %v1283 = vsel %vm596, %v1207, 0
      %v1285 = vsel %vm596, %v1210, 0
      %v1287 = vsel %vm596, %v1212, 0
      %v1289 = vsel %vm596, %v1215, 0
      %v1291 = vsel %vm596, %v1217, 0
      %v1293 = vsel %vm596, %v1220, 0
      %v1295 = vsel %vm596, %v1222, 0
      %v1297 = vsel %vm596, %v1225, 0
      %v1299 = vsel %vm596, %v1227, 0
      %v1301 = vsel %vm596, %v1230, 0
      %v1303 = vsel %vm596, %v1232, 0
      %v1305 = vsel %vm596, %v1235, 0
      %v1307 = vsel %vm596, %v1237, 0
      %v1309 = vsel %vm596, %v1240, 0
      %v1311 = vsel %vm596, %v1242, 0
      %v1313 = vsel %vm596, %v1245, 0
      %v1315 = vsel %vm596, %v1247, 0
      %v1317 = vsel %vm596, %v1250, 0
      %v1319 = vsel %vm596, %v1252, 0
      %v1321 = vsel %vm596, %v1255, 0
      %v1323 = vsel %vm596, %v1257, 0
      %v1325 = vsel %vm596, %v1260, 0
      %v1327 = vsel %vm596, %v1262, 0
      %v1330 = vsel %vm661, %v1264, 0
      %1332 = vmatprep.subr.mxu0 0.0
      %1333 = vmatpush1.msra.mxu0 0.0
      %1334 = vmatprep.subr.mxu0 0.0
      %1335 = vmatpush1.msra.mxu0 0.0
      %1336 = vmatprep.subr.mxu0 0.0
      %1337 = vmatpush1.msra.mxu0 0.0
      %1338 = vmatprep.subr.mxu0 0.0
      %1339 = vmatpush1.msra.mxu0 0.0
      %1340 = vmatprep.subr.mxu0 0.0
      %1341 = vmatpush1.msra.mxu0 0.0
      %1342 = vmatprep.subr.mxu0 0.0
      %1343 = vmatpush1.msra.mxu0 0.0
      %1344 = vmatprep.subr.mxu0 0.0
      %1345 = vmatpush1.msra.mxu0 0.0
      %1346 = vmatprep.subr.mxu0 0.0
      %1347 = vmatpush1.msra.mxu0 0.0
      %1348 = vmatprep.subr.mxu0 0.0
      %1349 = vmatpush1.msra.mxu0 0.0
      %1350 = vmatprep.subr.mxu0 0.0
      %1351 = vmatpush1.msra.mxu0 0.0
      %1352 = vmatprep.subr.mxu0 0.0
      %1353 = vmatpush1.msra.mxu0 0.0
      %1354 = vmatprep.subr.mxu0 0.0
      %1355 = vmatpush1.msra.mxu0 0.0
      %1356 = vmatprep.subr.mxu0 0.0
      %1357 = vmatpush1.msra.mxu0 0.0
      %1358 = vmatprep.subr.mxu0 0.0
      %1359 = vmatpush1.msra.mxu0 0.0
      %1360 = vmatprep.subr.mxu0 0.0
      %1361 = vmatpush1.msra.mxu0 0.0
      %1362 = vmatprep.subr.mxu0 0.0
      %1363 = vmatpush1.msra.mxu0 %v1330
      %1364 = vmatprep.subr.mxu0 0.0
      %1365 = vmatpush2.msra.mxu0 0.0
      %1366 = vmatprep.subr.mxu0 0.0
      %1367 = vmatpush2.msra.mxu0 0.0
      %1368 = vmatprep.subr.mxu0 0.0
      %1369 = vmatpush2.msra.mxu0 0.0
      %1370 = vmatprep.subr.mxu0 0.0
      %1371 = vmatpush2.msra.mxu0 0.0
      %1372 = vmatprep.subr.mxu0 0.0
      %1373 = vmatpush2.msra.mxu0 0.0
      %1374 = vmatprep.subr.mxu0 0.0
      %1375 = vmatpush2.msra.mxu0 0.0
      %1376 = vmatprep.subr.mxu0 0.0
      %1377 = vmatpush2.msra.mxu0 0.0
      %1378 = vmatprep.subr.mxu0 0.0
      %1379 = vmatpush2.msra.mxu0 0.0
      %1380 = vmatprep.subr.mxu0 0.0
      %1381 = vmatpush2.msra.mxu0 0.0
      %1382 = vmatprep.subr.mxu0 0.0
      %1383 = vmatpush2.msra.mxu0 0.0
      %1384 = vmatprep.subr.mxu0 0.0
      %1385 = vmatpush2.msra.mxu0 0.0
      %1386 = vmatprep.subr.mxu0 0.0
      %1387 = vmatpush2.msra.mxu0 0.0
      %1388 = vmatprep.subr.mxu0 0.0
      %1389 = vmatpush2.msra.mxu0 0.0
      %1390 = vmatprep.subr.mxu0 0.0
      %1391 = vmatpush2.msra.mxu0 0.0
      %1392 = vmatprep.subr.mxu0 0.0
      %1393 = vmatpush2.msra.mxu0 0.0
      %1394 = vmatprep.subr.mxu0 0.0
      %1395 = vmatpush2.msra.mxu0 0.0
      %1396 = vmatprep.mubr.f32.mxu0 0.0
      %1397 = vmatmul.mubr.f32.gmra.mxu0 %v1265
      %v1398 = vpop.f32.mrf.mxu0
      %v1399 = vadd.f32 0.0, %v1398
      %v1400 = vpop.f32.mrf.mxu0
      %1401 = vmatprep.mubr.f32.mxu0 0.0
      %1402 = vmatmul.mubr.f32.gmra.mxu0 %v1267
      %v1403 = vpop.f32.mrf.mxu0
      %v1404 = vadd.f32 0.0, %v1403
      %v1405 = vpop.f32.mrf.mxu0
      %1406 = vmatprep.mubr.f32.mxu0 0.0
      %1407 = vmatmul.mubr.f32.gmra.mxu0 %v1269
      %v1408 = vpop.f32.mrf.mxu0
      %v1409 = vadd.f32 0.0, %v1408
      %v1410 = vpop.f32.mrf.mxu0
      %1411 = vmatprep.mubr.f32.mxu0 0.0
      %1412 = vmatmul.mubr.f32.gmra.mxu0 %v1271
      %v1413 = vpop.f32.mrf.mxu0
      %v1414 = vadd.f32 0.0, %v1413
      %v1415 = vpop.f32.mrf.mxu0
      %1416 = vmatprep.mubr.f32.mxu0 0.0
      %1417 = vmatmul.mubr.f32.gmra.mxu0 %v1273
      %v1418 = vpop.f32.mrf.mxu0
      %v1419 = vadd.f32 0.0, %v1418
      %v1420 = vpop.f32.mrf.mxu0
      %1421 = vmatprep.mubr.f32.mxu0 0.0
      %1422 = vmatmul.mubr.f32.gmra.mxu0 %v1275
      %v1423 = vpop.f32.mrf.mxu0
      %v1424 = vadd.f32 0.0, %v1423
      %v1425 = vpop.f32.mrf.mxu0
      %1426 = vmatprep.mubr.f32.mxu0 0.0
      %1427 = vmatmul.mubr.f32.gmra.mxu0 %v1277
      %v1428 = vpop.f32.mrf.mxu0
      %v1429 = vadd.f32 0.0, %v1428
      %v1430 = vpop.f32.mrf.mxu0
      %1431 = vmatprep.mubr.f32.mxu0 0.0
      %1432 = vmatmul.mubr.f32.gmra.mxu0 %v1279
      %v1433 = vpop.f32.mrf.mxu0
      %v1434 = vadd.f32 0.0, %v1433
      %v1435 = vpop.f32.mrf.mxu0
      %1436 = vmatprep.mubr.f32.mxu0 0.0
      %1437 = vmatmul.mubr.f32.gmra.mxu0 %v1281
      %v1438 = vpop.f32.mrf.mxu0
      %v1439 = vadd.f32 0.0, %v1438
      %v1440 = vpop.f32.mrf.mxu0
      %1441 = vmatprep.mubr.f32.mxu0 0.0
      %1442 = vmatmul.mubr.f32.gmra.mxu0 %v1283
      %v1443 = vpop.f32.mrf.mxu0
      %v1444 = vadd.f32 0.0, %v1443
      %v1445 = vpop.f32.mrf.mxu0
      %1446 = vmatprep.mubr.f32.mxu0 0.0
      %1447 = vmatmul.mubr.f32.gmra.mxu0 %v1285
      %v1448 = vpop.f32.mrf.mxu0
      %v1449 = vadd.f32 0.0, %v1448
      %v1450 = vpop.f32.mrf.mxu0
      %1451 = vmatprep.mubr.f32.mxu0 0.0
      %1452 = vmatmul.mubr.f32.gmra.mxu0 %v1287
      %v1453 = vpop.f32.mrf.mxu0
      %v1454 = vadd.f32 0.0, %v1453
      %v1455 = vpop.f32.mrf.mxu0
      %1456 = vmatprep.mubr.f32.mxu0 0.0
      %1457 = vmatmul.mubr.f32.gmra.mxu0 %v1289
      %v1458 = vpop.f32.mrf.mxu0
      %v1459 = vadd.f32 0.0, %v1458
      %v1460 = vpop.f32.mrf.mxu0
      %1461 = vmatprep.mubr.f32.mxu0 0.0
      %1462 = vmatmul.mubr.f32.gmra.mxu0 %v1291
      %v1463 = vpop.f32.mrf.mxu0
      %v1464 = vadd.f32 0.0, %v1463
      %v1465 = vpop.f32.mrf.mxu0
      %1466 = vmatprep.mubr.f32.mxu0 0.0
      %1467 = vmatmul.mubr.f32.gmra.mxu0 %v1293
      %v1468 = vpop.f32.mrf.mxu0
      %v1469 = vadd.f32 0.0, %v1468
      %v1470 = vpop.f32.mrf.mxu0
      %1471 = vmatprep.mubr.f32.mxu0 0.0
      %1472 = vmatmul.mubr.f32.gmra.mxu0 %v1295
      %v1473 = vpop.f32.mrf.mxu0
      %v1474 = vadd.f32 0.0, %v1473
      %v1475 = vpop.f32.mrf.mxu0
      %1476 = vmatprep.mubr.f32.mxu0 0.0
      %1477 = vmatmul.mubr.f32.gmra.mxu0 %v1297
      %v1478 = vpop.f32.mrf.mxu0
      %v1479 = vadd.f32 0.0, %v1478
      %v1480 = vpop.f32.mrf.mxu0
      %1481 = vmatprep.mubr.f32.mxu0 0.0
      %1482 = vmatmul.mubr.f32.gmra.mxu0 %v1299
      %v1483 = vpop.f32.mrf.mxu0
      %v1484 = vadd.f32 0.0, %v1483
      %v1485 = vpop.f32.mrf.mxu0
      %1486 = vmatprep.mubr.f32.mxu0 0.0
      %1487 = vmatmul.mubr.f32.gmra.mxu0 %v1301
      %v1488 = vpop.f32.mrf.mxu0
      %v1489 = vadd.f32 0.0, %v1488
      %v1490 = vpop.f32.mrf.mxu0
      %1491 = vmatprep.mubr.f32.mxu0 0.0
      %1492 = vmatmul.mubr.f32.gmra.mxu0 %v1303
      %v1493 = vpop.f32.mrf.mxu0
      %v1494 = vadd.f32 0.0, %v1493
      %v1495 = vpop.f32.mrf.mxu0
      %1496 = vmatprep.mubr.f32.mxu0 0.0
      %1497 = vmatmul.mubr.f32.gmra.mxu0 %v1305
      %v1498 = vpop.f32.mrf.mxu0
      %v1499 = vadd.f32 0.0, %v1498
      %v1500 = vpop.f32.mrf.mxu0
      %1501 = vmatprep.mubr.f32.mxu0 0.0
      %1502 = vmatmul.mubr.f32.gmra.mxu0 %v1307
      %v1503 = vpop.f32.mrf.mxu0
      %v1504 = vadd.f32 0.0, %v1503
      %v1505 = vpop.f32.mrf.mxu0
      %1506 = vmatprep.mubr.f32.mxu0 0.0
      %1507 = vmatmul.mubr.f32.gmra.mxu0 %v1309
      %v1508 = vpop.f32.mrf.mxu0
      %v1509 = vadd.f32 0.0, %v1508
      %v1510 = vpop.f32.mrf.mxu0
      %1511 = vmatprep.mubr.f32.mxu0 0.0
      %1512 = vmatmul.mubr.f32.gmra.mxu0 %v1311
      %v1513 = vpop.f32.mrf.mxu0
      %v1514 = vadd.f32 0.0, %v1513
      %v1515 = vpop.f32.mrf.mxu0
      %1516 = vmatprep.mubr.f32.mxu0 0.0
      %1517 = vmatmul.mubr.f32.gmra.mxu0 %v1313
      %v1518 = vpop.f32.mrf.mxu0
      %v1519 = vadd.f32 0.0, %v1518
      %v1520 = vpop.f32.mrf.mxu0
      %1521 = vmatprep.mubr.f32.mxu0 0.0
      %1522 = vmatmul.mubr.f32.gmra.mxu0 %v1315
      %v1523 = vpop.f32.mrf.mxu0
      %v1524 = vadd.f32 0.0, %v1523
      %v1525 = vpop.f32.mrf.mxu0
      %1526 = vmatprep.mubr.f32.mxu0 0.0
      %1527 = vmatmul.mubr.f32.gmra.mxu0 %v1317
      %v1528 = vpop.f32.mrf.mxu0
      %v1529 = vadd.f32 0.0, %v1528
      %v1530 = vpop.f32.mrf.mxu0
      %1531 = vmatprep.mubr.f32.mxu0 0.0
      %1532 = vmatmul.mubr.f32.gmra.mxu0 %v1319
      %v1533 = vpop.f32.mrf.mxu0
      %v1534 = vadd.f32 0.0, %v1533
      %v1535 = vpop.f32.mrf.mxu0
      %1536 = vmatprep.mubr.f32.mxu0 0.0
      %1537 = vmatmul.mubr.f32.gmra.mxu0 %v1321
      %v1538 = vpop.f32.mrf.mxu0
      %v1539 = vadd.f32 0.0, %v1538
      %v1540 = vpop.f32.mrf.mxu0
      %1541 = vmatprep.mubr.f32.mxu0 0.0
      %1542 = vmatmul.mubr.f32.gmra.mxu0 %v1323
      %v1543 = vpop.f32.mrf.mxu0
      %v1544 = vadd.f32 0.0, %v1543
      %v1545 = vpop.f32.mrf.mxu0
      %1546 = vmatprep.mubr.f32.mxu0 0.0
      %1547 = vmatmul.mubr.f32.gmra.mxu0 %v1325
      %v1548 = vpop.f32.mrf.mxu0
      %v1549 = vadd.f32 0.0, %v1548
      %v1550 = vpop.f32.mrf.mxu0
      %1551 = vmatprep.mubr.f32.mxu0 0.0
      %1552 = vmatmul.mubr.f32.gmra.mxu0 %v1327
      %v1553 = vpop.f32.mrf.mxu0
      %v1554 = vadd.f32 0.0, %v1553
      %v1555 = vpop.f32.mrf.mxu0
      %1556 = vdwg.mxu0
      %v1557 = vadd.f32 %v1024, %v1399
      %v1558 = vadd.f32 %v1029, %v1404
      %v1559 = vadd.f32 %v1034, %v1409
      %v1560 = vadd.f32 %v1039, %v1414
      %v1561 = vadd.f32 %v1044, %v1419
      %v1562 = vadd.f32 %v1049, %v1424
      %v1563 = vadd.f32 %v1054, %v1429
      %v1564 = vadd.f32 %v1059, %v1434
      %v1565 = vadd.f32 %v1064, %v1439
      %v1566 = vadd.f32 %v1069, %v1444
      %v1567 = vadd.f32 %v1074, %v1449
      %v1568 = vadd.f32 %v1079, %v1454
      %v1569 = vadd.f32 %v1084, %v1459
      %v1570 = vadd.f32 %v1089, %v1464
      %v1571 = vadd.f32 %v1094, %v1469
      %v1572 = vadd.f32 %v1099, %v1474
      %v1573 = vadd.f32 %v1104, %v1479
      %v1574 = vadd.f32 %v1109, %v1484
      %v1575 = vadd.f32 %v1114, %v1489
      %v1576 = vadd.f32 %v1119, %v1494
      %v1577 = vadd.f32 %v1124, %v1499
      %v1578 = vadd.f32 %v1129, %v1504
      %v1579 = vadd.f32 %v1134, %v1509
      %v1580 = vadd.f32 %v1139, %v1514
      %v1581 = vadd.f32 %v1144, %v1519
      %v1582 = vadd.f32 %v1149, %v1524
      %v1583 = vadd.f32 %v1154, %v1529
      %v1584 = vadd.f32 %v1159, %v1534
      %v1585 = vadd.f32 %v1164, %v1539
      %v1586 = vadd.f32 %v1169, %v1544
      %v1587 = vadd.f32 %v1174, %v1549
      %v1588 = vadd.f32 %v1179, %v1554
      %s1589 = scalar_lea.vmem %s3, 12
      %v1590 = vld [vmem:[%s1589] sm:$0xf]
      %v1592 = vsel %vm596, %v458, 0
      %v1595 = vsel %vm596, %v459, 0
      %v1598 = vsel %vm661, %v1590, 0
      %1600 = vmatprep.subr.mxu0 0.0
      %1601 = vmatpush1.msra.mxu0 0.0
      %1602 = vmatprep.subr.mxu0 0.0
      %1603 = vmatpush1.msra.mxu0 0.0
      %1604 = vmatprep.subr.mxu0 0.0
      %1605 = vmatpush1.msra.mxu0 0.0
      %1606 = vmatprep.subr.mxu0 0.0
      %1607 = vmatpush1.msra.mxu0 0.0
      %1608 = vmatprep.subr.mxu0 0.0
      %1609 = vmatpush1.msra.mxu0 0.0
      %1610 = vmatprep.subr.mxu0 0.0
      %1611 = vmatpush1.msra.mxu0 0.0
      %1612 = vmatprep.subr.mxu0 0.0
      %1613 = vmatpush1.msra.mxu0 0.0
      %1614 = vmatprep.subr.mxu0 0.0
      %1615 = vmatpush1.msra.mxu0 0.0
      %1616 = vmatprep.subr.mxu0 0.0
      %1617 = vmatpush1.msra.mxu0 0.0
      %1618 = vmatprep.subr.mxu0 0.0
      %1619 = vmatpush1.msra.mxu0 0.0
      %1620 = vmatprep.subr.mxu0 0.0
      %1621 = vmatpush1.msra.mxu0 0.0
      %1622 = vmatprep.subr.mxu0 0.0
      %1623 = vmatpush1.msra.mxu0 0.0
      %1624 = vmatprep.subr.mxu0 0.0
      %1625 = vmatpush1.msra.mxu0 0.0
      %1626 = vmatprep.subr.mxu0 0.0
      %1627 = vmatpush1.msra.mxu0 0.0
      %1628 = vmatprep.subr.mxu0 0.0
      %1629 = vmatpush1.msra.mxu0 0.0
      %1630 = vmatprep.subr.mxu0 0.0
      %1631 = vmatpush1.msra.mxu0 %v1598
      %1632 = vmatprep.subr.mxu0 0.0
      %1633 = vmatpush2.msra.mxu0 0.0
      %1634 = vmatprep.subr.mxu0 0.0
      %1635 = vmatpush2.msra.mxu0 0.0
      %1636 = vmatprep.subr.mxu0 0.0
      %1637 = vmatpush2.msra.mxu0 0.0
      %1638 = vmatprep.subr.mxu0 0.0
      %1639 = vmatpush2.msra.mxu0 0.0
      %1640 = vmatprep.subr.mxu0 0.0
      %1641 = vmatpush2.msra.mxu0 0.0
      %1642 = vmatprep.subr.mxu0 0.0
      %1643 = vmatpush2.msra.mxu0 0.0
      %1644 = vmatprep.subr.mxu0 0.0
      %1645 = vmatpush2.msra.mxu0 0.0
      %1646 = vmatprep.subr.mxu0 0.0
      %1647 = vmatpush2.msra.mxu0 0.0
      %1648 = vmatprep.subr.mxu0 0.0
      %1649 = vmatpush2.msra.mxu0 0.0
      %1650 = vmatprep.subr.mxu0 0.0
      %1651 = vmatpush2.msra.mxu0 0.0
      %1652 = vmatprep.subr.mxu0 0.0
      %1653 = vmatpush2.msra.mxu0 0.0
      %1654 = vmatprep.subr.mxu0 0.0
      %1655 = vmatpush2.msra.mxu0 0.0
      %1656 = vmatprep.subr.mxu0 0.0
      %1657 = vmatpush2.msra.mxu0 0.0
      %1658 = vmatprep.subr.mxu0 0.0
      %1659 = vmatpush2.msra.mxu0 0.0
      %1660 = vmatprep.subr.mxu0 0.0
      %1661 = vmatpush2.msra.mxu0 0.0
      %1662 = vmatprep.subr.mxu0 0.0
      %1663 = vmatpush2.msra.mxu0 0.0
      %1664 = vmatprep.mubr.f32.mxu0 0.0
      %1665 = vmatmul.mubr.f32.gmra.mxu0 %v894
      %v1666 = vpop.f32.mrf.mxu0
      %v1667 = vadd.f32 0.0, %v1666
      %v1668 = vpop.f32.mrf.mxu0
      %1669 = vmatprep.mubr.f32.mxu0 0.0
      %1670 = vmatmul.mubr.f32.gmra.mxu0 %v896
      %v1671 = vpop.f32.mrf.mxu0
      %v1672 = vadd.f32 0.0, %v1671
      %v1673 = vpop.f32.mrf.mxu0
      %1674 = vmatprep.mubr.f32.mxu0 0.0
      %1675 = vmatmul.mubr.f32.gmra.mxu0 %v898
      %v1676 = vpop.f32.mrf.mxu0
      %v1677 = vadd.f32 0.0, %v1676
      %v1678 = vpop.f32.mrf.mxu0
      %1679 = vmatprep.mubr.f32.mxu0 0.0
      %1680 = vmatmul.mubr.f32.gmra.mxu0 %v900
      %v1681 = vpop.f32.mrf.mxu0
      %v1682 = vadd.f32 0.0, %v1681
      %v1683 = vpop.f32.mrf.mxu0
      %1684 = vmatprep.mubr.f32.mxu0 0.0
      %1685 = vmatmul.mubr.f32.gmra.mxu0 %v902
      %v1686 = vpop.f32.mrf.mxu0
      %v1687 = vadd.f32 0.0, %v1686
      %v1688 = vpop.f32.mrf.mxu0
      %1689 = vmatprep.mubr.f32.mxu0 0.0
      %1690 = vmatmul.mubr.f32.gmra.mxu0 %v904
      %v1691 = vpop.f32.mrf.mxu0
      %v1692 = vadd.f32 0.0, %v1691
      %v1693 = vpop.f32.mrf.mxu0
      %1694 = vmatprep.mubr.f32.mxu0 0.0
      %1695 = vmatmul.mubr.f32.gmra.mxu0 %v906
      %v1696 = vpop.f32.mrf.mxu0
      %v1697 = vadd.f32 0.0, %v1696
      %v1698 = vpop.f32.mrf.mxu0
      %1699 = vmatprep.mubr.f32.mxu0 0.0
      %1700 = vmatmul.mubr.f32.gmra.mxu0 %v908
      %v1701 = vpop.f32.mrf.mxu0
      %v1702 = vadd.f32 0.0, %v1701
      %v1703 = vpop.f32.mrf.mxu0
      %1704 = vmatprep.mubr.f32.mxu0 0.0
      %1705 = vmatmul.mubr.f32.gmra.mxu0 %v910
      %v1706 = vpop.f32.mrf.mxu0
      %v1707 = vadd.f32 0.0, %v1706
      %v1708 = vpop.f32.mrf.mxu0
      %1709 = vmatprep.mubr.f32.mxu0 0.0
      %1710 = vmatmul.mubr.f32.gmra.mxu0 %v912
      %v1711 = vpop.f32.mrf.mxu0
      %v1712 = vadd.f32 0.0, %v1711
      %v1713 = vpop.f32.mrf.mxu0
      %1714 = vmatprep.mubr.f32.mxu0 0.0
      %1715 = vmatmul.mubr.f32.gmra.mxu0 %v914
      %v1716 = vpop.f32.mrf.mxu0
      %v1717 = vadd.f32 0.0, %v1716
      %v1718 = vpop.f32.mrf.mxu0
      %1719 = vmatprep.mubr.f32.mxu0 0.0
      %1720 = vmatmul.mubr.f32.gmra.mxu0 %v916
      %v1721 = vpop.f32.mrf.mxu0
      %v1722 = vadd.f32 0.0, %v1721
      %v1723 = vpop.f32.mrf.mxu0
      %1724 = vmatprep.mubr.f32.mxu0 0.0
      %1725 = vmatmul.mubr.f32.gmra.mxu0 %v918
      %v1726 = vpop.f32.mrf.mxu0
      %v1727 = vadd.f32 0.0, %v1726
      %v1728 = vpop.f32.mrf.mxu0
      %1729 = vmatprep.mubr.f32.mxu0 0.0
      %1730 = vmatmul.mubr.f32.gmra.mxu0 %v920
      %v1731 = vpop.f32.mrf.mxu0
      %v1732 = vadd.f32 0.0, %v1731
      %v1733 = vpop.f32.mrf.mxu0
      %1734 = vmatprep.mubr.f32.mxu0 0.0
      %1735 = vmatmul.mubr.f32.gmra.mxu0 %v922
      %v1736 = vpop.f32.mrf.mxu0
      %v1737 = vadd.f32 0.0, %v1736
      %v1738 = vpop.f32.mrf.mxu0
      %1739 = vmatprep.mubr.f32.mxu0 0.0
      %1740 = vmatmul.mubr.f32.gmra.mxu0 %v924
      %v1741 = vpop.f32.mrf.mxu0
      %v1742 = vadd.f32 0.0, %v1741
      %v1743 = vpop.f32.mrf.mxu0
      %1744 = vmatprep.mubr.f32.mxu0 0.0
      %1745 = vmatmul.mubr.f32.gmra.mxu0 %v926
      %v1746 = vpop.f32.mrf.mxu0
      %v1747 = vadd.f32 0.0, %v1746
      %v1748 = vpop.f32.mrf.mxu0
      %1749 = vmatprep.mubr.f32.mxu0 0.0
      %1750 = vmatmul.mubr.f32.gmra.mxu0 %v928
      %v1751 = vpop.f32.mrf.mxu0
      %v1752 = vadd.f32 0.0, %v1751
      %v1753 = vpop.f32.mrf.mxu0
      %1754 = vmatprep.mubr.f32.mxu0 0.0
      %1755 = vmatmul.mubr.f32.gmra.mxu0 %v930
      %v1756 = vpop.f32.mrf.mxu0
      %v1757 = vadd.f32 0.0, %v1756
      %v1758 = vpop.f32.mrf.mxu0
      %1759 = vmatprep.mubr.f32.mxu0 0.0
      %1760 = vmatmul.mubr.f32.gmra.mxu0 %v932
      %v1761 = vpop.f32.mrf.mxu0
      %v1762 = vadd.f32 0.0, %v1761
      %v1763 = vpop.f32.mrf.mxu0
      %1764 = vmatprep.mubr.f32.mxu0 0.0
      %1765 = vmatmul.mubr.f32.gmra.mxu0 %v934
      %v1766 = vpop.f32.mrf.mxu0
      %v1767 = vadd.f32 0.0, %v1766
      %v1768 = vpop.f32.mrf.mxu0
      %1769 = vmatprep.mubr.f32.mxu0 0.0
      %1770 = vmatmul.mubr.f32.gmra.mxu0 %v936
      %v1771 = vpop.f32.mrf.mxu0
      %v1772 = vadd.f32 0.0, %v1771
      %v1773 = vpop.f32.mrf.mxu0
      %1774 = vmatprep.mubr.f32.mxu0 0.0
      %1775 = vmatmul.mubr.f32.gmra.mxu0 %v938
      %v1776 = vpop.f32.mrf.mxu0
      %v1777 = vadd.f32 0.0, %v1776
      %v1778 = vpop.f32.mrf.mxu0
      %1779 = vmatprep.mubr.f32.mxu0 0.0
      %1780 = vmatmul.mubr.f32.gmra.mxu0 %v940
      %v1781 = vpop.f32.mrf.mxu0
      %v1782 = vadd.f32 0.0, %v1781
      %v1783 = vpop.f32.mrf.mxu0
      %1784 = vmatprep.mubr.f32.mxu0 0.0
      %1785 = vmatmul.mubr.f32.gmra.mxu0 %v942
      %v1786 = vpop.f32.mrf.mxu0
      %v1787 = vadd.f32 0.0, %v1786
      %v1788 = vpop.f32.mrf.mxu0
      %1789 = vmatprep.mubr.f32.mxu0 0.0
      %1790 = vmatmul.mubr.f32.gmra.mxu0 %v944
      %v1791 = vpop.f32.mrf.mxu0
      %v1792 = vadd.f32 0.0, %v1791
      %v1793 = vpop.f32.mrf.mxu0
      %1794 = vmatprep.mubr.f32.mxu0 0.0
      %1795 = vmatmul.mubr.f32.gmra.mxu0 %v946
      %v1796 = vpop.f32.mrf.mxu0
      %v1797 = vadd.f32 0.0, %v1796
      %v1798 = vpop.f32.mrf.mxu0
      %1799 = vmatprep.mubr.f32.mxu0 0.0
      %1800 = vmatmul.mubr.f32.gmra.mxu0 %v948
      %v1801 = vpop.f32.mrf.mxu0
      %v1802 = vadd.f32 0.0, %v1801
      %v1803 = vpop.f32.mrf.mxu0
      %1804 = vmatprep.mubr.f32.mxu0 0.0
      %1805 = vmatmul.mubr.f32.gmra.mxu0 %v950
      %v1806 = vpop.f32.mrf.mxu0
      %v1807 = vadd.f32 0.0, %v1806
      %v1808 = vpop.f32.mrf.mxu0
      %1809 = vmatprep.mubr.f32.mxu0 0.0
      %1810 = vmatmul.mubr.f32.gmra.mxu0 %v952
      %v1811 = vpop.f32.mrf.mxu0
      %v1812 = vadd.f32 0.0, %v1811
      %v1813 = vpop.f32.mrf.mxu0
      %1814 = vmatprep.mubr.f32.mxu0 0.0
      %1815 = vmatmul.mubr.f32.gmra.mxu0 %v1592
      %v1816 = vpop.f32.mrf.mxu0
      %v1817 = vadd.f32 0.0, %v1816
      %v1818 = vpop.f32.mrf.mxu0
      %1819 = vmatprep.mubr.f32.mxu0 0.0
      %1820 = vmatmul.mubr.f32.gmra.mxu0 %v1595
      %v1821 = vpop.f32.mrf.mxu0
      %v1822 = vadd.f32 0.0, %v1821
      %v1823 = vpop.f32.mrf.mxu0
      %1824 = vdwg.mxu0
      %v1825 = vadd.f32 %v1557, %v1667
      %v1826 = vadd.f32 %v1558, %v1672
      %v1827 = vadd.f32 %v1559, %v1677
      %v1828 = vadd.f32 %v1560, %v1682
      %v1829 = vadd.f32 %v1561, %v1687
      %v1830 = vadd.f32 %v1562, %v1692
      %v1831 = vadd.f32 %v1563, %v1697
      %v1832 = vadd.f32 %v1564, %v1702
      %v1833 = vadd.f32 %v1565, %v1707
      %v1834 = vadd.f32 %v1566, %v1712
      %v1835 = vadd.f32 %v1567, %v1717
      %v1836 = vadd.f32 %v1568, %v1722
      %v1837 = vadd.f32 %v1569, %v1727
      %v1838 = vadd.f32 %v1570, %v1732
      %v1839 = vadd.f32 %v1571, %v1737
      %v1840 = vadd.f32 %v1572, %v1742
      %v1841 = vadd.f32 %v1573, %v1747
      %v1842 = vadd.f32 %v1574, %v1752
      %v1843 = vadd.f32 %v1575, %v1757
      %v1844 = vadd.f32 %v1576, %v1762
      %v1845 = vadd.f32 %v1577, %v1767
      %v1846 = vadd.f32 %v1578, %v1772
      %v1847 = vadd.f32 %v1579, %v1777
      %v1848 = vadd.f32 %v1580, %v1782
      %v1849 = vadd.f32 %v1581, %v1787
      %v1850 = vadd.f32 %v1582, %v1792
      %v1851 = vadd.f32 %v1583, %v1797
      %v1852 = vadd.f32 %v1584, %v1802
      %v1853 = vadd.f32 %v1585, %v1807
      %v1854 = vadd.f32 %v1586, %v1812
      %v1855 = vadd.f32 %v1587, %v1817
      %v1856 = vadd.f32 %v1588, %v1822
      %v1858 = vrot.slane %v458, 1
      %v1859 = vrot.slane %v459, 1
      %v1860 = vsel %vm513, %v1858, %v1859
      %v1861 = vrot.slane %v460, 1
      %v1862 = vsel %vm513, %v1859, %v1861
      %s1863 = scalar_lea.vmem %s3, 16
      %v1864 = vld [vmem:[%s1863] sm:$0xf]
      %v1865 = vsel %vm596, %v1860, 0
      %v1867 = vsel %vm596, %v1862, 0
      %v1870 = vsel %vm661, %v1864, 0
      %1872 = vmatprep.subr.mxu0 0.0
      %1873 = vmatpush1.msra.mxu0 0.0
      %1874 = vmatprep.subr.mxu0 0.0
      %1875 = vmatpush1.msra.mxu0 0.0
      %1876 = vmatprep.subr.mxu0 0.0
      %1877 = vmatpush1.msra.mxu0 0.0
      %1878 = vmatprep.subr.mxu0 0.0
      %1879 = vmatpush1.msra.mxu0 0.0
      %1880 = vmatprep.subr.mxu0 0.0
      %1881 = vmatpush1.msra.mxu0 0.0
      %1882 = vmatprep.subr.mxu0 0.0
      %1883 = vmatpush1.msra.mxu0 0.0
      %1884 = vmatprep.subr.mxu0 0.0
      %1885 = vmatpush1.msra.mxu0 0.0
      %1886 = vmatprep.subr.mxu0 0.0
      %1887 = vmatpush1.msra.mxu0 0.0
      %1888 = vmatprep.subr.mxu0 0.0
      %1889 = vmatpush1.msra.mxu0 0.0
      %1890 = vmatprep.subr.mxu0 0.0
      %1891 = vmatpush1.msra.mxu0 0.0
      %1892 = vmatprep.subr.mxu0 0.0
      %1893 = vmatpush1.msra.mxu0 0.0
      %1894 = vmatprep.subr.mxu0 0.0
      %1895 = vmatpush1.msra.mxu0 0.0
      %1896 = vmatprep.subr.mxu0 0.0
      %1897 = vmatpush1.msra.mxu0 0.0
      %1898 = vmatprep.subr.mxu0 0.0
      %1899 = vmatpush1.msra.mxu0 0.0
      %1900 = vmatprep.subr.mxu0 0.0
      %1901 = vmatpush1.msra.mxu0 0.0
      %1902 = vmatprep.subr.mxu0 0.0
      %1903 = vmatpush1.msra.mxu0 %v1870
      %1904 = vmatprep.subr.mxu0 0.0
      %1905 = vmatpush2.msra.mxu0 0.0
      %1906 = vmatprep.subr.mxu0 0.0
      %1907 = vmatpush2.msra.mxu0 0.0
      %1908 = vmatprep.subr.mxu0 0.0
      %1909 = vmatpush2.msra.mxu0 0.0
      %1910 = vmatprep.subr.mxu0 0.0
      %1911 = vmatpush2.msra.mxu0 0.0
      %1912 = vmatprep.subr.mxu0 0.0
      %1913 = vmatpush2.msra.mxu0 0.0
      %1914 = vmatprep.subr.mxu0 0.0
      %1915 = vmatpush2.msra.mxu0 0.0
      %1916 = vmatprep.subr.mxu0 0.0
      %1917 = vmatpush2.msra.mxu0 0.0
      %1918 = vmatprep.subr.mxu0 0.0
      %1919 = vmatpush2.msra.mxu0 0.0
      %1920 = vmatprep.subr.mxu0 0.0
      %1921 = vmatpush2.msra.mxu0 0.0
      %1922 = vmatprep.subr.mxu0 0.0
      %1923 = vmatpush2.msra.mxu0 0.0
      %1924 = vmatprep.subr.mxu0 0.0
      %1925 = vmatpush2.msra.mxu0 0.0
      %1926 = vmatprep.subr.mxu0 0.0
      %1927 = vmatpush2.msra.mxu0 0.0
      %1928 = vmatprep.subr.mxu0 0.0
      %1929 = vmatpush2.msra.mxu0 0.0
      %1930 = vmatprep.subr.mxu0 0.0
      %1931 = vmatpush2.msra.mxu0 0.0
      %1932 = vmatprep.subr.mxu0 0.0
      %1933 = vmatpush2.msra.mxu0 0.0
      %1934 = vmatprep.subr.mxu0 0.0
      %1935 = vmatpush2.msra.mxu0 0.0
      %1936 = vmatprep.mubr.f32.mxu0 0.0
      %1937 = vmatmul.mubr.f32.gmra.mxu0 %v601
      %v1938 = vpop.f32.mrf.mxu0
      %v1939 = vadd.f32 0.0, %v1938
      %v1940 = vpop.f32.mrf.mxu0
      %1941 = vmatprep.mubr.f32.mxu0 0.0
      %1942 = vmatmul.mubr.f32.gmra.mxu0 %v603
      %v1943 = vpop.f32.mrf.mxu0
      %v1944 = vadd.f32 0.0, %v1943
      %v1945 = vpop.f32.mrf.mxu0
      %1946 = vmatprep.mubr.f32.mxu0 0.0
      %1947 = vmatmul.mubr.f32.gmra.mxu0 %v605
      %v1948 = vpop.f32.mrf.mxu0
      %v1949 = vadd.f32 0.0, %v1948
      %v1950 = vpop.f32.mrf.mxu0
      %1951 = vmatprep.mubr.f32.mxu0 0.0
      %1952 = vmatmul.mubr.f32.gmra.mxu0 %v607
      %v1953 = vpop.f32.mrf.mxu0
      %v1954 = vadd.f32 0.0, %v1953
      %v1955 = vpop.f32.mrf.mxu0
      %1956 = vmatprep.mubr.f32.mxu0 0.0
      %1957 = vmatmul.mubr.f32.gmra.mxu0 %v609
      %v1958 = vpop.f32.mrf.mxu0
      %v1959 = vadd.f32 0.0, %v1958
      %v1960 = vpop.f32.mrf.mxu0
      %1961 = vmatprep.mubr.f32.mxu0 0.0
      %1962 = vmatmul.mubr.f32.gmra.mxu0 %v611
      %v1963 = vpop.f32.mrf.mxu0
      %v1964 = vadd.f32 0.0, %v1963
      %v1965 = vpop.f32.mrf.mxu0
      %1966 = vmatprep.mubr.f32.mxu0 0.0
      %1967 = vmatmul.mubr.f32.gmra.mxu0 %v613
      %v1968 = vpop.f32.mrf.mxu0
      %v1969 = vadd.f32 0.0, %v1968
      %v1970 = vpop.f32.mrf.mxu0
      %1971 = vmatprep.mubr.f32.mxu0 0.0
      %1972 = vmatmul.mubr.f32.gmra.mxu0 %v615
      %v1973 = vpop.f32.mrf.mxu0
      %v1974 = vadd.f32 0.0, %v1973
      %v1975 = vpop.f32.mrf.mxu0
      %1976 = vmatprep.mubr.f32.mxu0 0.0
      %1977 = vmatmul.mubr.f32.gmra.mxu0 %v617
      %v1978 = vpop.f32.mrf.mxu0
      %v1979 = vadd.f32 0.0, %v1978
      %v1980 = vpop.f32.mrf.mxu0
      %1981 = vmatprep.mubr.f32.mxu0 0.0
      %1982 = vmatmul.mubr.f32.gmra.mxu0 %v619
      %v1983 = vpop.f32.mrf.mxu0
      %v1984 = vadd.f32 0.0, %v1983
      %v1985 = vpop.f32.mrf.mxu0
      %1986 = vmatprep.mubr.f32.mxu0 0.0
      %1987 = vmatmul.mubr.f32.gmra.mxu0 %v621
      %v1988 = vpop.f32.mrf.mxu0
      %v1989 = vadd.f32 0.0, %v1988
      %v1990 = vpop.f32.mrf.mxu0
      %1991 = vmatprep.mubr.f32.mxu0 0.0
      %1992 = vmatmul.mubr.f32.gmra.mxu0 %v623
      %v1993 = vpop.f32.mrf.mxu0
      %v1994 = vadd.f32 0.0, %v1993
      %v1995 = vpop.f32.mrf.mxu0
      %1996 = vmatprep.mubr.f32.mxu0 0.0
      %1997 = vmatmul.mubr.f32.gmra.mxu0 %v625
      %v1998 = vpop.f32.mrf.mxu0
      %v1999 = vadd.f32 0.0, %v1998
      %v2000 = vpop.f32.mrf.mxu0
      %2001 = vmatprep.mubr.f32.mxu0 0.0
      %2002 = vmatmul.mubr.f32.gmra.mxu0 %v627
      %v2003 = vpop.f32.mrf.mxu0
      %v2004 = vadd.f32 0.0, %v2003
      %v2005 = vpop.f32.mrf.mxu0
      %2006 = vmatprep.mubr.f32.mxu0 0.0
      %2007 = vmatmul.mubr.f32.gmra.mxu0 %v629
      %v2008 = vpop.f32.mrf.mxu0
      %v2009 = vadd.f32 0.0, %v2008
      %v2010 = vpop.f32.mrf.mxu0
      %2011 = vmatprep.mubr.f32.mxu0 0.0
      %2012 = vmatmul.mubr.f32.gmra.mxu0 %v631
      %v2013 = vpop.f32.mrf.mxu0
      %v2014 = vadd.f32 0.0, %v2013
      %v2015 = vpop.f32.mrf.mxu0
      %2016 = vmatprep.mubr.f32.mxu0 0.0
      %2017 = vmatmul.mubr.f32.gmra.mxu0 %v633
      %v2018 = vpop.f32.mrf.mxu0
      %v2019 = vadd.f32 0.0, %v2018
      %v2020 = vpop.f32.mrf.mxu0
      %2021 = vmatprep.mubr.f32.mxu0 0.0
      %2022 = vmatmul.mubr.f32.gmra.mxu0 %v635
      %v2023 = vpop.f32.mrf.mxu0
      %v2024 = vadd.f32 0.0, %v2023
      %v2025 = vpop.f32.mrf.mxu0
      %2026 = vmatprep.mubr.f32.mxu0 0.0
      %2027 = vmatmul.mubr.f32.gmra.mxu0 %v637
      %v2028 = vpop.f32.mrf.mxu0
      %v2029 = vadd.f32 0.0, %v2028
      %v2030 = vpop.f32.mrf.mxu0
      %2031 = vmatprep.mubr.f32.mxu0 0.0
      %2032 = vmatmul.mubr.f32.gmra.mxu0 %v639
      %v2033 = vpop.f32.mrf.mxu0
      %v2034 = vadd.f32 0.0, %v2033
      %v2035 = vpop.f32.mrf.mxu0
      %2036 = vmatprep.mubr.f32.mxu0 0.0
      %2037 = vmatmul.mubr.f32.gmra.mxu0 %v641
      %v2038 = vpop.f32.mrf.mxu0
      %v2039 = vadd.f32 0.0, %v2038
      %v2040 = vpop.f32.mrf.mxu0
      %2041 = vmatprep.mubr.f32.mxu0 0.0
      %2042 = vmatmul.mubr.f32.gmra.mxu0 %v643
      %v2043 = vpop.f32.mrf.mxu0
      %v2044 = vadd.f32 0.0, %v2043
      %v2045 = vpop.f32.mrf.mxu0
      %2046 = vmatprep.mubr.f32.mxu0 0.0
      %2047 = vmatmul.mubr.f32.gmra.mxu0 %v645
      %v2048 = vpop.f32.mrf.mxu0
      %v2049 = vadd.f32 0.0, %v2048
      %v2050 = vpop.f32.mrf.mxu0
      %2051 = vmatprep.mubr.f32.mxu0 0.0
      %2052 = vmatmul.mubr.f32.gmra.mxu0 %v647
      %v2053 = vpop.f32.mrf.mxu0
      %v2054 = vadd.f32 0.0, %v2053
      %v2055 = vpop.f32.mrf.mxu0
      %2056 = vmatprep.mubr.f32.mxu0 0.0
      %2057 = vmatmul.mubr.f32.gmra.mxu0 %v649
      %v2058 = vpop.f32.mrf.mxu0
      %v2059 = vadd.f32 0.0, %v2058
      %v2060 = vpop.f32.mrf.mxu0
      %2061 = vmatprep.mubr.f32.mxu0 0.0
      %2062 = vmatmul.mubr.f32.gmra.mxu0 %v651
      %v2063 = vpop.f32.mrf.mxu0
      %v2064 = vadd.f32 0.0, %v2063
      %v2065 = vpop.f32.mrf.mxu0
      %2066 = vmatprep.mubr.f32.mxu0 0.0
      %2067 = vmatmul.mubr.f32.gmra.mxu0 %v653
      %v2068 = vpop.f32.mrf.mxu0
      %v2069 = vadd.f32 0.0, %v2068
      %v2070 = vpop.f32.mrf.mxu0
      %2071 = vmatprep.mubr.f32.mxu0 0.0
      %2072 = vmatmul.mubr.f32.gmra.mxu0 %v655
      %v2073 = vpop.f32.mrf.mxu0
      %v2074 = vadd.f32 0.0, %v2073
      %v2075 = vpop.f32.mrf.mxu0
      %2076 = vmatprep.mubr.f32.mxu0 0.0
      %2077 = vmatmul.mubr.f32.gmra.mxu0 %v657
      %v2078 = vpop.f32.mrf.mxu0
      %v2079 = vadd.f32 0.0, %v2078
      %v2080 = vpop.f32.mrf.mxu0
      %2081 = vmatprep.mubr.f32.mxu0 0.0
      %2082 = vmatmul.mubr.f32.gmra.mxu0 %v659
      %v2083 = vpop.f32.mrf.mxu0
      %v2084 = vadd.f32 0.0, %v2083
      %v2085 = vpop.f32.mrf.mxu0
      %2086 = vmatprep.mubr.f32.mxu0 0.0
      %2087 = vmatmul.mubr.f32.gmra.mxu0 %v1865
      %v2088 = vpop.f32.mrf.mxu0
      %v2089 = vadd.f32 0.0, %v2088
      %v2090 = vpop.f32.mrf.mxu0
      %2091 = vmatprep.mubr.f32.mxu0 0.0
      %2092 = vmatmul.mubr.f32.gmra.mxu0 %v1867
      %v2093 = vpop.f32.mrf.mxu0
      %v2094 = vadd.f32 0.0, %v2093
      %v2095 = vpop.f32.mrf.mxu0
      %2096 = vdwg.mxu0
      %v2097 = vadd.f32 %v1825, %v1939
      %v2098 = vadd.f32 %v1826, %v1944
      %v2099 = vadd.f32 %v1827, %v1949
      %v2100 = vadd.f32 %v1828, %v1954
      %v2101 = vadd.f32 %v1829, %v1959
      %v2102 = vadd.f32 %v1830, %v1964
      %v2103 = vadd.f32 %v1831, %v1969
      %v2104 = vadd.f32 %v1832, %v1974
      %v2105 = vadd.f32 %v1833, %v1979
      %v2106 = vadd.f32 %v1834, %v1984
      %v2107 = vadd.f32 %v1835, %v1989
      %v2108 = vadd.f32 %v1836, %v1994
      %v2109 = vadd.f32 %v1837, %v1999
      %v2110 = vadd.f32 %v1838, %v2004
      %v2111 = vadd.f32 %v1839, %v2009
      %v2112 = vadd.f32 %v1840, %v2014
      %v2113 = vadd.f32 %v1841, %v2019
      %v2114 = vadd.f32 %v1842, %v2024
      %v2115 = vadd.f32 %v1843, %v2029
      %v2116 = vadd.f32 %v1844, %v2034
      %v2117 = vadd.f32 %v1845, %v2039
      %v2118 = vadd.f32 %v1846, %v2044
      %v2119 = vadd.f32 %v1847, %v2049
      %v2120 = vadd.f32 %v1848, %v2054
      %v2121 = vadd.f32 %v1849, %v2059
      %v2122 = vadd.f32 %v1850, %v2064
      %v2123 = vadd.f32 %v1851, %v2069
      %v2124 = vadd.f32 %v1852, %v2074
      %v2125 = vadd.f32 %v1853, %v2079
      %v2126 = vadd.f32 %v1854, %v2084
      %v2127 = vadd.f32 %v1855, %v2089
      %v2128 = vadd.f32 %v1856, %v2094
      %v2129 = vrot.slane %v458, 2
      %v2130 = vrot.slane %v459, 2
      %v2131 = vsel %vm1182, %v2129, %v2130
      %v2132 = vrot.slane %v460, 2
      %v2133 = vsel %vm1182, %v2130, %v2132
      %s2134 = scalar_lea.vmem %s3, 20
      %v2135 = vld [vmem:[%s2134] sm:$0xf]
      %v2136 = vsel %vm596, %v2131, 0
      %v2138 = vsel %vm596, %v2133, 0
      %v2141 = vsel %vm661, %v2135, 0
      %2143 = vmatprep.subr.mxu0 0.0
      %2144 = vmatpush1.msra.mxu0 0.0
      %2145 = vmatprep.subr.mxu0 0.0
      %2146 = vmatpush1.msra.mxu0 0.0
      %2147 = vmatprep.subr.mxu0 0.0
      %2148 = vmatpush1.msra.mxu0 0.0
      %2149 = vmatprep.subr.mxu0 0.0
      %2150 = vmatpush1.msra.mxu0 0.0
      %2151 = vmatprep.subr.mxu0 0.0
      %2152 = vmatpush1.msra.mxu0 0.0
      %2153 = vmatprep.subr.mxu0 0.0
      %2154 = vmatpush1.msra.mxu0 0.0
      %2155 = vmatprep.subr.mxu0 0.0
      %2156 = vmatpush1.msra.mxu0 0.0
      %2157 = vmatprep.subr.mxu0 0.0
      %2158 = vmatpush1.msra.mxu0 0.0
      %2159 = vmatprep.subr.mxu0 0.0
      %2160 = vmatpush1.msra.mxu0 0.0
      %2161 = vmatprep.subr.mxu0 0.0
      %2162 = vmatpush1.msra.mxu0 0.0
      %2163 = vmatprep.subr.mxu0 0.0
      %2164 = vmatpush1.msra.mxu0 0.0
      %2165 = vmatprep.subr.mxu0 0.0
      %2166 = vmatpush1.msra.mxu0 0.0
      %2167 = vmatprep.subr.mxu0 0.0
      %2168 = vmatpush1.msra.mxu0 0.0
      %2169 = vmatprep.subr.mxu0 0.0
      %2170 = vmatpush1.msra.mxu0 0.0
      %2171 = vmatprep.subr.mxu0 0.0
      %2172 = vmatpush1.msra.mxu0 0.0
      %2173 = vmatprep.subr.mxu0 0.0
      %2174 = vmatpush1.msra.mxu0 %v2141
      %2175 = vmatprep.subr.mxu0 0.0
      %2176 = vmatpush2.msra.mxu0 0.0
      %2177 = vmatprep.subr.mxu0 0.0
      %2178 = vmatpush2.msra.mxu0 0.0
      %2179 = vmatprep.subr.mxu0 0.0
      %2180 = vmatpush2.msra.mxu0 0.0
      %2181 = vmatprep.subr.mxu0 0.0
      %2182 = vmatpush2.msra.mxu0 0.0
      %2183 = vmatprep.subr.mxu0 0.0
      %2184 = vmatpush2.msra.mxu0 0.0
      %2185 = vmatprep.subr.mxu0 0.0
      %2186 = vmatpush2.msra.mxu0 0.0
      %2187 = vmatprep.subr.mxu0 0.0
      %2188 = vmatpush2.msra.mxu0 0.0
      %2189 = vmatprep.subr.mxu0 0.0
      %2190 = vmatpush2.msra.mxu0 0.0
      %2191 = vmatprep.subr.mxu0 0.0
      %2192 = vmatpush2.msra.mxu0 0.0
      %2193 = vmatprep.subr.mxu0 0.0
      %2194 = vmatpush2.msra.mxu0 0.0
      %2195 = vmatprep.subr.mxu0 0.0
      %2196 = vmatpush2.msra.mxu0 0.0
      %2197 = vmatprep.subr.mxu0 0.0
      %2198 = vmatpush2.msra.mxu0 0.0
      %2199 = vmatprep.subr.mxu0 0.0
      %2200 = vmatpush2.msra.mxu0 0.0
      %2201 = vmatprep.subr.mxu0 0.0
      %2202 = vmatpush2.msra.mxu0 0.0
      %2203 = vmatprep.subr.mxu0 0.0
      %2204 = vmatpush2.msra.mxu0 0.0
      %2205 = vmatprep.subr.mxu0 0.0
      %2206 = vmatpush2.msra.mxu0 0.0
      %2207 = vmatprep.mubr.f32.mxu0 0.0
      %2208 = vmatmul.mubr.f32.gmra.mxu0 %v1269
      %v2209 = vpop.f32.mrf.mxu0
      %v2210 = vadd.f32 0.0, %v2209
      %v2211 = vpop.f32.mrf.mxu0
      %2212 = vmatprep.mubr.f32.mxu0 0.0
      %2213 = vmatmul.mubr.f32.gmra.mxu0 %v1271
      %v2214 = vpop.f32.mrf.mxu0
      %v2215 = vadd.f32 0.0, %v2214
      %v2216 = vpop.f32.mrf.mxu0
      %2217 = vmatprep.mubr.f32.mxu0 0.0
      %2218 = vmatmul.mubr.f32.gmra.mxu0 %v1273
      %v2219 = vpop.f32.mrf.mxu0
      %v2220 = vadd.f32 0.0, %v2219
      %v2221 = vpop.f32.mrf.mxu0
      %2222 = vmatprep.mubr.f32.mxu0 0.0
      %2223 = vmatmul.mubr.f32.gmra.mxu0 %v1275
      %v2224 = vpop.f32.mrf.mxu0
      %v2225 = vadd.f32 0.0, %v2224
      %v2226 = vpop.f32.mrf.mxu0
      %2227 = vmatprep.mubr.f32.mxu0 0.0
      %2228 = vmatmul.mubr.f32.gmra.mxu0 %v1277
      %v2229 = vpop.f32.mrf.mxu0
      %v2230 = vadd.f32 0.0, %v2229
      %v2231 = vpop.f32.mrf.mxu0
      %2232 = vmatprep.mubr.f32.mxu0 0.0
      %2233 = vmatmul.mubr.f32.gmra.mxu0 %v1279
      %v2234 = vpop.f32.mrf.mxu0
      %v2235 = vadd.f32 0.0, %v2234
      %v2236 = vpop.f32.mrf.mxu0
      %2237 = vmatprep.mubr.f32.mxu0 0.0
      %2238 = vmatmul.mubr.f32.gmra.mxu0 %v1281
      %v2239 = vpop.f32.mrf.mxu0
      %v2240 = vadd.f32 0.0, %v2239
      %v2241 = vpop.f32.mrf.mxu0
      %2242 = vmatprep.mubr.f32.mxu0 0.0
      %2243 = vmatmul.mubr.f32.gmra.mxu0 %v1283
      %v2244 = vpop.f32.mrf.mxu0
      %v2245 = vadd.f32 0.0, %v2244
      %v2246 = vpop.f32.mrf.mxu0
      %2247 = vmatprep.mubr.f32.mxu0 0.0
      %2248 = vmatmul.mubr.f32.gmra.mxu0 %v1285
      %v2249 = vpop.f32.mrf.mxu0
      %v2250 = vadd.f32 0.0, %v2249
      %v2251 = vpop.f32.mrf.mxu0
      %2252 = vmatprep.mubr.f32.mxu0 0.0
      %2253 = vmatmul.mubr.f32.gmra.mxu0 %v1287
      %v2254 = vpop.f32.mrf.mxu0
      %v2255 = vadd.f32 0.0, %v2254
      %v2256 = vpop.f32.mrf.mxu0
      %2257 = vmatprep.mubr.f32.mxu0 0.0
      %2258 = vmatmul.mubr.f32.gmra.mxu0 %v1289
      %v2259 = vpop.f32.mrf.mxu0
      %v2260 = vadd.f32 0.0, %v2259
      %v2261 = vpop.f32.mrf.mxu0
      %2262 = vmatprep.mubr.f32.mxu0 0.0
      %2263 = vmatmul.mubr.f32.gmra.mxu0 %v1291
      %v2264 = vpop.f32.mrf.mxu0
      %v2265 = vadd.f32 0.0, %v2264
      %v2266 = vpop.f32.mrf.mxu0
      %2267 = vmatprep.mubr.f32.mxu0 0.0
      %2268 = vmatmul.mubr.f32.gmra.mxu0 %v1293
      %v2269 = vpop.f32.mrf.mxu0
      %v2270 = vadd.f32 0.0, %v2269
      %v2271 = vpop.f32.mrf.mxu0
      %2272 = vmatprep.mubr.f32.mxu0 0.0
      %2273 = vmatmul.mubr.f32.gmra.mxu0 %v1295
      %v2274 = vpop.f32.mrf.mxu0
      %v2275 = vadd.f32 0.0, %v2274
      %v2276 = vpop.f32.mrf.mxu0
      %2277 = vmatprep.mubr.f32.mxu0 0.0
      %2278 = vmatmul.mubr.f32.gmra.mxu0 %v1297
      %v2279 = vpop.f32.mrf.mxu0
      %v2280 = vadd.f32 0.0, %v2279
      %v2281 = vpop.f32.mrf.mxu0
      %2282 = vmatprep.mubr.f32.mxu0 0.0
      %2283 = vmatmul.mubr.f32.gmra.mxu0 %v1299
      %v2284 = vpop.f32.mrf.mxu0
      %v2285 = vadd.f32 0.0, %v2284
      %v2286 = vpop.f32.mrf.mxu0
      %2287 = vmatprep.mubr.f32.mxu0 0.0
      %2288 = vmatmul.mubr.f32.gmra.mxu0 %v1301
      %v2289 = vpop.f32.mrf.mxu0
      %v2290 = vadd.f32 0.0, %v2289
      %v2291 = vpop.f32.mrf.mxu0
      %2292 = vmatprep.mubr.f32.mxu0 0.0
      %2293 = vmatmul.mubr.f32.gmra.mxu0 %v1303
      %v2294 = vpop.f32.mrf.mxu0
      %v2295 = vadd.f32 0.0, %v2294
      %v2296 = vpop.f32.mrf.mxu0
      %2297 = vmatprep.mubr.f32.mxu0 0.0
      %2298 = vmatmul.mubr.f32.gmra.mxu0 %v1305
      %v2299 = vpop.f32.mrf.mxu0
      %v2300 = vadd.f32 0.0, %v2299
      %v2301 = vpop.f32.mrf.mxu0
      %2302 = vmatprep.mubr.f32.mxu0 0.0
      %2303 = vmatmul.mubr.f32.gmra.mxu0 %v1307
      %v2304 = vpop.f32.mrf.mxu0
      %v2305 = vadd.f32 0.0, %v2304
      %v2306 = vpop.f32.mrf.mxu0
      %2307 = vmatprep.mubr.f32.mxu0 0.0
      %2308 = vmatmul.mubr.f32.gmra.mxu0 %v1309
      %v2309 = vpop.f32.mrf.mxu0
      %v2310 = vadd.f32 0.0, %v2309
      %v2311 = vpop.f32.mrf.mxu0
      %2312 = vmatprep.mubr.f32.mxu0 0.0
      %2313 = vmatmul.mubr.f32.gmra.mxu0 %v1311
      %v2314 = vpop.f32.mrf.mxu0
      %v2315 = vadd.f32 0.0, %v2314
      %v2316 = vpop.f32.mrf.mxu0
      %2317 = vmatprep.mubr.f32.mxu0 0.0
      %2318 = vmatmul.mubr.f32.gmra.mxu0 %v1313
      %v2319 = vpop.f32.mrf.mxu0
      %v2320 = vadd.f32 0.0, %v2319
      %v2321 = vpop.f32.mrf.mxu0
      %2322 = vmatprep.mubr.f32.mxu0 0.0
      %2323 = vmatmul.mubr.f32.gmra.mxu0 %v1315
      %v2324 = vpop.f32.mrf.mxu0
      %v2325 = vadd.f32 0.0, %v2324
      %v2326 = vpop.f32.mrf.mxu0
      %2327 = vmatprep.mubr.f32.mxu0 0.0
      %2328 = vmatmul.mubr.f32.gmra.mxu0 %v1317
      %v2329 = vpop.f32.mrf.mxu0
      %v2330 = vadd.f32 0.0, %v2329
      %v2331 = vpop.f32.mrf.mxu0
      %2332 = vmatprep.mubr.f32.mxu0 0.0
      %2333 = vmatmul.mubr.f32.gmra.mxu0 %v1319
      %v2334 = vpop.f32.mrf.mxu0
      %v2335 = vadd.f32 0.0, %v2334
      %v2336 = vpop.f32.mrf.mxu0
      %2337 = vmatprep.mubr.f32.mxu0 0.0
      %2338 = vmatmul.mubr.f32.gmra.mxu0 %v1321
      %v2339 = vpop.f32.mrf.mxu0
      %v2340 = vadd.f32 0.0, %v2339
      %v2341 = vpop.f32.mrf.mxu0
      %2342 = vmatprep.mubr.f32.mxu0 0.0
      %2343 = vmatmul.mubr.f32.gmra.mxu0 %v1323
      %v2344 = vpop.f32.mrf.mxu0
      %v2345 = vadd.f32 0.0, %v2344
      %v2346 = vpop.f32.mrf.mxu0
      %2347 = vmatprep.mubr.f32.mxu0 0.0
      %2348 = vmatmul.mubr.f32.gmra.mxu0 %v1325
      %v2349 = vpop.f32.mrf.mxu0
      %v2350 = vadd.f32 0.0, %v2349
      %v2351 = vpop.f32.mrf.mxu0
      %2352 = vmatprep.mubr.f32.mxu0 0.0
      %2353 = vmatmul.mubr.f32.gmra.mxu0 %v1327
      %v2354 = vpop.f32.mrf.mxu0
      %v2355 = vadd.f32 0.0, %v2354
      %v2356 = vpop.f32.mrf.mxu0
      %2357 = vmatprep.mubr.f32.mxu0 0.0
      %2358 = vmatmul.mubr.f32.gmra.mxu0 %v2136
      %v2359 = vpop.f32.mrf.mxu0
      %v2360 = vadd.f32 0.0, %v2359
      %v2361 = vpop.f32.mrf.mxu0
      %2362 = vmatprep.mubr.f32.mxu0 0.0
      %2363 = vmatmul.mubr.f32.gmra.mxu0 %v2138
      %v2364 = vpop.f32.mrf.mxu0
      %v2365 = vadd.f32 0.0, %v2364
      %v2366 = vpop.f32.mrf.mxu0
      %2367 = vdwg.mxu0
      %v2368 = vadd.f32 %v2097, %v2210
      %v2369 = vadd.f32 %v2098, %v2215
      %v2370 = vadd.f32 %v2099, %v2220
      %v2371 = vadd.f32 %v2100, %v2225
      %v2372 = vadd.f32 %v2101, %v2230
      %v2373 = vadd.f32 %v2102, %v2235
      %v2374 = vadd.f32 %v2103, %v2240
      %v2375 = vadd.f32 %v2104, %v2245
      %v2376 = vadd.f32 %v2105, %v2250
      %v2377 = vadd.f32 %v2106, %v2255
      %v2378 = vadd.f32 %v2107, %v2260
      %v2379 = vadd.f32 %v2108, %v2265
      %v2380 = vadd.f32 %v2109, %v2270
      %v2381 = vadd.f32 %v2110, %v2275
      %v2382 = vadd.f32 %v2111, %v2280
      %v2383 = vadd.f32 %v2112, %v2285
      %v2384 = vadd.f32 %v2113, %v2290
      %v2385 = vadd.f32 %v2114, %v2295
      %v2386 = vadd.f32 %v2115, %v2300
      %v2387 = vadd.f32 %v2116, %v2305
      %v2388 = vadd.f32 %v2117, %v2310
      %v2389 = vadd.f32 %v2118, %v2315
      %v2390 = vadd.f32 %v2119, %v2320
      %v2391 = vadd.f32 %v2120, %v2325
      %v2392 = vadd.f32 %v2121, %v2330
      %v2393 = vadd.f32 %v2122, %v2335
      %v2394 = vadd.f32 %v2123, %v2340
      %v2395 = vadd.f32 %v2124, %v2345
      %v2396 = vadd.f32 %v2125, %v2350
      %v2397 = vadd.f32 %v2126, %v2355
      %v2398 = vadd.f32 %v2127, %v2360
      %v2399 = vadd.f32 %v2128, %v2365
      %s2400 = scalar_lea.vmem %s3, 24
      %v2401 = vld [vmem:[%s2400] sm:$0xf]
      %v2403 = vsel %vm596, %v461, 0
      %v2406 = vsel %vm596, %v462, 0
      %v2409 = vsel %vm661, %v2401, 0
      %2411 = vmatprep.subr.mxu0 0.0
      %2412 = vmatpush1.msra.mxu0 0.0
      %2413 = vmatprep.subr.mxu0 0.0
      %2414 = vmatpush1.msra.mxu0 0.0
      %2415 = vmatprep.subr.mxu0 0.0
      %2416 = vmatpush1.msra.mxu0 0.0
      %2417 = vmatprep.subr.mxu0 0.0
      %2418 = vmatpush1.msra.mxu0 0.0
      %2419 = vmatprep.subr.mxu0 0.0
      %2420 = vmatpush1.msra.mxu0 0.0
      %2421 = vmatprep.subr.mxu0 0.0
      %2422 = vmatpush1.msra.mxu0 0.0
      %2423 = vmatprep.subr.mxu0 0.0
      %2424 = vmatpush1.msra.mxu0 0.0
      %2425 = vmatprep.subr.mxu0 0.0
      %2426 = vmatpush1.msra.mxu0 0.0
      %2427 = vmatprep.subr.mxu0 0.0
      %2428 = vmatpush1.msra.mxu0 0.0
      %2429 = vmatprep.subr.mxu0 0.0
      %2430 = vmatpush1.msra.mxu0 0.0
      %2431 = vmatprep.subr.mxu0 0.0
      %2432 = vmatpush1.msra.mxu0 0.0
      %2433 = vmatprep.subr.mxu0 0.0
      %2434 = vmatpush1.msra.mxu0 0.0
      %2435 = vmatprep.subr.mxu0 0.0
      %2436 = vmatpush1.msra.mxu0 0.0
      %2437 = vmatprep.subr.mxu0 0.0
      %2438 = vmatpush1.msra.mxu0 0.0
      %2439 = vmatprep.subr.mxu0 0.0
      %2440 = vmatpush1.msra.mxu0 0.0
      %2441 = vmatprep.subr.mxu0 0.0
      %2442 = vmatpush1.msra.mxu0 %v2409
      %2443 = vmatprep.subr.mxu0 0.0
      %2444 = vmatpush2.msra.mxu0 0.0
      %2445 = vmatprep.subr.mxu0 0.0
      %2446 = vmatpush2.msra.mxu0 0.0
      %2447 = vmatprep.subr.mxu0 0.0
      %2448 = vmatpush2.msra.mxu0 0.0
      %2449 = vmatprep.subr.mxu0 0.0
      %2450 = vmatpush2.msra.mxu0 0.0
      %2451 = vmatprep.subr.mxu0 0.0
      %2452 = vmatpush2.msra.mxu0 0.0
      %2453 = vmatprep.subr.mxu0 0.0
      %2454 = vmatpush2.msra.mxu0 0.0
      %2455 = vmatprep.subr.mxu0 0.0
      %2456 = vmatpush2.msra.mxu0 0.0
      %2457 = vmatprep.subr.mxu0 0.0
      %2458 = vmatpush2.msra.mxu0 0.0
      %2459 = vmatprep.subr.mxu0 0.0
      %2460 = vmatpush2.msra.mxu0 0.0
      %2461 = vmatprep.subr.mxu0 0.0
      %2462 = vmatpush2.msra.mxu0 0.0
      %2463 = vmatprep.subr.mxu0 0.0
      %2464 = vmatpush2.msra.mxu0 0.0
      %2465 = vmatprep.subr.mxu0 0.0
      %2466 = vmatpush2.msra.mxu0 0.0
      %2467 = vmatprep.subr.mxu0 0.0
      %2468 = vmatpush2.msra.mxu0 0.0
      %2469 = vmatprep.subr.mxu0 0.0
      %2470 = vmatpush2.msra.mxu0 0.0
      %2471 = vmatprep.subr.mxu0 0.0
      %2472 = vmatpush2.msra.mxu0 0.0
      %2473 = vmatprep.subr.mxu0 0.0
      %2474 = vmatpush2.msra.mxu0 0.0
      %2475 = vmatprep.mubr.f32.mxu0 0.0
      %2476 = vmatmul.mubr.f32.gmra.mxu0 %v898
      %v2477 = vpop.f32.mrf.mxu0
      %v2478 = vadd.f32 0.0, %v2477
      %v2479 = vpop.f32.mrf.mxu0
      %2480 = vmatprep.mubr.f32.mxu0 0.0
      %2481 = vmatmul.mubr.f32.gmra.mxu0 %v900
      %v2482 = vpop.f32.mrf.mxu0
      %v2483 = vadd.f32 0.0, %v2482
      %v2484 = vpop.f32.mrf.mxu0
      %2485 = vmatprep.mubr.f32.mxu0 0.0
      %2486 = vmatmul.mubr.f32.gmra.mxu0 %v902
      %v2487 = vpop.f32.mrf.mxu0
      %v2488 = vadd.f32 0.0, %v2487
      %v2489 = vpop.f32.mrf.mxu0
      %2490 = vmatprep.mubr.f32.mxu0 0.0
      %2491 = vmatmul.mubr.f32.gmra.mxu0 %v904
      %v2492 = vpop.f32.mrf.mxu0
      %v2493 = vadd.f32 0.0, %v2492
      %v2494 = vpop.f32.mrf.mxu0
      %2495 = vmatprep.mubr.f32.mxu0 0.0
      %2496 = vmatmul.mubr.f32.gmra.mxu0 %v906
      %v2497 = vpop.f32.mrf.mxu0
      %v2498 = vadd.f32 0.0, %v2497
      %v2499 = vpop.f32.mrf.mxu0
      %2500 = vmatprep.mubr.f32.mxu0 0.0
      %2501 = vmatmul.mubr.f32.gmra.mxu0 %v908
      %v2502 = vpop.f32.mrf.mxu0
      %v2503 = vadd.f32 0.0, %v2502
      %v2504 = vpop.f32.mrf.mxu0
      %2505 = vmatprep.mubr.f32.mxu0 0.0
      %2506 = vmatmul.mubr.f32.gmra.mxu0 %v910
      %v2507 = vpop.f32.mrf.mxu0
      %v2508 = vadd.f32 0.0, %v2507
      %v2509 = vpop.f32.mrf.mxu0
      %2510 = vmatprep.mubr.f32.mxu0 0.0
      %2511 = vmatmul.mubr.f32.gmra.mxu0 %v912
      %v2512 = vpop.f32.mrf.mxu0
      %v2513 = vadd.f32 0.0, %v2512
      %v2514 = vpop.f32.mrf.mxu0
      %2515 = vmatprep.mubr.f32.mxu0 0.0
      %2516 = vmatmul.mubr.f32.gmra.mxu0 %v914
      %v2517 = vpop.f32.mrf.mxu0
      %v2518 = vadd.f32 0.0, %v2517
      %v2519 = vpop.f32.mrf.mxu0
      %2520 = vmatprep.mubr.f32.mxu0 0.0
      %2521 = vmatmul.mubr.f32.gmra.mxu0 %v916
      %v2522 = vpop.f32.mrf.mxu0
      %v2523 = vadd.f32 0.0, %v2522
      %v2524 = vpop.f32.mrf.mxu0
      %2525 = vmatprep.mubr.f32.mxu0 0.0
      %2526 = vmatmul.mubr.f32.gmra.mxu0 %v918
      %v2527 = vpop.f32.mrf.mxu0
      %v2528 = vadd.f32 0.0, %v2527
      %v2529 = vpop.f32.mrf.mxu0
      %2530 = vmatprep.mubr.f32.mxu0 0.0
      %2531 = vmatmul.mubr.f32.gmra.mxu0 %v920
      %v2532 = vpop.f32.mrf.mxu0
      %v2533 = vadd.f32 0.0, %v2532
      %v2534 = vpop.f32.mrf.mxu0
      %2535 = vmatprep.mubr.f32.mxu0 0.0
      %2536 = vmatmul.mubr.f32.gmra.mxu0 %v922
      %v2537 = vpop.f32.mrf.mxu0
      %v2538 = vadd.f32 0.0, %v2537
      %v2539 = vpop.f32.mrf.mxu0
      %2540 = vmatprep.mubr.f32.mxu0 0.0
      %2541 = vmatmul.mubr.f32.gmra.mxu0 %v924
      %v2542 = vpop.f32.mrf.mxu0
      %v2543 = vadd.f32 0.0, %v2542
      %v2544 = vpop.f32.mrf.mxu0
      %2545 = vmatprep.mubr.f32.mxu0 0.0
      %2546 = vmatmul.mubr.f32.gmra.mxu0 %v926
      %v2547 = vpop.f32.mrf.mxu0
      %v2548 = vadd.f32 0.0, %v2547
      %v2549 = vpop.f32.mrf.mxu0
      %2550 = vmatprep.mubr.f32.mxu0 0.0
      %2551 = vmatmul.mubr.f32.gmra.mxu0 %v928
      %v2552 = vpop.f32.mrf.mxu0
      %v2553 = vadd.f32 0.0, %v2552
      %v2554 = vpop.f32.mrf.mxu0
      %2555 = vmatprep.mubr.f32.mxu0 0.0
      %2556 = vmatmul.mubr.f32.gmra.mxu0 %v930
      %v2557 = vpop.f32.mrf.mxu0
      %v2558 = vadd.f32 0.0, %v2557
      %v2559 = vpop.f32.mrf.mxu0
      %2560 = vmatprep.mubr.f32.mxu0 0.0
      %2561 = vmatmul.mubr.f32.gmra.mxu0 %v932
      %v2562 = vpop.f32.mrf.mxu0
      %v2563 = vadd.f32 0.0, %v2562
      %v2564 = vpop.f32.mrf.mxu0
      %2565 = vmatprep.mubr.f32.mxu0 0.0
      %2566 = vmatmul.mubr.f32.gmra.mxu0 %v934
      %v2567 = vpop.f32.mrf.mxu0
      %v2568 = vadd.f32 0.0, %v2567
      %v2569 = vpop.f32.mrf.mxu0
      %2570 = vmatprep.mubr.f32.mxu0 0.0
      %2571 = vmatmul.mubr.f32.gmra.mxu0 %v936
      %v2572 = vpop.f32.mrf.mxu0
      %v2573 = vadd.f32 0.0, %v2572
      %v2574 = vpop.f32.mrf.mxu0
      %2575 = vmatprep.mubr.f32.mxu0 0.0
      %2576 = vmatmul.mubr.f32.gmra.mxu0 %v938
      %v2577 = vpop.f32.mrf.mxu0
      %v2578 = vadd.f32 0.0, %v2577
      %v2579 = vpop.f32.mrf.mxu0
      %2580 = vmatprep.mubr.f32.mxu0 0.0
      %2581 = vmatmul.mubr.f32.gmra.mxu0 %v940
      %v2582 = vpop.f32.mrf.mxu0
      %v2583 = vadd.f32 0.0, %v2582
      %v2584 = vpop.f32.mrf.mxu0
      %2585 = vmatprep.mubr.f32.mxu0 0.0
      %2586 = vmatmul.mubr.f32.gmra.mxu0 %v942
      %v2587 = vpop.f32.mrf.mxu0
      %v2588 = vadd.f32 0.0, %v2587
      %v2589 = vpop.f32.mrf.mxu0
      %2590 = vmatprep.mubr.f32.mxu0 0.0
      %2591 = vmatmul.mubr.f32.gmra.mxu0 %v944
      %v2592 = vpop.f32.mrf.mxu0
      %v2593 = vadd.f32 0.0, %v2592
      %v2594 = vpop.f32.mrf.mxu0
      %2595 = vmatprep.mubr.f32.mxu0 0.0
      %2596 = vmatmul.mubr.f32.gmra.mxu0 %v946
      %v2597 = vpop.f32.mrf.mxu0
      %v2598 = vadd.f32 0.0, %v2597
      %v2599 = vpop.f32.mrf.mxu0
      %2600 = vmatprep.mubr.f32.mxu0 0.0
      %2601 = vmatmul.mubr.f32.gmra.mxu0 %v948
      %v2602 = vpop.f32.mrf.mxu0
      %v2603 = vadd.f32 0.0, %v2602
      %v2604 = vpop.f32.mrf.mxu0
      %2605 = vmatprep.mubr.f32.mxu0 0.0
      %2606 = vmatmul.mubr.f32.gmra.mxu0 %v950
      %v2607 = vpop.f32.mrf.mxu0
      %v2608 = vadd.f32 0.0, %v2607
      %v2609 = vpop.f32.mrf.mxu0
      %2610 = vmatprep.mubr.f32.mxu0 0.0
      %2611 = vmatmul.mubr.f32.gmra.mxu0 %v952
      %v2612 = vpop.f32.mrf.mxu0
      %v2613 = vadd.f32 0.0, %v2612
      %v2614 = vpop.f32.mrf.mxu0
      %2615 = vmatprep.mubr.f32.mxu0 0.0
      %2616 = vmatmul.mubr.f32.gmra.mxu0 %v1592
      %v2617 = vpop.f32.mrf.mxu0
      %v2618 = vadd.f32 0.0, %v2617
      %v2619 = vpop.f32.mrf.mxu0
      %2620 = vmatprep.mubr.f32.mxu0 0.0
      %2621 = vmatmul.mubr.f32.gmra.mxu0 %v1595
      %v2622 = vpop.f32.mrf.mxu0
      %v2623 = vadd.f32 0.0, %v2622
      %v2624 = vpop.f32.mrf.mxu0
      %2625 = vmatprep.mubr.f32.mxu0 0.0
      %2626 = vmatmul.mubr.f32.gmra.mxu0 %v2403
      %v2627 = vpop.f32.mrf.mxu0
      %v2628 = vadd.f32 0.0, %v2627
      %v2629 = vpop.f32.mrf.mxu0
      %2630 = vmatprep.mubr.f32.mxu0 0.0
      %2631 = vmatmul.mubr.f32.gmra.mxu0 %v2406
      %v2632 = vpop.f32.mrf.mxu0
      %v2633 = vadd.f32 0.0, %v2632
      %v2634 = vpop.f32.mrf.mxu0
      %2635 = vdwg.mxu0
      %v2636 = vadd.f32 %v2368, %v2478
      %v2637 = vadd.f32 %v2369, %v2483
      %v2638 = vadd.f32 %v2370, %v2488
      %v2639 = vadd.f32 %v2371, %v2493
      %v2640 = vadd.f32 %v2372, %v2498
      %v2641 = vadd.f32 %v2373, %v2503
      %v2642 = vadd.f32 %v2374, %v2508
      %v2643 = vadd.f32 %v2375, %v2513
      %v2644 = vadd.f32 %v2376, %v2518
      %v2645 = vadd.f32 %v2377, %v2523
      %v2646 = vadd.f32 %v2378, %v2528
      %v2647 = vadd.f32 %v2379, %v2533
      %v2648 = vadd.f32 %v2380, %v2538
      %v2649 = vadd.f32 %v2381, %v2543
      %v2650 = vadd.f32 %v2382, %v2548
      %v2651 = vadd.f32 %v2383, %v2553
      %v2652 = vadd.f32 %v2384, %v2558
      %v2653 = vadd.f32 %v2385, %v2563
      %v2654 = vadd.f32 %v2386, %v2568
      %v2655 = vadd.f32 %v2387, %v2573
      %v2656 = vadd.f32 %v2388, %v2578
      %v2657 = vadd.f32 %v2389, %v2583
      %v2658 = vadd.f32 %v2390, %v2588
      %v2659 = vadd.f32 %v2391, %v2593
      %v2660 = vadd.f32 %v2392, %v2598
      %v2661 = vadd.f32 %v2393, %v2603
      %v2662 = vadd.f32 %v2394, %v2608
      %v2663 = vadd.f32 %v2395, %v2613
      %v2664 = vadd.f32 %v2396, %v2618
      %v2665 = vadd.f32 %v2397, %v2623
      %v2666 = vadd.f32 %v2398, %v2628
      %v2667 = vadd.f32 %v2399, %v2633
      %v2669 = vrot.slane %v461, 1
      %v2670 = vrot.slane %v462, 1
      %v2671 = vsel %vm513, %v2669, %v2670
      %v2672 = vrot.slane %v463, 1
      %v2673 = vsel %vm513, %v2670, %v2672
      %s2674 = scalar_lea.vmem %s3, 28
      %v2675 = vld [vmem:[%s2674] sm:$0xf]
      %v2676 = vsel %vm596, %v2671, 0
      %v2678 = vsel %vm596, %v2673, 0
      %v2681 = vsel %vm661, %v2675, 0
      %2683 = vmatprep.subr.mxu0 0.0
      %2684 = vmatpush1.msra.mxu0 0.0
      %2685 = vmatprep.subr.mxu0 0.0
      %2686 = vmatpush1.msra.mxu0 0.0
      %2687 = vmatprep.subr.mxu0 0.0
      %2688 = vmatpush1.msra.mxu0 0.0
      %2689 = vmatprep.subr.mxu0 0.0
      %2690 = vmatpush1.msra.mxu0 0.0
      %2691 = vmatprep.subr.mxu0 0.0
      %2692 = vmatpush1.msra.mxu0 0.0
      %2693 = vmatprep.subr.mxu0 0.0
      %2694 = vmatpush1.msra.mxu0 0.0
      %2695 = vmatprep.subr.mxu0 0.0
      %2696 = vmatpush1.msra.mxu0 0.0
      %2697 = vmatprep.subr.mxu0 0.0
      %2698 = vmatpush1.msra.mxu0 0.0
      %2699 = vmatprep.subr.mxu0 0.0
      %2700 = vmatpush1.msra.mxu0 0.0
      %2701 = vmatprep.subr.mxu0 0.0
      %2702 = vmatpush1.msra.mxu0 0.0
      %2703 = vmatprep.subr.mxu0 0.0
      %2704 = vmatpush1.msra.mxu0 0.0
      %2705 = vmatprep.subr.mxu0 0.0
      %2706 = vmatpush1.msra.mxu0 0.0
      %2707 = vmatprep.subr.mxu0 0.0
      %2708 = vmatpush1.msra.mxu0 0.0
      %2709 = vmatprep.subr.mxu0 0.0
      %2710 = vmatpush1.msra.mxu0 0.0
      %2711 = vmatprep.subr.mxu0 0.0
      %2712 = vmatpush1.msra.mxu0 0.0
      %2713 = vmatprep.subr.mxu0 0.0
      %2714 = vmatpush1.msra.mxu0 %v2681
      %2715 = vmatprep.subr.mxu0 0.0
      %2716 = vmatpush2.msra.mxu0 0.0
      %2717 = vmatprep.subr.mxu0 0.0
      %2718 = vmatpush2.msra.mxu0 0.0
      %2719 = vmatprep.subr.mxu0 0.0
      %2720 = vmatpush2.msra.mxu0 0.0
      %2721 = vmatprep.subr.mxu0 0.0
      %2722 = vmatpush2.msra.mxu0 0.0
      %2723 = vmatprep.subr.mxu0 0.0
      %2724 = vmatpush2.msra.mxu0 0.0
      %2725 = vmatprep.subr.mxu0 0.0
      %2726 = vmatpush2.msra.mxu0 0.0
      %2727 = vmatprep.subr.mxu0 0.0
      %2728 = vmatpush2.msra.mxu0 0.0
      %2729 = vmatprep.subr.mxu0 0.0
      %2730 = vmatpush2.msra.mxu0 0.0
      %2731 = vmatprep.subr.mxu0 0.0
      %2732 = vmatpush2.msra.mxu0 0.0
      %2733 = vmatprep.subr.mxu0 0.0
      %2734 = vmatpush2.msra.mxu0 0.0
      %2735 = vmatprep.subr.mxu0 0.0
      %2736 = vmatpush2.msra.mxu0 0.0
      %2737 = vmatprep.subr.mxu0 0.0
      %2738 = vmatpush2.msra.mxu0 0.0
      %2739 = vmatprep.subr.mxu0 0.0
      %2740 = vmatpush2.msra.mxu0 0.0
      %2741 = vmatprep.subr.mxu0 0.0
      %2742 = vmatpush2.msra.mxu0 0.0
      %2743 = vmatprep.subr.mxu0 0.0
      %2744 = vmatpush2.msra.mxu0 0.0
      %2745 = vmatprep.subr.mxu0 0.0
      %2746 = vmatpush2.msra.mxu0 0.0
      %2747 = vmatprep.mubr.f32.mxu0 0.0
      %2748 = vmatmul.mubr.f32.gmra.mxu0 %v605
      %v2749 = vpop.f32.mrf.mxu0
      %v2750 = vadd.f32 0.0, %v2749
      %v2751 = vpop.f32.mrf.mxu0
      %2752 = vmatprep.mubr.f32.mxu0 0.0
      %2753 = vmatmul.mubr.f32.gmra.mxu0 %v607
      %v2754 = vpop.f32.mrf.mxu0
      %v2755 = vadd.f32 0.0, %v2754
      %v2756 = vpop.f32.mrf.mxu0
      %2757 = vmatprep.mubr.f32.mxu0 0.0
      %2758 = vmatmul.mubr.f32.gmra.mxu0 %v609
      %v2759 = vpop.f32.mrf.mxu0
      %v2760 = vadd.f32 0.0, %v2759
      %v2761 = vpop.f32.mrf.mxu0
      %2762 = vmatprep.mubr.f32.mxu0 0.0
      %2763 = vmatmul.mubr.f32.gmra.mxu0 %v611
      %v2764 = vpop.f32.mrf.mxu0
      %v2765 = vadd.f32 0.0, %v2764
      %v2766 = vpop.f32.mrf.mxu0
      %2767 = vmatprep.mubr.f32.mxu0 0.0
      %2768 = vmatmul.mubr.f32.gmra.mxu0 %v613
      %v2769 = vpop.f32.mrf.mxu0
      %v2770 = vadd.f32 0.0, %v2769
      %v2771 = vpop.f32.mrf.mxu0
      %2772 = vmatprep.mubr.f32.mxu0 0.0
      %2773 = vmatmul.mubr.f32.gmra.mxu0 %v615
      %v2774 = vpop.f32.mrf.mxu0
      %v2775 = vadd.f32 0.0, %v2774
      %v2776 = vpop.f32.mrf.mxu0
      %2777 = vmatprep.mubr.f32.mxu0 0.0
      %2778 = vmatmul.mubr.f32.gmra.mxu0 %v617
      %v2779 = vpop.f32.mrf.mxu0
      %v2780 = vadd.f32 0.0, %v2779
      %v2781 = vpop.f32.mrf.mxu0
      %2782 = vmatprep.mubr.f32.mxu0 0.0
      %2783 = vmatmul.mubr.f32.gmra.mxu0 %v619
      %v2784 = vpop.f32.mrf.mxu0
      %v2785 = vadd.f32 0.0, %v2784
      %v2786 = vpop.f32.mrf.mxu0
      %2787 = vmatprep.mubr.f32.mxu0 0.0
      %2788 = vmatmul.mubr.f32.gmra.mxu0 %v621
      %v2789 = vpop.f32.mrf.mxu0
      %v2790 = vadd.f32 0.0, %v2789
      %v2791 = vpop.f32.mrf.mxu0
      %2792 = vmatprep.mubr.f32.mxu0 0.0
      %2793 = vmatmul.mubr.f32.gmra.mxu0 %v623
      %v2794 = vpop.f32.mrf.mxu0
      %v2795 = vadd.f32 0.0, %v2794
      %v2796 = vpop.f32.mrf.mxu0
      %2797 = vmatprep.mubr.f32.mxu0 0.0
      %2798 = vmatmul.mubr.f32.gmra.mxu0 %v625
      %v2799 = vpop.f32.mrf.mxu0
      %v2800 = vadd.f32 0.0, %v2799
      %v2801 = vpop.f32.mrf.mxu0
      %2802 = vmatprep.mubr.f32.mxu0 0.0
      %2803 = vmatmul.mubr.f32.gmra.mxu0 %v627
      %v2804 = vpop.f32.mrf.mxu0
      %v2805 = vadd.f32 0.0, %v2804
      %v2806 = vpop.f32.mrf.mxu0
      %2807 = vmatprep.mubr.f32.mxu0 0.0
      %2808 = vmatmul.mubr.f32.gmra.mxu0 %v629
      %v2809 = vpop.f32.mrf.mxu0
      %v2810 = vadd.f32 0.0, %v2809
      %v2811 = vpop.f32.mrf.mxu0
      %2812 = vmatprep.mubr.f32.mxu0 0.0
      %2813 = vmatmul.mubr.f32.gmra.mxu0 %v631
      %v2814 = vpop.f32.mrf.mxu0
      %v2815 = vadd.f32 0.0, %v2814
      %v2816 = vpop.f32.mrf.mxu0
      %2817 = vmatprep.mubr.f32.mxu0 0.0
      %2818 = vmatmul.mubr.f32.gmra.mxu0 %v633
      %v2819 = vpop.f32.mrf.mxu0
      %v2820 = vadd.f32 0.0, %v2819
      %v2821 = vpop.f32.mrf.mxu0
      %2822 = vmatprep.mubr.f32.mxu0 0.0
      %2823 = vmatmul.mubr.f32.gmra.mxu0 %v635
      %v2824 = vpop.f32.mrf.mxu0
      %v2825 = vadd.f32 0.0, %v2824
      %v2826 = vpop.f32.mrf.mxu0
      %2827 = vmatprep.mubr.f32.mxu0 0.0
      %2828 = vmatmul.mubr.f32.gmra.mxu0 %v637
      %v2829 = vpop.f32.mrf.mxu0
      %v2830 = vadd.f32 0.0, %v2829
      %v2831 = vpop.f32.mrf.mxu0
      %2832 = vmatprep.mubr.f32.mxu0 0.0
      %2833 = vmatmul.mubr.f32.gmra.mxu0 %v639
      %v2834 = vpop.f32.mrf.mxu0
      %v2835 = vadd.f32 0.0, %v2834
      %v2836 = vpop.f32.mrf.mxu0
      %2837 = vmatprep.mubr.f32.mxu0 0.0
      %2838 = vmatmul.mubr.f32.gmra.mxu0 %v641
      %v2839 = vpop.f32.mrf.mxu0
      %v2840 = vadd.f32 0.0, %v2839
      %v2841 = vpop.f32.mrf.mxu0
      %2842 = vmatprep.mubr.f32.mxu0 0.0
      %2843 = vmatmul.mubr.f32.gmra.mxu0 %v643
      %v2844 = vpop.f32.mrf.mxu0
      %v2845 = vadd.f32 0.0, %v2844
      %v2846 = vpop.f32.mrf.mxu0
      %2847 = vmatprep.mubr.f32.mxu0 0.0
      %2848 = vmatmul.mubr.f32.gmra.mxu0 %v645
      %v2849 = vpop.f32.mrf.mxu0
      %v2850 = vadd.f32 0.0, %v2849
      %v2851 = vpop.f32.mrf.mxu0
      %2852 = vmatprep.mubr.f32.mxu0 0.0
      %2853 = vmatmul.mubr.f32.gmra.mxu0 %v647
      %v2854 = vpop.f32.mrf.mxu0
      %v2855 = vadd.f32 0.0, %v2854
      %v2856 = vpop.f32.mrf.mxu0
      %2857 = vmatprep.mubr.f32.mxu0 0.0
      %2858 = vmatmul.mubr.f32.gmra.mxu0 %v649
      %v2859 = vpop.f32.mrf.mxu0
      %v2860 = vadd.f32 0.0, %v2859
      %v2861 = vpop.f32.mrf.mxu0
      %2862 = vmatprep.mubr.f32.mxu0 0.0
      %2863 = vmatmul.mubr.f32.gmra.mxu0 %v651
      %v2864 = vpop.f32.mrf.mxu0
      %v2865 = vadd.f32 0.0, %v2864
      %v2866 = vpop.f32.mrf.mxu0
      %2867 = vmatprep.mubr.f32.mxu0 0.0
      %2868 = vmatmul.mubr.f32.gmra.mxu0 %v653
      %v2869 = vpop.f32.mrf.mxu0
      %v2870 = vadd.f32 0.0, %v2869
      %v2871 = vpop.f32.mrf.mxu0
      %2872 = vmatprep.mubr.f32.mxu0 0.0
      %2873 = vmatmul.mubr.f32.gmra.mxu0 %v655
      %v2874 = vpop.f32.mrf.mxu0
      %v2875 = vadd.f32 0.0, %v2874
      %v2876 = vpop.f32.mrf.mxu0
      %2877 = vmatprep.mubr.f32.mxu0 0.0
      %2878 = vmatmul.mubr.f32.gmra.mxu0 %v657
      %v2879 = vpop.f32.mrf.mxu0
      %v2880 = vadd.f32 0.0, %v2879
      %v2881 = vpop.f32.mrf.mxu0
      %2882 = vmatprep.mubr.f32.mxu0 0.0
      %2883 = vmatmul.mubr.f32.gmra.mxu0 %v659
      %v2884 = vpop.f32.mrf.mxu0
      %v2885 = vadd.f32 0.0, %v2884
      %v2886 = vpop.f32.mrf.mxu0
      %2887 = vmatprep.mubr.f32.mxu0 0.0
      %2888 = vmatmul.mubr.f32.gmra.mxu0 %v1865
      %v2889 = vpop.f32.mrf.mxu0
      %v2890 = vadd.f32 0.0, %v2889
      %v2891 = vpop.f32.mrf.mxu0
      %2892 = vmatprep.mubr.f32.mxu0 0.0
      %2893 = vmatmul.mubr.f32.gmra.mxu0 %v1867
      %v2894 = vpop.f32.mrf.mxu0
      %v2895 = vadd.f32 0.0, %v2894
      %v2896 = vpop.f32.mrf.mxu0
      %2897 = vmatprep.mubr.f32.mxu0 0.0
      %2898 = vmatmul.mubr.f32.gmra.mxu0 %v2676
      %v2899 = vpop.f32.mrf.mxu0
      %v2900 = vadd.f32 0.0, %v2899
      %v2901 = vpop.f32.mrf.mxu0
      %2902 = vmatprep.mubr.f32.mxu0 0.0
      %2903 = vmatmul.mubr.f32.gmra.mxu0 %v2678
      %v2904 = vpop.f32.mrf.mxu0
      %v2905 = vadd.f32 0.0, %v2904
      %v2906 = vpop.f32.mrf.mxu0
      %2907 = vdwg.mxu0
      %v2908 = vadd.f32 %v2636, %v2750
      %v2909 = vadd.f32 %v2637, %v2755
      %v2910 = vadd.f32 %v2638, %v2760
      %v2911 = vadd.f32 %v2639, %v2765
      %v2912 = vadd.f32 %v2640, %v2770
      %v2913 = vadd.f32 %v2641, %v2775
      %v2914 = vadd.f32 %v2642, %v2780
      %v2915 = vadd.f32 %v2643, %v2785
      %v2916 = vadd.f32 %v2644, %v2790
      %v2917 = vadd.f32 %v2645, %v2795
      %v2918 = vadd.f32 %v2646, %v2800
      %v2919 = vadd.f32 %v2647, %v2805
      %v2920 = vadd.f32 %v2648, %v2810
      %v2921 = vadd.f32 %v2649, %v2815
      %v2922 = vadd.f32 %v2650, %v2820
      %v2923 = vadd.f32 %v2651, %v2825
      %v2924 = vadd.f32 %v2652, %v2830
      %v2925 = vadd.f32 %v2653, %v2835
      %v2926 = vadd.f32 %v2654, %v2840
      %v2927 = vadd.f32 %v2655, %v2845
      %v2928 = vadd.f32 %v2656, %v2850
      %v2929 = vadd.f32 %v2657, %v2855
      %v2930 = vadd.f32 %v2658, %v2860
      %v2931 = vadd.f32 %v2659, %v2865
      %v2932 = vadd.f32 %v2660, %v2870
      %v2933 = vadd.f32 %v2661, %v2875
      %v2934 = vadd.f32 %v2662, %v2880
      %v2935 = vadd.f32 %v2663, %v2885
      %v2936 = vadd.f32 %v2664, %v2890
      %v2937 = vadd.f32 %v2665, %v2895
      %v2938 = vadd.f32 %v2666, %v2900
      %v2939 = vadd.f32 %v2667, %v2905
      %v2940 = vrot.slane %v461, 2
      %v2941 = vrot.slane %v462, 2
      %v2942 = vsel %vm1182, %v2940, %v2941
      %v2943 = vrot.slane %v463, 2
      %v2944 = vsel %vm1182, %v2941, %v2943
      %s2945 = scalar_lea.vmem %s3, 32
      %v2946 = vld [vmem:[%s2945] sm:$0xf]
      %v2947 = vsel %vm596, %v2942, 0
      %v2949 = vsel %vm596, %v2944, 0
      %v2952 = vsel %vm661, %v2946, 0
      %2954 = vmatprep.subr.mxu0 0.0
      %2955 = vmatpush1.msra.mxu0 0.0
      %2956 = vmatprep.subr.mxu0 0.0
      %2957 = vmatpush1.msra.mxu0 0.0
      %2958 = vmatprep.subr.mxu0 0.0
      %2959 = vmatpush1.msra.mxu0 0.0
      %2960 = vmatprep.subr.mxu0 0.0
      %2961 = vmatpush1.msra.mxu0 0.0
      %2962 = vmatprep.subr.mxu0 0.0
      %2963 = vmatpush1.msra.mxu0 0.0
      %2964 = vmatprep.subr.mxu0 0.0
      %2965 = vmatpush1.msra.mxu0 0.0
      %2966 = vmatprep.subr.mxu0 0.0
      %2967 = vmatpush1.msra.mxu0 0.0
      %2968 = vmatprep.subr.mxu0 0.0
      %2969 = vmatpush1.msra.mxu0 0.0
      %2970 = vmatprep.subr.mxu0 0.0
      %2971 = vmatpush1.msra.mxu0 0.0
      %2972 = vmatprep.subr.mxu0 0.0
      %2973 = vmatpush1.msra.mxu0 0.0
      %2974 = vmatprep.subr.mxu0 0.0
      %2975 = vmatpush1.msra.mxu0 0.0
      %2976 = vmatprep.subr.mxu0 0.0
      %2977 = vmatpush1.msra.mxu0 0.0
      %2978 = vmatprep.subr.mxu0 0.0
      %2979 = vmatpush1.msra.mxu0 0.0
      %2980 = vmatprep.subr.mxu0 0.0
      %2981 = vmatpush1.msra.mxu0 0.0
      %2982 = vmatprep.subr.mxu0 0.0
      %2983 = vmatpush1.msra.mxu0 0.0
      %2984 = vmatprep.subr.mxu0 0.0
      %2985 = vmatpush1.msra.mxu0 %v2952
      %2986 = vmatprep.subr.mxu0 0.0
      %2987 = vmatpush2.msra.mxu0 0.0
      %2988 = vmatprep.subr.mxu0 0.0
      %2989 = vmatpush2.msra.mxu0 0.0
      %2990 = vmatprep.subr.mxu0 0.0
      %2991 = vmatpush2.msra.mxu0 0.0
      %2992 = vmatprep.subr.mxu0 0.0
      %2993 = vmatpush2.msra.mxu0 0.0
      %2994 = vmatprep.subr.mxu0 0.0
      %2995 = vmatpush2.msra.mxu0 0.0
      %2996 = vmatprep.subr.mxu0 0.0
      %2997 = vmatpush2.msra.mxu0 0.0
      %2998 = vmatprep.subr.mxu0 0.0
      %2999 = vmatpush2.msra.mxu0 0.0
      %3000 = vmatprep.subr.mxu0 0.0
      %3001 = vmatpush2.msra.mxu0 0.0
      %3002 = vmatprep.subr.mxu0 0.0
      %3003 = vmatpush2.msra.mxu0 0.0
      %3004 = vmatprep.subr.mxu0 0.0
      %3005 = vmatpush2.msra.mxu0 0.0
      %3006 = vmatprep.subr.mxu0 0.0
      %3007 = vmatpush2.msra.mxu0 0.0
      %3008 = vmatprep.subr.mxu0 0.0
      %3009 = vmatpush2.msra.mxu0 0.0
      %3010 = vmatprep.subr.mxu0 0.0
      %3011 = vmatpush2.msra.mxu0 0.0
      %3012 = vmatprep.subr.mxu0 0.0
      %3013 = vmatpush2.msra.mxu0 0.0
      %3014 = vmatprep.subr.mxu0 0.0
      %3015 = vmatpush2.msra.mxu0 0.0
      %3016 = vmatprep.subr.mxu0 0.0
      %3017 = vmatpush2.msra.mxu0 0.0
      %3018 = vmatprep.mubr.f32.mxu0 0.0
      %3019 = vmatmul.mubr.f32.gmra.mxu0 %v1273
      %v3020 = vpop.f32.mrf.mxu0
      %v3021 = vadd.f32 0.0, %v3020
      %v3022 = vpop.f32.mrf.mxu0
      %3023 = vmatprep.mubr.f32.mxu0 0.0
      %3024 = vmatmul.mubr.f32.gmra.mxu0 %v1275
      %v3025 = vpop.f32.mrf.mxu0
      %v3026 = vadd.f32 0.0, %v3025
      %v3027 = vpop.f32.mrf.mxu0
      %3028 = vmatprep.mubr.f32.mxu0 0.0
      %3029 = vmatmul.mubr.f32.gmra.mxu0 %v1277
      %v3030 = vpop.f32.mrf.mxu0
      %v3031 = vadd.f32 0.0, %v3030
      %v3032 = vpop.f32.mrf.mxu0
      %3033 = vmatprep.mubr.f32.mxu0 0.0
      %3034 = vmatmul.mubr.f32.gmra.mxu0 %v1279
      %v3035 = vpop.f32.mrf.mxu0
      %v3036 = vadd.f32 0.0, %v3035
      %v3037 = vpop.f32.mrf.mxu0
      %3038 = vmatprep.mubr.f32.mxu0 0.0
      %3039 = vmatmul.mubr.f32.gmra.mxu0 %v1281
      %v3040 = vpop.f32.mrf.mxu0
      %v3041 = vadd.f32 0.0, %v3040
      %v3042 = vpop.f32.mrf.mxu0
      %3043 = vmatprep.mubr.f32.mxu0 0.0
      %3044 = vmatmul.mubr.f32.gmra.mxu0 %v1283
      %v3045 = vpop.f32.mrf.mxu0
      %v3046 = vadd.f32 0.0, %v3045
      %v3047 = vpop.f32.mrf.mxu0
      %3048 = vmatprep.mubr.f32.mxu0 0.0
      %3049 = vmatmul.mubr.f32.gmra.mxu0 %v1285
      %v3050 = vpop.f32.mrf.mxu0
      %v3051 = vadd.f32 0.0, %v3050
      %v3052 = vpop.f32.mrf.mxu0
      %3053 = vmatprep.mubr.f32.mxu0 0.0
      %3054 = vmatmul.mubr.f32.gmra.mxu0 %v1287
      %v3055 = vpop.f32.mrf.mxu0
      %v3056 = vadd.f32 0.0, %v3055
      %v3057 = vpop.f32.mrf.mxu0
      %3058 = vmatprep.mubr.f32.mxu0 0.0
      %3059 = vmatmul.mubr.f32.gmra.mxu0 %v1289
      %v3060 = vpop.f32.mrf.mxu0
      %v3061 = vadd.f32 0.0, %v3060
      %v3062 = vpop.f32.mrf.mxu0
      %3063 = vmatprep.mubr.f32.mxu0 0.0
      %3064 = vmatmul.mubr.f32.gmra.mxu0 %v1291
      %v3065 = vpop.f32.mrf.mxu0
      %v3066 = vadd.f32 0.0, %v3065
      %v3067 = vpop.f32.mrf.mxu0
      %3068 = vmatprep.mubr.f32.mxu0 0.0
      %3069 = vmatmul.mubr.f32.gmra.mxu0 %v1293
      %v3070 = vpop.f32.mrf.mxu0
      %v3071 = vadd.f32 0.0, %v3070
      %v3072 = vpop.f32.mrf.mxu0
      %3073 = vmatprep.mubr.f32.mxu0 0.0
      %3074 = vmatmul.mubr.f32.gmra.mxu0 %v1295
      %v3075 = vpop.f32.mrf.mxu0
      %v3076 = vadd.f32 0.0, %v3075
      %v3077 = vpop.f32.mrf.mxu0
      %3078 = vmatprep.mubr.f32.mxu0 0.0
      %3079 = vmatmul.mubr.f32.gmra.mxu0 %v1297
      %v3080 = vpop.f32.mrf.mxu0
      %v3081 = vadd.f32 0.0, %v3080
      %v3082 = vpop.f32.mrf.mxu0
      %3083 = vmatprep.mubr.f32.mxu0 0.0
      %3084 = vmatmul.mubr.f32.gmra.mxu0 %v1299
      %v3085 = vpop.f32.mrf.mxu0
      %v3086 = vadd.f32 0.0, %v3085
      %v3087 = vpop.f32.mrf.mxu0
      %3088 = vmatprep.mubr.f32.mxu0 0.0
      %3089 = vmatmul.mubr.f32.gmra.mxu0 %v1301
      %v3090 = vpop.f32.mrf.mxu0
      %v3091 = vadd.f32 0.0, %v3090
      %v3092 = vpop.f32.mrf.mxu0
      %3093 = vmatprep.mubr.f32.mxu0 0.0
      %3094 = vmatmul.mubr.f32.gmra.mxu0 %v1303
      %v3095 = vpop.f32.mrf.mxu0
      %v3096 = vadd.f32 0.0, %v3095
      %v3097 = vpop.f32.mrf.mxu0
      %3098 = vmatprep.mubr.f32.mxu0 0.0
      %3099 = vmatmul.mubr.f32.gmra.mxu0 %v1305
      %v3100 = vpop.f32.mrf.mxu0
      %v3101 = vadd.f32 0.0, %v3100
      %v3102 = vpop.f32.mrf.mxu0
      %3103 = vmatprep.mubr.f32.mxu0 0.0
      %3104 = vmatmul.mubr.f32.gmra.mxu0 %v1307
      %v3105 = vpop.f32.mrf.mxu0
      %v3106 = vadd.f32 0.0, %v3105
      %v3107 = vpop.f32.mrf.mxu0
      %3108 = vmatprep.mubr.f32.mxu0 0.0
      %3109 = vmatmul.mubr.f32.gmra.mxu0 %v1309
      %v3110 = vpop.f32.mrf.mxu0
      %v3111 = vadd.f32 0.0, %v3110
      %v3112 = vpop.f32.mrf.mxu0
      %3113 = vmatprep.mubr.f32.mxu0 0.0
      %3114 = vmatmul.mubr.f32.gmra.mxu0 %v1311
      %v3115 = vpop.f32.mrf.mxu0
      %v3116 = vadd.f32 0.0, %v3115
      %v3117 = vpop.f32.mrf.mxu0
      %3118 = vmatprep.mubr.f32.mxu0 0.0
      %3119 = vmatmul.mubr.f32.gmra.mxu0 %v1313
      %v3120 = vpop.f32.mrf.mxu0
      %v3121 = vadd.f32 0.0, %v3120
      %v3122 = vpop.f32.mrf.mxu0
      %3123 = vmatprep.mubr.f32.mxu0 0.0
      %3124 = vmatmul.mubr.f32.gmra.mxu0 %v1315
      %v3125 = vpop.f32.mrf.mxu0
      %v3126 = vadd.f32 0.0, %v3125
      %v3127 = vpop.f32.mrf.mxu0
      %3128 = vmatprep.mubr.f32.mxu0 0.0
      %3129 = vmatmul.mubr.f32.gmra.mxu0 %v1317
      %v3130 = vpop.f32.mrf.mxu0
      %v3131 = vadd.f32 0.0, %v3130
      %v3132 = vpop.f32.mrf.mxu0
      %3133 = vmatprep.mubr.f32.mxu0 0.0
      %3134 = vmatmul.mubr.f32.gmra.mxu0 %v1319
      %v3135 = vpop.f32.mrf.mxu0
      %v3136 = vadd.f32 0.0, %v3135
      %v3137 = vpop.f32.mrf.mxu0
      %3138 = vmatprep.mubr.f32.mxu0 0.0
      %3139 = vmatmul.mubr.f32.gmra.mxu0 %v1321
      %v3140 = vpop.f32.mrf.mxu0
      %v3141 = vadd.f32 0.0, %v3140
      %v3142 = vpop.f32.mrf.mxu0
      %3143 = vmatprep.mubr.f32.mxu0 0.0
      %3144 = vmatmul.mubr.f32.gmra.mxu0 %v1323
      %v3145 = vpop.f32.mrf.mxu0
      %v3146 = vadd.f32 0.0, %v3145
      %v3147 = vpop.f32.mrf.mxu0
      %3148 = vmatprep.mubr.f32.mxu0 0.0
      %3149 = vmatmul.mubr.f32.gmra.mxu0 %v1325
      %v3150 = vpop.f32.mrf.mxu0
      %v3151 = vadd.f32 0.0, %v3150
      %v3152 = vpop.f32.mrf.mxu0
      %3153 = vmatprep.mubr.f32.mxu0 0.0
      %3154 = vmatmul.mubr.f32.gmra.mxu0 %v1327
      %v3155 = vpop.f32.mrf.mxu0
      %v3156 = vadd.f32 0.0, %v3155
      %v3157 = vpop.f32.mrf.mxu0
      %3158 = vmatprep.mubr.f32.mxu0 0.0
      %3159 = vmatmul.mubr.f32.gmra.mxu0 %v2136
      %v3160 = vpop.f32.mrf.mxu0
      %v3161 = vadd.f32 0.0, %v3160
      %v3162 = vpop.f32.mrf.mxu0
      %3163 = vmatprep.mubr.f32.mxu0 0.0
      %3164 = vmatmul.mubr.f32.gmra.mxu0 %v2138
      %v3165 = vpop.f32.mrf.mxu0
      %v3166 = vadd.f32 0.0, %v3165
      %v3167 = vpop.f32.mrf.mxu0
      %3168 = vmatprep.mubr.f32.mxu0 0.0
      %3169 = vmatmul.mubr.f32.gmra.mxu0 %v2947
      %v3170 = vpop.f32.mrf.mxu0
      %v3171 = vadd.f32 0.0, %v3170
      %v3172 = vpop.f32.mrf.mxu0
      %3173 = vmatprep.mubr.f32.mxu0 0.0
      %3174 = vmatmul.mubr.f32.gmra.mxu0 %v2949
      %v3175 = vpop.f32.mrf.mxu0
      %v3176 = vadd.f32 0.0, %v3175
      %v3177 = vpop.f32.mrf.mxu0
      %3178 = vdwg.mxu0
      %v3179 = vadd.f32 %v2908, %v3021
      %v3180 = vadd.f32 %v2909, %v3026
      %v3181 = vadd.f32 %v2910, %v3031
      %v3182 = vadd.f32 %v2911, %v3036
      %v3183 = vadd.f32 %v2912, %v3041
      %v3184 = vadd.f32 %v2913, %v3046
      %v3185 = vadd.f32 %v2914, %v3051
      %v3186 = vadd.f32 %v2915, %v3056
      %v3187 = vadd.f32 %v2916, %v3061
      %v3188 = vadd.f32 %v2917, %v3066
      %v3189 = vadd.f32 %v2918, %v3071
      %v3190 = vadd.f32 %v2919, %v3076
      %v3191 = vadd.f32 %v2920, %v3081
      %v3192 = vadd.f32 %v2921, %v3086
      %v3193 = vadd.f32 %v2922, %v3091
      %v3194 = vadd.f32 %v2923, %v3096
      %v3195 = vadd.f32 %v2924, %v3101
      %v3196 = vadd.f32 %v2925, %v3106
      %v3197 = vadd.f32 %v2926, %v3111
      %v3198 = vadd.f32 %v2927, %v3116
      %v3199 = vadd.f32 %v2928, %v3121
      %v3200 = vadd.f32 %v2929, %v3126
      %v3201 = vadd.f32 %v2930, %v3131
      %v3202 = vadd.f32 %v2931, %v3136
      %v3203 = vadd.f32 %v2932, %v3141
      %v3204 = vadd.f32 %v2933, %v3146
      %v3205 = vadd.f32 %v2934, %v3151
      %v3206 = vadd.f32 %v2935, %v3156
      %v3207 = vadd.f32 %v2936, %v3161
      %v3208 = vadd.f32 %v2937, %v3166
      %v3209 = vadd.f32 %v2938, %v3171
      %v3210 = vadd.f32 %v2939, %v3176
      %v3211 = vld [vmem:[%s4] sm:$0x1]
      %v3213 = vlaneseq
      %v3214 = vshrl.u32 %v3213, 7
      %v3215 = vsub.s32 0, %v3214
      %v3216 = vrot.slane %v3211, %v3215
      %v3218 = vmul.f32 %v3179, %v3216
      %v3219 = vmul.f32 %v3180, %v3216
      %v3220 = vmul.f32 %v3181, %v3216
      %v3221 = vmul.f32 %v3182, %v3216
      %v3222 = vmul.f32 %v3183, %v3216
      %v3223 = vmul.f32 %v3184, %v3216
      %v3224 = vmul.f32 %v3185, %v3216
      %v3225 = vmul.f32 %v3186, %v3216
      %v3226 = vmul.f32 %v3187, %v3216
      %v3227 = vmul.f32 %v3188, %v3216
      %v3228 = vmul.f32 %v3189, %v3216
      %v3229 = vmul.f32 %v3190, %v3216
      %v3230 = vmul.f32 %v3191, %v3216
      %v3231 = vmul.f32 %v3192, %v3216
      %v3232 = vmul.f32 %v3193, %v3216
      %v3233 = vmul.f32 %v3194, %v3216
      %v3234 = vmul.f32 %v3195, %v3216
      %v3235 = vmul.f32 %v3196, %v3216
      %v3236 = vmul.f32 %v3197, %v3216
      %v3237 = vmul.f32 %v3198, %v3216
      %v3238 = vmul.f32 %v3199, %v3216
      %v3239 = vmul.f32 %v3200, %v3216
      %v3240 = vmul.f32 %v3201, %v3216
      %v3241 = vmul.f32 %v3202, %v3216
      %v3242 = vmul.f32 %v3203, %v3216
      %v3243 = vmul.f32 %v3204, %v3216
      %v3244 = vmul.f32 %v3205, %v3216
      %v3245 = vmul.f32 %v3206, %v3216
      %v3246 = vmul.f32 %v3207, %v3216
      %v3247 = vmul.f32 %v3208, %v3216
      %v3248 = vmul.f32 %v3209, %v3216
      %v3249 = vmul.f32 %v3210, %v3216
      %v3250 = vld [vmem:[%s5] sm:$0x1]
      %v3252 = vlaneseq
      %v3253 = vshrl.u32 %v3252, 7
      %v3254 = vsub.s32 0, %v3253
      %v3255 = vrot.slane %v3250, %v3254
      %v3257 = vadd.f32 %v3218, %v3255
      %v3258 = vadd.f32 %v3219, %v3255
      %v3259 = vadd.f32 %v3220, %v3255
      %v3260 = vadd.f32 %v3221, %v3255
      %v3261 = vadd.f32 %v3222, %v3255
      %v3262 = vadd.f32 %v3223, %v3255
      %v3263 = vadd.f32 %v3224, %v3255
      %v3264 = vadd.f32 %v3225, %v3255
      %v3265 = vadd.f32 %v3226, %v3255
      %v3266 = vadd.f32 %v3227, %v3255
      %v3267 = vadd.f32 %v3228, %v3255
      %v3268 = vadd.f32 %v3229, %v3255
      %v3269 = vadd.f32 %v3230, %v3255
      %v3270 = vadd.f32 %v3231, %v3255
      %v3271 = vadd.f32 %v3232, %v3255
      %v3272 = vadd.f32 %v3233, %v3255
      %v3273 = vadd.f32 %v3234, %v3255
      %v3274 = vadd.f32 %v3235, %v3255
      %v3275 = vadd.f32 %v3236, %v3255
      %v3276 = vadd.f32 %v3237, %v3255
      %v3277 = vadd.f32 %v3238, %v3255
      %v3278 = vadd.f32 %v3239, %v3255
      %v3279 = vadd.f32 %v3240, %v3255
      %v3280 = vadd.f32 %v3241, %v3255
      %v3281 = vadd.f32 %v3242, %v3255
      %v3282 = vadd.f32 %v3243, %v3255
      %v3283 = vadd.f32 %v3244, %v3255
      %v3284 = vadd.f32 %v3245, %v3255
      %v3285 = vadd.f32 %v3246, %v3255
      %v3286 = vadd.f32 %v3247, %v3255
      %v3287 = vadd.f32 %v3248, %v3255
      %v3288 = vadd.f32 %v3249, %v3255
      %vm3289 = vcmp.gt.f32.partialorder %v3257, 0.0
      %vm3290 = vcmp.gt.f32.partialorder %v3258, 0.0
      %vm3291 = vcmp.gt.f32.partialorder %v3259, 0.0
      %vm3292 = vcmp.gt.f32.partialorder %v3260, 0.0
      %vm3293 = vcmp.gt.f32.partialorder %v3261, 0.0
      %vm3294 = vcmp.gt.f32.partialorder %v3262, 0.0
      %vm3295 = vcmp.gt.f32.partialorder %v3263, 0.0
      %vm3296 = vcmp.gt.f32.partialorder %v3264, 0.0
      %vm3297 = vcmp.gt.f32.partialorder %v3265, 0.0
      %vm3298 = vcmp.gt.f32.partialorder %v3266, 0.0
      %vm3299 = vcmp.gt.f32.partialorder %v3267, 0.0
      %vm3300 = vcmp.gt.f32.partialorder %v3268, 0.0
      %vm3301 = vcmp.gt.f32.partialorder %v3269, 0.0
      %vm3302 = vcmp.gt.f32.partialorder %v3270, 0.0
      %vm3303 = vcmp.gt.f32.partialorder %v3271, 0.0
      %vm3304 = vcmp.gt.f32.partialorder %v3272, 0.0
      %vm3305 = vcmp.gt.f32.partialorder %v3273, 0.0
      %vm3306 = vcmp.gt.f32.partialorder %v3274, 0.0
      %vm3307 = vcmp.gt.f32.partialorder %v3275, 0.0
      %vm3308 = vcmp.gt.f32.partialorder %v3276, 0.0
      %vm3309 = vcmp.gt.f32.partialorder %v3277, 0.0
      %vm3310 = vcmp.gt.f32.partialorder %v3278, 0.0
      %vm3311 = vcmp.gt.f32.partialorder %v3279, 0.0
      %vm3312 = vcmp.gt.f32.partialorder %v3280, 0.0
      %vm3313 = vcmp.gt.f32.partialorder %v3281, 0.0
      %vm3314 = vcmp.gt.f32.partialorder %v3282, 0.0
      %vm3315 = vcmp.gt.f32.partialorder %v3283, 0.0
      %vm3316 = vcmp.gt.f32.partialorder %v3284, 0.0
      %vm3317 = vcmp.gt.f32.partialorder %v3285, 0.0
      %vm3318 = vcmp.gt.f32.partialorder %v3286, 0.0
      %vm3319 = vcmp.gt.f32.partialorder %v3287, 0.0
      %vm3320 = vcmp.gt.f32.partialorder %v3288, 0.0
      %v3321 = vmul.f32 %v3257, 0.01
      %v3322 = vmul.f32 %v3258, 0.01
      %v3323 = vmul.f32 %v3259, 0.01
      %v3324 = vmul.f32 %v3260, 0.01
      %v3325 = vmul.f32 %v3261, 0.01
      %v3326 = vmul.f32 %v3262, 0.01
      %v3327 = vmul.f32 %v3263, 0.01
      %v3328 = vmul.f32 %v3264, 0.01
      %v3329 = vmul.f32 %v3265, 0.01
      %v3330 = vmul.f32 %v3266, 0.01
      %v3331 = vmul.f32 %v3267, 0.01
      %v3332 = vmul.f32 %v3268, 0.01
      %v3333 = vmul.f32 %v3269, 0.01
      %v3334 = vmul.f32 %v3270, 0.01
      %v3335 = vmul.f32 %v3271, 0.01
      %v3336 = vmul.f32 %v3272, 0.01
      %v3337 = vmul.f32 %v3273, 0.01
      %v3338 = vmul.f32 %v3274, 0.01
      %v3339 = vmul.f32 %v3275, 0.01
      %v3340 = vmul.f32 %v3276, 0.01
      %v3341 = vmul.f32 %v3277, 0.01
      %v3342 = vmul.f32 %v3278, 0.01
      %v3343 = vmul.f32 %v3279, 0.01
      %v3344 = vmul.f32 %v3280, 0.01
      %v3345 = vmul.f32 %v3281, 0.01
      %v3346 = vmul.f32 %v3282, 0.01
      %v3347 = vmul.f32 %v3283, 0.01
      %v3348 = vmul.f32 %v3284, 0.01
      %v3349 = vmul.f32 %v3285, 0.01
      %v3350 = vmul.f32 %v3286, 0.01
      %v3351 = vmul.f32 %v3287, 0.01
      %v3352 = vmul.f32 %v3288, 0.01
      %v3353 = vsel %vm3289, %v3257, %v3321
      %v3354 = vsel %vm3290, %v3258, %v3322
      %v3355 = vsel %vm3291, %v3259, %v3323
      %v3356 = vsel %vm3292, %v3260, %v3324
      %v3357 = vsel %vm3293, %v3261, %v3325
      %v3358 = vsel %vm3294, %v3262, %v3326
      %v3359 = vsel %vm3295, %v3263, %v3327
      %v3360 = vsel %vm3296, %v3264, %v3328
      %v3361 = vsel %vm3297, %v3265, %v3329
      %v3362 = vsel %vm3298, %v3266, %v3330
      %v3363 = vsel %vm3299, %v3267, %v3331
      %v3364 = vsel %vm3300, %v3268, %v3332
      %v3365 = vsel %vm3301, %v3269, %v3333
      %v3366 = vsel %vm3302, %v3270, %v3334
      %v3367 = vsel %vm3303, %v3271, %v3335
      %v3368 = vsel %vm3304, %v3272, %v3336
      %v3369 = vsel %vm3305, %v3273, %v3337
      %v3370 = vsel %vm3306, %v3274, %v3338
      %v3371 = vsel %vm3307, %v3275, %v3339
      %v3372 = vsel %vm3308, %v3276, %v3340
      %v3373 = vsel %vm3309, %v3277, %v3341
      %v3374 = vsel %vm3310, %v3278, %v3342
      %v3375 = vsel %vm3311, %v3279, %v3343
      %v3376 = vsel %vm3312, %v3280, %v3344
      %v3377 = vsel %vm3313, %v3281, %v3345
      %v3378 = vsel %vm3314, %v3282, %v3346
      %v3379 = vsel %vm3315, %v3283, %v3347
      %v3380 = vsel %vm3316, %v3284, %v3348
      %v3381 = vsel %vm3317, %v3285, %v3349
      %v3382 = vsel %vm3318, %v3286, %v3350
      %v3383 = vsel %vm3319, %v3287, %v3351
      %v3384 = vsel %vm3320, %v3288, %v3352
      %3385 = vst [vmem:[%s407] sm:$0xff] %v3353
      %3386 = vst [vmem:[%s407 + $0x8] sm:$0xff] %v3354
      %3387 = vst [vmem:[%s407 + $0x10] sm:$0xff] %v3355
      %3388 = vst [vmem:[%s407 + $0x18] sm:$0xff] %v3356
      %3389 = vst [vmem:[%s407 + $0x20] sm:$0xff] %v3357
      %3390 = vst [vmem:[%s407 + $0x28] sm:$0xff] %v3358
      %3391 = vst [vmem:[%s407 + $0x30] sm:$0xff] %v3359
      %3392 = vst [vmem:[%s407 + $0x38] sm:$0xff] %v3360
      %3393 = vst [vmem:[%s407 + $0x40] sm:$0xff] %v3361
      %3394 = vst [vmem:[%s407 + $0x48] sm:$0xff] %v3362
      %3395 = vst [vmem:[%s407 + $0x50] sm:$0xff] %v3363
      %3396 = vst [vmem:[%s407 + $0x58] sm:$0xff] %v3364
      %3397 = vst [vmem:[%s407 + $0x60] sm:$0xff] %v3365
      %3398 = vst [vmem:[%s407 + $0x68] sm:$0xff] %v3366
      %3399 = vst [vmem:[%s407 + $0x70] sm:$0xff] %v3367
      %3400 = vst [vmem:[%s407 + $0x78] sm:$0xff] %v3368
      %3401 = vst [vmem:[%s407 + $0x80] sm:$0xff] %v3369
      %3402 = vst [vmem:[%s407 + $0x88] sm:$0xff] %v3370
      %3403 = vst [vmem:[%s407 + $0x90] sm:$0xff] %v3371
      %3404 = vst [vmem:[%s407 + $0x98] sm:$0xff] %v3372
      %3405 = vst [vmem:[%s407 + $0xa0] sm:$0xff] %v3373
      %3406 = vst [vmem:[%s407 + $0xa8] sm:$0xff] %v3374
      %3407 = vst [vmem:[%s407 + $0xb0] sm:$0xff] %v3375
      %3408 = vst [vmem:[%s407 + $0xb8] sm:$0xff] %v3376
      %3409 = vst [vmem:[%s407 + $0xc0] sm:$0xff] %v3377
      %3410 = vst [vmem:[%s407 + $0xc8] sm:$0xff] %v3378
      %3411 = vst [vmem:[%s407 + $0xd0] sm:$0xff] %v3379
      %3412 = vst [vmem:[%s407 + $0xd8] sm:$0xff] %v3380
      %3413 = vst [vmem:[%s407 + $0xe0] sm:$0xff] %v3381
      %3414 = vst [vmem:[%s407 + $0xe8] sm:$0xff] %v3382
      %3415 = vst [vmem:[%s407 + $0xf0] sm:$0xff] %v3383
      %3416 = vst [vmem:[%s407 + $0xf8] sm:$0xff] %v3384
      %s3417 = sadd.s32 %s21, %s22
      %s3418 = smul.u32 32, %s3417
      %p3419 = scmp.lt.s32.totalorder %s3418, 63
      %s3420 = scalar_select %p3419, %s3418, 63
      %s3421 = smul.addr %s3420, 8
      %s3422 = scalar_lea.vmem %s6, %s3421
      // Predicated region
      $region45: #{up_conv_forward.3} parent=43 // pred_check
        %p3423 = pneg %p204
      $region46: #{up_conv_forward.3} parent=43 // pred_check_branch
        %3425 = sbr.rel (%p3423) target = $region48
      $region47: #{up_conv_forward.3} parent=43 // pred_region
        %s3426 = sadd.s32 %s21, %s22
        %s3427 = smul.u32 32, %s3426
      $region48: #{up_conv_forward.3} parent=43 // pred_fallthru
        _
    $region44: #{up_conv_forward.3} parent=5 // pred_fallthru
      _
    %p3428 = scmp.le.s32.totalorder 2, %s12
    // Predicated region
    $region49: #{up_conv_forward.3} parent=5 // pred_check
      %p3429 = pneg %p3428
    $region50: #{up_conv_forward.3} parent=5 // pred_check_branch
      %3431 = sbr.rel (%p3429) target = $region52
    $region51: #{up_conv_forward.3} parent=5 // pred_region
      %s3432 = ssub.s32 %s12, 2
      // Predicated region
      $region53: #{up_conv_forward.3} parent=51 // pred_check
        %p3433 = pneg %p210
      $region54: #{up_conv_forward.3} parent=51 // pred_check_branch
        %3435 = sbr.rel (%p3433) target = $region56
      $region55: #{up_conv_forward.3} parent=51 // pred_region
        %s3436 = sadd.s32 %s23, %s24
        %s3437 = smul.u32 32, %s3436
        %p3438 = scmp.lt.s32.totalorder %s3437, 63
        %s3439 = scalar_select %p3438, %s3437, 63
        %s3440 = smul.addr %s3439, 8
        %s3441 = scalar_lea.vmem %s6, %s3440
      $region56: #{up_conv_forward.3} parent=51 // pred_fallthru
        _
    $region52: #{up_conv_forward.3} parent=5 // pred_fallthru
      _
  $region6: #{up_conv_forward.3} parent=0 // loop_footer
    %s16 = sadd.s32 1, %s12
  $region7: #{up_conv_forward.3} parent=0 // loop_footer_branch
    %11 = sbr.rel target = $region3
  $region8: #{up_conv_forward.3} parent=0 // loop_exit
    _

</llo_original>
